<compile_context>
chip_gen: v7x
topology: tpu7x:2x2x1
jax: 0.10.0
libtpu: 0.0.40
codegen_flags: <defaults>
</compile_context>

<pallas_src>
import functools

import numpy as np
import jax
import jax.numpy as jnp
from jax.experimental import pallas as pl
from jax.experimental.pallas import tpu as pltpu


# ----------------------------------------------------------------------------
# Fused Pallas kernel
# ----------------------------------------------------------------------------

def _msrvq_fused_kernel(z_ref, in_w_ref, in_b_ref, pool_ref, cbnt_ref, cb_ref,
                        interp_ref, tapmask_ref, phi_w_ref, phi_b_ref,
                        bmean_ref, out_w_ref, out_b_ref,
                        zq_ref, idx_ref, lat_ref, loss_ref,
                        *, n_q, ks, K, resi_ratio, use_phi):
    f32 = jnp.float32
    n_rows = z_ref.shape[0]                 # B * T  (channel-last slab rows)
    dc = in_w_ref.shape[2]                  # codebook_dim
    k_pad = cb_ref.shape[1]                 # lane-padded codebook size
    pad = ks // 2
    n_b = bmean_ref.shape[0]

    residual = z_ref[...]                   # (BT, D)
    zq_acc = jnp.zeros_like(residual)
    tapmask = tapmask_ref[...]              # (BT, ks*Dc) im2col validity mask
    bmean = bmean_ref[...]                  # (B, BT)   per-batch mean weights

    col = jax.lax.broadcasted_iota(jnp.int32, (n_rows, k_pad), 1)
    # Padded codebook rows must never win: real cosine scores lie in [-1, 1].
    pad_penalty = jnp.where(col < K, 0.0, -4.0).astype(f32)

    idx_acc = jnp.zeros((n_q, n_rows), jnp.int32)
    lat_acc = jnp.zeros((n_q, n_rows, dc), f32)
    loss_acc = jnp.zeros((n_b, n_q), f32)

    for i in range(n_q):                    # static unroll: n_q is tiny
        # ---- 1x1 in_proj (weight-norm conv folded into effective weight) ----
        z_e = jnp.dot(residual, in_w_ref[i],
                      preferred_element_type=f32) + in_b_ref[i]        # (BT, Dc)
        # ---- area pooling over T (block-diag matrix, zero-padded slots) ----
        enc = jnp.dot(pool_ref[i], z_e, preferred_element_type=f32)    # (BT, Dc)
        # ---- VQ: cosine similarity against pre-normalized codebook ----
        nrm = jnp.sqrt(jnp.sum(enc * enc, axis=1, keepdims=True))
        enc_n = enc / jnp.maximum(nrm, 1e-12)                          # F.normalize
        score = jnp.dot(enc_n, cbnt_ref[i],
                        preferred_element_type=f32) + pad_penalty      # (BT, Kp)
        best = jnp.max(score, axis=1, keepdims=True)
        idx = jnp.min(jnp.where(score >= best, col, k_pad), axis=1)    # first argmax
        onehot = (idx[:, None] == col).astype(f32)
        zq_s = jnp.dot(onehot, cb_ref[i], preferred_element_type=f32)  # raw codes
        # ---- linear interp back to T (zero rows kill padded slots) ----
        h = jnp.dot(interp_ref[i], zq_s, preferred_element_type=f32)   # (BT, Dc)
        # ---- Phi: ks-tap conv as ONE im2col matmul, residual-blended ----
        if use_phi:
            zp = ((pad + 7) // 8) * 8       # 8-aligned zero padding rows
            zpad = jnp.zeros((zp, dc), f32)
            hp = jnp.concatenate([zpad, h, zpad], axis=0)              # (BT+2zp, Dc)
            base = zp - pad
            cols = jnp.concatenate(
                [hp[base + k: base + k + n_rows, :] for k in range(ks)],
                axis=1) * tapmask                                      # (BT, ks*Dc)
            conv = jnp.dot(cols, phi_w_ref[i],
                           preferred_element_type=f32) + phi_b_ref[i]
            z_q = h * (1.0 - resi_ratio) + conv * resi_ratio
        else:
            z_q = h
        # ---- commitment / codebook loss (identical forward values) ----
        d = z_e - z_q
        per_b = jnp.dot(bmean, d * d, preferred_element_type=f32)      # (B, Dc)
        lb = jnp.sum(per_b, axis=1, keepdims=True)                     # (B, 1)
        # ---- straight-through is identity in fwd; 1x1 out_proj ----
        zq_i = jnp.dot(z_q, out_w_ref[i],
                       preferred_element_type=f32) + out_b_ref[i]      # (BT, D)
        zq_acc = zq_acc + zq_i
        residual = residual - zq_i
        # ---- scatter this quantizer's slabs into the stacked outputs ----
        qsel = jax.lax.broadcasted_iota(jnp.int32, (n_q, 1), 0) == i   # (n_q, 1)
        idx_acc = idx_acc + jnp.where(qsel, idx[None, :], 0)
        lat_acc = lat_acc + z_e[None] * qsel.astype(f32)[:, :, None]
        lsel = (jax.lax.broadcasted_iota(jnp.int32, (1, n_q), 1) == i).astype(f32)
        loss_acc = loss_acc + lb * lsel

    zq_ref[...] = zq_acc
    idx_ref[...] = idx_acc
    lat_ref[...] = lat_acc
    loss_ref[...] = loss_acc


# ----------------------------------------------------------------------------
# Trace-time constants (numpy) and parameter packing
# ----------------------------------------------------------------------------

def area_pool_matrix(t_in, t_out):
    """F.interpolate(mode='area') == adaptive_avg_pool1d, as (t_in, t_out)."""
    P = np.zeros((t_in, t_out), np.float32)
    for j in range(t_out):
        s = (j * t_in) // t_out
        e = -((-(j + 1) * t_in) // t_out)   # ceil((j+1)*t_in/t_out)
        P[s:e, j] = 1.0 / (e - s)
    return P


def linear_interp_matrix(t_in, t_out):
    """F.interpolate(mode='linear', align_corners=False) as (t_in, t_out)."""
    L = np.zeros((t_in, t_out), np.float32)
    ratio = t_in / t_out
    for j in range(t_out):
        src = ratio * (j + 0.5) - 0.5
        src = max(src, 0.0)
        i0 = min(int(np.floor(src)), t_in - 1)
        lam = src - i0
        i1 = min(i0 + 1, t_in - 1)
        L[i0, j] += 1.0 - lam
        L[i1, j] += lam
    return L


def _build_consts(B, T, Dc, scale_factors, ks):
    n_q = len(scale_factors)
    BT = B * T
    eye_b = np.eye(B, dtype=np.float32)
    pool = np.zeros((n_q, BT, BT), np.float32)
    interp = np.zeros((n_q, BT, BT), np.float32)
    scales = []
    for i, sf in enumerate(scale_factors):
        S = int(sf * T)
        S += 1 if S == 0 else 0
        if S > T:
            raise ValueError("scale_factor > 1 not supported by the padded layout")
        scales.append(S)
        Ppad = np.zeros((T, T), np.float32)
        Ppad[:, :S] = area_pool_matrix(T, S)          # (T, S)
        Ipad = np.zeros((T, T), np.float32)
        Ipad[:S, :] = linear_interp_matrix(S, T)      # (S, T)
        pool[i] = np.kron(eye_b, Ppad.T)              # (BT, BT) block-diag
        interp[i] = np.kron(eye_b, Ipad.T)            # (BT, BT) block-diag
    pad = ks // 2
    tapmask = np.zeros((BT, ks * Dc), np.float32)
    for j in range(BT):
        t = j % T
        for k in range(ks):
            if 0 <= t + k - pad < T:                  # in-batch, in-range tap
                tapmask[j, k * Dc:(k + 1) * Dc] = 1.0
    bmean = np.zeros((B, BT), np.float32)
    for b in range(B):
        bmean[b, b * T:(b + 1) * T] = 1.0 / (T * Dc)
    return pool, interp, tapmask, bmean, scales


def _full_spec(shape):
    nd = len(shape)
    return pl.BlockSpec(tuple(shape), lambda i, _nd=nd: (0,) * _nd)


# ----------------------------------------------------------------------------
# Forward (one pallas_call for the whole module)
# ----------------------------------------------------------------------------

def multiscale_rvq_forward(z, quantizer_params, phi_list, scale_factors,
                           n_quantizers=None):
    # n_quantizers is unused in the reference forward loop as well.
    del n_quantizers
    B, D, T = z.shape
    n_q = len(scale_factors)
    K, Dc = quantizer_params[0]["codebook"].shape
    K_pad = ((K + 127) // 128) * 128                   # lane-pad the codebook
    use_phi = phi_list is not None and len(phi_list) > 0
    ks = int(phi_list[0]["w"].shape[0]) if use_phi else 1
    if use_phi:
        assert all(int(p["w"].shape[0]) == ks for p in phi_list), \
            "stacked Phi packing assumes a uniform kernel size"
    BT = B * T

    # Trace-time constants (baked under jit).
    pool_bd, interp_bd, tapmask, bmean, scales = _build_consts(
        B, T, Dc, scale_factors, ks)
    if use_phi:
        K_phi = len(phi_list)
        ticks = (np.linspace(1 / 3 / K_phi, 1 - 1 / 3 / K_phi, K_phi)
                 if K_phi == 4 else
                 np.linspace(1 / 2 / K_phi, 1 - 1 / 2 / K_phi, K_phi))
        phi_sel = [int(np.argmin(np.abs(ticks - i / float(n_q))))
                   for i in range(n_q)]
    else:
        phi_sel = []

    # Pack per-quantizer parameters into stacked operands.
    in_w = jnp.stack([jnp.transpose(q["in_w"]) for q in quantizer_params])    # (n_q, D, Dc)
    in_b = jnp.stack([q["in_b"][None, :] for q in quantizer_params])          # (n_q, 1, Dc)
    out_w = jnp.stack([jnp.transpose(q["out_w"]) for q in quantizer_params])  # (n_q, Dc, D)
    out_b = jnp.stack([q["out_b"][None, :] for q in quantizer_params])        # (n_q, 1, D)
    cb_pad_l, cb_nT_l = [], []
    for q in quantizer_params:
        cb = q["codebook"]                                                    # (K, Dc)
        cbn = cb / jnp.maximum(
            jnp.sqrt(jnp.sum(cb * cb, axis=1, keepdims=True)), 1e-12)
        cb_pad_l.append(jnp.pad(cb, ((0, K_pad - K), (0, 0))))
        cb_nT_l.append(jnp.pad(jnp.transpose(cbn), ((0, 0), (0, K_pad - K))))
    cb_pad = jnp.stack(cb_pad_l)                                              # (n_q, Kp, Dc)
    cb_nT = jnp.stack(cb_nT_l)                                                # (n_q, Dc, Kp)
    if use_phi:
        phi_w = jnp.stack(
            [jnp.transpose(phi_list[s]["w"], (0, 2, 1)).reshape(ks * Dc, Dc)
             for s in phi_sel])                                               # (n_q, ks*Dc, Dc)
        phi_b = jnp.stack([phi_list[s]["b"][None, :] for s in phi_sel])       # (n_q, 1, Dc)
    else:
        phi_w = jnp.zeros((n_q, ks * Dc, Dc), jnp.float32)
        phi_b = jnp.zeros((n_q, 1, Dc), jnp.float32)

    z_flat = jnp.transpose(z, (0, 2, 1)).reshape(BT, D)                       # channel-last

    inputs = (z_flat, in_w, in_b, jnp.asarray(pool_bd), cb_nT, cb_pad,
              jnp.asarray(interp_bd), jnp.asarray(tapmask), phi_w, phi_b,
              jnp.asarray(bmean), out_w, out_b)
    out_shapes = (
        jax.ShapeDtypeStruct((BT, D), jnp.float32),        # summed z_q
        jax.ShapeDtypeStruct((n_q, BT), jnp.int32),        # codebook indices
        jax.ShapeDtypeStruct((n_q, BT, Dc), jnp.float32),  # per-quantizer z_e
        jax.ShapeDtypeStruct((B, n_q), jnp.float32),       # per-batch MSE loss
    )
    kernel = functools.partial(_msrvq_fused_kernel, n_q=n_q, ks=ks, K=K,
                               resi_ratio=0.5, use_phi=use_phi)
    zq_flat, idx_all, lat_all, losses = pl.pallas_call(
        kernel,
        out_shape=out_shapes,
        grid=(1,),
        in_specs=[_full_spec(x.shape) for x in inputs],
        out_specs=tuple(_full_spec(s.shape) for s in out_shapes),
        compiler_params=pltpu.CompilerParams(
            dimension_semantics=("arbitrary",)),
    )(*inputs)

    z_q = jnp.transpose(zq_flat.reshape(B, T, D), (0, 2, 1))                  # (B, D, T)
    codes = [idx_all[i].reshape(B, T)[:, :scales[i]] for i in range(n_q)]
    latents = jnp.transpose(lat_all.reshape(n_q, B, T, Dc),
                            (1, 0, 3, 2)).reshape(B, n_q * Dc, T)
    commitment_loss = jnp.sum(jnp.mean(losses, axis=0))
    codebook_loss = commitment_loss        # identical forward value
    return z_q, codes, latents, commitment_loss, codebook_loss, 0


# ----------------------------------------------------------------------------
# Parameter initialization (deterministic test setup)
# ----------------------------------------------------------------------------

def init_params(key, input_dim, codebook_size, codebook_dim, n_codebooks,
                phi_kernel):
    n_keys = n_codebooks * 5 + len(phi_kernel) * 2
    keys = iter(jax.random.split(key, n_keys))
    quantizers = []
    for _ in range(n_codebooks):
        quantizers.append(dict(
            in_w=jax.random.normal(next(keys), (codebook_dim, input_dim),
                                   jnp.float32) / np.sqrt(input_dim),
            in_b=0.01 * jax.random.normal(next(keys), (codebook_dim,), jnp.float32),
            out_w=jax.random.normal(next(keys), (input_dim, codebook_dim),
                                    jnp.float32) / np.sqrt(codebook_dim),
            out_b=0.01 * jax.random.normal(next(keys), (input_dim,), jnp.float32),
            codebook=jax.random.normal(next(keys), (codebook_size, codebook_dim),
                                       jnp.float32),
        ))
    phis = []
    for ks in phi_kernel:
        phis.append(dict(
            w=jax.random.normal(next(keys), (ks, codebook_dim, codebook_dim),
                                jnp.float32) / np.sqrt(codebook_dim * ks),
            b=0.01 * jax.random.normal(next(keys), (codebook_dim,), jnp.float32),
        ))
    return quantizers, phis


if __name__ == "__main__":
    B, input_dim, T = 2, 32, 16
    codebook_size, codebook_dim = 64, 8
    scale_factors = [0.25, 0.5, 0.75, 1.0]
    phi_kernel = [9, 9, 9, 9, 9]

    key = jax.random.PRNGKey(0)
    k_z, k_p = jax.random.split(key)
    z = jax.random.normal(k_z, (B, input_dim, T), jnp.float32)
    qparams, phis = init_params(k_p, input_dim, codebook_size, codebook_dim,
                                len(scale_factors), phi_kernel)

    fwd = jax.jit(lambda zz: multiscale_rvq_forward(zz, qparams, phis,
                                                    scale_factors))
    out = fwd(z)
    z_q, codes, latents, commit_l, cb_l, _ = out

    for leaf in jax.tree_util.tree_leaves(out):
        if isinstance(leaf, jax.Array):
            jax.block_until_ready(leaf)

    assert z_q.shape == (B, input_dim, T)
    assert latents.shape == (B, len(scale_factors) * codebook_dim, T)
    assert [tuple(c.shape) for c in codes] == \
        [(B, int(s * T)) for s in scale_factors]
    print("KERNEL_OK")
</pallas_src>

<mosaic_0001>
module attributes {stable_mosaic.version = 11 : i64} {
  func.func @_msrvq_fused_kernel(%arg0: i32, %arg1: memref<32x32xf32, #tpu.memory_space<vmem>>, %arg2: memref<4x32x8xf32, #tpu.memory_space<vmem>>, %arg3: memref<4x1x8xf32, #tpu.memory_space<vmem>>, %arg4: memref<4x32x32xf32, #tpu.memory_space<vmem>>, %arg5: memref<4x8x128xf32, #tpu.memory_space<vmem>>, %arg6: memref<4x128x8xf32, #tpu.memory_space<vmem>>, %arg7: memref<4x32x32xf32, #tpu.memory_space<vmem>>, %arg8: memref<32x72xf32, #tpu.memory_space<vmem>>, %arg9: memref<4x72x8xf32, #tpu.memory_space<vmem>>, %arg10: memref<4x1x8xf32, #tpu.memory_space<vmem>>, %arg11: memref<2x32xf32, #tpu.memory_space<vmem>>, %arg12: memref<4x8x32xf32, #tpu.memory_space<vmem>>, %arg13: memref<4x1x32xf32, #tpu.memory_space<vmem>>, %arg14: memref<32x32xf32, #tpu.memory_space<vmem>>, %arg15: memref<4x32xi32, #tpu.memory_space<vmem>>, %arg16: memref<4x32x8xf32, #tpu.memory_space<vmem>>, %arg17: memref<2x4xf32, #tpu.memory_space<vmem>>) attributes {dimension_semantics = [#tpu.dimension_semantics<arbitrary>], iteration_bounds = array<i64: 1>, scalar_prefetch = 0 : i64, scratch_operands = 0 : i64, tpu.core_type = #tpu.core_type<tc>, window_params = [{pipeline_mode = #tpu.pipeline_mode<synchronous>, transform_indices = @transform_0, window_bounds = array<i64: 32, 32>}, {pipeline_mode = #tpu.pipeline_mode<synchronous>, transform_indices = @transform_1, window_bounds = array<i64: 4, 32, 8>}, {pipeline_mode = #tpu.pipeline_mode<synchronous>, transform_indices = @transform_2, window_bounds = array<i64: 4, 1, 8>}, {pipeline_mode = #tpu.pipeline_mode<synchronous>, transform_indices = @transform_3, window_bounds = array<i64: 4, 32, 32>}, {pipeline_mode = #tpu.pipeline_mode<synchronous>, transform_indices = @transform_4, window_bounds = array<i64: 4, 8, 128>}, {pipeline_mode = #tpu.pipeline_mode<synchronous>, transform_indices = @transform_5, window_bounds = array<i64: 4, 128, 8>}, {pipeline_mode = #tpu.pipeline_mode<synchronous>, transform_indices = @transform_6, window_bounds = array<i64: 4, 32, 32>}, {pipeline_mode = #tpu.pipeline_mode<synchronous>, transform_indices = @transform_7, window_bounds = array<i64: 32, 72>}, {pipeline_mode = #tpu.pipeline_mode<synchronous>, transform_indices = @transform_8, window_bounds = array<i64: 4, 72, 8>}, {pipeline_mode = #tpu.pipeline_mode<synchronous>, transform_indices = @transform_9, window_bounds = array<i64: 4, 1, 8>}, {pipeline_mode = #tpu.pipeline_mode<synchronous>, transform_indices = @transform_10, window_bounds = array<i64: 2, 32>}, {pipeline_mode = #tpu.pipeline_mode<synchronous>, transform_indices = @transform_11, window_bounds = array<i64: 4, 8, 32>}, {pipeline_mode = #tpu.pipeline_mode<synchronous>, transform_indices = @transform_12, window_bounds = array<i64: 4, 1, 32>}, {pipeline_mode = #tpu.pipeline_mode<synchronous>, transform_indices = @transform_13, window_bounds = array<i64: 32, 32>}, {pipeline_mode = #tpu.pipeline_mode<synchronous>, transform_indices = @transform_14, window_bounds = array<i64: 4, 32>}, {pipeline_mode = #tpu.pipeline_mode<synchronous>, transform_indices = @transform_15, window_bounds = array<i64: 4, 32, 8>}, {pipeline_mode = #tpu.pipeline_mode<synchronous>, transform_indices = @transform_16, window_bounds = array<i64: 2, 4>}]} {
    %c0 = arith.constant 0 : index
    %c0_0 = arith.constant 0 : index
    %0 = vector.load %arg1[%c0, %c0_0] : memref<32x32xf32, #tpu.memory_space<vmem>>, vector<32x32xf32>
    %cst = arith.constant 0.000000e+00 : f32
    %1 = vector.broadcast %cst : f32 to vector<32x32xf32>
    %c0_1 = arith.constant 0 : index
    %c0_2 = arith.constant 0 : index
    %2 = vector.load %arg8[%c0_1, %c0_2] : memref<32x72xf32, #tpu.memory_space<vmem>>, vector<32x72xf32>
    %c0_3 = arith.constant 0 : index
    %c0_4 = arith.constant 0 : index
    %3 = vector.load %arg11[%c0_3, %c0_4] : memref<2x32xf32, #tpu.memory_space<vmem>>, vector<2x32xf32>
    %4 = tpu.iota {dimensions = array<i32: 1>} : vector<32x128xi32>
    %c64_i32 = arith.constant 64 : i32
    %5 = vector.broadcast %c64_i32 : i32 to vector<32x128xi32>
    %6 = arith.cmpi slt, %4, %5 : vector<32x128xi32>
    %cst_5 = arith.constant 0.000000e+00 : f32
    %cst_6 = arith.constant -4.000000e+00 : f32
    %7 = vector.broadcast %cst_5 : f32 to vector<32x128xf32>
    %8 = vector.broadcast %cst_6 : f32 to vector<32x128xf32>
    %9 = arith.select %6, %7, %8 : vector<32x128xi1>, vector<32x128xf32>
    %c0_i32 = arith.constant 0 : i32
    %10 = vector.broadcast %c0_i32 : i32 to vector<4x32xi32>
    %cst_7 = arith.constant 0.000000e+00 : f32
    %11 = vector.broadcast %cst_7 : f32 to vector<4x32x8xf32>
    %cst_8 = arith.constant 0.000000e+00 : f32
    %12 = vector.broadcast %cst_8 : f32 to vector<2x4xf32>
    %c0_9 = arith.constant 0 : index
    %c0_10 = arith.constant 0 : index
    %c0_11 = arith.constant 0 : index
    %13 = vector.load %arg2[%c0_9, %c0_10, %c0_11] : memref<4x32x8xf32, #tpu.memory_space<vmem>>, vector<1x32x8xf32>
    %14 = vector.shape_cast %13 : vector<1x32x8xf32> to vector<32x8xf32>
    %cst_12 = arith.constant dense<0.000000e+00> : vector<32x8xf32>
    %15 = tpu.matmul %0, %14, %cst_12 {dimension_numbers = #tpu.dot_dimension_numbers<[1], [0], [0], [1], [0, 0, 1, 1], [], []>} : vector<32x32xf32>, vector<32x8xf32>, vector<32x8xf32> -> vector<32x8xf32>
    %c0_13 = arith.constant 0 : index
    %c0_14 = arith.constant 0 : index
    %c0_15 = arith.constant 0 : index
    %16 = vector.load %arg3[%c0_13, %c0_14, %c0_15] : memref<4x1x8xf32, #tpu.memory_space<vmem>>, vector<1x1x8xf32>
    %17 = vector.shape_cast %16 : vector<1x1x8xf32> to vector<1x8xf32>
    %18 = vector.broadcast %17 : vector<1x8xf32> to vector<32x8xf32>
    %19 = arith.addf %15, %18 : vector<32x8xf32>
    %c0_16 = arith.constant 0 : index
    %c0_17 = arith.constant 0 : index
    %c0_18 = arith.constant 0 : index
    %20 = vector.load %arg4[%c0_16, %c0_17, %c0_18] : memref<4x32x32xf32, #tpu.memory_space<vmem>>, vector<1x32x32xf32>
    %21 = vector.shape_cast %20 : vector<1x32x32xf32> to vector<32x32xf32>
    %cst_19 = arith.constant dense<0.000000e+00> : vector<32x8xf32>
    %22 = tpu.matmul %21, %19, %cst_19 {dimension_numbers = #tpu.dot_dimension_numbers<[1], [0], [0], [1], [0, 0, 1, 1], [], []>} : vector<32x32xf32>, vector<32x8xf32>, vector<32x8xf32> -> vector<32x8xf32>
    %23 = arith.mulf %22, %22 : vector<32x8xf32>
    %cst_20 = arith.constant dense<0.000000e+00> : vector<32xf32>
    %24 = vector.multi_reduction <add>, %23, %cst_20 [1] : vector<32x8xf32> to vector<32xf32>
    %25 = vector.shape_cast %24 : vector<32xf32> to vector<32x1xf32>
    %26 = math.sqrt %25 : vector<32x1xf32>
    %cst_21 = arith.constant 9.99999996E-13 : f32
    %27 = vector.broadcast %cst_21 : f32 to vector<32x1xf32>
    %28 = arith.maximumf %26, %27 : vector<32x1xf32>
    %29 = vector.broadcast %28 : vector<32x1xf32> to vector<32x8xf32>
    %30 = arith.divf %22, %29 : vector<32x8xf32>
    %c0_22 = arith.constant 0 : index
    %c0_23 = arith.constant 0 : index
    %c0_24 = arith.constant 0 : index
    %31 = vector.load %arg5[%c0_22, %c0_23, %c0_24] : memref<4x8x128xf32, #tpu.memory_space<vmem>>, vector<1x8x128xf32>
    %32 = vector.shape_cast %31 : vector<1x8x128xf32> to vector<8x128xf32>
    %cst_25 = arith.constant dense<0.000000e+00> : vector<32x128xf32>
    %33 = tpu.matmul %30, %32, %cst_25 {dimension_numbers = #tpu.dot_dimension_numbers<[1], [0], [0], [1], [0, 0, 1, 1], [], []>} : vector<32x8xf32>, vector<8x128xf32>, vector<32x128xf32> -> vector<32x128xf32>
    %34 = arith.addf %33, %9 : vector<32x128xf32>
    %cst_26 = arith.constant dense<0xFF800000> : vector<32xf32>
    %35 = vector.multi_reduction <maximumf>, %34, %cst_26 [1] : vector<32x128xf32> to vector<32xf32>
    %36 = vector.shape_cast %35 : vector<32xf32> to vector<32x1xf32>
    %37 = vector.broadcast %36 : vector<32x1xf32> to vector<32x128xf32>
    %38 = arith.cmpf oge, %34, %37 : vector<32x128xf32>
    %c128_i32 = arith.constant 128 : i32
    %39 = vector.broadcast %c128_i32 : i32 to vector<32x128xi32>
    %40 = arith.select %38, %4, %39 : vector<32x128xi1>, vector<32x128xi32>
    %cst_27 = arith.constant dense<2147483647> : vector<32xi32>
    %41 = vector.multi_reduction <minsi>, %40, %cst_27 [1] : vector<32x128xi32> to vector<32xi32>
    %42 = vector.shape_cast %41 : vector<32xi32> to vector<32x1xi32>
    %43 = vector.broadcast %42 : vector<32x1xi32> to vector<32x128xi32>
    %44 = arith.cmpi eq, %43, %4 : vector<32x128xi32>
    %45 = arith.extui %44 : vector<32x128xi1> to vector<32x128xi32>
    %46 = arith.sitofp %45 : vector<32x128xi32> to vector<32x128xf32>
    %c0_28 = arith.constant 0 : index
    %c0_29 = arith.constant 0 : index
    %c0_30 = arith.constant 0 : index
    %47 = vector.load %arg6[%c0_28, %c0_29, %c0_30] : memref<4x128x8xf32, #tpu.memory_space<vmem>>, vector<1x128x8xf32>
    %48 = vector.shape_cast %47 : vector<1x128x8xf32> to vector<128x8xf32>
    %cst_31 = arith.constant dense<0.000000e+00> : vector<32x8xf32>
    %49 = tpu.matmul %46, %48, %cst_31 {dimension_numbers = #tpu.dot_dimension_numbers<[1], [0], [0], [1], [0, 0, 1, 1], [], []>} : vector<32x128xf32>, vector<128x8xf32>, vector<32x8xf32> -> vector<32x8xf32>
    %c0_32 = arith.constant 0 : index
    %c0_33 = arith.constant 0 : index
    %c0_34 = arith.constant 0 : index
    %50 = vector.load %arg7[%c0_32, %c0_33, %c0_34] : memref<4x32x32xf32, #tpu.memory_space<vmem>>, vector<1x32x32xf32>
    %51 = vector.shape_cast %50 : vector<1x32x32xf32> to vector<32x32xf32>
    %cst_35 = arith.constant dense<0.000000e+00> : vector<32x8xf32>
    %52 = tpu.matmul %51, %49, %cst_35 {dimension_numbers = #tpu.dot_dimension_numbers<[1], [0], [0], [1], [0, 0, 1, 1], [], []>} : vector<32x32xf32>, vector<32x8xf32>, vector<32x8xf32> -> vector<32x8xf32>
    %cst_36 = arith.constant 0.000000e+00 : f32
    %53 = vector.broadcast %cst_36 : f32 to vector<8x8xf32>
    %54 = tpu.concatenate %53, %52, %53 in 0 : vector<8x8xf32>, vector<32x8xf32>, vector<8x8xf32> -> vector<48x8xf32>
    %55 = vector.extract_strided_slice %54 {offsets = [4, 0], sizes = [32, 8], strides = [1, 1]} : vector<48x8xf32> to vector<32x8xf32>
    %56 = vector.extract_strided_slice %54 {offsets = [5, 0], sizes = [32, 8], strides = [1, 1]} : vector<48x8xf32> to vector<32x8xf32>
    %57 = vector.extract_strided_slice %54 {offsets = [6, 0], sizes = [32, 8], strides = [1, 1]} : vector<48x8xf32> to vector<32x8xf32>
    %58 = vector.extract_strided_slice %54 {offsets = [7, 0], sizes = [32, 8], strides = [1, 1]} : vector<48x8xf32> to vector<32x8xf32>
    %59 = vector.extract_strided_slice %54 {offsets = [8, 0], sizes = [32, 8], strides = [1, 1]} : vector<48x8xf32> to vector<32x8xf32>
    %60 = vector.extract_strided_slice %54 {offsets = [9, 0], sizes = [32, 8], strides = [1, 1]} : vector<48x8xf32> to vector<32x8xf32>
    %61 = vector.extract_strided_slice %54 {offsets = [10, 0], sizes = [32, 8], strides = [1, 1]} : vector<48x8xf32> to vector<32x8xf32>
    %62 = vector.extract_strided_slice %54 {offsets = [11, 0], sizes = [32, 8], strides = [1, 1]} : vector<48x8xf32> to vector<32x8xf32>
    %63 = vector.extract_strided_slice %54 {offsets = [12, 0], sizes = [32, 8], strides = [1, 1]} : vector<48x8xf32> to vector<32x8xf32>
    %64 = tpu.concatenate %55, %56, %57, %58, %59, %60, %61, %62, %63 in 1 : vector<32x8xf32>, vector<32x8xf32>, vector<32x8xf32>, vector<32x8xf32>, vector<32x8xf32>, vector<32x8xf32>, vector<32x8xf32>, vector<32x8xf32>, vector<32x8xf32> -> vector<32x72xf32>
    %65 = arith.mulf %64, %2 : vector<32x72xf32>
    %c0_37 = arith.constant 0 : index
    %c0_38 = arith.constant 0 : index
    %c0_39 = arith.constant 0 : index
    %66 = vector.load %arg9[%c0_37, %c0_38, %c0_39] : memref<4x72x8xf32, #tpu.memory_space<vmem>>, vector<1x72x8xf32>
    %67 = vector.shape_cast %66 : vector<1x72x8xf32> to vector<72x8xf32>
    %cst_40 = arith.constant dense<0.000000e+00> : vector<32x8xf32>
    %68 = tpu.matmul %65, %67, %cst_40 {dimension_numbers = #tpu.dot_dimension_numbers<[1], [0], [0], [1], [0, 0, 1, 1], [], []>} : vector<32x72xf32>, vector<72x8xf32>, vector<32x8xf32> -> vector<32x8xf32>
    %c0_41 = arith.constant 0 : index
    %c0_42 = arith.constant 0 : index
    %c0_43 = arith.constant 0 : index
    %69 = vector.load %arg10[%c0_41, %c0_42, %c0_43] : memref<4x1x8xf32, #tpu.memory_space<vmem>>, vector<1x1x8xf32>
    %70 = vector.shape_cast %69 : vector<1x1x8xf32> to vector<1x8xf32>
    %71 = vector.broadcast %70 : vector<1x8xf32> to vector<32x8xf32>
    %72 = arith.addf %68, %71 : vector<32x8xf32>
    %cst_44 = arith.constant 5.000000e-01 : f32
    %73 = vector.broadcast %cst_44 : f32 to vector<32x8xf32>
    %74 = arith.mulf %52, %73 : vector<32x8xf32>
    %cst_45 = arith.constant 5.000000e-01 : f32
    %75 = vector.broadcast %cst_45 : f32 to vector<32x8xf32>
    %76 = arith.mulf %72, %75 : vector<32x8xf32>
    %77 = arith.addf %74, %76 : vector<32x8xf32>
    %78 = arith.subf %19, %77 : vector<32x8xf32>
    %79 = arith.mulf %78, %78 : vector<32x8xf32>
    %cst_46 = arith.constant dense<0.000000e+00> : vector<2x8xf32>
    %80 = tpu.matmul %3, %79, %cst_46 {dimension_numbers = #tpu.dot_dimension_numbers<[1], [0], [0], [1], [0, 0, 1, 1], [], []>} : vector<2x32xf32>, vector<32x8xf32>, vector<2x8xf32> -> vector<2x8xf32>
    %cst_47 = arith.constant dense<0.000000e+00> : vector<2xf32>
    %81 = vector.multi_reduction <add>, %80, %cst_47 [1] : vector<2x8xf32> to vector<2xf32>
    %82 = vector.shape_cast %81 : vector<2xf32> to vector<2x1xf32>
    %c0_48 = arith.constant 0 : index
    %c0_49 = arith.constant 0 : index
    %c0_50 = arith.constant 0 : index
    %83 = vector.load %arg12[%c0_48, %c0_49, %c0_50] : memref<4x8x32xf32, #tpu.memory_space<vmem>>, vector<1x8x32xf32>
    %84 = vector.shape_cast %83 : vector<1x8x32xf32> to vector<8x32xf32>
    %cst_51 = arith.constant dense<0.000000e+00> : vector<32x32xf32>
    %85 = tpu.matmul %77, %84, %cst_51 {dimension_numbers = #tpu.dot_dimension_numbers<[1], [0], [0], [1], [0, 0, 1, 1], [], []>} : vector<32x8xf32>, vector<8x32xf32>, vector<32x32xf32> -> vector<32x32xf32>
    %c0_52 = arith.constant 0 : index
    %c0_53 = arith.constant 0 : index
    %c0_54 = arith.constant 0 : index
    %86 = vector.load %arg13[%c0_52, %c0_53, %c0_54] : memref<4x1x32xf32, #tpu.memory_space<vmem>>, vector<1x1x32xf32>
    %87 = vector.shape_cast %86 : vector<1x1x32xf32> to vector<1x32xf32>
    %88 = vector.broadcast %87 : vector<1x32xf32> to vector<32x32xf32>
    %89 = arith.addf %85, %88 : vector<32x32xf32>
    %90 = arith.addf %1, %89 : vector<32x32xf32>
    %91 = arith.subf %0, %89 : vector<32x32xf32>
    %92 = tpu.iota {dimensions = array<i32: 0>} : vector<4x1xi32>
    %c0_i32_55 = arith.constant 0 : i32
    %93 = vector.broadcast %c0_i32_55 : i32 to vector<4x1xi32>
    %94 = arith.cmpi eq, %92, %93 : vector<4x1xi32>
    %95 = vector.shape_cast %41 : vector<32xi32> to vector<1x32xi32>
    %c0_i32_56 = arith.constant 0 : i32
    %96 = vector.shape_cast %94 : vector<4x1xi1> to vector<4x1xi1>
    %97 = vector.broadcast %96 : vector<4x1xi1> to vector<4x32xi1>
    %98 = vector.shape_cast %95 : vector<1x32xi32> to vector<1x32xi32>
    %99 = vector.broadcast %98 : vector<1x32xi32> to vector<4x32xi32>
    %100 = vector.broadcast %c0_i32_56 : i32 to vector<4x32xi32>
    %101 = arith.select %97, %99, %100 : vector<4x32xi1>, vector<4x32xi32>
    %102 = arith.addi %10, %101 : vector<4x32xi32>
    %103 = vector.shape_cast %19 : vector<32x8xf32> to vector<1x32x8xf32>
    %104 = arith.extui %94 : vector<4x1xi1> to vector<4x1xi32>
    %105 = arith.sitofp %104 : vector<4x1xi32> to vector<4x1xf32>
    %106 = vector.shape_cast %105 : vector<4x1xf32> to vector<4x1x1xf32>
    %107 = vector.broadcast %103 : vector<1x32x8xf32> to vector<4x32x8xf32>
    %108 = vector.broadcast %106 : vector<4x1x1xf32> to vector<4x32x8xf32>
    %109 = arith.mulf %107, %108 : vector<4x32x8xf32>
    %110 = arith.addf %11, %109 : vector<4x32x8xf32>
    %111 = tpu.iota {dimensions = array<i32: 1>} : vector<1x4xi32>
    %c0_i32_57 = arith.constant 0 : i32
    %112 = vector.broadcast %c0_i32_57 : i32 to vector<1x4xi32>
    %113 = arith.cmpi eq, %111, %112 : vector<1x4xi32>
    %114 = arith.extui %113 : vector<1x4xi1> to vector<1x4xi32>
    %115 = arith.sitofp %114 : vector<1x4xi32> to vector<1x4xf32>
    %116 = vector.broadcast %82 : vector<2x1xf32> to vector<2x4xf32>
    %117 = vector.broadcast %115 : vector<1x4xf32> to vector<2x4xf32>
    %118 = arith.mulf %116, %117 : vector<2x4xf32>
    %119 = arith.addf %12, %118 : vector<2x4xf32>
    %c1 = arith.constant 1 : index
    %c0_58 = arith.constant 0 : index
    %c0_59 = arith.constant 0 : index
    %120 = vector.load %arg2[%c1, %c0_58, %c0_59] : memref<4x32x8xf32, #tpu.memory_space<vmem>>, vector<1x32x8xf32>
    %121 = vector.shape_cast %120 : vector<1x32x8xf32> to vector<32x8xf32>
    %cst_60 = arith.constant dense<0.000000e+00> : vector<32x8xf32>
    %122 = tpu.matmul %91, %121, %cst_60 {dimension_numbers = #tpu.dot_dimension_numbers<[1], [0], [0], [1], [0, 0, 1, 1], [], []>} : vector<32x32xf32>, vector<32x8xf32>, vector<32x8xf32> -> vector<32x8xf32>
    %c1_61 = arith.constant 1 : index
    %c0_62 = arith.constant 0 : index
    %c0_63 = arith.constant 0 : index
    %123 = vector.load %arg3[%c1_61, %c0_62, %c0_63] : memref<4x1x8xf32, #tpu.memory_space<vmem>>, vector<1x1x8xf32>
    %124 = vector.shape_cast %123 : vector<1x1x8xf32> to vector<1x8xf32>
    %125 = vector.broadcast %124 : vector<1x8xf32> to vector<32x8xf32>
    %126 = arith.addf %122, %125 : vector<32x8xf32>
    %c1_64 = arith.constant 1 : index
    %c0_65 = arith.constant 0 : index
    %c0_66 = arith.constant 0 : index
    %127 = vector.load %arg4[%c1_64, %c0_65, %c0_66] : memref<4x32x32xf32, #tpu.memory_space<vmem>>, vector<1x32x32xf32>
    %128 = vector.shape_cast %127 : vector<1x32x32xf32> to vector<32x32xf32>
    %cst_67 = arith.constant dense<0.000000e+00> : vector<32x8xf32>
    %129 = tpu.matmul %128, %126, %cst_67 {dimension_numbers = #tpu.dot_dimension_numbers<[1], [0], [0], [1], [0, 0, 1, 1], [], []>} : vector<32x32xf32>, vector<32x8xf32>, vector<32x8xf32> -> vector<32x8xf32>
    %130 = arith.mulf %129, %129 : vector<32x8xf32>
    %cst_68 = arith.constant dense<0.000000e+00> : vector<32xf32>
    %131 = vector.multi_reduction <add>, %130, %cst_68 [1] : vector<32x8xf32> to vector<32xf32>
    %132 = vector.shape_cast %131 : vector<32xf32> to vector<32x1xf32>
    %133 = math.sqrt %132 : vector<32x1xf32>
    %cst_69 = arith.constant 9.99999996E-13 : f32
    %134 = vector.broadcast %cst_69 : f32 to vector<32x1xf32>
    %135 = arith.maximumf %133, %134 : vector<32x1xf32>
    %136 = vector.broadcast %135 : vector<32x1xf32> to vector<32x8xf32>
    %137 = arith.divf %129, %136 : vector<32x8xf32>
    %c1_70 = arith.constant 1 : index
    %c0_71 = arith.constant 0 : index
    %c0_72 = arith.constant 0 : index
    %138 = vector.load %arg5[%c1_70, %c0_71, %c0_72] : memref<4x8x128xf32, #tpu.memory_space<vmem>>, vector<1x8x128xf32>
    %139 = vector.shape_cast %138 : vector<1x8x128xf32> to vector<8x128xf32>
    %cst_73 = arith.constant dense<0.000000e+00> : vector<32x128xf32>
    %140 = tpu.matmul %137, %139, %cst_73 {dimension_numbers = #tpu.dot_dimension_numbers<[1], [0], [0], [1], [0, 0, 1, 1], [], []>} : vector<32x8xf32>, vector<8x128xf32>, vector<32x128xf32> -> vector<32x128xf32>
    %141 = arith.addf %140, %9 : vector<32x128xf32>
    %cst_74 = arith.constant dense<0xFF800000> : vector<32xf32>
    %142 = vector.multi_reduction <maximumf>, %141, %cst_74 [1] : vector<32x128xf32> to vector<32xf32>
    %143 = vector.shape_cast %142 : vector<32xf32> to vector<32x1xf32>
    %144 = vector.broadcast %143 : vector<32x1xf32> to vector<32x128xf32>
    %145 = arith.cmpf oge, %141, %144 : vector<32x128xf32>
    %c128_i32_75 = arith.constant 128 : i32
    %146 = vector.broadcast %c128_i32_75 : i32 to vector<32x128xi32>
    %147 = arith.select %145, %4, %146 : vector<32x128xi1>, vector<32x128xi32>
    %cst_76 = arith.constant dense<2147483647> : vector<32xi32>
    %148 = vector.multi_reduction <minsi>, %147, %cst_76 [1] : vector<32x128xi32> to vector<32xi32>
    %149 = vector.shape_cast %148 : vector<32xi32> to vector<32x1xi32>
    %150 = vector.broadcast %149 : vector<32x1xi32> to vector<32x128xi32>
    %151 = arith.cmpi eq, %150, %4 : vector<32x128xi32>
    %152 = arith.extui %151 : vector<32x128xi1> to vector<32x128xi32>
    %153 = arith.sitofp %152 : vector<32x128xi32> to vector<32x128xf32>
    %c1_77 = arith.constant 1 : index
    %c0_78 = arith.constant 0 : index
    %c0_79 = arith.constant 0 : index
    %154 = vector.load %arg6[%c1_77, %c0_78, %c0_79] : memref<4x128x8xf32, #tpu.memory_space<vmem>>, vector<1x128x8xf32>
    %155 = vector.shape_cast %154 : vector<1x128x8xf32> to vector<128x8xf32>
    %cst_80 = arith.constant dense<0.000000e+00> : vector<32x8xf32>
    %156 = tpu.matmul %153, %155, %cst_80 {dimension_numbers = #tpu.dot_dimension_numbers<[1], [0], [0], [1], [0, 0, 1, 1], [], []>} : vector<32x128xf32>, vector<128x8xf32>, vector<32x8xf32> -> vector<32x8xf32>
    %c1_81 = arith.constant 1 : index
    %c0_82 = arith.constant 0 : index
    %c0_83 = arith.constant 0 : index
    %157 = vector.load %arg7[%c1_81, %c0_82, %c0_83] : memref<4x32x32xf32, #tpu.memory_space<vmem>>, vector<1x32x32xf32>
    %158 = vector.shape_cast %157 : vector<1x32x32xf32> to vector<32x32xf32>
    %cst_84 = arith.constant dense<0.000000e+00> : vector<32x8xf32>
    %159 = tpu.matmul %158, %156, %cst_84 {dimension_numbers = #tpu.dot_dimension_numbers<[1], [0], [0], [1], [0, 0, 1, 1], [], []>} : vector<32x32xf32>, vector<32x8xf32>, vector<32x8xf32> -> vector<32x8xf32>
    %cst_85 = arith.constant 0.000000e+00 : f32
    %160 = vector.broadcast %cst_85 : f32 to vector<8x8xf32>
    %161 = tpu.concatenate %160, %159, %160 in 0 : vector<8x8xf32>, vector<32x8xf32>, vector<8x8xf32> -> vector<48x8xf32>
    %162 = vector.extract_strided_slice %161 {offsets = [4, 0], sizes = [32, 8], strides = [1, 1]} : vector<48x8xf32> to vector<32x8xf32>
    %163 = vector.extract_strided_slice %161 {offsets = [5, 0], sizes = [32, 8], strides = [1, 1]} : vector<48x8xf32> to vector<32x8xf32>
    %164 = vector.extract_strided_slice %161 {offsets = [6, 0], sizes = [32, 8], strides = [1, 1]} : vector<48x8xf32> to vector<32x8xf32>
    %165 = vector.extract_strided_slice %161 {offsets = [7, 0], sizes = [32, 8], strides = [1, 1]} : vector<48x8xf32> to vector<32x8xf32>
    %166 = vector.extract_strided_slice %161 {offsets = [8, 0], sizes = [32, 8], strides = [1, 1]} : vector<48x8xf32> to vector<32x8xf32>
    %167 = vector.extract_strided_slice %161 {offsets = [9, 0], sizes = [32, 8], strides = [1, 1]} : vector<48x8xf32> to vector<32x8xf32>
    %168 = vector.extract_strided_slice %161 {offsets = [10, 0], sizes = [32, 8], strides = [1, 1]} : vector<48x8xf32> to vector<32x8xf32>
    %169 = vector.extract_strided_slice %161 {offsets = [11, 0], sizes = [32, 8], strides = [1, 1]} : vector<48x8xf32> to vector<32x8xf32>
    %170 = vector.extract_strided_slice %161 {offsets = [12, 0], sizes = [32, 8], strides = [1, 1]} : vector<48x8xf32> to vector<32x8xf32>
    %171 = tpu.concatenate %162, %163, %164, %165, %166, %167, %168, %169, %170 in 1 : vector<32x8xf32>, vector<32x8xf32>, vector<32x8xf32>, vector<32x8xf32>, vector<32x8xf32>, vector<32x8xf32>, vector<32x8xf32>, vector<32x8xf32>, vector<32x8xf32> -> vector<32x72xf32>
    %172 = arith.mulf %171, %2 : vector<32x72xf32>
    %c1_86 = arith.constant 1 : index
    %c0_87 = arith.constant 0 : index
    %c0_88 = arith.constant 0 : index
    %173 = vector.load %arg9[%c1_86, %c0_87, %c0_88] : memref<4x72x8xf32, #tpu.memory_space<vmem>>, vector<1x72x8xf32>
    %174 = vector.shape_cast %173 : vector<1x72x8xf32> to vector<72x8xf32>
    %cst_89 = arith.constant dense<0.000000e+00> : vector<32x8xf32>
    %175 = tpu.matmul %172, %174, %cst_89 {dimension_numbers = #tpu.dot_dimension_numbers<[1], [0], [0], [1], [0, 0, 1, 1], [], []>} : vector<32x72xf32>, vector<72x8xf32>, vector<32x8xf32> -> vector<32x8xf32>
    %c1_90 = arith.constant 1 : index
    %c0_91 = arith.constant 0 : index
    %c0_92 = arith.constant 0 : index
    %176 = vector.load %arg10[%c1_90, %c0_91, %c0_92] : memref<4x1x8xf32, #tpu.memory_space<vmem>>, vector<1x1x8xf32>
    %177 = vector.shape_cast %176 : vector<1x1x8xf32> to vector<1x8xf32>
    %178 = vector.broadcast %177 : vector<1x8xf32> to vector<32x8xf32>
    %179 = arith.addf %175, %178 : vector<32x8xf32>
    %cst_93 = arith.constant 5.000000e-01 : f32
    %180 = vector.broadcast %cst_93 : f32 to vector<32x8xf32>
    %181 = arith.mulf %159, %180 : vector<32x8xf32>
    %cst_94 = arith.constant 5.000000e-01 : f32
    %182 = vector.broadcast %cst_94 : f32 to vector<32x8xf32>
    %183 = arith.mulf %179, %182 : vector<32x8xf32>
    %184 = arith.addf %181, %183 : vector<32x8xf32>
    %185 = arith.subf %126, %184 : vector<32x8xf32>
    %186 = arith.mulf %185, %185 : vector<32x8xf32>
    %cst_95 = arith.constant dense<0.000000e+00> : vector<2x8xf32>
    %187 = tpu.matmul %3, %186, %cst_95 {dimension_numbers = #tpu.dot_dimension_numbers<[1], [0], [0], [1], [0, 0, 1, 1], [], []>} : vector<2x32xf32>, vector<32x8xf32>, vector<2x8xf32> -> vector<2x8xf32>
    %cst_96 = arith.constant dense<0.000000e+00> : vector<2xf32>
    %188 = vector.multi_reduction <add>, %187, %cst_96 [1] : vector<2x8xf32> to vector<2xf32>
    %189 = vector.shape_cast %188 : vector<2xf32> to vector<2x1xf32>
    %c1_97 = arith.constant 1 : index
    %c0_98 = arith.constant 0 : index
    %c0_99 = arith.constant 0 : index
    %190 = vector.load %arg12[%c1_97, %c0_98, %c0_99] : memref<4x8x32xf32, #tpu.memory_space<vmem>>, vector<1x8x32xf32>
    %191 = vector.shape_cast %190 : vector<1x8x32xf32> to vector<8x32xf32>
    %cst_100 = arith.constant dense<0.000000e+00> : vector<32x32xf32>
    %192 = tpu.matmul %184, %191, %cst_100 {dimension_numbers = #tpu.dot_dimension_numbers<[1], [0], [0], [1], [0, 0, 1, 1], [], []>} : vector<32x8xf32>, vector<8x32xf32>, vector<32x32xf32> -> vector<32x32xf32>
    %c1_101 = arith.constant 1 : index
    %c0_102 = arith.constant 0 : index
    %c0_103 = arith.constant 0 : index
    %193 = vector.load %arg13[%c1_101, %c0_102, %c0_103] : memref<4x1x32xf32, #tpu.memory_space<vmem>>, vector<1x1x32xf32>
    %194 = vector.shape_cast %193 : vector<1x1x32xf32> to vector<1x32xf32>
    %195 = vector.broadcast %194 : vector<1x32xf32> to vector<32x32xf32>
    %196 = arith.addf %192, %195 : vector<32x32xf32>
    %197 = arith.addf %90, %196 : vector<32x32xf32>
    %198 = arith.subf %91, %196 : vector<32x32xf32>
    %199 = tpu.iota {dimensions = array<i32: 0>} : vector<4x1xi32>
    %c1_i32 = arith.constant 1 : i32
    %200 = vector.broadcast %c1_i32 : i32 to vector<4x1xi32>
    %201 = arith.cmpi eq, %199, %200 : vector<4x1xi32>
    %202 = vector.shape_cast %148 : vector<32xi32> to vector<1x32xi32>
    %c0_i32_104 = arith.constant 0 : i32
    %203 = vector.shape_cast %201 : vector<4x1xi1> to vector<4x1xi1>
    %204 = vector.broadcast %203 : vector<4x1xi1> to vector<4x32xi1>
    %205 = vector.shape_cast %202 : vector<1x32xi32> to vector<1x32xi32>
    %206 = vector.broadcast %205 : vector<1x32xi32> to vector<4x32xi32>
    %207 = vector.broadcast %c0_i32_104 : i32 to vector<4x32xi32>
    %208 = arith.select %204, %206, %207 : vector<4x32xi1>, vector<4x32xi32>
    %209 = arith.addi %102, %208 : vector<4x32xi32>
    %210 = vector.shape_cast %126 : vector<32x8xf32> to vector<1x32x8xf32>
    %211 = arith.extui %201 : vector<4x1xi1> to vector<4x1xi32>
    %212 = arith.sitofp %211 : vector<4x1xi32> to vector<4x1xf32>
    %213 = vector.shape_cast %212 : vector<4x1xf32> to vector<4x1x1xf32>
    %214 = vector.broadcast %210 : vector<1x32x8xf32> to vector<4x32x8xf32>
    %215 = vector.broadcast %213 : vector<4x1x1xf32> to vector<4x32x8xf32>
    %216 = arith.mulf %214, %215 : vector<4x32x8xf32>
    %217 = arith.addf %110, %216 : vector<4x32x8xf32>
    %218 = tpu.iota {dimensions = array<i32: 1>} : vector<1x4xi32>
    %c1_i32_105 = arith.constant 1 : i32
    %219 = vector.broadcast %c1_i32_105 : i32 to vector<1x4xi32>
    %220 = arith.cmpi eq, %218, %219 : vector<1x4xi32>
    %221 = arith.extui %220 : vector<1x4xi1> to vector<1x4xi32>
    %222 = arith.sitofp %221 : vector<1x4xi32> to vector<1x4xf32>
    %223 = vector.broadcast %189 : vector<2x1xf32> to vector<2x4xf32>
    %224 = vector.broadcast %222 : vector<1x4xf32> to vector<2x4xf32>
    %225 = arith.mulf %223, %224 : vector<2x4xf32>
    %226 = arith.addf %119, %225 : vector<2x4xf32>
    %c2 = arith.constant 2 : index
    %c0_106 = arith.constant 0 : index
    %c0_107 = arith.constant 0 : index
    %227 = vector.load %arg2[%c2, %c0_106, %c0_107] : memref<4x32x8xf32, #tpu.memory_space<vmem>>, vector<1x32x8xf32>
    %228 = vector.shape_cast %227 : vector<1x32x8xf32> to vector<32x8xf32>
    %cst_108 = arith.constant dense<0.000000e+00> : vector<32x8xf32>
    %229 = tpu.matmul %198, %228, %cst_108 {dimension_numbers = #tpu.dot_dimension_numbers<[1], [0], [0], [1], [0, 0, 1, 1], [], []>} : vector<32x32xf32>, vector<32x8xf32>, vector<32x8xf32> -> vector<32x8xf32>
    %c2_109 = arith.constant 2 : index
    %c0_110 = arith.constant 0 : index
    %c0_111 = arith.constant 0 : index
    %230 = vector.load %arg3[%c2_109, %c0_110, %c0_111] : memref<4x1x8xf32, #tpu.memory_space<vmem>>, vector<1x1x8xf32>
    %231 = vector.shape_cast %230 : vector<1x1x8xf32> to vector<1x8xf32>
    %232 = vector.broadcast %231 : vector<1x8xf32> to vector<32x8xf32>
    %233 = arith.addf %229, %232 : vector<32x8xf32>
    %c2_112 = arith.constant 2 : index
    %c0_113 = arith.constant 0 : index
    %c0_114 = arith.constant 0 : index
    %234 = vector.load %arg4[%c2_112, %c0_113, %c0_114] : memref<4x32x32xf32, #tpu.memory_space<vmem>>, vector<1x32x32xf32>
    %235 = vector.shape_cast %234 : vector<1x32x32xf32> to vector<32x32xf32>
    %cst_115 = arith.constant dense<0.000000e+00> : vector<32x8xf32>
    %236 = tpu.matmul %235, %233, %cst_115 {dimension_numbers = #tpu.dot_dimension_numbers<[1], [0], [0], [1], [0, 0, 1, 1], [], []>} : vector<32x32xf32>, vector<32x8xf32>, vector<32x8xf32> -> vector<32x8xf32>
    %237 = arith.mulf %236, %236 : vector<32x8xf32>
    %cst_116 = arith.constant dense<0.000000e+00> : vector<32xf32>
    %238 = vector.multi_reduction <add>, %237, %cst_116 [1] : vector<32x8xf32> to vector<32xf32>
    %239 = vector.shape_cast %238 : vector<32xf32> to vector<32x1xf32>
    %240 = math.sqrt %239 : vector<32x1xf32>
    %cst_117 = arith.constant 9.99999996E-13 : f32
    %241 = vector.broadcast %cst_117 : f32 to vector<32x1xf32>
    %242 = arith.maximumf %240, %241 : vector<32x1xf32>
    %243 = vector.broadcast %242 : vector<32x1xf32> to vector<32x8xf32>
    %244 = arith.divf %236, %243 : vector<32x8xf32>
    %c2_118 = arith.constant 2 : index
    %c0_119 = arith.constant 0 : index
    %c0_120 = arith.constant 0 : index
    %245 = vector.load %arg5[%c2_118, %c0_119, %c0_120] : memref<4x8x128xf32, #tpu.memory_space<vmem>>, vector<1x8x128xf32>
    %246 = vector.shape_cast %245 : vector<1x8x128xf32> to vector<8x128xf32>
    %cst_121 = arith.constant dense<0.000000e+00> : vector<32x128xf32>
    %247 = tpu.matmul %244, %246, %cst_121 {dimension_numbers = #tpu.dot_dimension_numbers<[1], [0], [0], [1], [0, 0, 1, 1], [], []>} : vector<32x8xf32>, vector<8x128xf32>, vector<32x128xf32> -> vector<32x128xf32>
    %248 = arith.addf %247, %9 : vector<32x128xf32>
    %cst_122 = arith.constant dense<0xFF800000> : vector<32xf32>
    %249 = vector.multi_reduction <maximumf>, %248, %cst_122 [1] : vector<32x128xf32> to vector<32xf32>
    %250 = vector.shape_cast %249 : vector<32xf32> to vector<32x1xf32>
    %251 = vector.broadcast %250 : vector<32x1xf32> to vector<32x128xf32>
    %252 = arith.cmpf oge, %248, %251 : vector<32x128xf32>
    %c128_i32_123 = arith.constant 128 : i32
    %253 = vector.broadcast %c128_i32_123 : i32 to vector<32x128xi32>
    %254 = arith.select %252, %4, %253 : vector<32x128xi1>, vector<32x128xi32>
    %cst_124 = arith.constant dense<2147483647> : vector<32xi32>
    %255 = vector.multi_reduction <minsi>, %254, %cst_124 [1] : vector<32x128xi32> to vector<32xi32>
    %256 = vector.shape_cast %255 : vector<32xi32> to vector<32x1xi32>
    %257 = vector.broadcast %256 : vector<32x1xi32> to vector<32x128xi32>
    %258 = arith.cmpi eq, %257, %4 : vector<32x128xi32>
    %259 = arith.extui %258 : vector<32x128xi1> to vector<32x128xi32>
    %260 = arith.sitofp %259 : vector<32x128xi32> to vector<32x128xf32>
    %c2_125 = arith.constant 2 : index
    %c0_126 = arith.constant 0 : index
    %c0_127 = arith.constant 0 : index
    %261 = vector.load %arg6[%c2_125, %c0_126, %c0_127] : memref<4x128x8xf32, #tpu.memory_space<vmem>>, vector<1x128x8xf32>
    %262 = vector.shape_cast %261 : vector<1x128x8xf32> to vector<128x8xf32>
    %cst_128 = arith.constant dense<0.000000e+00> : vector<32x8xf32>
    %263 = tpu.matmul %260, %262, %cst_128 {dimension_numbers = #tpu.dot_dimension_numbers<[1], [0], [0], [1], [0, 0, 1, 1], [], []>} : vector<32x128xf32>, vector<128x8xf32>, vector<32x8xf32> -> vector<32x8xf32>
    %c2_129 = arith.constant 2 : index
    %c0_130 = arith.constant 0 : index
    %c0_131 = arith.constant 0 : index
    %264 = vector.load %arg7[%c2_129, %c0_130, %c0_131] : memref<4x32x32xf32, #tpu.memory_space<vmem>>, vector<1x32x32xf32>
    %265 = vector.shape_cast %264 : vector<1x32x32xf32> to vector<32x32xf32>
    %cst_132 = arith.constant dense<0.000000e+00> : vector<32x8xf32>
    %266 = tpu.matmul %265, %263, %cst_132 {dimension_numbers = #tpu.dot_dimension_numbers<[1], [0], [0], [1], [0, 0, 1, 1], [], []>} : vector<32x32xf32>, vector<32x8xf32>, vector<32x8xf32> -> vector<32x8xf32>
    %cst_133 = arith.constant 0.000000e+00 : f32
    %267 = vector.broadcast %cst_133 : f32 to vector<8x8xf32>
    %268 = tpu.concatenate %267, %266, %267 in 0 : vector<8x8xf32>, vector<32x8xf32>, vector<8x8xf32> -> vector<48x8xf32>
    %269 = vector.extract_strided_slice %268 {offsets = [4, 0], sizes = [32, 8], strides = [1, 1]} : vector<48x8xf32> to vector<32x8xf32>
    %270 = vector.extract_strided_slice %268 {offsets = [5, 0], sizes = [32, 8], strides = [1, 1]} : vector<48x8xf32> to vector<32x8xf32>
    %271 = vector.extract_strided_slice %268 {offsets = [6, 0], sizes = [32, 8], strides = [1, 1]} : vector<48x8xf32> to vector<32x8xf32>
    %272 = vector.extract_strided_slice %268 {offsets = [7, 0], sizes = [32, 8], strides = [1, 1]} : vector<48x8xf32> to vector<32x8xf32>
    %273 = vector.extract_strided_slice %268 {offsets = [8, 0], sizes = [32, 8], strides = [1, 1]} : vector<48x8xf32> to vector<32x8xf32>
    %274 = vector.extract_strided_slice %268 {offsets = [9, 0], sizes = [32, 8], strides = [1, 1]} : vector<48x8xf32> to vector<32x8xf32>
    %275 = vector.extract_strided_slice %268 {offsets = [10, 0], sizes = [32, 8], strides = [1, 1]} : vector<48x8xf32> to vector<32x8xf32>
    %276 = vector.extract_strided_slice %268 {offsets = [11, 0], sizes = [32, 8], strides = [1, 1]} : vector<48x8xf32> to vector<32x8xf32>
    %277 = vector.extract_strided_slice %268 {offsets = [12, 0], sizes = [32, 8], strides = [1, 1]} : vector<48x8xf32> to vector<32x8xf32>
    %278 = tpu.concatenate %269, %270, %271, %272, %273, %274, %275, %276, %277 in 1 : vector<32x8xf32>, vector<32x8xf32>, vector<32x8xf32>, vector<32x8xf32>, vector<32x8xf32>, vector<32x8xf32>, vector<32x8xf32>, vector<32x8xf32>, vector<32x8xf32> -> vector<32x72xf32>
    %279 = arith.mulf %278, %2 : vector<32x72xf32>
    %c2_134 = arith.constant 2 : index
    %c0_135 = arith.constant 0 : index
    %c0_136 = arith.constant 0 : index
    %280 = vector.load %arg9[%c2_134, %c0_135, %c0_136] : memref<4x72x8xf32, #tpu.memory_space<vmem>>, vector<1x72x8xf32>
    %281 = vector.shape_cast %280 : vector<1x72x8xf32> to vector<72x8xf32>
    %cst_137 = arith.constant dense<0.000000e+00> : vector<32x8xf32>
    %282 = tpu.matmul %279, %281, %cst_137 {dimension_numbers = #tpu.dot_dimension_numbers<[1], [0], [0], [1], [0, 0, 1, 1], [], []>} : vector<32x72xf32>, vector<72x8xf32>, vector<32x8xf32> -> vector<32x8xf32>
    %c2_138 = arith.constant 2 : index
    %c0_139 = arith.constant 0 : index
    %c0_140 = arith.constant 0 : index
    %283 = vector.load %arg10[%c2_138, %c0_139, %c0_140] : memref<4x1x8xf32, #tpu.memory_space<vmem>>, vector<1x1x8xf32>
    %284 = vector.shape_cast %283 : vector<1x1x8xf32> to vector<1x8xf32>
    %285 = vector.broadcast %284 : vector<1x8xf32> to vector<32x8xf32>
    %286 = arith.addf %282, %285 : vector<32x8xf32>
    %cst_141 = arith.constant 5.000000e-01 : f32
    %287 = vector.broadcast %cst_141 : f32 to vector<32x8xf32>
    %288 = arith.mulf %266, %287 : vector<32x8xf32>
    %cst_142 = arith.constant 5.000000e-01 : f32
    %289 = vector.broadcast %cst_142 : f32 to vector<32x8xf32>
    %290 = arith.mulf %286, %289 : vector<32x8xf32>
    %291 = arith.addf %288, %290 : vector<32x8xf32>
    %292 = arith.subf %233, %291 : vector<32x8xf32>
    %293 = arith.mulf %292, %292 : vector<32x8xf32>
    %cst_143 = arith.constant dense<0.000000e+00> : vector<2x8xf32>
    %294 = tpu.matmul %3, %293, %cst_143 {dimension_numbers = #tpu.dot_dimension_numbers<[1], [0], [0], [1], [0, 0, 1, 1], [], []>} : vector<2x32xf32>, vector<32x8xf32>, vector<2x8xf32> -> vector<2x8xf32>
    %cst_144 = arith.constant dense<0.000000e+00> : vector<2xf32>
    %295 = vector.multi_reduction <add>, %294, %cst_144 [1] : vector<2x8xf32> to vector<2xf32>
    %296 = vector.shape_cast %295 : vector<2xf32> to vector<2x1xf32>
    %c2_145 = arith.constant 2 : index
    %c0_146 = arith.constant 0 : index
    %c0_147 = arith.constant 0 : index
    %297 = vector.load %arg12[%c2_145, %c0_146, %c0_147] : memref<4x8x32xf32, #tpu.memory_space<vmem>>, vector<1x8x32xf32>
    %298 = vector.shape_cast %297 : vector<1x8x32xf32> to vector<8x32xf32>
    %cst_148 = arith.constant dense<0.000000e+00> : vector<32x32xf32>
    %299 = tpu.matmul %291, %298, %cst_148 {dimension_numbers = #tpu.dot_dimension_numbers<[1], [0], [0], [1], [0, 0, 1, 1], [], []>} : vector<32x8xf32>, vector<8x32xf32>, vector<32x32xf32> -> vector<32x32xf32>
    %c2_149 = arith.constant 2 : index
    %c0_150 = arith.constant 0 : index
    %c0_151 = arith.constant 0 : index
    %300 = vector.load %arg13[%c2_149, %c0_150, %c0_151] : memref<4x1x32xf32, #tpu.memory_space<vmem>>, vector<1x1x32xf32>
    %301 = vector.shape_cast %300 : vector<1x1x32xf32> to vector<1x32xf32>
    %302 = vector.broadcast %301 : vector<1x32xf32> to vector<32x32xf32>
    %303 = arith.addf %299, %302 : vector<32x32xf32>
    %304 = arith.addf %197, %303 : vector<32x32xf32>
    %305 = arith.subf %198, %303 : vector<32x32xf32>
    %306 = tpu.iota {dimensions = array<i32: 0>} : vector<4x1xi32>
    %c2_i32 = arith.constant 2 : i32
    %307 = vector.broadcast %c2_i32 : i32 to vector<4x1xi32>
    %308 = arith.cmpi eq, %306, %307 : vector<4x1xi32>
    %309 = vector.shape_cast %255 : vector<32xi32> to vector<1x32xi32>
    %c0_i32_152 = arith.constant 0 : i32
    %310 = vector.shape_cast %308 : vector<4x1xi1> to vector<4x1xi1>
    %311 = vector.broadcast %310 : vector<4x1xi1> to vector<4x32xi1>
    %312 = vector.shape_cast %309 : vector<1x32xi32> to vector<1x32xi32>
    %313 = vector.broadcast %312 : vector<1x32xi32> to vector<4x32xi32>
    %314 = vector.broadcast %c0_i32_152 : i32 to vector<4x32xi32>
    %315 = arith.select %311, %313, %314 : vector<4x32xi1>, vector<4x32xi32>
    %316 = arith.addi %209, %315 : vector<4x32xi32>
    %317 = vector.shape_cast %233 : vector<32x8xf32> to vector<1x32x8xf32>
    %318 = arith.extui %308 : vector<4x1xi1> to vector<4x1xi32>
    %319 = arith.sitofp %318 : vector<4x1xi32> to vector<4x1xf32>
    %320 = vector.shape_cast %319 : vector<4x1xf32> to vector<4x1x1xf32>
    %321 = vector.broadcast %317 : vector<1x32x8xf32> to vector<4x32x8xf32>
    %322 = vector.broadcast %320 : vector<4x1x1xf32> to vector<4x32x8xf32>
    %323 = arith.mulf %321, %322 : vector<4x32x8xf32>
    %324 = arith.addf %217, %323 : vector<4x32x8xf32>
    %325 = tpu.iota {dimensions = array<i32: 1>} : vector<1x4xi32>
    %c2_i32_153 = arith.constant 2 : i32
    %326 = vector.broadcast %c2_i32_153 : i32 to vector<1x4xi32>
    %327 = arith.cmpi eq, %325, %326 : vector<1x4xi32>
    %328 = arith.extui %327 : vector<1x4xi1> to vector<1x4xi32>
    %329 = arith.sitofp %328 : vector<1x4xi32> to vector<1x4xf32>
    %330 = vector.broadcast %296 : vector<2x1xf32> to vector<2x4xf32>
    %331 = vector.broadcast %329 : vector<1x4xf32> to vector<2x4xf32>
    %332 = arith.mulf %330, %331 : vector<2x4xf32>
    %333 = arith.addf %226, %332 : vector<2x4xf32>
    %c3 = arith.constant 3 : index
    %c0_154 = arith.constant 0 : index
    %c0_155 = arith.constant 0 : index
    %334 = vector.load %arg2[%c3, %c0_154, %c0_155] : memref<4x32x8xf32, #tpu.memory_space<vmem>>, vector<1x32x8xf32>
    %335 = vector.shape_cast %334 : vector<1x32x8xf32> to vector<32x8xf32>
    %cst_156 = arith.constant dense<0.000000e+00> : vector<32x8xf32>
    %336 = tpu.matmul %305, %335, %cst_156 {dimension_numbers = #tpu.dot_dimension_numbers<[1], [0], [0], [1], [0, 0, 1, 1], [], []>} : vector<32x32xf32>, vector<32x8xf32>, vector<32x8xf32> -> vector<32x8xf32>
    %c3_157 = arith.constant 3 : index
    %c0_158 = arith.constant 0 : index
    %c0_159 = arith.constant 0 : index
    %337 = vector.load %arg3[%c3_157, %c0_158, %c0_159] : memref<4x1x8xf32, #tpu.memory_space<vmem>>, vector<1x1x8xf32>
    %338 = vector.shape_cast %337 : vector<1x1x8xf32> to vector<1x8xf32>
    %339 = vector.broadcast %338 : vector<1x8xf32> to vector<32x8xf32>
    %340 = arith.addf %336, %339 : vector<32x8xf32>
    %c3_160 = arith.constant 3 : index
    %c0_161 = arith.constant 0 : index
    %c0_162 = arith.constant 0 : index
    %341 = vector.load %arg4[%c3_160, %c0_161, %c0_162] : memref<4x32x32xf32, #tpu.memory_space<vmem>>, vector<1x32x32xf32>
    %342 = vector.shape_cast %341 : vector<1x32x32xf32> to vector<32x32xf32>
    %cst_163 = arith.constant dense<0.000000e+00> : vector<32x8xf32>
    %343 = tpu.matmul %342, %340, %cst_163 {dimension_numbers = #tpu.dot_dimension_numbers<[1], [0], [0], [1], [0, 0, 1, 1], [], []>} : vector<32x32xf32>, vector<32x8xf32>, vector<32x8xf32> -> vector<32x8xf32>
    %344 = arith.mulf %343, %343 : vector<32x8xf32>
    %cst_164 = arith.constant dense<0.000000e+00> : vector<32xf32>
    %345 = vector.multi_reduction <add>, %344, %cst_164 [1] : vector<32x8xf32> to vector<32xf32>
    %346 = vector.shape_cast %345 : vector<32xf32> to vector<32x1xf32>
    %347 = math.sqrt %346 : vector<32x1xf32>
    %cst_165 = arith.constant 9.99999996E-13 : f32
    %348 = vector.broadcast %cst_165 : f32 to vector<32x1xf32>
    %349 = arith.maximumf %347, %348 : vector<32x1xf32>
    %350 = vector.broadcast %349 : vector<32x1xf32> to vector<32x8xf32>
    %351 = arith.divf %343, %350 : vector<32x8xf32>
    %c3_166 = arith.constant 3 : index
    %c0_167 = arith.constant 0 : index
    %c0_168 = arith.constant 0 : index
    %352 = vector.load %arg5[%c3_166, %c0_167, %c0_168] : memref<4x8x128xf32, #tpu.memory_space<vmem>>, vector<1x8x128xf32>
    %353 = vector.shape_cast %352 : vector<1x8x128xf32> to vector<8x128xf32>
    %cst_169 = arith.constant dense<0.000000e+00> : vector<32x128xf32>
    %354 = tpu.matmul %351, %353, %cst_169 {dimension_numbers = #tpu.dot_dimension_numbers<[1], [0], [0], [1], [0, 0, 1, 1], [], []>} : vector<32x8xf32>, vector<8x128xf32>, vector<32x128xf32> -> vector<32x128xf32>
    %355 = arith.addf %354, %9 : vector<32x128xf32>
    %cst_170 = arith.constant dense<0xFF800000> : vector<32xf32>
    %356 = vector.multi_reduction <maximumf>, %355, %cst_170 [1] : vector<32x128xf32> to vector<32xf32>
    %357 = vector.shape_cast %356 : vector<32xf32> to vector<32x1xf32>
    %358 = vector.broadcast %357 : vector<32x1xf32> to vector<32x128xf32>
    %359 = arith.cmpf oge, %355, %358 : vector<32x128xf32>
    %c128_i32_171 = arith.constant 128 : i32
    %360 = vector.broadcast %c128_i32_171 : i32 to vector<32x128xi32>
    %361 = arith.select %359, %4, %360 : vector<32x128xi1>, vector<32x128xi32>
    %cst_172 = arith.constant dense<2147483647> : vector<32xi32>
    %362 = vector.multi_reduction <minsi>, %361, %cst_172 [1] : vector<32x128xi32> to vector<32xi32>
    %363 = vector.shape_cast %362 : vector<32xi32> to vector<32x1xi32>
    %364 = vector.broadcast %363 : vector<32x1xi32> to vector<32x128xi32>
    %365 = arith.cmpi eq, %364, %4 : vector<32x128xi32>
    %366 = arith.extui %365 : vector<32x128xi1> to vector<32x128xi32>
    %367 = arith.sitofp %366 : vector<32x128xi32> to vector<32x128xf32>
    %c3_173 = arith.constant 3 : index
    %c0_174 = arith.constant 0 : index
    %c0_175 = arith.constant 0 : index
    %368 = vector.load %arg6[%c3_173, %c0_174, %c0_175] : memref<4x128x8xf32, #tpu.memory_space<vmem>>, vector<1x128x8xf32>
    %369 = vector.shape_cast %368 : vector<1x128x8xf32> to vector<128x8xf32>
    %cst_176 = arith.constant dense<0.000000e+00> : vector<32x8xf32>
    %370 = tpu.matmul %367, %369, %cst_176 {dimension_numbers = #tpu.dot_dimension_numbers<[1], [0], [0], [1], [0, 0, 1, 1], [], []>} : vector<32x128xf32>, vector<128x8xf32>, vector<32x8xf32> -> vector<32x8xf32>
    %c3_177 = arith.constant 3 : index
    %c0_178 = arith.constant 0 : index
    %c0_179 = arith.constant 0 : index
    %371 = vector.load %arg7[%c3_177, %c0_178, %c0_179] : memref<4x32x32xf32, #tpu.memory_space<vmem>>, vector<1x32x32xf32>
    %372 = vector.shape_cast %371 : vector<1x32x32xf32> to vector<32x32xf32>
    %cst_180 = arith.constant dense<0.000000e+00> : vector<32x8xf32>
    %373 = tpu.matmul %372, %370, %cst_180 {dimension_numbers = #tpu.dot_dimension_numbers<[1], [0], [0], [1], [0, 0, 1, 1], [], []>} : vector<32x32xf32>, vector<32x8xf32>, vector<32x8xf32> -> vector<32x8xf32>
    %cst_181 = arith.constant 0.000000e+00 : f32
    %374 = vector.broadcast %cst_181 : f32 to vector<8x8xf32>
    %375 = tpu.concatenate %374, %373, %374 in 0 : vector<8x8xf32>, vector<32x8xf32>, vector<8x8xf32> -> vector<48x8xf32>
    %376 = vector.extract_strided_slice %375 {offsets = [4, 0], sizes = [32, 8], strides = [1, 1]} : vector<48x8xf32> to vector<32x8xf32>
    %377 = vector.extract_strided_slice %375 {offsets = [5, 0], sizes = [32, 8], strides = [1, 1]} : vector<48x8xf32> to vector<32x8xf32>
    %378 = vector.extract_strided_slice %375 {offsets = [6, 0], sizes = [32, 8], strides = [1, 1]} : vector<48x8xf32> to vector<32x8xf32>
    %379 = vector.extract_strided_slice %375 {offsets = [7, 0], sizes = [32, 8], strides = [1, 1]} : vector<48x8xf32> to vector<32x8xf32>
    %380 = vector.extract_strided_slice %375 {offsets = [8, 0], sizes = [32, 8], strides = [1, 1]} : vector<48x8xf32> to vector<32x8xf32>
    %381 = vector.extract_strided_slice %375 {offsets = [9, 0], sizes = [32, 8], strides = [1, 1]} : vector<48x8xf32> to vector<32x8xf32>
    %382 = vector.extract_strided_slice %375 {offsets = [10, 0], sizes = [32, 8], strides = [1, 1]} : vector<48x8xf32> to vector<32x8xf32>
    %383 = vector.extract_strided_slice %375 {offsets = [11, 0], sizes = [32, 8], strides = [1, 1]} : vector<48x8xf32> to vector<32x8xf32>
    %384 = vector.extract_strided_slice %375 {offsets = [12, 0], sizes = [32, 8], strides = [1, 1]} : vector<48x8xf32> to vector<32x8xf32>
    %385 = tpu.concatenate %376, %377, %378, %379, %380, %381, %382, %383, %384 in 1 : vector<32x8xf32>, vector<32x8xf32>, vector<32x8xf32>, vector<32x8xf32>, vector<32x8xf32>, vector<32x8xf32>, vector<32x8xf32>, vector<32x8xf32>, vector<32x8xf32> -> vector<32x72xf32>
    %386 = arith.mulf %385, %2 : vector<32x72xf32>
    %c3_182 = arith.constant 3 : index
    %c0_183 = arith.constant 0 : index
    %c0_184 = arith.constant 0 : index
    %387 = vector.load %arg9[%c3_182, %c0_183, %c0_184] : memref<4x72x8xf32, #tpu.memory_space<vmem>>, vector<1x72x8xf32>
    %388 = vector.shape_cast %387 : vector<1x72x8xf32> to vector<72x8xf32>
    %cst_185 = arith.constant dense<0.000000e+00> : vector<32x8xf32>
    %389 = tpu.matmul %386, %388, %cst_185 {dimension_numbers = #tpu.dot_dimension_numbers<[1], [0], [0], [1], [0, 0, 1, 1], [], []>} : vector<32x72xf32>, vector<72x8xf32>, vector<32x8xf32> -> vector<32x8xf32>
    %c3_186 = arith.constant 3 : index
    %c0_187 = arith.constant 0 : index
    %c0_188 = arith.constant 0 : index
    %390 = vector.load %arg10[%c3_186, %c0_187, %c0_188] : memref<4x1x8xf32, #tpu.memory_space<vmem>>, vector<1x1x8xf32>
    %391 = vector.shape_cast %390 : vector<1x1x8xf32> to vector<1x8xf32>
    %392 = vector.broadcast %391 : vector<1x8xf32> to vector<32x8xf32>
    %393 = arith.addf %389, %392 : vector<32x8xf32>
    %cst_189 = arith.constant 5.000000e-01 : f32
    %394 = vector.broadcast %cst_189 : f32 to vector<32x8xf32>
    %395 = arith.mulf %373, %394 : vector<32x8xf32>
    %cst_190 = arith.constant 5.000000e-01 : f32
    %396 = vector.broadcast %cst_190 : f32 to vector<32x8xf32>
    %397 = arith.mulf %393, %396 : vector<32x8xf32>
    %398 = arith.addf %395, %397 : vector<32x8xf32>
    %399 = arith.subf %340, %398 : vector<32x8xf32>
    %400 = arith.mulf %399, %399 : vector<32x8xf32>
    %cst_191 = arith.constant dense<0.000000e+00> : vector<2x8xf32>
    %401 = tpu.matmul %3, %400, %cst_191 {dimension_numbers = #tpu.dot_dimension_numbers<[1], [0], [0], [1], [0, 0, 1, 1], [], []>} : vector<2x32xf32>, vector<32x8xf32>, vector<2x8xf32> -> vector<2x8xf32>
    %cst_192 = arith.constant dense<0.000000e+00> : vector<2xf32>
    %402 = vector.multi_reduction <add>, %401, %cst_192 [1] : vector<2x8xf32> to vector<2xf32>
    %403 = vector.shape_cast %402 : vector<2xf32> to vector<2x1xf32>
    %c3_193 = arith.constant 3 : index
    %c0_194 = arith.constant 0 : index
    %c0_195 = arith.constant 0 : index
    %404 = vector.load %arg12[%c3_193, %c0_194, %c0_195] : memref<4x8x32xf32, #tpu.memory_space<vmem>>, vector<1x8x32xf32>
    %405 = vector.shape_cast %404 : vector<1x8x32xf32> to vector<8x32xf32>
    %cst_196 = arith.constant dense<0.000000e+00> : vector<32x32xf32>
    %406 = tpu.matmul %398, %405, %cst_196 {dimension_numbers = #tpu.dot_dimension_numbers<[1], [0], [0], [1], [0, 0, 1, 1], [], []>} : vector<32x8xf32>, vector<8x32xf32>, vector<32x32xf32> -> vector<32x32xf32>
    %c3_197 = arith.constant 3 : index
    %c0_198 = arith.constant 0 : index
    %c0_199 = arith.constant 0 : index
    %407 = vector.load %arg13[%c3_197, %c0_198, %c0_199] : memref<4x1x32xf32, #tpu.memory_space<vmem>>, vector<1x1x32xf32>
    %408 = vector.shape_cast %407 : vector<1x1x32xf32> to vector<1x32xf32>
    %409 = vector.broadcast %408 : vector<1x32xf32> to vector<32x32xf32>
    %410 = arith.addf %406, %409 : vector<32x32xf32>
    %411 = arith.addf %304, %410 : vector<32x32xf32>
    %412 = tpu.iota {dimensions = array<i32: 0>} : vector<4x1xi32>
    %c3_i32 = arith.constant 3 : i32
    %413 = vector.broadcast %c3_i32 : i32 to vector<4x1xi32>
    %414 = arith.cmpi eq, %412, %413 : vector<4x1xi32>
    %415 = vector.shape_cast %362 : vector<32xi32> to vector<1x32xi32>
    %c0_i32_200 = arith.constant 0 : i32
    %416 = vector.shape_cast %414 : vector<4x1xi1> to vector<4x1xi1>
    %417 = vector.broadcast %416 : vector<4x1xi1> to vector<4x32xi1>
    %418 = vector.shape_cast %415 : vector<1x32xi32> to vector<1x32xi32>
    %419 = vector.broadcast %418 : vector<1x32xi32> to vector<4x32xi32>
    %420 = vector.broadcast %c0_i32_200 : i32 to vector<4x32xi32>
    %421 = arith.select %417, %419, %420 : vector<4x32xi1>, vector<4x32xi32>
    %422 = arith.addi %316, %421 : vector<4x32xi32>
    %423 = vector.shape_cast %340 : vector<32x8xf32> to vector<1x32x8xf32>
    %424 = arith.extui %414 : vector<4x1xi1> to vector<4x1xi32>
    %425 = arith.sitofp %424 : vector<4x1xi32> to vector<4x1xf32>
    %426 = vector.shape_cast %425 : vector<4x1xf32> to vector<4x1x1xf32>
    %427 = vector.broadcast %423 : vector<1x32x8xf32> to vector<4x32x8xf32>
    %428 = vector.broadcast %426 : vector<4x1x1xf32> to vector<4x32x8xf32>
    %429 = arith.mulf %427, %428 : vector<4x32x8xf32>
    %430 = arith.addf %324, %429 : vector<4x32x8xf32>
    %431 = tpu.iota {dimensions = array<i32: 1>} : vector<1x4xi32>
    %c3_i32_201 = arith.constant 3 : i32
    %432 = vector.broadcast %c3_i32_201 : i32 to vector<1x4xi32>
    %433 = arith.cmpi eq, %431, %432 : vector<1x4xi32>
    %434 = arith.extui %433 : vector<1x4xi1> to vector<1x4xi32>
    %435 = arith.sitofp %434 : vector<1x4xi32> to vector<1x4xf32>
    %436 = vector.broadcast %403 : vector<2x1xf32> to vector<2x4xf32>
    %437 = vector.broadcast %435 : vector<1x4xf32> to vector<2x4xf32>
    %438 = arith.mulf %436, %437 : vector<2x4xf32>
    %439 = arith.addf %333, %438 : vector<2x4xf32>
    %c0_202 = arith.constant 0 : index
    %c0_203 = arith.constant 0 : index
    %440 = vector.load %arg14[%c0_202, %c0_203] : memref<32x32xf32, #tpu.memory_space<vmem>>, vector<32x32xf32>
    tpu.vector_store %arg14[%c0_202, %c0_203], %411 {strides = array<i32>} : memref<32x32xf32, #tpu.memory_space<vmem>>, vector<32x32xf32>,
    %c0_204 = arith.constant 0 : index
    %c0_205 = arith.constant 0 : index
    %441 = vector.load %arg15[%c0_204, %c0_205] : memref<4x32xi32, #tpu.memory_space<vmem>>, vector<4x32xi32>
    tpu.vector_store %arg15[%c0_204, %c0_205], %422 {strides = array<i32>} : memref<4x32xi32, #tpu.memory_space<vmem>>, vector<4x32xi32>,
    %c0_206 = arith.constant 0 : index
    %c0_207 = arith.constant 0 : index
    %c0_208 = arith.constant 0 : index
    %442 = vector.load %arg16[%c0_206, %c0_207, %c0_208] : memref<4x32x8xf32, #tpu.memory_space<vmem>>, vector<4x32x8xf32>
    tpu.vector_store %arg16[%c0_206, %c0_207, %c0_208], %430 {strides = array<i32>} : memref<4x32x8xf32, #tpu.memory_space<vmem>>, vector<4x32x8xf32>,
    %c0_209 = arith.constant 0 : index
    %c0_210 = arith.constant 0 : index
    %443 = vector.load %arg17[%c0_209, %c0_210] : memref<2x4xf32, #tpu.memory_space<vmem>>, vector<2x4xf32>
    tpu.vector_store %arg17[%c0_209, %c0_210], %439 {strides = array<i32>} : memref<2x4xf32, #tpu.memory_space<vmem>>, vector<2x4xf32>,
    return
  }
  func.func @transform_0(%arg0: i32) -> (i32, i32) {
    %c0_i32 = arith.constant 0 : i32
    %c0_i32_0 = arith.constant 0 : i32
    %c0_i32_1 = arith.constant 0 : i32
    return %c0_i32, %c0_i32_0 : i32, i32
  }
  func.func @transform_1(%arg0: i32) -> (i32, i32, i32) {
    %c0_i32 = arith.constant 0 : i32
    %c0_i32_0 = arith.constant 0 : i32
    %c0_i32_1 = arith.constant 0 : i32
    %c0_i32_2 = arith.constant 0 : i32
    return %c0_i32, %c0_i32_0, %c0_i32_1 : i32, i32, i32
  }
  func.func @transform_2(%arg0: i32) -> (i32, i32, i32) {
    %c0_i32 = arith.constant 0 : i32
    %c0_i32_0 = arith.constant 0 : i32
    %c0_i32_1 = arith.constant 0 : i32
    %c0_i32_2 = arith.constant 0 : i32
    return %c0_i32, %c0_i32_0, %c0_i32_1 : i32, i32, i32
  }
  func.func @transform_3(%arg0: i32) -> (i32, i32, i32) {
    %c0_i32 = arith.constant 0 : i32
    %c0_i32_0 = arith.constant 0 : i32
    %c0_i32_1 = arith.constant 0 : i32
    %c0_i32_2 = arith.constant 0 : i32
    return %c0_i32, %c0_i32_0, %c0_i32_1 : i32, i32, i32
  }
  func.func @transform_4(%arg0: i32) -> (i32, i32, i32) {
    %c0_i32 = arith.constant 0 : i32
    %c0_i32_0 = arith.constant 0 : i32
    %c0_i32_1 = arith.constant 0 : i32
    %c0_i32_2 = arith.constant 0 : i32
    return %c0_i32, %c0_i32_0, %c0_i32_1 : i32, i32, i32
  }
  func.func @transform_5(%arg0: i32) -> (i32, i32, i32) {
    %c0_i32 = arith.constant 0 : i32
    %c0_i32_0 = arith.constant 0 : i32
    %c0_i32_1 = arith.constant 0 : i32
    %c0_i32_2 = arith.constant 0 : i32
    return %c0_i32, %c0_i32_0, %c0_i32_1 : i32, i32, i32
  }
  func.func @transform_6(%arg0: i32) -> (i32, i32, i32) {
    %c0_i32 = arith.constant 0 : i32
    %c0_i32_0 = arith.constant 0 : i32
    %c0_i32_1 = arith.constant 0 : i32
    %c0_i32_2 = arith.constant 0 : i32
    return %c0_i32, %c0_i32_0, %c0_i32_1 : i32, i32, i32
  }
  func.func @transform_7(%arg0: i32) -> (i32, i32) {
    %c0_i32 = arith.constant 0 : i32
    %c0_i32_0 = arith.constant 0 : i32
    %c0_i32_1 = arith.constant 0 : i32
    return %c0_i32, %c0_i32_0 : i32, i32
  }
  func.func @transform_8(%arg0: i32) -> (i32, i32, i32) {
    %c0_i32 = arith.constant 0 : i32
    %c0_i32_0 = arith.constant 0 : i32
    %c0_i32_1 = arith.constant 0 : i32
    %c0_i32_2 = arith.constant 0 : i32
    return %c0_i32, %c0_i32_0, %c0_i32_1 : i32, i32, i32
  }
  func.func @transform_9(%arg0: i32) -> (i32, i32, i32) {
    %c0_i32 = arith.constant 0 : i32
    %c0_i32_0 = arith.constant 0 : i32
    %c0_i32_1 = arith.constant 0 : i32
    %c0_i32_2 = arith.constant 0 : i32
    return %c0_i32, %c0_i32_0, %c0_i32_1 : i32, i32, i32
  }
  func.func @transform_10(%arg0: i32) -> (i32, i32) {
    %c0_i32 = arith.constant 0 : i32
    %c0_i32_0 = arith.constant 0 : i32
    %c0_i32_1 = arith.constant 0 : i32
    return %c0_i32, %c0_i32_0 : i32, i32
  }
  func.func @transform_11(%arg0: i32) -> (i32, i32, i32) {
    %c0_i32 = arith.constant 0 : i32
    %c0_i32_0 = arith.constant 0 : i32
    %c0_i32_1 = arith.constant 0 : i32
    %c0_i32_2 = arith.constant 0 : i32
    return %c0_i32, %c0_i32_0, %c0_i32_1 : i32, i32, i32
  }
  func.func @transform_12(%arg0: i32) -> (i32, i32, i32) {
    %c0_i32 = arith.constant 0 : i32
    %c0_i32_0 = arith.constant 0 : i32
    %c0_i32_1 = arith.constant 0 : i32
    %c0_i32_2 = arith.constant 0 : i32
    return %c0_i32, %c0_i32_0, %c0_i32_1 : i32, i32, i32
  }
  func.func @transform_13(%arg0: i32) -> (i32, i32) {
    %c0_i32 = arith.constant 0 : i32
    %c0_i32_0 = arith.constant 0 : i32
    %c0_i32_1 = arith.constant 0 : i32
    return %c0_i32, %c0_i32_0 : i32, i32
  }
  func.func @transform_14(%arg0: i32) -> (i32, i32) {
    %c0_i32 = arith.constant 0 : i32
    %c0_i32_0 = arith.constant 0 : i32
    %c0_i32_1 = arith.constant 0 : i32
    return %c0_i32, %c0_i32_0 : i32, i32
  }
  func.func @transform_15(%arg0: i32) -> (i32, i32, i32) {
    %c0_i32 = arith.constant 0 : i32
    %c0_i32_0 = arith.constant 0 : i32
    %c0_i32_1 = arith.constant 0 : i32
    %c0_i32_2 = arith.constant 0 : i32
    return %c0_i32, %c0_i32_0, %c0_i32_1 : i32, i32, i32
  }
  func.func @transform_16(%arg0: i32) -> (i32, i32) {
    %c0_i32 = arith.constant 0 : i32
    %c0_i32_0 = arith.constant 0 : i32
    %c0_i32_1 = arith.constant 0 : i32
    return %c0_i32, %c0_i32_0 : i32, i32
  }
}

</mosaic_0001>

<llo_original>
// kernel: squeeze.4
$region0: #{squeeze.4}
  %s0 = inlined_call_operand.vmem [shape: s32[32], index: 0, kind: input, shape index: {}]
  %s1 = inlined_call_operand.hbm [shape: s32[2,16], index: 1, kind: output, shape index: {}]
  $region1: #{squeeze.4} parent=0
    #allocation0 [shape = 'u8[1024]{0}', space=vmem, size = 0x400, scoped, tag = 'operand span for operand 1']
    #allocation1 [shape = 's32[1]{0}', space=sflag, size = 0x4, scoped, tag = 'scoped memory for squeeze.4']
    #allocation2 [shape = 'u8[4096]{0}', space=vmem, size = 0x1000, scoped, tag = 'scoped mem for output reshape']
    #allocation3 [shape = 'u8[4096]{0}', space=vmem, size = 0x1000, scoped, tag = 'scoped mem for input reshape']
    %2 = vsyncpa [#allocation1], 0
    %s4 = sshllo.u32 0, 1
    %v5 = vld [vmem:[%s0] sm:%s4]
    %6 = vst [vmem:[#allocation3] sm:%s4] %v5
    %v7 = vld [vmem:[#allocation3] sm:$0x1]
    %vm8 = vcmask 130048
    %9 = vst.msk [vmem:[#allocation2] sm:$0x1] %vm8, %v7
    %v10 = vld [vmem:[#allocation3] sm:$0x1]
    %11 = vrot.lane.b32.xlu0 %v10, 112
    %v12 = vpop.permute.xlu0 %11
    %vm13 = vcmask 130048
    %s14 = scalar_lea.vmem [#allocation2], 1
    %15 = vst.msk [vmem:[%s14] sm:$0x1] %vm13, %v12
    %s17 = sshllo.u32 0, 2
    %v19 = vld [vmem:[#allocation2] sm:%s17]
    %s20 = sshllo.u32 0, 2
    %21 = vst [vmem:[#allocation0] sm:%s20] %v19
    %s23 = ssub.s32 32, 32
    %24 = vsyncadd [#allocation1], %s23
    %s26 = sshll.u32 [#allocation0], 4
    %s27 = int_to_ptr.vmem [resolvable:$true] %s26
    %29 = dma.vmem_to_hbm [thread:$0]  %s27, 32, %s1, [#allocation1]
    %30 = dma.done [#allocation1], 32
    %31 = vsyncpa [#allocation1], 1

// kernel: _lambda_.1
$region0: #{_lambda_.1}
  #allocation0 [shape = 'u32[]', space=smem, size = 0x4, offset = 0x4, fixed_abs, tag = 'smem constant byte address 0x4 - core index']
  #allocation1 [shape = 'u32[144,128]{1,0:T(1,128)}', space=vmem, size = 0x12000, scoped, tag = 'internal scratch']
  %s0 = inlined_call_operand.hbm [shape: f32[32,32], index: 0, kind: input, shape index: {}]
  %s1 = inlined_call_operand.hbm [shape: f32[4,32,8], index: 1, kind: input, shape index: {}]
  %s2 = inlined_call_operand.vmem [shape: f32[4,1,8], index: 2, kind: input, shape index: {}]
  %s3 = inlined_call_operand.hbm [shape: f32[4,32,32], index: 3, kind: input, shape index: {}]
  %s4 = inlined_call_operand.hbm [shape: f32[4,8,128], index: 4, kind: input, shape index: {}]
  %s5 = inlined_call_operand.hbm [shape: f32[4,128,8], index: 5, kind: input, shape index: {}]
  %s6 = inlined_call_operand.hbm [shape: f32[4,32,32], index: 6, kind: input, shape index: {}]
  %s7 = inlined_call_operand.vmem [shape: f32[32,72], index: 7, kind: input, shape index: {}]
  %s8 = inlined_call_operand.hbm [shape: f32[4,72,8], index: 8, kind: input, shape index: {}]
  %s9 = inlined_call_operand.vmem [shape: f32[4,1,8], index: 9, kind: input, shape index: {}]
  %s10 = inlined_call_operand.hbm [shape: f32[2,32], index: 10, kind: input, shape index: {}]
  %s11 = inlined_call_operand.hbm [shape: f32[4,8,32], index: 11, kind: input, shape index: {}]
  %s12 = inlined_call_operand.hbm [shape: f32[4,1,32], index: 12, kind: input, shape index: {}]
  %s13 = inlined_call_operand.hbm [shape: f32[32,32], index: 13, kind: output, shape index: {0}]
  %s14 = inlined_call_operand.vmem [shape: s32[4,32], index: 14, kind: output, shape index: {1}]
  %s15 = inlined_call_operand.vmem [shape: f32[4,32,8], index: 15, kind: output, shape index: {2}]
  %s16 = inlined_call_operand.vmem [shape: f32[2,4], index: 16, kind: output, shape index: {3}]
  %17 = xla_tuple %s13, %s14, %s15, %s16
  %s18 = sld [smem:[#allocation0]]
  $region126: #{_lambda_.1} parent=0
    _
  %s20 = ssub.s32 1, %s18
  %s21 = scalar_select 0, %s20, %s18
  $region1: #{_lambda_.1} parent=0
    #allocation2 [shape = 'u8[16384]{0}', space=vmem, size = 0x4000, scoped, tag = 'input window, operand 0, single buffered']
    #allocation3 [shape = 's32[1]{0}', space=sflag, size = 0x4, scoped, tag = 'scoped memory for _lambda_.1']
    #allocation4 [shape = 's32[1]{0}', space=sflag, size = 0x4, scoped, tag = 'scoped memory for _lambda_.1']
    #allocation5 [shape = 'u8[65536]{0}', space=vmem, size = 0x10000, scoped, tag = 'input window, operand 1, single buffered']
    #allocation6 [shape = 's32[1]{0}', space=sflag, size = 0x4, scoped, tag = 'scoped memory for _lambda_.1']
    #allocation7 [shape = 'u8[65536]{0}', space=vmem, size = 0x10000, scoped, tag = 'input window, operand 3, single buffered']
    #allocation8 [shape = 'u8[16384]{0}', space=vmem, size = 0x4000, scoped, tag = 'input window, operand 4, single buffered']
    #allocation9 [shape = 's32[1]{0}', space=sflag, size = 0x4, scoped, tag = 'scoped memory for _lambda_.1']
    #allocation10 [shape = 'u8[262144]{0}', space=vmem, size = 0x40000, scoped, tag = 'input window, operand 5, single buffered']
    #allocation11 [shape = 'u8[65536]{0}', space=vmem, size = 0x10000, scoped, tag = 'input window, operand 6, single buffered']
    #allocation12 [shape = 's32[1]{0}', space=sflag, size = 0x4, scoped, tag = 'scoped memory for _lambda_.1']
    #allocation13 [shape = 'u8[147456]{0}', space=vmem, size = 0x24000, scoped, tag = 'input window, operand 8, single buffered']
    #allocation14 [shape = 'u8[1024]{0}', space=vmem, size = 0x400, scoped, tag = 'input window, operand 10, single buffered']
    #allocation15 [shape = 's32[1]{0}', space=sflag, size = 0x4, scoped, tag = 'scoped memory for _lambda_.1']
    #allocation16 [shape = 'u8[16384]{0}', space=vmem, size = 0x4000, scoped, tag = 'input window, operand 11, single buffered']
    #allocation17 [shape = 'u8[2048]{0}', space=vmem, size = 0x800, scoped, tag = 'input window, operand 12, single buffered']
    #allocation18 [shape = 's32[1]{0}', space=sflag, size = 0x4, scoped, tag = 'scoped memory for _lambda_.1']
    #allocation19 [shape = 'u8[16384]{0}', space=vmem, size = 0x4000, scoped, tag = 'output window, operand 0, single buffered']
    %22 = vsyncpa [#allocation3], 0
    %23 = vsyncpa [#allocation6], 0
    %24 = vsyncpa [#allocation9], 0
    %25 = vsyncpa [#allocation12], 0
    %26 = vsyncpa [#allocation15], 0
    %27 = vsyncpa [#allocation18], 0
    %28 = vsyncpa [#allocation4], 0
    // Predicated region
    $region2: #{_lambda_.1} parent=1 // pred_check
      _
    $region3: #{_lambda_.1} parent=1 // pred_check_branch
      %30 = sbr.rel (0) target = $region5
    $region4: #{_lambda_.1} parent=1 // pred_region
      %s32 = ssub.s32 512, 512
      %33 = vsyncadd [#allocation3], %s32
      %s34 = sshll.u32 [#allocation2], 4
      %s35 = int_to_ptr.vmem [resolvable:$true] %s34
      %40 = dma.hbm_to_vmem [thread:$0]  %s0, 512, %s35, [#allocation3], 128, 128, 8
    $region5: #{_lambda_.1} parent=1 // pred_fallthru
      _
    // Predicated region
    $region6: #{_lambda_.1} parent=1 // pred_check
      _
    $region7: #{_lambda_.1} parent=1 // pred_check_branch
      %42 = sbr.rel (0) target = $region9
    $region8: #{_lambda_.1} parent=1 // pred_region
      %s44 = ssub.s32 2048, 2048
      %45 = vsyncadd [#allocation6], %s44
      %s46 = sshll.u32 [#allocation5], 4
      %s47 = int_to_ptr.vmem [resolvable:$true] %s46
      %52 = dma.hbm_to_vmem [thread:$0]  %s1, 2048, %s47, [#allocation6], 128, 128, 8
    $region9: #{_lambda_.1} parent=1 // pred_fallthru
      _
    // Predicated region
    $region10: #{_lambda_.1} parent=1 // pred_check
      _
    $region11: #{_lambda_.1} parent=1 // pred_check_branch
      %54 = sbr.rel (0) target = $region13
    $region12: #{_lambda_.1} parent=1 // pred_region
      _
    $region13: #{_lambda_.1} parent=1 // pred_fallthru
      _
    // Predicated region
    $region14: #{_lambda_.1} parent=1 // pred_check
      _
    $region15: #{_lambda_.1} parent=1 // pred_check_branch
      %56 = sbr.rel (0) target = $region17
    $region16: #{_lambda_.1} parent=1 // pred_region
      %s58 = ssub.s32 2048, 2048
      %59 = vsyncadd [#allocation6], %s58
      %s60 = sshll.u32 [#allocation7], 4
      %s61 = int_to_ptr.vmem [resolvable:$true] %s60
      %66 = dma.hbm_to_vmem [thread:$0]  %s3, 2048, %s61, [#allocation6], 128, 128, 8
    $region17: #{_lambda_.1} parent=1 // pred_fallthru
      _
    // Predicated region
    $region18: #{_lambda_.1} parent=1 // pred_check
      _
    $region19: #{_lambda_.1} parent=1 // pred_check_branch
      %68 = sbr.rel (0) target = $region21
    $region20: #{_lambda_.1} parent=1 // pred_region
      %s70 = ssub.s32 512, 512
      %71 = vsyncadd [#allocation9], %s70
      %s72 = sshll.u32 [#allocation8], 4
      %s73 = int_to_ptr.vmem [resolvable:$true] %s72
      %78 = dma.hbm_to_vmem [thread:$0]  %s4, 512, %s73, [#allocation9], 128, 128, 8
    $region21: #{_lambda_.1} parent=1 // pred_fallthru
      _
    // Predicated region
    $region22: #{_lambda_.1} parent=1 // pred_check
      _
    $region23: #{_lambda_.1} parent=1 // pred_check_branch
      %80 = sbr.rel (0) target = $region25
    $region24: #{_lambda_.1} parent=1 // pred_region
      %s82 = ssub.s32 8192, 8192
      %83 = vsyncadd [#allocation9], %s82
      %s84 = sshll.u32 [#allocation10], 4
      %s85 = int_to_ptr.vmem [resolvable:$true] %s84
      %90 = dma.hbm_to_vmem [thread:$0]  %s5, 8192, %s85, [#allocation9], 128, 128, 8
    $region25: #{_lambda_.1} parent=1 // pred_fallthru
      _
    // Predicated region
    $region26: #{_lambda_.1} parent=1 // pred_check
      _
    $region27: #{_lambda_.1} parent=1 // pred_check_branch
      %92 = sbr.rel (0) target = $region29
    $region28: #{_lambda_.1} parent=1 // pred_region
      %s94 = ssub.s32 2048, 2048
      %95 = vsyncadd [#allocation12], %s94
      %s96 = sshll.u32 [#allocation11], 4
      %s97 = int_to_ptr.vmem [resolvable:$true] %s96
      %102 = dma.hbm_to_vmem [thread:$0]  %s6, 2048, %s97, [#allocation12], 128, 128, 8
    $region29: #{_lambda_.1} parent=1 // pred_fallthru
      _
    // Predicated region
    $region30: #{_lambda_.1} parent=1 // pred_check
      _
    $region31: #{_lambda_.1} parent=1 // pred_check_branch
      %104 = sbr.rel (0) target = $region33
    $region32: #{_lambda_.1} parent=1 // pred_region
      _
    $region33: #{_lambda_.1} parent=1 // pred_fallthru
      _
    // Predicated region
    $region34: #{_lambda_.1} parent=1 // pred_check
      _
    $region35: #{_lambda_.1} parent=1 // pred_check_branch
      %106 = sbr.rel (0) target = $region37
    $region36: #{_lambda_.1} parent=1 // pred_region
      %s108 = ssub.s32 4608, 4608
      %109 = vsyncadd [#allocation12], %s108
      %s110 = sshll.u32 [#allocation13], 4
      %s111 = int_to_ptr.vmem [resolvable:$true] %s110
      %116 = dma.hbm_to_vmem [thread:$0]  %s8, 4608, %s111, [#allocation12], 128, 128, 8
    $region37: #{_lambda_.1} parent=1 // pred_fallthru
      _
    // Predicated region
    $region38: #{_lambda_.1} parent=1 // pred_check
      _
    $region39: #{_lambda_.1} parent=1 // pred_check_branch
      %118 = sbr.rel (0) target = $region41
    $region40: #{_lambda_.1} parent=1 // pred_region
      _
    $region41: #{_lambda_.1} parent=1 // pred_fallthru
      _
    // Predicated region
    $region42: #{_lambda_.1} parent=1 // pred_check
      _
    $region43: #{_lambda_.1} parent=1 // pred_check_branch
      %120 = sbr.rel (0) target = $region45
    $region44: #{_lambda_.1} parent=1 // pred_region
      %s122 = ssub.s32 32, 32
      %123 = vsyncadd [#allocation15], %s122
      %s125 = sshll.u32 [#allocation14], 4
      %s126 = int_to_ptr.vmem [resolvable:$true] %s125
      %128 = dma.hbm_to_vmem [thread:$0]  %s10, 32, %s126, [#allocation15]
    $region45: #{_lambda_.1} parent=1 // pred_fallthru
      _
    // Predicated region
    $region46: #{_lambda_.1} parent=1 // pred_check
      _
    $region47: #{_lambda_.1} parent=1 // pred_check_branch
      %130 = sbr.rel (0) target = $region49
    $region48: #{_lambda_.1} parent=1 // pred_region
      %s132 = ssub.s32 512, 512
      %133 = vsyncadd [#allocation15], %s132
      %s134 = sshll.u32 [#allocation16], 4
      %s135 = int_to_ptr.vmem [resolvable:$true] %s134
      %140 = dma.hbm_to_vmem [thread:$0]  %s11, 512, %s135, [#allocation15], 128, 128, 8
    $region49: #{_lambda_.1} parent=1 // pred_fallthru
      _
    // Predicated region
    $region50: #{_lambda_.1} parent=1 // pred_check
      _
    $region51: #{_lambda_.1} parent=1 // pred_check_branch
      %142 = sbr.rel (0) target = $region53
    $region52: #{_lambda_.1} parent=1 // pred_region
      %s144 = ssub.s32 64, 64
      %145 = vsyncadd [#allocation18], %s144
      %s146 = sshll.u32 [#allocation17], 4
      %s147 = int_to_ptr.vmem [resolvable:$true] %s146
      %152 = dma.hbm_to_vmem [thread:$0]  %s12, 64, %s147, [#allocation18], 16, 16, 1
    $region53: #{_lambda_.1} parent=1 // pred_fallthru
      _
    // Predicated region
    $region54: #{_lambda_.1} parent=1 // pred_check
      _
    $region55: #{_lambda_.1} parent=1 // pred_check_branch
      %154 = sbr.rel (0) target = $region57
    $region56: #{_lambda_.1} parent=1 // pred_region
      %155 = dma.done [#allocation3], 512
    $region57: #{_lambda_.1} parent=1 // pred_fallthru
      _
    // Predicated region
    $region58: #{_lambda_.1} parent=1 // pred_check
      _
    $region59: #{_lambda_.1} parent=1 // pred_check_branch
      %157 = sbr.rel (0) target = $region61
    $region60: #{_lambda_.1} parent=1 // pred_region
      %158 = dma.done [#allocation6], 2048
    $region61: #{_lambda_.1} parent=1 // pred_fallthru
      _
    // Predicated region
    $region62: #{_lambda_.1} parent=1 // pred_check
      _
    $region63: #{_lambda_.1} parent=1 // pred_check_branch
      %160 = sbr.rel (0) target = $region65
    $region64: #{_lambda_.1} parent=1 // pred_region
      %161 = dma.done [#allocation6], 2048
    $region65: #{_lambda_.1} parent=1 // pred_fallthru
      _
    // Predicated region
    $region66: #{_lambda_.1} parent=1 // pred_check
      _
    $region67: #{_lambda_.1} parent=1 // pred_check_branch
      %163 = sbr.rel (0) target = $region69
    $region68: #{_lambda_.1} parent=1 // pred_region
      %164 = dma.done [#allocation9], 512
    $region69: #{_lambda_.1} parent=1 // pred_fallthru
      _
    // Predicated region
    $region70: #{_lambda_.1} parent=1 // pred_check
      _
    $region71: #{_lambda_.1} parent=1 // pred_check_branch
      %166 = sbr.rel (0) target = $region73
    $region72: #{_lambda_.1} parent=1 // pred_region
      %167 = dma.done [#allocation9], 8192
    $region73: #{_lambda_.1} parent=1 // pred_fallthru
      _
    // Predicated region
    $region74: #{_lambda_.1} parent=1 // pred_check
      _
    $region75: #{_lambda_.1} parent=1 // pred_check_branch
      %169 = sbr.rel (0) target = $region77
    $region76: #{_lambda_.1} parent=1 // pred_region
      %170 = dma.done [#allocation12], 2048
    $region77: #{_lambda_.1} parent=1 // pred_fallthru
      _
    // Predicated region
    $region78: #{_lambda_.1} parent=1 // pred_check
      _
    $region79: #{_lambda_.1} parent=1 // pred_check_branch
      %172 = sbr.rel (0) target = $region81
    $region80: #{_lambda_.1} parent=1 // pred_region
      %173 = dma.done [#allocation12], 4608
    $region81: #{_lambda_.1} parent=1 // pred_fallthru
      _
    // Predicated region
    $region82: #{_lambda_.1} parent=1 // pred_check
      _
    $region83: #{_lambda_.1} parent=1 // pred_check_branch
      %175 = sbr.rel (0) target = $region85
    $region84: #{_lambda_.1} parent=1 // pred_region
      %176 = dma.done [#allocation15], 32
    $region85: #{_lambda_.1} parent=1 // pred_fallthru
      _
    // Predicated region
    $region86: #{_lambda_.1} parent=1 // pred_check
      _
    $region87: #{_lambda_.1} parent=1 // pred_check_branch
      %178 = sbr.rel (0) target = $region89
    $region88: #{_lambda_.1} parent=1 // pred_region
      %179 = dma.done [#allocation15], 512
    $region89: #{_lambda_.1} parent=1 // pred_fallthru
      _
    // Predicated region
    $region90: #{_lambda_.1} parent=1 // pred_check
      _
    $region91: #{_lambda_.1} parent=1 // pred_check_branch
      %181 = sbr.rel (0) target = $region93
    $region92: #{_lambda_.1} parent=1 // pred_region
      %182 = dma.done [#allocation18], 64
    $region93: #{_lambda_.1} parent=1 // pred_fallthru
      _
    %v183 = vld [vmem:[#allocation2] sm:$0xff]
    %v184 = vld [vmem:[#allocation2 + $0x8] sm:$0xff]
    %v185 = vld [vmem:[#allocation2 + $0x10] sm:$0xff]
    %v186 = vld [vmem:[#allocation2 + $0x18] sm:$0xff]
    %v187 = vld [vmem:[%s7] sm:$0xff]
    %v188 = vld [vmem:[%s7 + $0x8] sm:$0xff]
    %v189 = vld [vmem:[%s7 + $0x10] sm:$0xff]
    %v190 = vld [vmem:[%s7 + $0x18] sm:$0xff]
    %v191 = vld [vmem:[#allocation14] sm:$0x3]
    %v192 = vlaneseq
    %v193 = vand.u32 %v192, 127
    %vm194 = vcmp.lt.s32.totalorder %v193, 64
    %v195 = vsel %vm194, 0.0, -4.0
    %v196 = vld [vmem:[#allocation5] sm:$0xff]
    %v197 = vld [vmem:[#allocation5 + $0x8] sm:$0xff]
    %v198 = vld [vmem:[#allocation5 + $0x10] sm:$0xff]
    %v199 = vld [vmem:[#allocation5 + $0x18] sm:$0xff]
    %v200 = vld [vmem:[%s2] sm:$0x1]
    %v202 = vlaneseq
    %v203 = vshrl.u32 %v202, 7
    %v204 = vsub.s32 0, %v203
    %v205 = vrot.slane %v200, %v204
    %vm207 = vcmask 261120
    %v209 = vsel %vm207, %v183, 0
    %v212 = vsel %vm207, %v184, 0
    %v215 = vsel %vm207, %v185, 0
    %v218 = vsel %vm207, %v186, 0
    %220 = vmatprep.subr.mxu0 0.0
    %221 = vmatpush1.msra.mxu0 %v196
    %222 = vmatprep.subr.mxu0 0.0
    %223 = vmatpush1.msra.mxu0 %v197
    %224 = vmatprep.subr.mxu0 0.0
    %225 = vmatpush1.msra.mxu0 %v198
    %226 = vmatprep.subr.mxu0 0.0
    %227 = vmatpush1.msra.mxu0 %v199
    %228 = vmatprep.subr.mxu0 0.0
    %229 = vmatpush1.msra.mxu0 0.0
    %230 = vmatprep.subr.mxu0 0.0
    %231 = vmatpush1.msra.mxu0 0.0
    %232 = vmatprep.subr.mxu0 0.0
    %233 = vmatpush1.msra.mxu0 0.0
    %234 = vmatprep.subr.mxu0 0.0
    %235 = vmatpush1.msra.mxu0 0.0
    %236 = vmatprep.subr.mxu0 0.0
    %237 = vmatpush1.msra.mxu0 0.0
    %238 = vmatprep.subr.mxu0 0.0
    %239 = vmatpush1.msra.mxu0 0.0
    %240 = vmatprep.subr.mxu0 0.0
    %241 = vmatpush1.msra.mxu0 0.0
    %242 = vmatprep.subr.mxu0 0.0
    %243 = vmatpush1.msra.mxu0 0.0
    %244 = vmatprep.subr.mxu0 0.0
    %245 = vmatpush1.msra.mxu0 0.0
    %246 = vmatprep.subr.mxu0 0.0
    %247 = vmatpush1.msra.mxu0 0.0
    %248 = vmatprep.subr.mxu0 0.0
    %249 = vmatpush1.msra.mxu0 0.0
    %250 = vmatprep.subr.mxu0 0.0
    %251 = vmatpush1.msra.mxu0 0.0
    %252 = vmatprep.subr.mxu0 0.0
    %253 = vmatpush1.msra.mxu0 0.0
    %254 = vmatprep.subr.mxu0 0.0
    %255 = vmatpush1.msra.mxu0 0.0
    %256 = vmatprep.subr.mxu0 0.0
    %257 = vmatpush1.msra.mxu0 0.0
    %258 = vmatprep.subr.mxu0 0.0
    %259 = vmatpush1.msra.mxu0 0.0
    %260 = vmatprep.subr.mxu0 0.0
    %261 = vmatpush1.msra.mxu0 0.0
    %262 = vmatprep.subr.mxu0 0.0
    %263 = vmatpush1.msra.mxu0 0.0
    %264 = vmatprep.subr.mxu0 0.0
    %265 = vmatpush1.msra.mxu0 0.0
    %266 = vmatprep.subr.mxu0 0.0
    %267 = vmatpush1.msra.mxu0 0.0
    %268 = vmatprep.subr.mxu0 0.0
    %269 = vmatpush1.msra.mxu0 0.0
    %270 = vmatprep.subr.mxu0 0.0
    %271 = vmatpush1.msra.mxu0 0.0
    %272 = vmatprep.subr.mxu0 0.0
    %273 = vmatpush1.msra.mxu0 0.0
    %274 = vmatprep.subr.mxu0 0.0
    %275 = vmatpush1.msra.mxu0 0.0
    %276 = vmatprep.subr.mxu0 0.0
    %277 = vmatpush1.msra.mxu0 0.0
    %278 = vmatprep.subr.mxu0 0.0
    %279 = vmatpush1.msra.mxu0 0.0
    %280 = vmatprep.subr.mxu0 0.0
    %281 = vmatpush1.msra.mxu0 0.0
    %282 = vmatprep.subr.mxu0 0.0
    %283 = vmatpush1.msra.mxu0 0.0
    %284 = vmatprep.mubr.f32.mxu0 0.0
    %285 = vmatmul.mubr.f32.gmra.mrb[0].mxu0 %v209
    %v286 = vpop.f32.mrb[0].mxu0
    %v287 = vadd.f32 %v205, %v286
    %v288 = vpop.f32.mrb[0].mxu0
    %289 = vmatprep.mubr.f32.mxu0 0.0
    %290 = vmatmul.mubr.f32.gmra.mrb[0].mxu0 %v212
    %v291 = vpop.f32.mrb[0].mxu0
    %v292 = vadd.f32 %v205, %v291
    %v293 = vpop.f32.mrb[0].mxu0
    %294 = vmatprep.mubr.f32.mxu0 0.0
    %295 = vmatmul.mubr.f32.gmra.mrb[0].mxu0 %v215
    %v296 = vpop.f32.mrb[0].mxu0
    %v297 = vadd.f32 %v205, %v296
    %v298 = vpop.f32.mrb[0].mxu0
    %299 = vmatprep.mubr.f32.mxu0 0.0
    %300 = vmatmul.mubr.f32.gmra.mrb[0].mxu0 %v218
    %v301 = vpop.f32.mrb[0].mxu0
    %v302 = vadd.f32 %v205, %v301
    %v303 = vpop.f32.mrb[0].mxu0
    %304 = vdwg.mxu0
    %v305 = vld [vmem:[#allocation7] sm:$0xff]
    %v306 = vld [vmem:[#allocation7 + $0x8] sm:$0xff]
    %v307 = vld [vmem:[#allocation7 + $0x10] sm:$0xff]
    %v308 = vld [vmem:[#allocation7 + $0x18] sm:$0xff]
    %v310 = vsel %vm207, %v305, 0
    %v313 = vsel %vm207, %v306, 0
    %v316 = vsel %vm207, %v307, 0
    %v319 = vsel %vm207, %v308, 0
    %321 = vmatprep.subr.mxu0 0.0
    %322 = vmatpush1.msra.mxu0 %v287
    %323 = vmatprep.subr.mxu0 0.0
    %324 = vmatpush1.msra.mxu0 %v292
    %325 = vmatprep.subr.mxu0 0.0
    %326 = vmatpush1.msra.mxu0 %v297
    %327 = vmatprep.subr.mxu0 0.0
    %328 = vmatpush1.msra.mxu0 %v302
    %329 = vmatprep.subr.mxu0 0.0
    %330 = vmatpush1.msra.mxu0 0.0
    %331 = vmatprep.subr.mxu0 0.0
    %332 = vmatpush1.msra.mxu0 0.0
    %333 = vmatprep.subr.mxu0 0.0
    %334 = vmatpush1.msra.mxu0 0.0
    %335 = vmatprep.subr.mxu0 0.0
    %336 = vmatpush1.msra.mxu0 0.0
    %337 = vmatprep.subr.mxu0 0.0
    %338 = vmatpush1.msra.mxu0 0.0
    %339 = vmatprep.subr.mxu0 0.0
    %340 = vmatpush1.msra.mxu0 0.0
    %341 = vmatprep.subr.mxu0 0.0
    %342 = vmatpush1.msra.mxu0 0.0
    %343 = vmatprep.subr.mxu0 0.0
    %344 = vmatpush1.msra.mxu0 0.0
    %345 = vmatprep.subr.mxu0 0.0
    %346 = vmatpush1.msra.mxu0 0.0
    %347 = vmatprep.subr.mxu0 0.0
    %348 = vmatpush1.msra.mxu0 0.0
    %349 = vmatprep.subr.mxu0 0.0
    %350 = vmatpush1.msra.mxu0 0.0
    %351 = vmatprep.subr.mxu0 0.0
    %352 = vmatpush1.msra.mxu0 0.0
    %353 = vmatprep.subr.mxu0 0.0
    %354 = vmatpush1.msra.mxu0 0.0
    %355 = vmatprep.subr.mxu0 0.0
    %356 = vmatpush1.msra.mxu0 0.0
    %357 = vmatprep.subr.mxu0 0.0
    %358 = vmatpush1.msra.mxu0 0.0
    %359 = vmatprep.subr.mxu0 0.0
    %360 = vmatpush1.msra.mxu0 0.0
    %361 = vmatprep.subr.mxu0 0.0
    %362 = vmatpush1.msra.mxu0 0.0
    %363 = vmatprep.subr.mxu0 0.0
    %364 = vmatpush1.msra.mxu0 0.0
    %365 = vmatprep.subr.mxu0 0.0
    %366 = vmatpush1.msra.mxu0 0.0
    %367 = vmatprep.subr.mxu0 0.0
    %368 = vmatpush1.msra.mxu0 0.0
    %369 = vmatprep.subr.mxu0 0.0
    %370 = vmatpush1.msra.mxu0 0.0
    %371 = vmatprep.subr.mxu0 0.0
    %372 = vmatpush1.msra.mxu0 0.0
    %373 = vmatprep.subr.mxu0 0.0
    %374 = vmatpush1.msra.mxu0 0.0
    %375 = vmatprep.subr.mxu0 0.0
    %376 = vmatpush1.msra.mxu0 0.0
    %377 = vmatprep.subr.mxu0 0.0
    %378 = vmatpush1.msra.mxu0 0.0
    %379 = vmatprep.subr.mxu0 0.0
    %380 = vmatpush1.msra.mxu0 0.0
    %381 = vmatprep.subr.mxu0 0.0
    %382 = vmatpush1.msra.mxu0 0.0
    %383 = vmatprep.subr.mxu0 0.0
    %384 = vmatpush1.msra.mxu0 0.0
    %385 = vmatprep.mubr.f32.mxu0 0.0
    %386 = vmatmul.mubr.f32.gmra.mrb[0].mxu0 %v310
    %v387 = vpop.f32.mrb[0].mxu0
    %v388 = vadd.f32 0.0, %v387
    %v389 = vpop.f32.mrb[0].mxu0
    %390 = vmatprep.mubr.f32.mxu0 0.0
    %391 = vmatmul.mubr.f32.gmra.mrb[0].mxu0 %v313
    %v392 = vpop.f32.mrb[0].mxu0
    %v393 = vadd.f32 0.0, %v392
    %v394 = vpop.f32.mrb[0].mxu0
    %395 = vmatprep.mubr.f32.mxu0 0.0
    %396 = vmatmul.mubr.f32.gmra.mrb[0].mxu0 %v316
    %v397 = vpop.f32.mrb[0].mxu0
    %v398 = vadd.f32 0.0, %v397
    %v399 = vpop.f32.mrb[0].mxu0
    %400 = vmatprep.mubr.f32.mxu0 0.0
    %401 = vmatmul.mubr.f32.gmra.mrb[0].mxu0 %v319
    %v402 = vpop.f32.mrb[0].mxu0
    %v403 = vadd.f32 0.0, %v402
    %v404 = vpop.f32.mrb[0].mxu0
    %405 = vdwg.mxu0
    %v406 = vmul.f32 %v388, %v388
    %v407 = vmul.f32 %v393, %v393
    %v408 = vmul.f32 %v398, %v398
    %v409 = vmul.f32 %v403, %v403
    %vm410 = vcmask 64512
    %v411 = vsel %vm410, %v406, 0.0
    %412 = vadd.xlane.f32.xlu0 %v411
    %v413 = vpop.xlane.xlu0 %412
    %v414 = vsel %vm410, %v407, 0.0
    %415 = vadd.xlane.f32.xlu0 %v414
    %v416 = vpop.xlane.xlu0 %415
    %v417 = vsel %vm410, %v408, 0.0
    %418 = vadd.xlane.f32.xlu0 %v417
    %v419 = vpop.xlane.xlu0 %418
    %v420 = vsel %vm410, %v409, 0.0
    %421 = vadd.xlane.f32.xlu0 %v420
    %v422 = vpop.xlane.xlu0 %421
    %v423 = vrsqrt.pop %v413
    %v424 = vmul.f32 %v413, %v423
    %vm425 = vcmp.eq.f32.partialorder %v413, inf
    %v426 = vsel %vm425, %v413, %v424
    %vm427 = vcmp.eq.f32.partialorder %v413, 0.0
    %v428 = vand.u32 %v413, 2147483648
    %v429 = vsel %vm427, %v428, %v426
    %v430 = vrsqrt.pop %v416
    %v431 = vmul.f32 %v416, %v430
    %vm432 = vcmp.eq.f32.partialorder %v416, inf
    %v433 = vsel %vm432, %v416, %v431
    %vm434 = vcmp.eq.f32.partialorder %v416, 0.0
    %v435 = vand.u32 %v416, 2147483648
    %v436 = vsel %vm434, %v435, %v433
    %v437 = vrsqrt.pop %v419
    %v438 = vmul.f32 %v419, %v437
    %vm439 = vcmp.eq.f32.partialorder %v419, inf
    %v440 = vsel %vm439, %v419, %v438
    %vm441 = vcmp.eq.f32.partialorder %v419, 0.0
    %v442 = vand.u32 %v419, 2147483648
    %v443 = vsel %vm441, %v442, %v440
    %v444 = vrsqrt.pop %v422
    %v445 = vmul.f32 %v422, %v444
    %vm446 = vcmp.eq.f32.partialorder %v422, inf
    %v447 = vsel %vm446, %v422, %v445
    %vm448 = vcmp.eq.f32.partialorder %v422, 0.0
    %v449 = vand.u32 %v422, 2147483648
    %v450 = vsel %vm448, %v449, %v447
    %v451 = vmax.f32 %v429, 1e-12
    %v452 = vmax.f32 %v436, 1e-12
    %v453 = vmax.f32 %v443, 1e-12
    %v454 = vmax.f32 %v450, 1e-12
    %v455 = vrcp.pop %v451
    %v456 = vmul.f32 %v388, %v455
    %v457 = vrcp.pop %v452
    %v458 = vmul.f32 %v393, %v457
    %v459 = vrcp.pop %v453
    %v460 = vmul.f32 %v398, %v459
    %v461 = vrcp.pop %v454
    %v462 = vmul.f32 %v403, %v461
    %v463 = vld [vmem:[#allocation8] sm:$0xff]
    %v465 = vsel %vm410, %v456, 0
    %v468 = vsel %vm410, %v458, 0
    %v471 = vsel %vm410, %v460, 0
    %v474 = vsel %vm410, %v462, 0
    %476 = vmatprep.subr.mxu0 0.0
    %477 = vmatpush1.msra.mxu0 %v463
    %478 = vmatprep.subr.mxu0 0.0
    %479 = vmatpush1.msra.mxu0 0.0
    %480 = vmatprep.subr.mxu0 0.0
    %481 = vmatpush1.msra.mxu0 0.0
    %482 = vmatprep.subr.mxu0 0.0
    %483 = vmatpush1.msra.mxu0 0.0
    %484 = vmatprep.subr.mxu0 0.0
    %485 = vmatpush1.msra.mxu0 0.0
    %486 = vmatprep.subr.mxu0 0.0
    %487 = vmatpush1.msra.mxu0 0.0
    %488 = vmatprep.subr.mxu0 0.0
    %489 = vmatpush1.msra.mxu0 0.0
    %490 = vmatprep.subr.mxu0 0.0
    %491 = vmatpush1.msra.mxu0 0.0
    %492 = vmatprep.subr.mxu0 0.0
    %493 = vmatpush1.msra.mxu0 0.0
    %494 = vmatprep.subr.mxu0 0.0
    %495 = vmatpush1.msra.mxu0 0.0
    %496 = vmatprep.subr.mxu0 0.0
    %497 = vmatpush1.msra.mxu0 0.0
    %498 = vmatprep.subr.mxu0 0.0
    %499 = vmatpush1.msra.mxu0 0.0
    %500 = vmatprep.subr.mxu0 0.0
    %501 = vmatpush1.msra.mxu0 0.0
    %502 = vmatprep.subr.mxu0 0.0
    %503 = vmatpush1.msra.mxu0 0.0
    %504 = vmatprep.subr.mxu0 0.0
    %505 = vmatpush1.msra.mxu0 0.0
    %506 = vmatprep.subr.mxu0 0.0
    %507 = vmatpush1.msra.mxu0 0.0
    %508 = vmatprep.subr.mxu0 0.0
    %509 = vmatpush1.msra.mxu0 0.0
    %510 = vmatprep.subr.mxu0 0.0
    %511 = vmatpush1.msra.mxu0 0.0
    %512 = vmatprep.subr.mxu0 0.0
    %513 = vmatpush1.msra.mxu0 0.0
    %514 = vmatprep.subr.mxu0 0.0
    %515 = vmatpush1.msra.mxu0 0.0
    %516 = vmatprep.subr.mxu0 0.0
    %517 = vmatpush1.msra.mxu0 0.0
    %518 = vmatprep.subr.mxu0 0.0
    %519 = vmatpush1.msra.mxu0 0.0
    %520 = vmatprep.subr.mxu0 0.0
    %521 = vmatpush1.msra.mxu0 0.0
    %522 = vmatprep.subr.mxu0 0.0
    %523 = vmatpush1.msra.mxu0 0.0
    %524 = vmatprep.subr.mxu0 0.0
    %525 = vmatpush1.msra.mxu0 0.0
    %526 = vmatprep.subr.mxu0 0.0
    %527 = vmatpush1.msra.mxu0 0.0
    %528 = vmatprep.subr.mxu0 0.0
    %529 = vmatpush1.msra.mxu0 0.0
    %530 = vmatprep.subr.mxu0 0.0
    %531 = vmatpush1.msra.mxu0 0.0
    %532 = vmatprep.subr.mxu0 0.0
    %533 = vmatpush1.msra.mxu0 0.0
    %534 = vmatprep.subr.mxu0 0.0
    %535 = vmatpush1.msra.mxu0 0.0
    %536 = vmatprep.subr.mxu0 0.0
    %537 = vmatpush1.msra.mxu0 0.0
    %538 = vmatprep.subr.mxu0 0.0
    %539 = vmatpush1.msra.mxu0 0.0
    %540 = vmatprep.mubr.f32.mxu0 0.0
    %541 = vmatmul.mubr.f32.gmra.mrb[0].mxu0 %v465
    %v542 = vpop.f32.mrb[0].mxu0
    %v543 = vadd.f32 %v195, %v542
    %v544 = vpop.f32.mrb[0].mxu0
    %545 = vmatprep.mubr.f32.mxu0 0.0
    %546 = vmatmul.mubr.f32.gmra.mrb[0].mxu0 %v468
    %v547 = vpop.f32.mrb[0].mxu0
    %v548 = vadd.f32 %v195, %v547
    %v549 = vpop.f32.mrb[0].mxu0
    %550 = vmatprep.mubr.f32.mxu0 0.0
    %551 = vmatmul.mubr.f32.gmra.mrb[0].mxu0 %v471
    %v552 = vpop.f32.mrb[0].mxu0
    %v553 = vadd.f32 %v195, %v552
    %v554 = vpop.f32.mrb[0].mxu0
    %555 = vmatprep.mubr.f32.mxu0 0.0
    %556 = vmatmul.mubr.f32.gmra.mrb[0].mxu0 %v474
    %v557 = vpop.f32.mrb[0].mxu0
    %v558 = vadd.f32 %v195, %v557
    %v559 = vpop.f32.mrb[0].mxu0
    %560 = vdwg.mxu0
    %561 = vmax.xlane.f32.xlu0 %v543
    %v562 = vpop.xlane.xlu0 %561
    %563 = vmax.xlane.f32.xlu0 %v548
    %v564 = vpop.xlane.xlu0 %563
    %565 = vmax.xlane.f32.xlu0 %v553
    %v566 = vpop.xlane.xlu0 %565
    %567 = vmax.xlane.f32.xlu0 %v558
    %v568 = vpop.xlane.xlu0 %567
    %vm569 = vcmp.ge.f32.partialorder %v543, %v562
    %vm570 = vcmp.ge.f32.partialorder %v548, %v564
    %vm571 = vcmp.ge.f32.partialorder %v553, %v566
    %vm572 = vcmp.ge.f32.partialorder %v558, %v568
    %v573 = vsel %vm569, %v193, 128
    %v574 = vsel %vm570, %v193, 128
    %v575 = vsel %vm571, %v193, 128
    %v576 = vsel %vm572, %v193, 128
    %v577 = vand.u32 %v573, 65535
    %v578 = vshra.s32 %v573, 16
    %v579 = vcvt.s32.f32 %v577
    %v580 = vcvt.s32.f32 %v578
    %581 = vmin.xlane.f32.xlu0 %v580
    %v582 = vpop.xlane.xlu0 %581
    %vm583 = vcmp.eq.f32.partialorder %v580, %v582
    %v584 = vsel %vm583, %v579, inf
    %585 = vmin.xlane.f32.xlu0 %v584
    %v586 = vpop.xlane.xlu0 %585
    %v587 = vcvt.f32.s32 %v586
    %v588 = vcvt.f32.s32 %v582
    %v589 = vshll.u32 %v588, 16
    %v590 = vadd.s32 %v589, %v587
    %v591 = vand.u32 %v574, 65535
    %v592 = vshra.s32 %v574, 16
    %v593 = vcvt.s32.f32 %v591
    %v594 = vcvt.s32.f32 %v592
    %595 = vmin.xlane.f32.xlu0 %v594
    %v596 = vpop.xlane.xlu0 %595
    %vm597 = vcmp.eq.f32.partialorder %v594, %v596
    %v598 = vsel %vm597, %v593, inf
    %599 = vmin.xlane.f32.xlu0 %v598
    %v600 = vpop.xlane.xlu0 %599
    %v601 = vcvt.f32.s32 %v600
    %v602 = vcvt.f32.s32 %v596
    %v603 = vshll.u32 %v602, 16
    %v604 = vadd.s32 %v603, %v601
    %v605 = vand.u32 %v575, 65535
    %v606 = vshra.s32 %v575, 16
    %v607 = vcvt.s32.f32 %v605
    %v608 = vcvt.s32.f32 %v606
    %609 = vmin.xlane.f32.xlu0 %v608
    %v610 = vpop.xlane.xlu0 %609
    %vm611 = vcmp.eq.f32.partialorder %v608, %v610
    %v612 = vsel %vm611, %v607, inf
    %613 = vmin.xlane.f32.xlu0 %v612
    %v614 = vpop.xlane.xlu0 %613
    %v615 = vcvt.f32.s32 %v614
    %v616 = vcvt.f32.s32 %v610
    %v617 = vshll.u32 %v616, 16
    %v618 = vadd.s32 %v617, %v615
    %v619 = vand.u32 %v576, 65535
    %v620 = vshra.s32 %v576, 16
    %v621 = vcvt.s32.f32 %v619
    %v622 = vcvt.s32.f32 %v620
    %623 = vmin.xlane.f32.xlu0 %v622
    %v624 = vpop.xlane.xlu0 %623
    %vm625 = vcmp.eq.f32.partialorder %v622, %v624
    %v626 = vsel %vm625, %v621, inf
    %627 = vmin.xlane.f32.xlu0 %v626
    %v628 = vpop.xlane.xlu0 %627
    %v629 = vcvt.f32.s32 %v628
    %v630 = vcvt.f32.s32 %v624
    %v631 = vshll.u32 %v630, 16
    %v632 = vadd.s32 %v631, %v629
    %vm633 = vcmp.eq.s32.totalorder %v590, %v193
    %vm634 = vcmp.eq.s32.totalorder %v604, %v193
    %vm635 = vcmp.eq.s32.totalorder %v618, %v193
    %vm636 = vcmp.eq.s32.totalorder %v632, %v193
    %v637 = vsel %vm633, 1, 0
    %v638 = vsel %vm634, 1, 0
    %v639 = vsel %vm635, 1, 0
    %v640 = vsel %vm636, 1, 0
    %v641 = vcvt.s32.f32 %v637
    %v642 = vcvt.s32.f32 %v638
    %v643 = vcvt.s32.f32 %v639
    %v644 = vcvt.s32.f32 %v640
    %v645 = vld [vmem:[#allocation10] sm:$0xff]
    %v646 = vld [vmem:[#allocation10 + $0x8] sm:$0xff]
    %v647 = vld [vmem:[#allocation10 + $0x10] sm:$0xff]
    %v648 = vld [vmem:[#allocation10 + $0x18] sm:$0xff]
    %v649 = vld [vmem:[#allocation10 + $0x20] sm:$0xff]
    %v650 = vld [vmem:[#allocation10 + $0x28] sm:$0xff]
    %v651 = vld [vmem:[#allocation10 + $0x30] sm:$0xff]
    %v652 = vld [vmem:[#allocation10 + $0x38] sm:$0xff]
    %v653 = vld [vmem:[#allocation10 + $0x40] sm:$0xff]
    %v654 = vld [vmem:[#allocation10 + $0x48] sm:$0xff]
    %v655 = vld [vmem:[#allocation10 + $0x50] sm:$0xff]
    %v656 = vld [vmem:[#allocation10 + $0x58] sm:$0xff]
    %v657 = vld [vmem:[#allocation10 + $0x60] sm:$0xff]
    %v658 = vld [vmem:[#allocation10 + $0x68] sm:$0xff]
    %v659 = vld [vmem:[#allocation10 + $0x70] sm:$0xff]
    %v660 = vld [vmem:[#allocation10 + $0x78] sm:$0xff]
    %661 = vmatprep.subr.mxu0 0.0
    %662 = vmatpush1.msra.mxu0 %v645
    %663 = vmatprep.subr.mxu0 0.0
    %664 = vmatpush1.msra.mxu0 %v646
    %665 = vmatprep.subr.mxu0 0.0
    %666 = vmatpush1.msra.mxu0 %v647
    %667 = vmatprep.subr.mxu0 0.0
    %668 = vmatpush1.msra.mxu0 %v648
    %669 = vmatprep.subr.mxu0 0.0
    %670 = vmatpush1.msra.mxu0 %v649
    %671 = vmatprep.subr.mxu0 0.0
    %672 = vmatpush1.msra.mxu0 %v650
    %673 = vmatprep.subr.mxu0 0.0
    %674 = vmatpush1.msra.mxu0 %v651
    %675 = vmatprep.subr.mxu0 0.0
    %676 = vmatpush1.msra.mxu0 %v652
    %677 = vmatprep.subr.mxu0 0.0
    %678 = vmatpush1.msra.mxu0 %v653
    %679 = vmatprep.subr.mxu0 0.0
    %680 = vmatpush1.msra.mxu0 %v654
    %681 = vmatprep.subr.mxu0 0.0
    %682 = vmatpush1.msra.mxu0 %v655
    %683 = vmatprep.subr.mxu0 0.0
    %684 = vmatpush1.msra.mxu0 %v656
    %685 = vmatprep.subr.mxu0 0.0
    %686 = vmatpush1.msra.mxu0 %v657
    %687 = vmatprep.subr.mxu0 0.0
    %688 = vmatpush1.msra.mxu0 %v658
    %689 = vmatprep.subr.mxu0 0.0
    %690 = vmatpush1.msra.mxu0 %v659
    %691 = vmatprep.subr.mxu0 0.0
    %692 = vmatpush1.msra.mxu0 %v660
    %693 = vmatprep.subr.mxu0 0.0
    %694 = vmatpush1.msra.mxu0 0.0
    %695 = vmatprep.subr.mxu0 0.0
    %696 = vmatpush1.msra.mxu0 0.0
    %697 = vmatprep.subr.mxu0 0.0
    %698 = vmatpush1.msra.mxu0 0.0
    %699 = vmatprep.subr.mxu0 0.0
    %700 = vmatpush1.msra.mxu0 0.0
    %701 = vmatprep.subr.mxu0 0.0
    %702 = vmatpush1.msra.mxu0 0.0
    %703 = vmatprep.subr.mxu0 0.0
    %704 = vmatpush1.msra.mxu0 0.0
    %705 = vmatprep.subr.mxu0 0.0
    %706 = vmatpush1.msra.mxu0 0.0
    %707 = vmatprep.subr.mxu0 0.0
    %708 = vmatpush1.msra.mxu0 0.0
    %709 = vmatprep.subr.mxu0 0.0
    %710 = vmatpush1.msra.mxu0 0.0
    %711 = vmatprep.subr.mxu0 0.0
    %712 = vmatpush1.msra.mxu0 0.0
    %713 = vmatprep.subr.mxu0 0.0
    %714 = vmatpush1.msra.mxu0 0.0
    %715 = vmatprep.subr.mxu0 0.0
    %716 = vmatpush1.msra.mxu0 0.0
    %717 = vmatprep.subr.mxu0 0.0
    %718 = vmatpush1.msra.mxu0 0.0
    %719 = vmatprep.subr.mxu0 0.0
    %720 = vmatpush1.msra.mxu0 0.0
    %721 = vmatprep.subr.mxu0 0.0
    %722 = vmatpush1.msra.mxu0 0.0
    %723 = vmatprep.subr.mxu0 0.0
    %724 = vmatpush1.msra.mxu0 0.0
    %725 = vmatprep.mubr.f32.mxu0 0.0
    %726 = vmatmul.mubr.f32.gmra.mrb[0].mxu0 %v641
    %v727 = vpop.f32.mrb[0].mxu0
    %v728 = vadd.f32 0.0, %v727
    %v729 = vpop.f32.mrb[0].mxu0
    %730 = vmatprep.mubr.f32.mxu0 0.0
    %731 = vmatmul.mubr.f32.gmra.mrb[0].mxu0 %v642
    %v732 = vpop.f32.mrb[0].mxu0
    %v733 = vadd.f32 0.0, %v732
    %v734 = vpop.f32.mrb[0].mxu0
    %735 = vmatprep.mubr.f32.mxu0 0.0
    %736 = vmatmul.mubr.f32.gmra.mrb[0].mxu0 %v643
    %v737 = vpop.f32.mrb[0].mxu0
    %v738 = vadd.f32 0.0, %v737
    %v739 = vpop.f32.mrb[0].mxu0
    %740 = vmatprep.mubr.f32.mxu0 0.0
    %741 = vmatmul.mubr.f32.gmra.mrb[0].mxu0 %v644
    %v742 = vpop.f32.mrb[0].mxu0
    %v743 = vadd.f32 0.0, %v742
    %v744 = vpop.f32.mrb[0].mxu0
    %745 = vdwg.mxu0
    %v746 = vld [vmem:[#allocation11] sm:$0xff]
    %v747 = vld [vmem:[#allocation11 + $0x8] sm:$0xff]
    %v748 = vld [vmem:[#allocation11 + $0x10] sm:$0xff]
    %v749 = vld [vmem:[#allocation11 + $0x18] sm:$0xff]
    %v751 = vsel %vm207, %v746, 0
    %v754 = vsel %vm207, %v747, 0
    %v757 = vsel %vm207, %v748, 0
    %v760 = vsel %vm207, %v749, 0
    %762 = vmatprep.subr.mxu0 0.0
    %763 = vmatpush1.msra.mxu0 %v728
    %764 = vmatprep.subr.mxu0 0.0
    %765 = vmatpush1.msra.mxu0 %v733
    %766 = vmatprep.subr.mxu0 0.0
    %767 = vmatpush1.msra.mxu0 %v738
    %768 = vmatprep.subr.mxu0 0.0
    %769 = vmatpush1.msra.mxu0 %v743
    %770 = vmatprep.subr.mxu0 0.0
    %771 = vmatpush1.msra.mxu0 0.0
    %772 = vmatprep.subr.mxu0 0.0
    %773 = vmatpush1.msra.mxu0 0.0
    %774 = vmatprep.subr.mxu0 0.0
    %775 = vmatpush1.msra.mxu0 0.0
    %776 = vmatprep.subr.mxu0 0.0
    %777 = vmatpush1.msra.mxu0 0.0
    %778 = vmatprep.subr.mxu0 0.0
    %779 = vmatpush1.msra.mxu0 0.0
    %780 = vmatprep.subr.mxu0 0.0
    %781 = vmatpush1.msra.mxu0 0.0
    %782 = vmatprep.subr.mxu0 0.0
    %783 = vmatpush1.msra.mxu0 0.0
    %784 = vmatprep.subr.mxu0 0.0
    %785 = vmatpush1.msra.mxu0 0.0
    %786 = vmatprep.subr.mxu0 0.0
    %787 = vmatpush1.msra.mxu0 0.0
    %788 = vmatprep.subr.mxu0 0.0
    %789 = vmatpush1.msra.mxu0 0.0
    %790 = vmatprep.subr.mxu0 0.0
    %791 = vmatpush1.msra.mxu0 0.0
    %792 = vmatprep.subr.mxu0 0.0
    %793 = vmatpush1.msra.mxu0 0.0
    %794 = vmatprep.subr.mxu0 0.0
    %795 = vmatpush1.msra.mxu0 0.0
    %796 = vmatprep.subr.mxu0 0.0
    %797 = vmatpush1.msra.mxu0 0.0
    %798 = vmatprep.subr.mxu0 0.0
    %799 = vmatpush1.msra.mxu0 0.0
    %800 = vmatprep.subr.mxu0 0.0
    %801 = vmatpush1.msra.mxu0 0.0
    %802 = vmatprep.subr.mxu0 0.0
    %803 = vmatpush1.msra.mxu0 0.0
    %804 = vmatprep.subr.mxu0 0.0
    %805 = vmatpush1.msra.mxu0 0.0
    %806 = vmatprep.subr.mxu0 0.0
    %807 = vmatpush1.msra.mxu0 0.0
    %808 = vmatprep.subr.mxu0 0.0
    %809 = vmatpush1.msra.mxu0 0.0
    %810 = vmatprep.subr.mxu0 0.0
    %811 = vmatpush1.msra.mxu0 0.0
    %812 = vmatprep.subr.mxu0 0.0
    %813 = vmatpush1.msra.mxu0 0.0
    %814 = vmatprep.subr.mxu0 0.0
    %815 = vmatpush1.msra.mxu0 0.0
    %816 = vmatprep.subr.mxu0 0.0
    %817 = vmatpush1.msra.mxu0 0.0
    %818 = vmatprep.subr.mxu0 0.0
    %819 = vmatpush1.msra.mxu0 0.0
    %820 = vmatprep.subr.mxu0 0.0
    %821 = vmatpush1.msra.mxu0 0.0
    %822 = vmatprep.subr.mxu0 0.0
    %823 = vmatpush1.msra.mxu0 0.0
    %824 = vmatprep.subr.mxu0 0.0
    %825 = vmatpush1.msra.mxu0 0.0
    %826 = vmatprep.mubr.f32.mxu0 0.0
    %827 = vmatmul.mubr.f32.gmra.mrb[0].mxu0 %v751
    %v828 = vpop.f32.mrb[0].mxu0
    %v829 = vadd.f32 0.0, %v828
    %v830 = vpop.f32.mrb[0].mxu0
    %831 = vmatprep.mubr.f32.mxu0 0.0
    %832 = vmatmul.mubr.f32.gmra.mrb[0].mxu0 %v754
    %v833 = vpop.f32.mrb[0].mxu0
    %v834 = vadd.f32 0.0, %v833
    %v835 = vpop.f32.mrb[0].mxu0
    %836 = vmatprep.mubr.f32.mxu0 0.0
    %837 = vmatmul.mubr.f32.gmra.mrb[0].mxu0 %v757
    %v838 = vpop.f32.mrb[0].mxu0
    %v839 = vadd.f32 0.0, %v838
    %v840 = vpop.f32.mrb[0].mxu0
    %841 = vmatprep.mubr.f32.mxu0 0.0
    %842 = vmatmul.mubr.f32.gmra.mrb[0].mxu0 %v760
    %v843 = vpop.f32.mrb[0].mxu0
    %v844 = vadd.f32 0.0, %v843
    %v845 = vpop.f32.mrb[0].mxu0
    %846 = vdwg.mxu0
    %vm852 = vcmask 1046528
    %v853 = vrot.slane 0.0, 1
    %v854 = vrot.slane %v829, 1
    %v855 = vsel %vm852, %v853, %v854
    %v856 = vrot.slane %v834, 1
    %v857 = vsel %vm852, %v854, %v856
    %v858 = vrot.slane %v839, 1
    %v859 = vsel %vm852, %v856, %v858
    %v860 = vrot.slane %v844, 1
    %v861 = vsel %vm852, %v858, %v860
    %862 = vrot.lane.b32.xlu0 %v855, 8
    %v863 = vpop.permute.xlu0 %862
    %864 = vrot.lane.b32.xlu0 %v857, 8
    %v865 = vpop.permute.xlu0 %864
    %866 = vrot.lane.b32.xlu0 %v859, 8
    %v867 = vpop.permute.xlu0 %866
    %868 = vrot.lane.b32.xlu0 %v861, 8
    %v869 = vpop.permute.xlu0 %868
    %870 = vrot.lane.b32.xlu0 %v860, 8
    %v871 = vpop.permute.xlu0 %870
    %vm877 = vcmask 1045504
    %v878 = vrot.slane 0.0, 2
    %v879 = vrot.slane %v829, 2
    %v880 = vsel %vm877, %v878, %v879
    %v881 = vrot.slane %v834, 2
    %v882 = vsel %vm877, %v879, %v881
    %v883 = vrot.slane %v839, 2
    %v884 = vsel %vm877, %v881, %v883
    %v885 = vrot.slane %v844, 2
    %v886 = vsel %vm877, %v883, %v885
    %887 = vrot.lane.b32.xlu0 %v880, 16
    %v888 = vpop.permute.xlu0 %887
    %889 = vrot.lane.b32.xlu0 %v882, 16
    %v890 = vpop.permute.xlu0 %889
    %891 = vrot.lane.b32.xlu0 %v884, 16
    %v892 = vpop.permute.xlu0 %891
    %893 = vrot.lane.b32.xlu0 %v886, 16
    %v894 = vpop.permute.xlu0 %893
    %895 = vrot.lane.b32.xlu0 %v885, 16
    %v896 = vpop.permute.xlu0 %895
    %vm902 = vcmask 1044480
    %v903 = vrot.slane 0.0, 3
    %v904 = vrot.slane %v829, 3
    %v905 = vsel %vm902, %v903, %v904
    %v906 = vrot.slane %v834, 3
    %v907 = vsel %vm902, %v904, %v906
    %v908 = vrot.slane %v839, 3
    %v909 = vsel %vm902, %v906, %v908
    %v910 = vrot.slane %v844, 3
    %v911 = vsel %vm902, %v908, %v910
    %912 = vrot.lane.b32.xlu0 %v905, 24
    %v913 = vpop.permute.xlu0 %912
    %914 = vrot.lane.b32.xlu0 %v907, 24
    %v915 = vpop.permute.xlu0 %914
    %916 = vrot.lane.b32.xlu0 %v909, 24
    %v917 = vpop.permute.xlu0 %916
    %918 = vrot.lane.b32.xlu0 %v911, 24
    %v919 = vpop.permute.xlu0 %918
    %920 = vrot.lane.b32.xlu0 %v910, 24
    %v921 = vpop.permute.xlu0 %920
    %vm927 = vcmask 1043456
    %v928 = vrot.slane %v829, 4
    %v929 = vrot.slane %v834, 4
    %v930 = vsel %vm927, %v928, %v929
    %v931 = vrot.slane %v839, 4
    %v932 = vsel %vm927, %v929, %v931
    %v933 = vrot.slane %v844, 4
    %v934 = vsel %vm927, %v931, %v933
    %935 = vrot.lane.b32.xlu0 %v928, 32
    %v936 = vpop.permute.xlu0 %935
    %937 = vrot.lane.b32.xlu0 %v930, 32
    %v938 = vpop.permute.xlu0 %937
    %939 = vrot.lane.b32.xlu0 %v932, 32
    %v940 = vpop.permute.xlu0 %939
    %941 = vrot.lane.b32.xlu0 %v934, 32
    %v942 = vpop.permute.xlu0 %941
    %943 = vrot.lane.b32.xlu0 %v933, 32
    %v944 = vpop.permute.xlu0 %943
    %vm950 = vcmask 1042432
    %v951 = vrot.slane %v829, 5
    %v952 = vrot.slane %v834, 5
    %v953 = vsel %vm950, %v951, %v952
    %v954 = vrot.slane %v839, 5
    %v955 = vsel %vm950, %v952, %v954
    %v956 = vrot.slane %v844, 5
    %v957 = vsel %vm950, %v954, %v956
    %v958 = vrot.slane 0.0, 5
    %v959 = vsel %vm950, %v956, %v958
    %960 = vrot.lane.b32.xlu0 %v951, 40
    %v961 = vpop.permute.xlu0 %960
    %962 = vrot.lane.b32.xlu0 %v953, 40
    %v963 = vpop.permute.xlu0 %962
    %964 = vrot.lane.b32.xlu0 %v955, 40
    %v965 = vpop.permute.xlu0 %964
    %966 = vrot.lane.b32.xlu0 %v957, 40
    %v967 = vpop.permute.xlu0 %966
    %968 = vrot.lane.b32.xlu0 %v959, 40
    %v969 = vpop.permute.xlu0 %968
    %vm975 = vcmask 1041408
    %v976 = vrot.slane %v829, 6
    %v977 = vrot.slane %v834, 6
    %v978 = vsel %vm975, %v976, %v977
    %v979 = vrot.slane %v839, 6
    %v980 = vsel %vm975, %v977, %v979
    %v981 = vrot.slane %v844, 6
    %v982 = vsel %vm975, %v979, %v981
    %v983 = vrot.slane 0.0, 6
    %v984 = vsel %vm975, %v981, %v983
    %985 = vrot.lane.b32.xlu0 %v976, 48
    %v986 = vpop.permute.xlu0 %985
    %987 = vrot.lane.b32.xlu0 %v978, 48
    %v988 = vpop.permute.xlu0 %987
    %989 = vrot.lane.b32.xlu0 %v980, 48
    %v990 = vpop.permute.xlu0 %989
    %991 = vrot.lane.b32.xlu0 %v982, 48
    %v992 = vpop.permute.xlu0 %991
    %993 = vrot.lane.b32.xlu0 %v984, 48
    %v994 = vpop.permute.xlu0 %993
    %vm1000 = vcmask 1040384
    %v1001 = vrot.slane %v829, 7
    %v1002 = vrot.slane %v834, 7
    %v1003 = vsel %vm1000, %v1001, %v1002
    %v1004 = vrot.slane %v839, 7
    %v1005 = vsel %vm1000, %v1002, %v1004
    %v1006 = vrot.slane %v844, 7
    %v1007 = vsel %vm1000, %v1004, %v1006
    %v1008 = vrot.slane 0.0, 7
    %v1009 = vsel %vm1000, %v1006, %v1008
    %1010 = vrot.lane.b32.xlu0 %v1001, 56
    %v1011 = vpop.permute.xlu0 %1010
    %1012 = vrot.lane.b32.xlu0 %v1003, 56
    %v1013 = vpop.permute.xlu0 %1012
    %1014 = vrot.lane.b32.xlu0 %v1005, 56
    %v1015 = vpop.permute.xlu0 %1014
    %1016 = vrot.lane.b32.xlu0 %v1007, 56
    %v1017 = vpop.permute.xlu0 %1016
    %1018 = vrot.lane.b32.xlu0 %v1009, 56
    %v1019 = vpop.permute.xlu0 %1018
    %1025 = vrot.lane.b32.xlu0 %v829, 64
    %v1026 = vpop.permute.xlu0 %1025
    %1027 = vrot.lane.b32.xlu0 %v834, 64
    %v1028 = vpop.permute.xlu0 %1027
    %1029 = vrot.lane.b32.xlu0 %v839, 64
    %v1030 = vpop.permute.xlu0 %1029
    %1031 = vrot.lane.b32.xlu0 %v844, 64
    %v1032 = vpop.permute.xlu0 %1031
    %1033 = vrot.lane.b32.xlu0 0.0, 64
    %v1034 = vpop.permute.xlu0 %1033
    %v1040 = vsel %vm410, 0.0, %v863
    %v1041 = vsel %vm410, %v829, %v865
    %v1042 = vsel %vm410, %v834, %v867
    %v1043 = vsel %vm410, %v839, %v869
    %v1044 = vsel %vm410, %v844, %v871
    %vm1045 = vcmask 130048
    %v1046 = vsel %vm1045, %v1040, %v888
    %v1047 = vsel %vm1045, %v1041, %v890
    %v1048 = vsel %vm1045, %v1042, %v892
    %v1049 = vsel %vm1045, %v1043, %v894
    %v1050 = vsel %vm1045, %v1044, %v896
    %vm1051 = vcmask 195584
    %v1052 = vsel %vm1051, %v1046, %v913
    %v1053 = vsel %vm1051, %v1047, %v915
    %v1054 = vsel %vm1051, %v1048, %v917
    %v1055 = vsel %vm1051, %v1049, %v919
    %v1056 = vsel %vm1051, %v1050, %v921
    %v1057 = vsel %vm207, %v1052, %v936
    %v1058 = vsel %vm207, %v1053, %v938
    %v1059 = vsel %vm207, %v1054, %v940
    %v1060 = vsel %vm207, %v1055, %v942
    %v1061 = vsel %vm207, %v1056, %v944
    %vm1062 = vcmask 326656
    %v1063 = vsel %vm1062, %v1057, %v961
    %v1064 = vsel %vm1062, %v1058, %v963
    %v1065 = vsel %vm1062, %v1059, %v965
    %v1066 = vsel %vm1062, %v1060, %v967
    %v1067 = vsel %vm1062, %v1061, %v969
    %vm1068 = vcmask 392192
    %v1069 = vsel %vm1068, %v1063, %v986
    %v1070 = vsel %vm1068, %v1064, %v988
    %v1071 = vsel %vm1068, %v1065, %v990
    %v1072 = vsel %vm1068, %v1066, %v992
    %v1073 = vsel %vm1068, %v1067, %v994
    %vm1074 = vcmask 457728
    %v1075 = vsel %vm1074, %v1069, %v1011
    %v1076 = vsel %vm1074, %v1070, %v1013
    %v1077 = vsel %vm1074, %v1071, %v1015
    %v1078 = vsel %vm1074, %v1072, %v1017
    %v1079 = vsel %vm1074, %v1073, %v1019
    %vm1080 = vcmask 523264
    %v1081 = vsel %vm1080, %v1075, %v1026
    %v1082 = vsel %vm1080, %v1076, %v1028
    %v1083 = vsel %vm1080, %v1077, %v1030
    %v1084 = vsel %vm1080, %v1078, %v1032
    %v1085 = vsel %vm1080, %v1079, %v1034
    %v1090 = vrot.slane %v187, 4
    %v1091 = vrot.slane %v188, 4
    %v1092 = vsel %vm927, %v1090, %v1091
    %v1093 = vrot.slane %v189, 4
    %v1094 = vsel %vm927, %v1091, %v1093
    %v1095 = vrot.slane %v190, 4
    %v1096 = vsel %vm927, %v1093, %v1095
    %v1102 = vmul.f32 %v1081, %v1090
    %v1103 = vmul.f32 %v1082, %v1092
    %v1104 = vmul.f32 %v1083, %v1094
    %v1105 = vmul.f32 %v1084, %v1096
    %v1106 = vmul.f32 %v1085, %v1095
    %v1107 = vld [vmem:[#allocation13] sm:$0xff]
    %v1108 = vld [vmem:[#allocation13 + $0x8] sm:$0xff]
    %v1109 = vld [vmem:[#allocation13 + $0x10] sm:$0xff]
    %v1110 = vld [vmem:[#allocation13 + $0x18] sm:$0xff]
    %v1111 = vld [vmem:[#allocation13 + $0x20] sm:$0xff]
    %v1112 = vld [vmem:[#allocation13 + $0x28] sm:$0xff]
    %v1113 = vld [vmem:[#allocation13 + $0x30] sm:$0xff]
    %v1114 = vld [vmem:[#allocation13 + $0x38] sm:$0xff]
    %v1115 = vld [vmem:[#allocation13 + $0x40] sm:$0xff]
    %v1116 = vld [vmem:[%s9] sm:$0x1]
    %v1118 = vlaneseq
    %v1119 = vshrl.u32 %v1118, 7
    %v1120 = vsub.s32 0, %v1119
    %v1121 = vrot.slane %v1116, %v1120
    %v1128 = vrot.slane %v1102, 4
    %v1129 = vrot.slane %v1103, 4
    %v1130 = vsel %vm927, %v1128, %v1129
    %v1131 = vrot.slane %v1104, 4
    %v1132 = vsel %vm927, %v1129, %v1131
    %v1133 = vrot.slane %v1105, 4
    %v1134 = vsel %vm927, %v1131, %v1133
    %v1135 = vrot.slane %v1106, 4
    %v1136 = vsel %vm927, %v1133, %v1135
    %vm1137 = vcmask 588800
    %v1138 = vsel %vm1137, %v1130, 0
    %v1140 = vsel %vm1137, %v1132, 0
    %v1142 = vsel %vm1137, %v1134, 0
    %v1144 = vsel %vm1137, %v1136, 0
    %1146 = vmatprep.subr.mxu0 0.0
    %1147 = vmatpush1.msra.mxu0 %v1107
    %1148 = vmatprep.subr.mxu0 0.0
    %1149 = vmatpush1.msra.mxu0 %v1108
    %1150 = vmatprep.subr.mxu0 0.0
    %1151 = vmatpush1.msra.mxu0 %v1109
    %1152 = vmatprep.subr.mxu0 0.0
    %1153 = vmatpush1.msra.mxu0 %v1110
    %1154 = vmatprep.subr.mxu0 0.0
    %1155 = vmatpush1.msra.mxu0 %v1111
    %1156 = vmatprep.subr.mxu0 0.0
    %1157 = vmatpush1.msra.mxu0 %v1112
    %1158 = vmatprep.subr.mxu0 0.0
    %1159 = vmatpush1.msra.mxu0 %v1113
    %1160 = vmatprep.subr.mxu0 0.0
    %1161 = vmatpush1.msra.mxu0 %v1114
    %1162 = vmatprep.subr.mxu0 0.0
    %1163 = vmatpush1.msra.mxu0 %v1115
    %1164 = vmatprep.subr.mxu0 0.0
    %1165 = vmatpush1.msra.mxu0 0.0
    %1166 = vmatprep.subr.mxu0 0.0
    %1167 = vmatpush1.msra.mxu0 0.0
    %1168 = vmatprep.subr.mxu0 0.0
    %1169 = vmatpush1.msra.mxu0 0.0
    %1170 = vmatprep.subr.mxu0 0.0
    %1171 = vmatpush1.msra.mxu0 0.0
    %1172 = vmatprep.subr.mxu0 0.0
    %1173 = vmatpush1.msra.mxu0 0.0
    %1174 = vmatprep.subr.mxu0 0.0
    %1175 = vmatpush1.msra.mxu0 0.0
    %1176 = vmatprep.subr.mxu0 0.0
    %1177 = vmatpush1.msra.mxu0 0.0
    %1178 = vmatprep.subr.mxu0 0.0
    %1179 = vmatpush1.msra.mxu0 0.0
    %1180 = vmatprep.subr.mxu0 0.0
    %1181 = vmatpush1.msra.mxu0 0.0
    %1182 = vmatprep.subr.mxu0 0.0
    %1183 = vmatpush1.msra.mxu0 0.0
    %1184 = vmatprep.subr.mxu0 0.0
    %1185 = vmatpush1.msra.mxu0 0.0
    %1186 = vmatprep.subr.mxu0 0.0
    %1187 = vmatpush1.msra.mxu0 0.0
    %1188 = vmatprep.subr.mxu0 0.0
    %1189 = vmatpush1.msra.mxu0 0.0
    %1190 = vmatprep.subr.mxu0 0.0
    %1191 = vmatpush1.msra.mxu0 0.0
    %1192 = vmatprep.subr.mxu0 0.0
    %1193 = vmatpush1.msra.mxu0 0.0
    %1194 = vmatprep.subr.mxu0 0.0
    %1195 = vmatpush1.msra.mxu0 0.0
    %1196 = vmatprep.subr.mxu0 0.0
    %1197 = vmatpush1.msra.mxu0 0.0
    %1198 = vmatprep.subr.mxu0 0.0
    %1199 = vmatpush1.msra.mxu0 0.0
    %1200 = vmatprep.subr.mxu0 0.0
    %1201 = vmatpush1.msra.mxu0 0.0
    %1202 = vmatprep.subr.mxu0 0.0
    %1203 = vmatpush1.msra.mxu0 0.0
    %1204 = vmatprep.subr.mxu0 0.0
    %1205 = vmatpush1.msra.mxu0 0.0
    %1206 = vmatprep.subr.mxu0 0.0
    %1207 = vmatpush1.msra.mxu0 0.0
    %1208 = vmatprep.subr.mxu0 0.0
    %1209 = vmatpush1.msra.mxu0 0.0
    %1210 = vmatprep.mubr.f32.mxu0 0.0
    %1211 = vmatmul.mubr.f32.gmra.mrb[0].mxu0 %v1138
    %v1212 = vpop.f32.mrb[0].mxu0
    %v1213 = vadd.f32 %v1121, %v1212
    %v1214 = vpop.f32.mrb[0].mxu0
    %1215 = vmatprep.mubr.f32.mxu0 0.0
    %1216 = vmatmul.mubr.f32.gmra.mrb[0].mxu0 %v1140
    %v1217 = vpop.f32.mrb[0].mxu0
    %v1218 = vadd.f32 %v1121, %v1217
    %v1219 = vpop.f32.mrb[0].mxu0
    %1220 = vmatprep.mubr.f32.mxu0 0.0
    %1221 = vmatmul.mubr.f32.gmra.mrb[0].mxu0 %v1142
    %v1222 = vpop.f32.mrb[0].mxu0
    %v1223 = vadd.f32 %v1121, %v1222
    %v1224 = vpop.f32.mrb[0].mxu0
    %1225 = vmatprep.mubr.f32.mxu0 0.0
    %1226 = vmatmul.mubr.f32.gmra.mrb[0].mxu0 %v1144
    %v1227 = vpop.f32.mrb[0].mxu0
    %v1228 = vadd.f32 %v1121, %v1227
    %v1229 = vpop.f32.mrb[0].mxu0
    %1230 = vdwg.mxu0
    %v1231 = vmul.f32 %v829, 0.5
    %v1232 = vmul.f32 %v834, 0.5
    %v1233 = vmul.f32 %v839, 0.5
    %v1234 = vmul.f32 %v844, 0.5
    %v1235 = vmul.f32 %v1213, 0.5
    %v1236 = vmul.f32 %v1218, 0.5
    %v1237 = vmul.f32 %v1223, 0.5
    %v1238 = vmul.f32 %v1228, 0.5
    %v1239 = vadd.f32 %v1231, %v1235
    %v1240 = vadd.f32 %v1232, %v1236
    %v1241 = vadd.f32 %v1233, %v1237
    %v1242 = vadd.f32 %v1234, %v1238
    %v1243 = vsub.f32 %v287, %v1239
    %v1244 = vsub.f32 %v292, %v1240
    %v1245 = vsub.f32 %v297, %v1241
    %v1246 = vsub.f32 %v302, %v1242
    %v1247 = vmul.f32 %v1243, %v1243
    %v1248 = vmul.f32 %v1244, %v1244
    %v1249 = vmul.f32 %v1245, %v1245
    %v1250 = vmul.f32 %v1246, %v1246
    %v1252 = vsel %vm207, %v191, 0
    %1254 = vmatprep.subr.mxu0 0.0
    %1255 = vmatpush1.msra.mxu0 %v1247
    %1256 = vmatprep.subr.mxu0 0.0
    %1257 = vmatpush1.msra.mxu0 %v1248
    %1258 = vmatprep.subr.mxu0 0.0
    %1259 = vmatpush1.msra.mxu0 %v1249
    %1260 = vmatprep.subr.mxu0 0.0
    %1261 = vmatpush1.msra.mxu0 %v1250
    %1262 = vmatprep.subr.mxu0 0.0
    %1263 = vmatpush1.msra.mxu0 0.0
    %1264 = vmatprep.subr.mxu0 0.0
    %1265 = vmatpush1.msra.mxu0 0.0
    %1266 = vmatprep.subr.mxu0 0.0
    %1267 = vmatpush1.msra.mxu0 0.0
    %1268 = vmatprep.subr.mxu0 0.0
    %1269 = vmatpush1.msra.mxu0 0.0
    %1270 = vmatprep.subr.mxu0 0.0
    %1271 = vmatpush1.msra.mxu0 0.0
    %1272 = vmatprep.subr.mxu0 0.0
    %1273 = vmatpush1.msra.mxu0 0.0
    %1274 = vmatprep.subr.mxu0 0.0
    %1275 = vmatpush1.msra.mxu0 0.0
    %1276 = vmatprep.subr.mxu0 0.0
    %1277 = vmatpush1.msra.mxu0 0.0
    %1278 = vmatprep.subr.mxu0 0.0
    %1279 = vmatpush1.msra.mxu0 0.0
    %1280 = vmatprep.subr.mxu0 0.0
    %1281 = vmatpush1.msra.mxu0 0.0
    %1282 = vmatprep.subr.mxu0 0.0
    %1283 = vmatpush1.msra.mxu0 0.0
    %1284 = vmatprep.subr.mxu0 0.0
    %1285 = vmatpush1.msra.mxu0 0.0
    %1286 = vmatprep.subr.mxu0 0.0
    %1287 = vmatpush1.msra.mxu0 0.0
    %1288 = vmatprep.subr.mxu0 0.0
    %1289 = vmatpush1.msra.mxu0 0.0
    %1290 = vmatprep.subr.mxu0 0.0
    %1291 = vmatpush1.msra.mxu0 0.0
    %1292 = vmatprep.subr.mxu0 0.0
    %1293 = vmatpush1.msra.mxu0 0.0
    %1294 = vmatprep.subr.mxu0 0.0
    %1295 = vmatpush1.msra.mxu0 0.0
    %1296 = vmatprep.subr.mxu0 0.0
    %1297 = vmatpush1.msra.mxu0 0.0
    %1298 = vmatprep.subr.mxu0 0.0
    %1299 = vmatpush1.msra.mxu0 0.0
    %1300 = vmatprep.subr.mxu0 0.0
    %1301 = vmatpush1.msra.mxu0 0.0
    %1302 = vmatprep.subr.mxu0 0.0
    %1303 = vmatpush1.msra.mxu0 0.0
    %1304 = vmatprep.subr.mxu0 0.0
    %1305 = vmatpush1.msra.mxu0 0.0
    %1306 = vmatprep.subr.mxu0 0.0
    %1307 = vmatpush1.msra.mxu0 0.0
    %1308 = vmatprep.subr.mxu0 0.0
    %1309 = vmatpush1.msra.mxu0 0.0
    %1310 = vmatprep.subr.mxu0 0.0
    %1311 = vmatpush1.msra.mxu0 0.0
    %1312 = vmatprep.subr.mxu0 0.0
    %1313 = vmatpush1.msra.mxu0 0.0
    %1314 = vmatprep.subr.mxu0 0.0
    %1315 = vmatpush1.msra.mxu0 0.0
    %1316 = vmatprep.subr.mxu0 0.0
    %1317 = vmatpush1.msra.mxu0 0.0
    %1318 = vmatprep.mubr.f32.mxu0 0.0
    %1319 = vmatmul.mubr.f32.gmra.mrb[0].mxu0 %v1252
    %v1320 = vpop.f32.mrb[0].mxu0
    %v1321 = vadd.f32 0.0, %v1320
    %v1322 = vpop.f32.mrb[0].mxu0
    %1323 = vdwg.mxu0
    %vm1324 = vcmask 58368
    %v1325 = vsel %vm1324, %v1321, 0.0
    %1326 = vadd.xlane.f32.xlu0 %v1325
    %v1327 = vpop.xlane.xlu0 %1326
    %v1328 = vld [vmem:[#allocation16] sm:$0xff]
    %v1329 = vld [vmem:[#allocation17] sm:$0x1]
    %v1331 = vlaneseq
    %v1332 = vshrl.u32 %v1331, 7
    %v1333 = vsub.s32 0, %v1332
    %v1334 = vrot.slane %v1329, %v1333
    %v1337 = vsel %vm410, %v1239, 0
    %v1340 = vsel %vm410, %v1240, 0
    %v1343 = vsel %vm410, %v1241, 0
    %v1346 = vsel %vm410, %v1242, 0
    %1348 = vmatprep.subr.mxu0 0.0
    %1349 = vmatpush1.msra.mxu0 %v1328
    %1350 = vmatprep.subr.mxu0 0.0
    %1351 = vmatpush1.msra.mxu0 0.0
    %1352 = vmatprep.subr.mxu0 0.0
    %1353 = vmatpush1.msra.mxu0 0.0
    %1354 = vmatprep.subr.mxu0 0.0
    %1355 = vmatpush1.msra.mxu0 0.0
    %1356 = vmatprep.subr.mxu0 0.0
    %1357 = vmatpush1.msra.mxu0 0.0
    %1358 = vmatprep.subr.mxu0 0.0
    %1359 = vmatpush1.msra.mxu0 0.0
    %1360 = vmatprep.subr.mxu0 0.0
    %1361 = vmatpush1.msra.mxu0 0.0
    %1362 = vmatprep.subr.mxu0 0.0
    %1363 = vmatpush1.msra.mxu0 0.0
    %1364 = vmatprep.subr.mxu0 0.0
    %1365 = vmatpush1.msra.mxu0 0.0
    %1366 = vmatprep.subr.mxu0 0.0
    %1367 = vmatpush1.msra.mxu0 0.0
    %1368 = vmatprep.subr.mxu0 0.0
    %1369 = vmatpush1.msra.mxu0 0.0
    %1370 = vmatprep.subr.mxu0 0.0
    %1371 = vmatpush1.msra.mxu0 0.0
    %1372 = vmatprep.subr.mxu0 0.0
    %1373 = vmatpush1.msra.mxu0 0.0
    %1374 = vmatprep.subr.mxu0 0.0
    %1375 = vmatpush1.msra.mxu0 0.0
    %1376 = vmatprep.subr.mxu0 0.0
    %1377 = vmatpush1.msra.mxu0 0.0
    %1378 = vmatprep.subr.mxu0 0.0
    %1379 = vmatpush1.msra.mxu0 0.0
    %1380 = vmatprep.subr.mxu0 0.0
    %1381 = vmatpush1.msra.mxu0 0.0
    %1382 = vmatprep.subr.mxu0 0.0
    %1383 = vmatpush1.msra.mxu0 0.0
    %1384 = vmatprep.subr.mxu0 0.0
    %1385 = vmatpush1.msra.mxu0 0.0
    %1386 = vmatprep.subr.mxu0 0.0
    %1387 = vmatpush1.msra.mxu0 0.0
    %1388 = vmatprep.subr.mxu0 0.0
    %1389 = vmatpush1.msra.mxu0 0.0
    %1390 = vmatprep.subr.mxu0 0.0
    %1391 = vmatpush1.msra.mxu0 0.0
    %1392 = vmatprep.subr.mxu0 0.0
    %1393 = vmatpush1.msra.mxu0 0.0
    %1394 = vmatprep.subr.mxu0 0.0
    %1395 = vmatpush1.msra.mxu0 0.0
    %1396 = vmatprep.subr.mxu0 0.0
    %1397 = vmatpush1.msra.mxu0 0.0
    %1398 = vmatprep.subr.mxu0 0.0
    %1399 = vmatpush1.msra.mxu0 0.0
    %1400 = vmatprep.subr.mxu0 0.0
    %1401 = vmatpush1.msra.mxu0 0.0
    %1402 = vmatprep.subr.mxu0 0.0
    %1403 = vmatpush1.msra.mxu0 0.0
    %1404 = vmatprep.subr.mxu0 0.0
    %1405 = vmatpush1.msra.mxu0 0.0
    %1406 = vmatprep.subr.mxu0 0.0
    %1407 = vmatpush1.msra.mxu0 0.0
    %1408 = vmatprep.subr.mxu0 0.0
    %1409 = vmatpush1.msra.mxu0 0.0
    %1410 = vmatprep.subr.mxu0 0.0
    %1411 = vmatpush1.msra.mxu0 0.0
    %1412 = vmatprep.mubr.f32.mxu0 0.0
    %1413 = vmatmul.mubr.f32.gmra.mrb[0].mxu0 %v1337
    %v1414 = vpop.f32.mrb[0].mxu0
    %v1415 = vadd.f32 %v1334, %v1414
    %v1416 = vpop.f32.mrb[0].mxu0
    %1417 = vmatprep.mubr.f32.mxu0 0.0
    %1418 = vmatmul.mubr.f32.gmra.mrb[0].mxu0 %v1340
    %v1419 = vpop.f32.mrb[0].mxu0
    %v1420 = vadd.f32 %v1334, %v1419
    %v1421 = vpop.f32.mrb[0].mxu0
    %1422 = vmatprep.mubr.f32.mxu0 0.0
    %1423 = vmatmul.mubr.f32.gmra.mrb[0].mxu0 %v1343
    %v1424 = vpop.f32.mrb[0].mxu0
    %v1425 = vadd.f32 %v1334, %v1424
    %v1426 = vpop.f32.mrb[0].mxu0
    %1427 = vmatprep.mubr.f32.mxu0 0.0
    %1428 = vmatmul.mubr.f32.gmra.mrb[0].mxu0 %v1346
    %v1429 = vpop.f32.mrb[0].mxu0
    %v1430 = vadd.f32 %v1334, %v1429
    %v1431 = vpop.f32.mrb[0].mxu0
    %1432 = vdwg.mxu0
    %v1433 = vadd.f32 %v1415, 0.0
    %v1434 = vadd.f32 %v1420, 0.0
    %v1435 = vadd.f32 %v1425, 0.0
    %v1436 = vadd.f32 %v1430, 0.0
    %v1437 = vsub.f32 %v183, %v1415
    %v1438 = vsub.f32 %v184, %v1420
    %v1439 = vsub.f32 %v185, %v1425
    %v1440 = vsub.f32 %v186, %v1430
    %v1441 = vlaneseq
    %v1442 = vshrl.u32 %v1441, 7
    %vm1443 = vcmp.eq.s32.totalorder %v1442, 0
    %v1444 = vsel %vm1443, 1, 0
    %vm1445 = vcmp.eq.s32.totalorder %v1444, 1
    %v1446 = vlaneseq
    %v1447 = vshrl.u32 %v1446, 7
    %v1448 = vsub.s32 %v193, %v1447
    %v1449 = vrot.slane %v590, %v1448
    %v1450 = vadd.s32 %v193, 4294967288
    %v1451 = vlaneseq
    %v1452 = vshrl.u32 %v1451, 7
    %v1453 = vsub.s32 %v1450, %v1452
    %v1454 = vrot.slane %v604, %v1453
    %vm1455 = vcmask 130112
    %v1456 = vsel %vm1455, %v1454, %v1449
    %v1457 = vadd.s32 %v193, 4294967280
    %v1458 = vlaneseq
    %v1459 = vshrl.u32 %v1458, 7
    %v1460 = vsub.s32 %v1457, %v1459
    %v1461 = vrot.slane %v618, %v1460
    %vm1462 = vcmask 195712
    %v1463 = vsel %vm1462, %v1461, %v1456
    %v1464 = vadd.s32 %v193, 4294967272
    %v1465 = vlaneseq
    %v1466 = vshrl.u32 %v1465, 7
    %v1467 = vsub.s32 %v1464, %v1466
    %v1468 = vrot.slane %v632, %v1467
    %vm1469 = vcmask 261312
    %v1470 = vsel %vm1469, %v1468, %v1463
    %vm1471 = vcmask 1042434
    %v1472 = vsel %vm1471, %v1470, %v1470
    %vm1473 = vcmask 1043459
    %v1474 = vsel %vm1473, %v1470, %v1472
    %v1475 = vsel %vm1445, %v1474, 0
    %v1476 = vcvt.s32.f32 %v1444
    %v1478 = vlaneseq
    %v1479 = vshrl.u32 %v1478, 7
    %v1480 = vsub.s32 0, %v1479
    %v1481 = vrot.slane %v1476, %v1480
    %v1482 = vlaneseq
    %v1483 = vshrl.u32 %v1482, 7
    %v1484 = vsub.s32 1, %v1483
    %v1485 = vrot.slane %v1476, %v1484
    %v1486 = vlaneseq
    %v1487 = vshrl.u32 %v1486, 7
    %v1488 = vsub.s32 2, %v1487
    %v1489 = vrot.slane %v1476, %v1488
    %v1490 = vlaneseq
    %v1491 = vshrl.u32 %v1490, 7
    %v1492 = vsub.s32 3, %v1491
    %v1493 = vrot.slane %v1476, %v1492
    %v1498 = vmul.f32 %v287, %v1481
    %v1499 = vmul.f32 %v292, %v1481
    %v1500 = vmul.f32 %v297, %v1481
    %v1501 = vmul.f32 %v302, %v1481
    %v1502 = vmul.f32 %v287, %v1485
    %v1503 = vmul.f32 %v292, %v1485
    %v1504 = vmul.f32 %v297, %v1485
    %v1505 = vmul.f32 %v302, %v1485
    %v1506 = vmul.f32 %v287, %v1489
    %v1507 = vmul.f32 %v292, %v1489
    %v1508 = vmul.f32 %v297, %v1489
    %v1509 = vmul.f32 %v302, %v1489
    %v1510 = vmul.f32 %v287, %v1493
    %v1511 = vmul.f32 %v292, %v1493
    %v1512 = vmul.f32 %v297, %v1493
    %v1513 = vmul.f32 %v302, %v1493
    %v1514 = vadd.f32 %v1498, 0.0
    %v1515 = vadd.f32 %v1499, 0.0
    %v1516 = vadd.f32 %v1500, 0.0
    %v1517 = vadd.f32 %v1501, 0.0
    %v1518 = vadd.f32 %v1502, 0.0
    %v1519 = vadd.f32 %v1503, 0.0
    %v1520 = vadd.f32 %v1504, 0.0
    %v1521 = vadd.f32 %v1505, 0.0
    %v1522 = vadd.f32 %v1506, 0.0
    %v1523 = vadd.f32 %v1507, 0.0
    %v1524 = vadd.f32 %v1508, 0.0
    %v1525 = vadd.f32 %v1509, 0.0
    %v1526 = vadd.f32 %v1510, 0.0
    %v1527 = vadd.f32 %v1511, 0.0
    %v1528 = vadd.f32 %v1512, 0.0
    %v1529 = vadd.f32 %v1513, 0.0
    %vm1530 = vcmp.eq.s32.totalorder %v193, 0
    %v1531 = vsel %vm1530, 1, 0
    %v1532 = vcvt.s32.f32 %v1531
    %v1533 = vmul.f32 %v1327, %v1532
    %v1534 = vadd.f32 %v1533, 0.0
    %s1535 = scalar_lea.vmem [#allocation5], 32
    %v1536 = vld [vmem:[%s1535] sm:$0xff]
    %v1537 = vld [vmem:[%s1535 + $0x8] sm:$0xff]
    %v1538 = vld [vmem:[%s1535 + $0x10] sm:$0xff]
    %v1539 = vld [vmem:[%s1535 + $0x18] sm:$0xff]
    %s1540 = scalar_lea.vmem %s2, 1
    %v1541 = vld [vmem:[%s1540] sm:$0x1]
    %v1543 = vlaneseq
    %v1544 = vshrl.u32 %v1543, 7
    %v1545 = vsub.s32 0, %v1544
    %v1546 = vrot.slane %v1541, %v1545
    %v1549 = vsel %vm207, %v1437, 0
    %v1552 = vsel %vm207, %v1438, 0
    %v1555 = vsel %vm207, %v1439, 0
    %v1558 = vsel %vm207, %v1440, 0
    %1560 = vmatprep.subr.mxu0 0.0
    %1561 = vmatpush1.msra.mxu0 %v1536
    %1562 = vmatprep.subr.mxu0 0.0
    %1563 = vmatpush1.msra.mxu0 %v1537
    %1564 = vmatprep.subr.mxu0 0.0
    %1565 = vmatpush1.msra.mxu0 %v1538
    %1566 = vmatprep.subr.mxu0 0.0
    %1567 = vmatpush1.msra.mxu0 %v1539
    %1568 = vmatprep.subr.mxu0 0.0
    %1569 = vmatpush1.msra.mxu0 0.0
    %1570 = vmatprep.subr.mxu0 0.0
    %1571 = vmatpush1.msra.mxu0 0.0
    %1572 = vmatprep.subr.mxu0 0.0
    %1573 = vmatpush1.msra.mxu0 0.0
    %1574 = vmatprep.subr.mxu0 0.0
    %1575 = vmatpush1.msra.mxu0 0.0
    %1576 = vmatprep.subr.mxu0 0.0
    %1577 = vmatpush1.msra.mxu0 0.0
    %1578 = vmatprep.subr.mxu0 0.0
    %1579 = vmatpush1.msra.mxu0 0.0
    %1580 = vmatprep.subr.mxu0 0.0
    %1581 = vmatpush1.msra.mxu0 0.0
    %1582 = vmatprep.subr.mxu0 0.0
    %1583 = vmatpush1.msra.mxu0 0.0
    %1584 = vmatprep.subr.mxu0 0.0
    %1585 = vmatpush1.msra.mxu0 0.0
    %1586 = vmatprep.subr.mxu0 0.0
    %1587 = vmatpush1.msra.mxu0 0.0
    %1588 = vmatprep.subr.mxu0 0.0
    %1589 = vmatpush1.msra.mxu0 0.0
    %1590 = vmatprep.subr.mxu0 0.0
    %1591 = vmatpush1.msra.mxu0 0.0
    %1592 = vmatprep.subr.mxu0 0.0
    %1593 = vmatpush1.msra.mxu0 0.0
    %1594 = vmatprep.subr.mxu0 0.0
    %1595 = vmatpush1.msra.mxu0 0.0
    %1596 = vmatprep.subr.mxu0 0.0
    %1597 = vmatpush1.msra.mxu0 0.0
    %1598 = vmatprep.subr.mxu0 0.0
    %1599 = vmatpush1.msra.mxu0 0.0
    %1600 = vmatprep.subr.mxu0 0.0
    %1601 = vmatpush1.msra.mxu0 0.0
    %1602 = vmatprep.subr.mxu0 0.0
    %1603 = vmatpush1.msra.mxu0 0.0
    %1604 = vmatprep.subr.mxu0 0.0
    %1605 = vmatpush1.msra.mxu0 0.0
    %1606 = vmatprep.subr.mxu0 0.0
    %1607 = vmatpush1.msra.mxu0 0.0
    %1608 = vmatprep.subr.mxu0 0.0
    %1609 = vmatpush1.msra.mxu0 0.0
    %1610 = vmatprep.subr.mxu0 0.0
    %1611 = vmatpush1.msra.mxu0 0.0
    %1612 = vmatprep.subr.mxu0 0.0
    %1613 = vmatpush1.msra.mxu0 0.0
    %1614 = vmatprep.subr.mxu0 0.0
    %1615 = vmatpush1.msra.mxu0 0.0
    %1616 = vmatprep.subr.mxu0 0.0
    %1617 = vmatpush1.msra.mxu0 0.0
    %1618 = vmatprep.subr.mxu0 0.0
    %1619 = vmatpush1.msra.mxu0 0.0
    %1620 = vmatprep.subr.mxu0 0.0
    %1621 = vmatpush1.msra.mxu0 0.0
    %1622 = vmatprep.subr.mxu0 0.0
    %1623 = vmatpush1.msra.mxu0 0.0
    %1624 = vmatprep.mubr.f32.mxu0 0.0
    %1625 = vmatmul.mubr.f32.gmra.mrb[0].mxu0 %v1549
    %v1626 = vpop.f32.mrb[0].mxu0
    %v1627 = vadd.f32 %v1546, %v1626
    %v1628 = vpop.f32.mrb[0].mxu0
    %1629 = vmatprep.mubr.f32.mxu0 0.0
    %1630 = vmatmul.mubr.f32.gmra.mrb[0].mxu0 %v1552
    %v1631 = vpop.f32.mrb[0].mxu0
    %v1632 = vadd.f32 %v1546, %v1631
    %v1633 = vpop.f32.mrb[0].mxu0
    %1634 = vmatprep.mubr.f32.mxu0 0.0
    %1635 = vmatmul.mubr.f32.gmra.mrb[0].mxu0 %v1555
    %v1636 = vpop.f32.mrb[0].mxu0
    %v1637 = vadd.f32 %v1546, %v1636
    %v1638 = vpop.f32.mrb[0].mxu0
    %1639 = vmatprep.mubr.f32.mxu0 0.0
    %1640 = vmatmul.mubr.f32.gmra.mrb[0].mxu0 %v1558
    %v1641 = vpop.f32.mrb[0].mxu0
    %v1642 = vadd.f32 %v1546, %v1641
    %v1643 = vpop.f32.mrb[0].mxu0
    %1644 = vdwg.mxu0
    %s1645 = scalar_lea.vmem [#allocation7], 32
    %v1646 = vld [vmem:[%s1645] sm:$0xff]
    %v1647 = vld [vmem:[%s1645 + $0x8] sm:$0xff]
    %v1648 = vld [vmem:[%s1645 + $0x10] sm:$0xff]
    %v1649 = vld [vmem:[%s1645 + $0x18] sm:$0xff]
    %v1651 = vsel %vm207, %v1646, 0
    %v1654 = vsel %vm207, %v1647, 0
    %v1657 = vsel %vm207, %v1648, 0
    %v1660 = vsel %vm207, %v1649, 0
    %1662 = vmatprep.subr.mxu0 0.0
    %1663 = vmatpush1.msra.mxu0 %v1627
    %1664 = vmatprep.subr.mxu0 0.0
    %1665 = vmatpush1.msra.mxu0 %v1632
    %1666 = vmatprep.subr.mxu0 0.0
    %1667 = vmatpush1.msra.mxu0 %v1637
    %1668 = vmatprep.subr.mxu0 0.0
    %1669 = vmatpush1.msra.mxu0 %v1642
    %1670 = vmatprep.subr.mxu0 0.0
    %1671 = vmatpush1.msra.mxu0 0.0
    %1672 = vmatprep.subr.mxu0 0.0
    %1673 = vmatpush1.msra.mxu0 0.0
    %1674 = vmatprep.subr.mxu0 0.0
    %1675 = vmatpush1.msra.mxu0 0.0
    %1676 = vmatprep.subr.mxu0 0.0
    %1677 = vmatpush1.msra.mxu0 0.0
    %1678 = vmatprep.subr.mxu0 0.0
    %1679 = vmatpush1.msra.mxu0 0.0
    %1680 = vmatprep.subr.mxu0 0.0
    %1681 = vmatpush1.msra.mxu0 0.0
    %1682 = vmatprep.subr.mxu0 0.0
    %1683 = vmatpush1.msra.mxu0 0.0
    %1684 = vmatprep.subr.mxu0 0.0
    %1685 = vmatpush1.msra.mxu0 0.0
    %1686 = vmatprep.subr.mxu0 0.0
    %1687 = vmatpush1.msra.mxu0 0.0
    %1688 = vmatprep.subr.mxu0 0.0
    %1689 = vmatpush1.msra.mxu0 0.0
    %1690 = vmatprep.subr.mxu0 0.0
    %1691 = vmatpush1.msra.mxu0 0.0
    %1692 = vmatprep.subr.mxu0 0.0
    %1693 = vmatpush1.msra.mxu0 0.0
    %1694 = vmatprep.subr.mxu0 0.0
    %1695 = vmatpush1.msra.mxu0 0.0
    %1696 = vmatprep.subr.mxu0 0.0
    %1697 = vmatpush1.msra.mxu0 0.0
    %1698 = vmatprep.subr.mxu0 0.0
    %1699 = vmatpush1.msra.mxu0 0.0
    %1700 = vmatprep.subr.mxu0 0.0
    %1701 = vmatpush1.msra.mxu0 0.0
    %1702 = vmatprep.subr.mxu0 0.0
    %1703 = vmatpush1.msra.mxu0 0.0
    %1704 = vmatprep.subr.mxu0 0.0
    %1705 = vmatpush1.msra.mxu0 0.0
    %1706 = vmatprep.subr.mxu0 0.0
    %1707 = vmatpush1.msra.mxu0 0.0
    %1708 = vmatprep.subr.mxu0 0.0
    %1709 = vmatpush1.msra.mxu0 0.0
    %1710 = vmatprep.subr.mxu0 0.0
    %1711 = vmatpush1.msra.mxu0 0.0
    %1712 = vmatprep.subr.mxu0 0.0
    %1713 = vmatpush1.msra.mxu0 0.0
    %1714 = vmatprep.subr.mxu0 0.0
    %1715 = vmatpush1.msra.mxu0 0.0
    %1716 = vmatprep.subr.mxu0 0.0
    %1717 = vmatpush1.msra.mxu0 0.0
    %1718 = vmatprep.subr.mxu0 0.0
    %1719 = vmatpush1.msra.mxu0 0.0
    %1720 = vmatprep.subr.mxu0 0.0
    %1721 = vmatpush1.msra.mxu0 0.0
    %1722 = vmatprep.subr.mxu0 0.0
    %1723 = vmatpush1.msra.mxu0 0.0
    %1724 = vmatprep.subr.mxu0 0.0
    %1725 = vmatpush1.msra.mxu0 0.0
    %1726 = vmatprep.mubr.f32.mxu0 0.0
    %1727 = vmatmul.mubr.f32.gmra.mrb[0].mxu0 %v1651
    %v1728 = vpop.f32.mrb[0].mxu0
    %v1729 = vadd.f32 0.0, %v1728
    %v1730 = vpop.f32.mrb[0].mxu0
    %1731 = vmatprep.mubr.f32.mxu0 0.0
    %1732 = vmatmul.mubr.f32.gmra.mrb[0].mxu0 %v1654
    %v1733 = vpop.f32.mrb[0].mxu0
    %v1734 = vadd.f32 0.0, %v1733
    %v1735 = vpop.f32.mrb[0].mxu0
    %1736 = vmatprep.mubr.f32.mxu0 0.0
    %1737 = vmatmul.mubr.f32.gmra.mrb[0].mxu0 %v1657
    %v1738 = vpop.f32.mrb[0].mxu0
    %v1739 = vadd.f32 0.0, %v1738
    %v1740 = vpop.f32.mrb[0].mxu0
    %1741 = vmatprep.mubr.f32.mxu0 0.0
    %1742 = vmatmul.mubr.f32.gmra.mrb[0].mxu0 %v1660
    %v1743 = vpop.f32.mrb[0].mxu0
    %v1744 = vadd.f32 0.0, %v1743
    %v1745 = vpop.f32.mrb[0].mxu0
    %1746 = vdwg.mxu0
    %v1747 = vmul.f32 %v1729, %v1729
    %v1748 = vmul.f32 %v1734, %v1734
    %v1749 = vmul.f32 %v1739, %v1739
    %v1750 = vmul.f32 %v1744, %v1744
    %v1751 = vsel %vm410, %v1747, 0.0
    %1752 = vadd.xlane.f32.xlu0 %v1751
    %v1753 = vpop.xlane.xlu0 %1752
    %v1754 = vsel %vm410, %v1748, 0.0
    %1755 = vadd.xlane.f32.xlu0 %v1754
    %v1756 = vpop.xlane.xlu0 %1755
    %v1757 = vsel %vm410, %v1749, 0.0
    %1758 = vadd.xlane.f32.xlu0 %v1757
    %v1759 = vpop.xlane.xlu0 %1758
    %v1760 = vsel %vm410, %v1750, 0.0
    %1761 = vadd.xlane.f32.xlu0 %v1760
    %v1762 = vpop.xlane.xlu0 %1761
    %v1763 = vrsqrt.pop %v1753
    %v1764 = vmul.f32 %v1753, %v1763
    %vm1765 = vcmp.eq.f32.partialorder %v1753, inf
    %v1766 = vsel %vm1765, %v1753, %v1764
    %vm1767 = vcmp.eq.f32.partialorder %v1753, 0.0
    %v1768 = vand.u32 %v1753, 2147483648
    %v1769 = vsel %vm1767, %v1768, %v1766
    %v1770 = vrsqrt.pop %v1756
    %v1771 = vmul.f32 %v1756, %v1770
    %vm1772 = vcmp.eq.f32.partialorder %v1756, inf
    %v1773 = vsel %vm1772, %v1756, %v1771
    %vm1774 = vcmp.eq.f32.partialorder %v1756, 0.0
    %v1775 = vand.u32 %v1756, 2147483648
    %v1776 = vsel %vm1774, %v1775, %v1773
    %v1777 = vrsqrt.pop %v1759
    %v1778 = vmul.f32 %v1759, %v1777
    %vm1779 = vcmp.eq.f32.partialorder %v1759, inf
    %v1780 = vsel %vm1779, %v1759, %v1778
    %vm1781 = vcmp.eq.f32.partialorder %v1759, 0.0
    %v1782 = vand.u32 %v1759, 2147483648
    %v1783 = vsel %vm1781, %v1782, %v1780
    %v1784 = vrsqrt.pop %v1762
    %v1785 = vmul.f32 %v1762, %v1784
    %vm1786 = vcmp.eq.f32.partialorder %v1762, inf
    %v1787 = vsel %vm1786, %v1762, %v1785
    %vm1788 = vcmp.eq.f32.partialorder %v1762, 0.0
    %v1789 = vand.u32 %v1762, 2147483648
    %v1790 = vsel %vm1788, %v1789, %v1787
    %v1791 = vmax.f32 %v1769, 1e-12
    %v1792 = vmax.f32 %v1776, 1e-12
    %v1793 = vmax.f32 %v1783, 1e-12
    %v1794 = vmax.f32 %v1790, 1e-12
    %v1795 = vrcp.pop %v1791
    %v1796 = vmul.f32 %v1729, %v1795
    %v1797 = vrcp.pop %v1792
    %v1798 = vmul.f32 %v1734, %v1797
    %v1799 = vrcp.pop %v1793
    %v1800 = vmul.f32 %v1739, %v1799
    %v1801 = vrcp.pop %v1794
    %v1802 = vmul.f32 %v1744, %v1801
    %s1803 = scalar_lea.vmem [#allocation8], 8
    %v1804 = vld [vmem:[%s1803] sm:$0xff]
    %v1806 = vsel %vm410, %v1796, 0
    %v1809 = vsel %vm410, %v1798, 0
    %v1812 = vsel %vm410, %v1800, 0
    %v1815 = vsel %vm410, %v1802, 0
    %1817 = vmatprep.subr.mxu0 0.0
    %1818 = vmatpush1.msra.mxu0 %v1804
    %1819 = vmatprep.subr.mxu0 0.0
    %1820 = vmatpush1.msra.mxu0 0.0
    %1821 = vmatprep.subr.mxu0 0.0
    %1822 = vmatpush1.msra.mxu0 0.0
    %1823 = vmatprep.subr.mxu0 0.0
    %1824 = vmatpush1.msra.mxu0 0.0
    %1825 = vmatprep.subr.mxu0 0.0
    %1826 = vmatpush1.msra.mxu0 0.0
    %1827 = vmatprep.subr.mxu0 0.0
    %1828 = vmatpush1.msra.mxu0 0.0
    %1829 = vmatprep.subr.mxu0 0.0
    %1830 = vmatpush1.msra.mxu0 0.0
    %1831 = vmatprep.subr.mxu0 0.0
    %1832 = vmatpush1.msra.mxu0 0.0
    %1833 = vmatprep.subr.mxu0 0.0
    %1834 = vmatpush1.msra.mxu0 0.0
    %1835 = vmatprep.subr.mxu0 0.0
    %1836 = vmatpush1.msra.mxu0 0.0
    %1837 = vmatprep.subr.mxu0 0.0
    %1838 = vmatpush1.msra.mxu0 0.0
    %1839 = vmatprep.subr.mxu0 0.0
    %1840 = vmatpush1.msra.mxu0 0.0
    %1841 = vmatprep.subr.mxu0 0.0
    %1842 = vmatpush1.msra.mxu0 0.0
    %1843 = vmatprep.subr.mxu0 0.0
    %1844 = vmatpush1.msra.mxu0 0.0
    %1845 = vmatprep.subr.mxu0 0.0
    %1846 = vmatpush1.msra.mxu0 0.0
    %1847 = vmatprep.subr.mxu0 0.0
    %1848 = vmatpush1.msra.mxu0 0.0
    %1849 = vmatprep.subr.mxu0 0.0
    %1850 = vmatpush1.msra.mxu0 0.0
    %1851 = vmatprep.subr.mxu0 0.0
    %1852 = vmatpush1.msra.mxu0 0.0
    %1853 = vmatprep.subr.mxu0 0.0
    %1854 = vmatpush1.msra.mxu0 0.0
    %1855 = vmatprep.subr.mxu0 0.0
    %1856 = vmatpush1.msra.mxu0 0.0
    %1857 = vmatprep.subr.mxu0 0.0
    %1858 = vmatpush1.msra.mxu0 0.0
    %1859 = vmatprep.subr.mxu0 0.0
    %1860 = vmatpush1.msra.mxu0 0.0
    %1861 = vmatprep.subr.mxu0 0.0
    %1862 = vmatpush1.msra.mxu0 0.0
    %1863 = vmatprep.subr.mxu0 0.0
    %1864 = vmatpush1.msra.mxu0 0.0
    %1865 = vmatprep.subr.mxu0 0.0
    %1866 = vmatpush1.msra.mxu0 0.0
    %1867 = vmatprep.subr.mxu0 0.0
    %1868 = vmatpush1.msra.mxu0 0.0
    %1869 = vmatprep.subr.mxu0 0.0
    %1870 = vmatpush1.msra.mxu0 0.0
    %1871 = vmatprep.subr.mxu0 0.0
    %1872 = vmatpush1.msra.mxu0 0.0
    %1873 = vmatprep.subr.mxu0 0.0
    %1874 = vmatpush1.msra.mxu0 0.0
    %1875 = vmatprep.subr.mxu0 0.0
    %1876 = vmatpush1.msra.mxu0 0.0
    %1877 = vmatprep.subr.mxu0 0.0
    %1878 = vmatpush1.msra.mxu0 0.0
    %1879 = vmatprep.subr.mxu0 0.0
    %1880 = vmatpush1.msra.mxu0 0.0
    %1881 = vmatprep.mubr.f32.mxu0 0.0
    %1882 = vmatmul.mubr.f32.gmra.mrb[0].mxu0 %v1806
    %v1883 = vpop.f32.mrb[0].mxu0
    %v1884 = vadd.f32 %v195, %v1883
    %v1885 = vpop.f32.mrb[0].mxu0
    %1886 = vmatprep.mubr.f32.mxu0 0.0
    %1887 = vmatmul.mubr.f32.gmra.mrb[0].mxu0 %v1809
    %v1888 = vpop.f32.mrb[0].mxu0
    %v1889 = vadd.f32 %v195, %v1888
    %v1890 = vpop.f32.mrb[0].mxu0
    %1891 = vmatprep.mubr.f32.mxu0 0.0
    %1892 = vmatmul.mubr.f32.gmra.mrb[0].mxu0 %v1812
    %v1893 = vpop.f32.mrb[0].mxu0
    %v1894 = vadd.f32 %v195, %v1893
    %v1895 = vpop.f32.mrb[0].mxu0
    %1896 = vmatprep.mubr.f32.mxu0 0.0
    %1897 = vmatmul.mubr.f32.gmra.mrb[0].mxu0 %v1815
    %v1898 = vpop.f32.mrb[0].mxu0
    %v1899 = vadd.f32 %v195, %v1898
    %v1900 = vpop.f32.mrb[0].mxu0
    %1901 = vdwg.mxu0
    %1902 = vmax.xlane.f32.xlu0 %v1884
    %v1903 = vpop.xlane.xlu0 %1902
    %1904 = vmax.xlane.f32.xlu0 %v1889
    %v1905 = vpop.xlane.xlu0 %1904
    %1906 = vmax.xlane.f32.xlu0 %v1894
    %v1907 = vpop.xlane.xlu0 %1906
    %1908 = vmax.xlane.f32.xlu0 %v1899
    %v1909 = vpop.xlane.xlu0 %1908
    %vm1910 = vcmp.ge.f32.partialorder %v1884, %v1903
    %vm1911 = vcmp.ge.f32.partialorder %v1889, %v1905
    %vm1912 = vcmp.ge.f32.partialorder %v1894, %v1907
    %vm1913 = vcmp.ge.f32.partialorder %v1899, %v1909
    %v1914 = vsel %vm1910, %v193, 128
    %v1915 = vsel %vm1911, %v193, 128
    %v1916 = vsel %vm1912, %v193, 128
    %v1917 = vsel %vm1913, %v193, 128
    %v1918 = vand.u32 %v1914, 65535
    %v1919 = vshra.s32 %v1914, 16
    %v1920 = vcvt.s32.f32 %v1918
    %v1921 = vcvt.s32.f32 %v1919
    %1922 = vmin.xlane.f32.xlu0 %v1921
    %v1923 = vpop.xlane.xlu0 %1922
    %vm1924 = vcmp.eq.f32.partialorder %v1921, %v1923
    %v1925 = vsel %vm1924, %v1920, inf
    %1926 = vmin.xlane.f32.xlu0 %v1925
    %v1927 = vpop.xlane.xlu0 %1926
    %v1928 = vcvt.f32.s32 %v1927
    %v1929 = vcvt.f32.s32 %v1923
    %v1930 = vshll.u32 %v1929, 16
    %v1931 = vadd.s32 %v1930, %v1928
    %v1932 = vand.u32 %v1915, 65535
    %v1933 = vshra.s32 %v1915, 16
    %v1934 = vcvt.s32.f32 %v1932
    %v1935 = vcvt.s32.f32 %v1933
    %1936 = vmin.xlane.f32.xlu0 %v1935
    %v1937 = vpop.xlane.xlu0 %1936
    %vm1938 = vcmp.eq.f32.partialorder %v1935, %v1937
    %v1939 = vsel %vm1938, %v1934, inf
    %1940 = vmin.xlane.f32.xlu0 %v1939
    %v1941 = vpop.xlane.xlu0 %1940
    %v1942 = vcvt.f32.s32 %v1941
    %v1943 = vcvt.f32.s32 %v1937
    %v1944 = vshll.u32 %v1943, 16
    %v1945 = vadd.s32 %v1944, %v1942
    %v1946 = vand.u32 %v1916, 65535
    %v1947 = vshra.s32 %v1916, 16
    %v1948 = vcvt.s32.f32 %v1946
    %v1949 = vcvt.s32.f32 %v1947
    %1950 = vmin.xlane.f32.xlu0 %v1949
    %v1951 = vpop.xlane.xlu0 %1950
    %vm1952 = vcmp.eq.f32.partialorder %v1949, %v1951
    %v1953 = vsel %vm1952, %v1948, inf
    %1954 = vmin.xlane.f32.xlu0 %v1953
    %v1955 = vpop.xlane.xlu0 %1954
    %v1956 = vcvt.f32.s32 %v1955
    %v1957 = vcvt.f32.s32 %v1951
    %v1958 = vshll.u32 %v1957, 16
    %v1959 = vadd.s32 %v1958, %v1956
    %v1960 = vand.u32 %v1917, 65535
    %v1961 = vshra.s32 %v1917, 16
    %v1962 = vcvt.s32.f32 %v1960
    %v1963 = vcvt.s32.f32 %v1961
    %1964 = vmin.xlane.f32.xlu0 %v1963
    %v1965 = vpop.xlane.xlu0 %1964
    %vm1966 = vcmp.eq.f32.partialorder %v1963, %v1965
    %v1967 = vsel %vm1966, %v1962, inf
    %1968 = vmin.xlane.f32.xlu0 %v1967
    %v1969 = vpop.xlane.xlu0 %1968
    %v1970 = vcvt.f32.s32 %v1969
    %v1971 = vcvt.f32.s32 %v1965
    %v1972 = vshll.u32 %v1971, 16
    %v1973 = vadd.s32 %v1972, %v1970
    %vm1974 = vcmp.eq.s32.totalorder %v1931, %v193
    %vm1975 = vcmp.eq.s32.totalorder %v1945, %v193
    %vm1976 = vcmp.eq.s32.totalorder %v1959, %v193
    %vm1977 = vcmp.eq.s32.totalorder %v1973, %v193
    %v1978 = vsel %vm1974, 1, 0
    %v1979 = vsel %vm1975, 1, 0
    %v1980 = vsel %vm1976, 1, 0
    %v1981 = vsel %vm1977, 1, 0
    %v1982 = vcvt.s32.f32 %v1978
    %v1983 = vcvt.s32.f32 %v1979
    %v1984 = vcvt.s32.f32 %v1980
    %v1985 = vcvt.s32.f32 %v1981
    %s1986 = scalar_lea.vmem [#allocation10], 128
    %v1987 = vld [vmem:[%s1986] sm:$0xff]
    %v1988 = vld [vmem:[%s1986 + $0x8] sm:$0xff]
    %v1989 = vld [vmem:[%s1986 + $0x10] sm:$0xff]
    %v1990 = vld [vmem:[%s1986 + $0x18] sm:$0xff]
    %v1991 = vld [vmem:[%s1986 + $0x20] sm:$0xff]
    %v1992 = vld [vmem:[%s1986 + $0x28] sm:$0xff]
    %v1993 = vld [vmem:[%s1986 + $0x30] sm:$0xff]
    %v1994 = vld [vmem:[%s1986 + $0x38] sm:$0xff]
    %v1995 = vld [vmem:[%s1986 + $0x40] sm:$0xff]
    %v1996 = vld [vmem:[%s1986 + $0x48] sm:$0xff]
    %v1997 = vld [vmem:[%s1986 + $0x50] sm:$0xff]
    %v1998 = vld [vmem:[%s1986 + $0x58] sm:$0xff]
    %v1999 = vld [vmem:[%s1986 + $0x60] sm:$0xff]
    %v2000 = vld [vmem:[%s1986 + $0x68] sm:$0xff]
    %v2001 = vld [vmem:[%s1986 + $0x70] sm:$0xff]
    %v2002 = vld [vmem:[%s1986 + $0x78] sm:$0xff]
    %2003 = vmatprep.subr.mxu0 0.0
    %2004 = vmatpush1.msra.mxu0 %v1987
    %2005 = vmatprep.subr.mxu0 0.0
    %2006 = vmatpush1.msra.mxu0 %v1988
    %2007 = vmatprep.subr.mxu0 0.0
    %2008 = vmatpush1.msra.mxu0 %v1989
    %2009 = vmatprep.subr.mxu0 0.0
    %2010 = vmatpush1.msra.mxu0 %v1990
    %2011 = vmatprep.subr.mxu0 0.0
    %2012 = vmatpush1.msra.mxu0 %v1991
    %2013 = vmatprep.subr.mxu0 0.0
    %2014 = vmatpush1.msra.mxu0 %v1992
    %2015 = vmatprep.subr.mxu0 0.0
    %2016 = vmatpush1.msra.mxu0 %v1993
    %2017 = vmatprep.subr.mxu0 0.0
    %2018 = vmatpush1.msra.mxu0 %v1994
    %2019 = vmatprep.subr.mxu0 0.0
    %2020 = vmatpush1.msra.mxu0 %v1995
    %2021 = vmatprep.subr.mxu0 0.0
    %2022 = vmatpush1.msra.mxu0 %v1996
    %2023 = vmatprep.subr.mxu0 0.0
    %2024 = vmatpush1.msra.mxu0 %v1997
    %2025 = vmatprep.subr.mxu0 0.0
    %2026 = vmatpush1.msra.mxu0 %v1998
    %2027 = vmatprep.subr.mxu0 0.0
    %2028 = vmatpush1.msra.mxu0 %v1999
    %2029 = vmatprep.subr.mxu0 0.0
    %2030 = vmatpush1.msra.mxu0 %v2000
    %2031 = vmatprep.subr.mxu0 0.0
    %2032 = vmatpush1.msra.mxu0 %v2001
    %2033 = vmatprep.subr.mxu0 0.0
    %2034 = vmatpush1.msra.mxu0 %v2002
    %2035 = vmatprep.subr.mxu0 0.0
    %2036 = vmatpush1.msra.mxu0 0.0
    %2037 = vmatprep.subr.mxu0 0.0
    %2038 = vmatpush1.msra.mxu0 0.0
    %2039 = vmatprep.subr.mxu0 0.0
    %2040 = vmatpush1.msra.mxu0 0.0
    %2041 = vmatprep.subr.mxu0 0.0
    %2042 = vmatpush1.msra.mxu0 0.0
    %2043 = vmatprep.subr.mxu0 0.0
    %2044 = vmatpush1.msra.mxu0 0.0
    %2045 = vmatprep.subr.mxu0 0.0
    %2046 = vmatpush1.msra.mxu0 0.0
    %2047 = vmatprep.subr.mxu0 0.0
    %2048 = vmatpush1.msra.mxu0 0.0
    %2049 = vmatprep.subr.mxu0 0.0
    %2050 = vmatpush1.msra.mxu0 0.0
    %2051 = vmatprep.subr.mxu0 0.0
    %2052 = vmatpush1.msra.mxu0 0.0
    %2053 = vmatprep.subr.mxu0 0.0
    %2054 = vmatpush1.msra.mxu0 0.0
    %2055 = vmatprep.subr.mxu0 0.0
    %2056 = vmatpush1.msra.mxu0 0.0
    %2057 = vmatprep.subr.mxu0 0.0
    %2058 = vmatpush1.msra.mxu0 0.0
    %2059 = vmatprep.subr.mxu0 0.0
    %2060 = vmatpush1.msra.mxu0 0.0
    %2061 = vmatprep.subr.mxu0 0.0
    %2062 = vmatpush1.msra.mxu0 0.0
    %2063 = vmatprep.subr.mxu0 0.0
    %2064 = vmatpush1.msra.mxu0 0.0
    %2065 = vmatprep.subr.mxu0 0.0
    %2066 = vmatpush1.msra.mxu0 0.0
    %2067 = vmatprep.mubr.f32.mxu0 0.0
    %2068 = vmatmul.mubr.f32.gmra.mrb[0].mxu0 %v1982
    %v2069 = vpop.f32.mrb[0].mxu0
    %v2070 = vadd.f32 0.0, %v2069
    %v2071 = vpop.f32.mrb[0].mxu0
    %2072 = vmatprep.mubr.f32.mxu0 0.0
    %2073 = vmatmul.mubr.f32.gmra.mrb[0].mxu0 %v1983
    %v2074 = vpop.f32.mrb[0].mxu0
    %v2075 = vadd.f32 0.0, %v2074
    %v2076 = vpop.f32.mrb[0].mxu0
    %2077 = vmatprep.mubr.f32.mxu0 0.0
    %2078 = vmatmul.mubr.f32.gmra.mrb[0].mxu0 %v1984
    %v2079 = vpop.f32.mrb[0].mxu0
    %v2080 = vadd.f32 0.0, %v2079
    %v2081 = vpop.f32.mrb[0].mxu0
    %2082 = vmatprep.mubr.f32.mxu0 0.0
    %2083 = vmatmul.mubr.f32.gmra.mrb[0].mxu0 %v1985
    %v2084 = vpop.f32.mrb[0].mxu0
    %v2085 = vadd.f32 0.0, %v2084
    %v2086 = vpop.f32.mrb[0].mxu0
    %2087 = vdwg.mxu0
    %s2088 = scalar_lea.vmem [#allocation11], 32
    %v2089 = vld [vmem:[%s2088] sm:$0xff]
    %v2090 = vld [vmem:[%s2088 + $0x8] sm:$0xff]
    %v2091 = vld [vmem:[%s2088 + $0x10] sm:$0xff]
    %v2092 = vld [vmem:[%s2088 + $0x18] sm:$0xff]
    %v2094 = vsel %vm207, %v2089, 0
    %v2097 = vsel %vm207, %v2090, 0
    %v2100 = vsel %vm207, %v2091, 0
    %v2103 = vsel %vm207, %v2092, 0
    %2105 = vmatprep.subr.mxu0 0.0
    %2106 = vmatpush1.msra.mxu0 %v2070
    %2107 = vmatprep.subr.mxu0 0.0
    %2108 = vmatpush1.msra.mxu0 %v2075
    %2109 = vmatprep.subr.mxu0 0.0
    %2110 = vmatpush1.msra.mxu0 %v2080
    %2111 = vmatprep.subr.mxu0 0.0
    %2112 = vmatpush1.msra.mxu0 %v2085
    %2113 = vmatprep.subr.mxu0 0.0
    %2114 = vmatpush1.msra.mxu0 0.0
    %2115 = vmatprep.subr.mxu0 0.0
    %2116 = vmatpush1.msra.mxu0 0.0
    %2117 = vmatprep.subr.mxu0 0.0
    %2118 = vmatpush1.msra.mxu0 0.0
    %2119 = vmatprep.subr.mxu0 0.0
    %2120 = vmatpush1.msra.mxu0 0.0
    %2121 = vmatprep.subr.mxu0 0.0
    %2122 = vmatpush1.msra.mxu0 0.0
    %2123 = vmatprep.subr.mxu0 0.0
    %2124 = vmatpush1.msra.mxu0 0.0
    %2125 = vmatprep.subr.mxu0 0.0
    %2126 = vmatpush1.msra.mxu0 0.0
    %2127 = vmatprep.subr.mxu0 0.0
    %2128 = vmatpush1.msra.mxu0 0.0
    %2129 = vmatprep.subr.mxu0 0.0
    %2130 = vmatpush1.msra.mxu0 0.0
    %2131 = vmatprep.subr.mxu0 0.0
    %2132 = vmatpush1.msra.mxu0 0.0
    %2133 = vmatprep.subr.mxu0 0.0
    %2134 = vmatpush1.msra.mxu0 0.0
    %2135 = vmatprep.subr.mxu0 0.0
    %2136 = vmatpush1.msra.mxu0 0.0
    %2137 = vmatprep.subr.mxu0 0.0
    %2138 = vmatpush1.msra.mxu0 0.0
    %2139 = vmatprep.subr.mxu0 0.0
    %2140 = vmatpush1.msra.mxu0 0.0
    %2141 = vmatprep.subr.mxu0 0.0
    %2142 = vmatpush1.msra.mxu0 0.0
    %2143 = vmatprep.subr.mxu0 0.0
    %2144 = vmatpush1.msra.mxu0 0.0
    %2145 = vmatprep.subr.mxu0 0.0
    %2146 = vmatpush1.msra.mxu0 0.0
    %2147 = vmatprep.subr.mxu0 0.0
    %2148 = vmatpush1.msra.mxu0 0.0
    %2149 = vmatprep.subr.mxu0 0.0
    %2150 = vmatpush1.msra.mxu0 0.0
    %2151 = vmatprep.subr.mxu0 0.0
    %2152 = vmatpush1.msra.mxu0 0.0
    %2153 = vmatprep.subr.mxu0 0.0
    %2154 = vmatpush1.msra.mxu0 0.0
    %2155 = vmatprep.subr.mxu0 0.0
    %2156 = vmatpush1.msra.mxu0 0.0
    %2157 = vmatprep.subr.mxu0 0.0
    %2158 = vmatpush1.msra.mxu0 0.0
    %2159 = vmatprep.subr.mxu0 0.0
    %2160 = vmatpush1.msra.mxu0 0.0
    %2161 = vmatprep.subr.mxu0 0.0
    %2162 = vmatpush1.msra.mxu0 0.0
    %2163 = vmatprep.subr.mxu0 0.0
    %2164 = vmatpush1.msra.mxu0 0.0
    %2165 = vmatprep.subr.mxu0 0.0
    %2166 = vmatpush1.msra.mxu0 0.0
    %2167 = vmatprep.subr.mxu0 0.0
    %2168 = vmatpush1.msra.mxu0 0.0
    %2169 = vmatprep.mubr.f32.mxu0 0.0
    %2170 = vmatmul.mubr.f32.gmra.mrb[0].mxu0 %v2094
    %v2171 = vpop.f32.mrb[0].mxu0
    %v2172 = vadd.f32 0.0, %v2171
    %v2173 = vpop.f32.mrb[0].mxu0
    %2174 = vmatprep.mubr.f32.mxu0 0.0
    %2175 = vmatmul.mubr.f32.gmra.mrb[0].mxu0 %v2097
    %v2176 = vpop.f32.mrb[0].mxu0
    %v2177 = vadd.f32 0.0, %v2176
    %v2178 = vpop.f32.mrb[0].mxu0
    %2179 = vmatprep.mubr.f32.mxu0 0.0
    %2180 = vmatmul.mubr.f32.gmra.mrb[0].mxu0 %v2100
    %v2181 = vpop.f32.mrb[0].mxu0
    %v2182 = vadd.f32 0.0, %v2181
    %v2183 = vpop.f32.mrb[0].mxu0
    %2184 = vmatprep.mubr.f32.mxu0 0.0
    %2185 = vmatmul.mubr.f32.gmra.mrb[0].mxu0 %v2103
    %v2186 = vpop.f32.mrb[0].mxu0
    %v2187 = vadd.f32 0.0, %v2186
    %v2188 = vpop.f32.mrb[0].mxu0
    %2189 = vdwg.mxu0
    %v2194 = vrot.slane %v2172, 1
    %v2195 = vsel %vm852, %v853, %v2194
    %v2196 = vrot.slane %v2177, 1
    %v2197 = vsel %vm852, %v2194, %v2196
    %v2198 = vrot.slane %v2182, 1
    %v2199 = vsel %vm852, %v2196, %v2198
    %v2200 = vrot.slane %v2187, 1
    %v2201 = vsel %vm852, %v2198, %v2200
    %2202 = vrot.lane.b32.xlu0 %v2195, 8
    %v2203 = vpop.permute.xlu0 %2202
    %2204 = vrot.lane.b32.xlu0 %v2197, 8
    %v2205 = vpop.permute.xlu0 %2204
    %2206 = vrot.lane.b32.xlu0 %v2199, 8
    %v2207 = vpop.permute.xlu0 %2206
    %2208 = vrot.lane.b32.xlu0 %v2201, 8
    %v2209 = vpop.permute.xlu0 %2208
    %2210 = vrot.lane.b32.xlu0 %v2200, 8
    %v2211 = vpop.permute.xlu0 %2210
    %v2217 = vrot.slane %v2172, 2
    %v2218 = vsel %vm877, %v878, %v2217
    %v2219 = vrot.slane %v2177, 2
    %v2220 = vsel %vm877, %v2217, %v2219
    %v2221 = vrot.slane %v2182, 2
    %v2222 = vsel %vm877, %v2219, %v2221
    %v2223 = vrot.slane %v2187, 2
    %v2224 = vsel %vm877, %v2221, %v2223
    %2225 = vrot.lane.b32.xlu0 %v2218, 16
    %v2226 = vpop.permute.xlu0 %2225
    %2227 = vrot.lane.b32.xlu0 %v2220, 16
    %v2228 = vpop.permute.xlu0 %2227
    %2229 = vrot.lane.b32.xlu0 %v2222, 16
    %v2230 = vpop.permute.xlu0 %2229
    %2231 = vrot.lane.b32.xlu0 %v2224, 16
    %v2232 = vpop.permute.xlu0 %2231
    %2233 = vrot.lane.b32.xlu0 %v2223, 16
    %v2234 = vpop.permute.xlu0 %2233
    %v2240 = vrot.slane %v2172, 3
    %v2241 = vsel %vm902, %v903, %v2240
    %v2242 = vrot.slane %v2177, 3
    %v2243 = vsel %vm902, %v2240, %v2242
    %v2244 = vrot.slane %v2182, 3
    %v2245 = vsel %vm902, %v2242, %v2244
    %v2246 = vrot.slane %v2187, 3
    %v2247 = vsel %vm902, %v2244, %v2246
    %2248 = vrot.lane.b32.xlu0 %v2241, 24
    %v2249 = vpop.permute.xlu0 %2248
    %2250 = vrot.lane.b32.xlu0 %v2243, 24
    %v2251 = vpop.permute.xlu0 %2250
    %2252 = vrot.lane.b32.xlu0 %v2245, 24
    %v2253 = vpop.permute.xlu0 %2252
    %2254 = vrot.lane.b32.xlu0 %v2247, 24
    %v2255 = vpop.permute.xlu0 %2254
    %2256 = vrot.lane.b32.xlu0 %v2246, 24
    %v2257 = vpop.permute.xlu0 %2256
    %v2263 = vrot.slane %v2172, 4
    %v2264 = vrot.slane %v2177, 4
    %v2265 = vsel %vm927, %v2263, %v2264
    %v2266 = vrot.slane %v2182, 4
    %v2267 = vsel %vm927, %v2264, %v2266
    %v2268 = vrot.slane %v2187, 4
    %v2269 = vsel %vm927, %v2266, %v2268
    %2270 = vrot.lane.b32.xlu0 %v2263, 32
    %v2271 = vpop.permute.xlu0 %2270
    %2272 = vrot.lane.b32.xlu0 %v2265, 32
    %v2273 = vpop.permute.xlu0 %2272
    %2274 = vrot.lane.b32.xlu0 %v2267, 32
    %v2275 = vpop.permute.xlu0 %2274
    %2276 = vrot.lane.b32.xlu0 %v2269, 32
    %v2277 = vpop.permute.xlu0 %2276
    %2278 = vrot.lane.b32.xlu0 %v2268, 32
    %v2279 = vpop.permute.xlu0 %2278
    %v2285 = vrot.slane %v2172, 5
    %v2286 = vrot.slane %v2177, 5
    %v2287 = vsel %vm950, %v2285, %v2286
    %v2288 = vrot.slane %v2182, 5
    %v2289 = vsel %vm950, %v2286, %v2288
    %v2290 = vrot.slane %v2187, 5
    %v2291 = vsel %vm950, %v2288, %v2290
    %v2292 = vsel %vm950, %v2290, %v958
    %2293 = vrot.lane.b32.xlu0 %v2285, 40
    %v2294 = vpop.permute.xlu0 %2293
    %2295 = vrot.lane.b32.xlu0 %v2287, 40
    %v2296 = vpop.permute.xlu0 %2295
    %2297 = vrot.lane.b32.xlu0 %v2289, 40
    %v2298 = vpop.permute.xlu0 %2297
    %2299 = vrot.lane.b32.xlu0 %v2291, 40
    %v2300 = vpop.permute.xlu0 %2299
    %2301 = vrot.lane.b32.xlu0 %v2292, 40
    %v2302 = vpop.permute.xlu0 %2301
    %v2308 = vrot.slane %v2172, 6
    %v2309 = vrot.slane %v2177, 6
    %v2310 = vsel %vm975, %v2308, %v2309
    %v2311 = vrot.slane %v2182, 6
    %v2312 = vsel %vm975, %v2309, %v2311
    %v2313 = vrot.slane %v2187, 6
    %v2314 = vsel %vm975, %v2311, %v2313
    %v2315 = vsel %vm975, %v2313, %v983
    %2316 = vrot.lane.b32.xlu0 %v2308, 48
    %v2317 = vpop.permute.xlu0 %2316
    %2318 = vrot.lane.b32.xlu0 %v2310, 48
    %v2319 = vpop.permute.xlu0 %2318
    %2320 = vrot.lane.b32.xlu0 %v2312, 48
    %v2321 = vpop.permute.xlu0 %2320
    %2322 = vrot.lane.b32.xlu0 %v2314, 48
    %v2323 = vpop.permute.xlu0 %2322
    %2324 = vrot.lane.b32.xlu0 %v2315, 48
    %v2325 = vpop.permute.xlu0 %2324
    %v2331 = vrot.slane %v2172, 7
    %v2332 = vrot.slane %v2177, 7
    %v2333 = vsel %vm1000, %v2331, %v2332
    %v2334 = vrot.slane %v2182, 7
    %v2335 = vsel %vm1000, %v2332, %v2334
    %v2336 = vrot.slane %v2187, 7
    %v2337 = vsel %vm1000, %v2334, %v2336
    %v2338 = vsel %vm1000, %v2336, %v1008
    %2339 = vrot.lane.b32.xlu0 %v2331, 56
    %v2340 = vpop.permute.xlu0 %2339
    %2341 = vrot.lane.b32.xlu0 %v2333, 56
    %v2342 = vpop.permute.xlu0 %2341
    %2343 = vrot.lane.b32.xlu0 %v2335, 56
    %v2344 = vpop.permute.xlu0 %2343
    %2345 = vrot.lane.b32.xlu0 %v2337, 56
    %v2346 = vpop.permute.xlu0 %2345
    %2347 = vrot.lane.b32.xlu0 %v2338, 56
    %v2348 = vpop.permute.xlu0 %2347
    %2354 = vrot.lane.b32.xlu0 %v2172, 64
    %v2355 = vpop.permute.xlu0 %2354
    %2356 = vrot.lane.b32.xlu0 %v2177, 64
    %v2357 = vpop.permute.xlu0 %2356
    %2358 = vrot.lane.b32.xlu0 %v2182, 64
    %v2359 = vpop.permute.xlu0 %2358
    %2360 = vrot.lane.b32.xlu0 %v2187, 64
    %v2361 = vpop.permute.xlu0 %2360
    %v2366 = vsel %vm410, 0.0, %v2203
    %v2367 = vsel %vm410, %v2172, %v2205
    %v2368 = vsel %vm410, %v2177, %v2207
    %v2369 = vsel %vm410, %v2182, %v2209
    %v2370 = vsel %vm410, %v2187, %v2211
    %v2371 = vsel %vm1045, %v2366, %v2226
    %v2372 = vsel %vm1045, %v2367, %v2228
    %v2373 = vsel %vm1045, %v2368, %v2230
    %v2374 = vsel %vm1045, %v2369, %v2232
    %v2375 = vsel %vm1045, %v2370, %v2234
    %v2376 = vsel %vm1051, %v2371, %v2249
    %v2377 = vsel %vm1051, %v2372, %v2251
    %v2378 = vsel %vm1051, %v2373, %v2253
    %v2379 = vsel %vm1051, %v2374, %v2255
    %v2380 = vsel %vm1051, %v2375, %v2257
    %v2381 = vsel %vm207, %v2376, %v2271
    %v2382 = vsel %vm207, %v2377, %v2273
    %v2383 = vsel %vm207, %v2378, %v2275
    %v2384 = vsel %vm207, %v2379, %v2277
    %v2385 = vsel %vm207, %v2380, %v2279
    %v2386 = vsel %vm1062, %v2381, %v2294
    %v2387 = vsel %vm1062, %v2382, %v2296
    %v2388 = vsel %vm1062, %v2383, %v2298
    %v2389 = vsel %vm1062, %v2384, %v2300
    %v2390 = vsel %vm1062, %v2385, %v2302
    %v2391 = vsel %vm1068, %v2386, %v2317
    %v2392 = vsel %vm1068, %v2387, %v2319
    %v2393 = vsel %vm1068, %v2388, %v2321
    %v2394 = vsel %vm1068, %v2389, %v2323
    %v2395 = vsel %vm1068, %v2390, %v2325
    %v2396 = vsel %vm1074, %v2391, %v2340
    %v2397 = vsel %vm1074, %v2392, %v2342
    %v2398 = vsel %vm1074, %v2393, %v2344
    %v2399 = vsel %vm1074, %v2394, %v2346
    %v2400 = vsel %vm1074, %v2395, %v2348
    %v2401 = vsel %vm1080, %v2396, %v2355
    %v2402 = vsel %vm1080, %v2397, %v2357
    %v2403 = vsel %vm1080, %v2398, %v2359
    %v2404 = vsel %vm1080, %v2399, %v2361
    %v2405 = vsel %vm1080, %v2400, %v1034
    %v2406 = vmul.f32 %v2401, %v1090
    %v2407 = vmul.f32 %v2402, %v1092
    %v2408 = vmul.f32 %v2403, %v1094
    %v2409 = vmul.f32 %v2404, %v1096
    %v2410 = vmul.f32 %v2405, %v1095
    %s2411 = scalar_lea.vmem [#allocation13], 72
    %v2412 = vld [vmem:[%s2411] sm:$0xff]
    %v2413 = vld [vmem:[%s2411 + $0x8] sm:$0xff]
    %v2414 = vld [vmem:[%s2411 + $0x10] sm:$0xff]
    %v2415 = vld [vmem:[%s2411 + $0x18] sm:$0xff]
    %v2416 = vld [vmem:[%s2411 + $0x20] sm:$0xff]
    %v2417 = vld [vmem:[%s2411 + $0x28] sm:$0xff]
    %v2418 = vld [vmem:[%s2411 + $0x30] sm:$0xff]
    %v2419 = vld [vmem:[%s2411 + $0x38] sm:$0xff]
    %v2420 = vld [vmem:[%s2411 + $0x40] sm:$0xff]
    %s2421 = scalar_lea.vmem %s9, 1
    %v2422 = vld [vmem:[%s2421] sm:$0x1]
    %v2424 = vlaneseq
    %v2425 = vshrl.u32 %v2424, 7
    %v2426 = vsub.s32 0, %v2425
    %v2427 = vrot.slane %v2422, %v2426
    %v2434 = vrot.slane %v2406, 4
    %v2435 = vrot.slane %v2407, 4
    %v2436 = vsel %vm927, %v2434, %v2435
    %v2437 = vrot.slane %v2408, 4
    %v2438 = vsel %vm927, %v2435, %v2437
    %v2439 = vrot.slane %v2409, 4
    %v2440 = vsel %vm927, %v2437, %v2439
    %v2441 = vrot.slane %v2410, 4
    %v2442 = vsel %vm927, %v2439, %v2441
    %v2443 = vsel %vm1137, %v2436, 0
    %v2445 = vsel %vm1137, %v2438, 0
    %v2447 = vsel %vm1137, %v2440, 0
    %v2449 = vsel %vm1137, %v2442, 0
    %2451 = vmatprep.subr.mxu0 0.0
    %2452 = vmatpush1.msra.mxu0 %v2412
    %2453 = vmatprep.subr.mxu0 0.0
    %2454 = vmatpush1.msra.mxu0 %v2413
    %2455 = vmatprep.subr.mxu0 0.0
    %2456 = vmatpush1.msra.mxu0 %v2414
    %2457 = vmatprep.subr.mxu0 0.0
    %2458 = vmatpush1.msra.mxu0 %v2415
    %2459 = vmatprep.subr.mxu0 0.0
    %2460 = vmatpush1.msra.mxu0 %v2416
    %2461 = vmatprep.subr.mxu0 0.0
    %2462 = vmatpush1.msra.mxu0 %v2417
    %2463 = vmatprep.subr.mxu0 0.0
    %2464 = vmatpush1.msra.mxu0 %v2418
    %2465 = vmatprep.subr.mxu0 0.0
    %2466 = vmatpush1.msra.mxu0 %v2419
    %2467 = vmatprep.subr.mxu0 0.0
    %2468 = vmatpush1.msra.mxu0 %v2420
    %2469 = vmatprep.subr.mxu0 0.0
    %2470 = vmatpush1.msra.mxu0 0.0
    %2471 = vmatprep.subr.mxu0 0.0
    %2472 = vmatpush1.msra.mxu0 0.0
    %2473 = vmatprep.subr.mxu0 0.0
    %2474 = vmatpush1.msra.mxu0 0.0
    %2475 = vmatprep.subr.mxu0 0.0
    %2476 = vmatpush1.msra.mxu0 0.0
    %2477 = vmatprep.subr.mxu0 0.0
    %2478 = vmatpush1.msra.mxu0 0.0
    %2479 = vmatprep.subr.mxu0 0.0
    %2480 = vmatpush1.msra.mxu0 0.0
    %2481 = vmatprep.subr.mxu0 0.0
    %2482 = vmatpush1.msra.mxu0 0.0
    %2483 = vmatprep.subr.mxu0 0.0
    %2484 = vmatpush1.msra.mxu0 0.0
    %2485 = vmatprep.subr.mxu0 0.0
    %2486 = vmatpush1.msra.mxu0 0.0
    %2487 = vmatprep.subr.mxu0 0.0
    %2488 = vmatpush1.msra.mxu0 0.0
    %2489 = vmatprep.subr.mxu0 0.0
    %2490 = vmatpush1.msra.mxu0 0.0
    %2491 = vmatprep.subr.mxu0 0.0
    %2492 = vmatpush1.msra.mxu0 0.0
    %2493 = vmatprep.subr.mxu0 0.0
    %2494 = vmatpush1.msra.mxu0 0.0
    %2495 = vmatprep.subr.mxu0 0.0
    %2496 = vmatpush1.msra.mxu0 0.0
    %2497 = vmatprep.subr.mxu0 0.0
    %2498 = vmatpush1.msra.mxu0 0.0
    %2499 = vmatprep.subr.mxu0 0.0
    %2500 = vmatpush1.msra.mxu0 0.0
    %2501 = vmatprep.subr.mxu0 0.0
    %2502 = vmatpush1.msra.mxu0 0.0
    %2503 = vmatprep.subr.mxu0 0.0
    %2504 = vmatpush1.msra.mxu0 0.0
    %2505 = vmatprep.subr.mxu0 0.0
    %2506 = vmatpush1.msra.mxu0 0.0
    %2507 = vmatprep.subr.mxu0 0.0
    %2508 = vmatpush1.msra.mxu0 0.0
    %2509 = vmatprep.subr.mxu0 0.0
    %2510 = vmatpush1.msra.mxu0 0.0
    %2511 = vmatprep.subr.mxu0 0.0
    %2512 = vmatpush1.msra.mxu0 0.0
    %2513 = vmatprep.subr.mxu0 0.0
    %2514 = vmatpush1.msra.mxu0 0.0
    %2515 = vmatprep.mubr.f32.mxu0 0.0
    %2516 = vmatmul.mubr.f32.gmra.mrb[0].mxu0 %v2443
    %v2517 = vpop.f32.mrb[0].mxu0
    %v2518 = vadd.f32 %v2427, %v2517
    %v2519 = vpop.f32.mrb[0].mxu0
    %2520 = vmatprep.mubr.f32.mxu0 0.0
    %2521 = vmatmul.mubr.f32.gmra.mrb[0].mxu0 %v2445
    %v2522 = vpop.f32.mrb[0].mxu0
    %v2523 = vadd.f32 %v2427, %v2522
    %v2524 = vpop.f32.mrb[0].mxu0
    %2525 = vmatprep.mubr.f32.mxu0 0.0
    %2526 = vmatmul.mubr.f32.gmra.mrb[0].mxu0 %v2447
    %v2527 = vpop.f32.mrb[0].mxu0
    %v2528 = vadd.f32 %v2427, %v2527
    %v2529 = vpop.f32.mrb[0].mxu0
    %2530 = vmatprep.mubr.f32.mxu0 0.0
    %2531 = vmatmul.mubr.f32.gmra.mrb[0].mxu0 %v2449
    %v2532 = vpop.f32.mrb[0].mxu0
    %v2533 = vadd.f32 %v2427, %v2532
    %v2534 = vpop.f32.mrb[0].mxu0
    %2535 = vdwg.mxu0
    %v2536 = vmul.f32 %v2172, 0.5
    %v2537 = vmul.f32 %v2177, 0.5
    %v2538 = vmul.f32 %v2182, 0.5
    %v2539 = vmul.f32 %v2187, 0.5
    %v2540 = vmul.f32 %v2518, 0.5
    %v2541 = vmul.f32 %v2523, 0.5
    %v2542 = vmul.f32 %v2528, 0.5
    %v2543 = vmul.f32 %v2533, 0.5
    %v2544 = vadd.f32 %v2536, %v2540
    %v2545 = vadd.f32 %v2537, %v2541
    %v2546 = vadd.f32 %v2538, %v2542
    %v2547 = vadd.f32 %v2539, %v2543
    %v2548 = vsub.f32 %v1627, %v2544
    %v2549 = vsub.f32 %v1632, %v2545
    %v2550 = vsub.f32 %v1637, %v2546
    %v2551 = vsub.f32 %v1642, %v2547
    %v2552 = vmul.f32 %v2548, %v2548
    %v2553 = vmul.f32 %v2549, %v2549
    %v2554 = vmul.f32 %v2550, %v2550
    %v2555 = vmul.f32 %v2551, %v2551
    %2556 = vmatprep.subr.mxu0 0.0
    %2557 = vmatpush1.msra.mxu0 %v2552
    %2558 = vmatprep.subr.mxu0 0.0
    %2559 = vmatpush1.msra.mxu0 %v2553
    %2560 = vmatprep.subr.mxu0 0.0
    %2561 = vmatpush1.msra.mxu0 %v2554
    %2562 = vmatprep.subr.mxu0 0.0
    %2563 = vmatpush1.msra.mxu0 %v2555
    %2564 = vmatprep.subr.mxu0 0.0
    %2565 = vmatpush1.msra.mxu0 0.0
    %2566 = vmatprep.subr.mxu0 0.0
    %2567 = vmatpush1.msra.mxu0 0.0
    %2568 = vmatprep.subr.mxu0 0.0
    %2569 = vmatpush1.msra.mxu0 0.0
    %2570 = vmatprep.subr.mxu0 0.0
    %2571 = vmatpush1.msra.mxu0 0.0
    %2572 = vmatprep.subr.mxu0 0.0
    %2573 = vmatpush1.msra.mxu0 0.0
    %2574 = vmatprep.subr.mxu0 0.0
    %2575 = vmatpush1.msra.mxu0 0.0
    %2576 = vmatprep.subr.mxu0 0.0
    %2577 = vmatpush1.msra.mxu0 0.0
    %2578 = vmatprep.subr.mxu0 0.0
    %2579 = vmatpush1.msra.mxu0 0.0
    %2580 = vmatprep.subr.mxu0 0.0
    %2581 = vmatpush1.msra.mxu0 0.0
    %2582 = vmatprep.subr.mxu0 0.0
    %2583 = vmatpush1.msra.mxu0 0.0
    %2584 = vmatprep.subr.mxu0 0.0
    %2585 = vmatpush1.msra.mxu0 0.0
    %2586 = vmatprep.subr.mxu0 0.0
    %2587 = vmatpush1.msra.mxu0 0.0
    %2588 = vmatprep.subr.mxu0 0.0
    %2589 = vmatpush1.msra.mxu0 0.0
    %2590 = vmatprep.subr.mxu0 0.0
    %2591 = vmatpush1.msra.mxu0 0.0
    %2592 = vmatprep.subr.mxu0 0.0
    %2593 = vmatpush1.msra.mxu0 0.0
    %2594 = vmatprep.subr.mxu0 0.0
    %2595 = vmatpush1.msra.mxu0 0.0
    %2596 = vmatprep.subr.mxu0 0.0
    %2597 = vmatpush1.msra.mxu0 0.0
    %2598 = vmatprep.subr.mxu0 0.0
    %2599 = vmatpush1.msra.mxu0 0.0
    %2600 = vmatprep.subr.mxu0 0.0
    %2601 = vmatpush1.msra.mxu0 0.0
    %2602 = vmatprep.subr.mxu0 0.0
    %2603 = vmatpush1.msra.mxu0 0.0
    %2604 = vmatprep.subr.mxu0 0.0
    %2605 = vmatpush1.msra.mxu0 0.0
    %2606 = vmatprep.subr.mxu0 0.0
    %2607 = vmatpush1.msra.mxu0 0.0
    %2608 = vmatprep.subr.mxu0 0.0
    %2609 = vmatpush1.msra.mxu0 0.0
    %2610 = vmatprep.subr.mxu0 0.0
    %2611 = vmatpush1.msra.mxu0 0.0
    %2612 = vmatprep.subr.mxu0 0.0
    %2613 = vmatpush1.msra.mxu0 0.0
    %2614 = vmatprep.subr.mxu0 0.0
    %2615 = vmatpush1.msra.mxu0 0.0
    %2616 = vmatprep.subr.mxu0 0.0
    %2617 = vmatpush1.msra.mxu0 0.0
    %2618 = vmatprep.subr.mxu0 0.0
    %2619 = vmatpush1.msra.mxu0 0.0
    %2620 = vmatprep.mubr.f32.mxu0 0.0
    %2621 = vmatmul.mubr.f32.gmra.mrb[0].mxu0 %v1252
    %v2622 = vpop.f32.mrb[0].mxu0
    %v2623 = vadd.f32 0.0, %v2622
    %v2624 = vpop.f32.mrb[0].mxu0
    %2625 = vdwg.mxu0
    %v2626 = vsel %vm1324, %v2623, 0.0
    %2627 = vadd.xlane.f32.xlu0 %v2626
    %v2628 = vpop.xlane.xlu0 %2627
    %s2629 = scalar_lea.vmem [#allocation16], 8
    %v2630 = vld [vmem:[%s2629] sm:$0xff]
    %s2631 = scalar_lea.vmem [#allocation17], 1
    %v2632 = vld [vmem:[%s2631] sm:$0x1]
    %v2634 = vlaneseq
    %v2635 = vshrl.u32 %v2634, 7
    %v2636 = vsub.s32 0, %v2635
    %v2637 = vrot.slane %v2632, %v2636
    %v2640 = vsel %vm410, %v2544, 0
    %v2643 = vsel %vm410, %v2545, 0
    %v2646 = vsel %vm410, %v2546, 0
    %v2649 = vsel %vm410, %v2547, 0
    %2651 = vmatprep.subr.mxu0 0.0
    %2652 = vmatpush1.msra.mxu0 %v2630
    %2653 = vmatprep.subr.mxu0 0.0
    %2654 = vmatpush1.msra.mxu0 0.0
    %2655 = vmatprep.subr.mxu0 0.0
    %2656 = vmatpush1.msra.mxu0 0.0
    %2657 = vmatprep.subr.mxu0 0.0
    %2658 = vmatpush1.msra.mxu0 0.0
    %2659 = vmatprep.subr.mxu0 0.0
    %2660 = vmatpush1.msra.mxu0 0.0
    %2661 = vmatprep.subr.mxu0 0.0
    %2662 = vmatpush1.msra.mxu0 0.0
    %2663 = vmatprep.subr.mxu0 0.0
    %2664 = vmatpush1.msra.mxu0 0.0
    %2665 = vmatprep.subr.mxu0 0.0
    %2666 = vmatpush1.msra.mxu0 0.0
    %2667 = vmatprep.subr.mxu0 0.0
    %2668 = vmatpush1.msra.mxu0 0.0
    %2669 = vmatprep.subr.mxu0 0.0
    %2670 = vmatpush1.msra.mxu0 0.0
    %2671 = vmatprep.subr.mxu0 0.0
    %2672 = vmatpush1.msra.mxu0 0.0
    %2673 = vmatprep.subr.mxu0 0.0
    %2674 = vmatpush1.msra.mxu0 0.0
    %2675 = vmatprep.subr.mxu0 0.0
    %2676 = vmatpush1.msra.mxu0 0.0
    %2677 = vmatprep.subr.mxu0 0.0
    %2678 = vmatpush1.msra.mxu0 0.0
    %2679 = vmatprep.subr.mxu0 0.0
    %2680 = vmatpush1.msra.mxu0 0.0
    %2681 = vmatprep.subr.mxu0 0.0
    %2682 = vmatpush1.msra.mxu0 0.0
    %2683 = vmatprep.subr.mxu0 0.0
    %2684 = vmatpush1.msra.mxu0 0.0
    %2685 = vmatprep.subr.mxu0 0.0
    %2686 = vmatpush1.msra.mxu0 0.0
    %2687 = vmatprep.subr.mxu0 0.0
    %2688 = vmatpush1.msra.mxu0 0.0
    %2689 = vmatprep.subr.mxu0 0.0
    %2690 = vmatpush1.msra.mxu0 0.0
    %2691 = vmatprep.subr.mxu0 0.0
    %2692 = vmatpush1.msra.mxu0 0.0
    %2693 = vmatprep.subr.mxu0 0.0
    %2694 = vmatpush1.msra.mxu0 0.0
    %2695 = vmatprep.subr.mxu0 0.0
    %2696 = vmatpush1.msra.mxu0 0.0
    %2697 = vmatprep.subr.mxu0 0.0
    %2698 = vmatpush1.msra.mxu0 0.0
    %2699 = vmatprep.subr.mxu0 0.0
    %2700 = vmatpush1.msra.mxu0 0.0
    %2701 = vmatprep.subr.mxu0 0.0
    %2702 = vmatpush1.msra.mxu0 0.0
    %2703 = vmatprep.subr.mxu0 0.0
    %2704 = vmatpush1.msra.mxu0 0.0
    %2705 = vmatprep.subr.mxu0 0.0
    %2706 = vmatpush1.msra.mxu0 0.0
    %2707 = vmatprep.subr.mxu0 0.0
    %2708 = vmatpush1.msra.mxu0 0.0
    %2709 = vmatprep.subr.mxu0 0.0
    %2710 = vmatpush1.msra.mxu0 0.0
    %2711 = vmatprep.subr.mxu0 0.0
    %2712 = vmatpush1.msra.mxu0 0.0
    %2713 = vmatprep.subr.mxu0 0.0
    %2714 = vmatpush1.msra.mxu0 0.0
    %2715 = vmatprep.mubr.f32.mxu0 0.0
    %2716 = vmatmul.mubr.f32.gmra.mrb[0].mxu0 %v2640
    %v2717 = vpop.f32.mrb[0].mxu0
    %v2718 = vadd.f32 %v2637, %v2717
    %v2719 = vpop.f32.mrb[0].mxu0
    %2720 = vmatprep.mubr.f32.mxu0 0.0
    %2721 = vmatmul.mubr.f32.gmra.mrb[0].mxu0 %v2643
    %v2722 = vpop.f32.mrb[0].mxu0
    %v2723 = vadd.f32 %v2637, %v2722
    %v2724 = vpop.f32.mrb[0].mxu0
    %2725 = vmatprep.mubr.f32.mxu0 0.0
    %2726 = vmatmul.mubr.f32.gmra.mrb[0].mxu0 %v2646
    %v2727 = vpop.f32.mrb[0].mxu0
    %v2728 = vadd.f32 %v2637, %v2727
    %v2729 = vpop.f32.mrb[0].mxu0
    %2730 = vmatprep.mubr.f32.mxu0 0.0
    %2731 = vmatmul.mubr.f32.gmra.mrb[0].mxu0 %v2649
    %v2732 = vpop.f32.mrb[0].mxu0
    %v2733 = vadd.f32 %v2637, %v2732
    %v2734 = vpop.f32.mrb[0].mxu0
    %2735 = vdwg.mxu0
    %v2736 = vadd.f32 %v1433, %v2718
    %v2737 = vadd.f32 %v1434, %v2723
    %v2738 = vadd.f32 %v1435, %v2728
    %v2739 = vadd.f32 %v1436, %v2733
    %v2740 = vsub.f32 %v1437, %v2718
    %v2741 = vsub.f32 %v1438, %v2723
    %v2742 = vsub.f32 %v1439, %v2728
    %v2743 = vsub.f32 %v1440, %v2733
    %vm2744 = vcmp.eq.s32.totalorder %v1442, 1
    %v2745 = vsel %vm2744, 1, 0
    %vm2746 = vcmp.eq.s32.totalorder %v2745, 1
    %v2747 = vlaneseq
    %v2748 = vshrl.u32 %v2747, 7
    %v2749 = vsub.s32 %v193, %v2748
    %v2750 = vrot.slane %v1931, %v2749
    %v2751 = vlaneseq
    %v2752 = vshrl.u32 %v2751, 7
    %v2753 = vsub.s32 %v1450, %v2752
    %v2754 = vrot.slane %v1945, %v2753
    %v2755 = vsel %vm1455, %v2754, %v2750
    %v2756 = vlaneseq
    %v2757 = vshrl.u32 %v2756, 7
    %v2758 = vsub.s32 %v1457, %v2757
    %v2759 = vrot.slane %v1959, %v2758
    %v2760 = vsel %vm1462, %v2759, %v2755
    %v2761 = vlaneseq
    %v2762 = vshrl.u32 %v2761, 7
    %v2763 = vsub.s32 %v1464, %v2762
    %v2764 = vrot.slane %v1973, %v2763
    %v2765 = vsel %vm1469, %v2764, %v2760
    %v2766 = vsel %vm1471, %v2765, %v2765
    %v2767 = vsel %vm1473, %v2765, %v2766
    %v2768 = vsel %vm2746, %v2767, 0
    %v2769 = vadd.s32 %v1475, %v2768
    %v2770 = vcvt.s32.f32 %v2745
    %v2772 = vlaneseq
    %v2773 = vshrl.u32 %v2772, 7
    %v2774 = vsub.s32 0, %v2773
    %v2775 = vrot.slane %v2770, %v2774
    %v2776 = vlaneseq
    %v2777 = vshrl.u32 %v2776, 7
    %v2778 = vsub.s32 1, %v2777
    %v2779 = vrot.slane %v2770, %v2778
    %v2780 = vlaneseq
    %v2781 = vshrl.u32 %v2780, 7
    %v2782 = vsub.s32 2, %v2781
    %v2783 = vrot.slane %v2770, %v2782
    %v2784 = vlaneseq
    %v2785 = vshrl.u32 %v2784, 7
    %v2786 = vsub.s32 3, %v2785
    %v2787 = vrot.slane %v2770, %v2786
    %v2792 = vmul.f32 %v1627, %v2775
    %v2793 = vmul.f32 %v1632, %v2775
    %v2794 = vmul.f32 %v1637, %v2775
    %v2795 = vmul.f32 %v1642, %v2775
    %v2796 = vmul.f32 %v1627, %v2779
    %v2797 = vmul.f32 %v1632, %v2779
    %v2798 = vmul.f32 %v1637, %v2779
    %v2799 = vmul.f32 %v1642, %v2779
    %v2800 = vmul.f32 %v1627, %v2783
    %v2801 = vmul.f32 %v1632, %v2783
    %v2802 = vmul.f32 %v1637, %v2783
    %v2803 = vmul.f32 %v1642, %v2783
    %v2804 = vmul.f32 %v1627, %v2787
    %v2805 = vmul.f32 %v1632, %v2787
    %v2806 = vmul.f32 %v1637, %v2787
    %v2807 = vmul.f32 %v1642, %v2787
    %v2808 = vadd.f32 %v1514, %v2792
    %v2809 = vadd.f32 %v1515, %v2793
    %v2810 = vadd.f32 %v1516, %v2794
    %v2811 = vadd.f32 %v1517, %v2795
    %v2812 = vadd.f32 %v1518, %v2796
    %v2813 = vadd.f32 %v1519, %v2797
    %v2814 = vadd.f32 %v1520, %v2798
    %v2815 = vadd.f32 %v1521, %v2799
    %v2816 = vadd.f32 %v1522, %v2800
    %v2817 = vadd.f32 %v1523, %v2801
    %v2818 = vadd.f32 %v1524, %v2802
    %v2819 = vadd.f32 %v1525, %v2803
    %v2820 = vadd.f32 %v1526, %v2804
    %v2821 = vadd.f32 %v1527, %v2805
    %v2822 = vadd.f32 %v1528, %v2806
    %v2823 = vadd.f32 %v1529, %v2807
    %vm2824 = vcmp.eq.s32.totalorder %v193, 1
    %v2825 = vsel %vm2824, 1, 0
    %v2826 = vcvt.s32.f32 %v2825
    %v2827 = vmul.f32 %v2628, %v2826
    %v2828 = vadd.f32 %v1534, %v2827
    %s2829 = scalar_lea.vmem [#allocation5], 64
    %v2830 = vld [vmem:[%s2829] sm:$0xff]
    %v2831 = vld [vmem:[%s2829 + $0x8] sm:$0xff]
    %v2832 = vld [vmem:[%s2829 + $0x10] sm:$0xff]
    %v2833 = vld [vmem:[%s2829 + $0x18] sm:$0xff]
    %s2834 = scalar_lea.vmem %s2, 2
    %v2835 = vld [vmem:[%s2834] sm:$0x1]
    %v2837 = vlaneseq
    %v2838 = vshrl.u32 %v2837, 7
    %v2839 = vsub.s32 0, %v2838
    %v2840 = vrot.slane %v2835, %v2839
    %v2843 = vsel %vm207, %v2740, 0
    %v2846 = vsel %vm207, %v2741, 0
    %v2849 = vsel %vm207, %v2742, 0
    %v2852 = vsel %vm207, %v2743, 0
    %2854 = vmatprep.subr.mxu0 0.0
    %2855 = vmatpush1.msra.mxu0 %v2830
    %2856 = vmatprep.subr.mxu0 0.0
    %2857 = vmatpush1.msra.mxu0 %v2831
    %2858 = vmatprep.subr.mxu0 0.0
    %2859 = vmatpush1.msra.mxu0 %v2832
    %2860 = vmatprep.subr.mxu0 0.0
    %2861 = vmatpush1.msra.mxu0 %v2833
    %2862 = vmatprep.subr.mxu0 0.0
    %2863 = vmatpush1.msra.mxu0 0.0
    %2864 = vmatprep.subr.mxu0 0.0
    %2865 = vmatpush1.msra.mxu0 0.0
    %2866 = vmatprep.subr.mxu0 0.0
    %2867 = vmatpush1.msra.mxu0 0.0
    %2868 = vmatprep.subr.mxu0 0.0
    %2869 = vmatpush1.msra.mxu0 0.0
    %2870 = vmatprep.subr.mxu0 0.0
    %2871 = vmatpush1.msra.mxu0 0.0
    %2872 = vmatprep.subr.mxu0 0.0
    %2873 = vmatpush1.msra.mxu0 0.0
    %2874 = vmatprep.subr.mxu0 0.0
    %2875 = vmatpush1.msra.mxu0 0.0
    %2876 = vmatprep.subr.mxu0 0.0
    %2877 = vmatpush1.msra.mxu0 0.0
    %2878 = vmatprep.subr.mxu0 0.0
    %2879 = vmatpush1.msra.mxu0 0.0
    %2880 = vmatprep.subr.mxu0 0.0
    %2881 = vmatpush1.msra.mxu0 0.0
    %2882 = vmatprep.subr.mxu0 0.0
    %2883 = vmatpush1.msra.mxu0 0.0
    %2884 = vmatprep.subr.mxu0 0.0
    %2885 = vmatpush1.msra.mxu0 0.0
    %2886 = vmatprep.subr.mxu0 0.0
    %2887 = vmatpush1.msra.mxu0 0.0
    %2888 = vmatprep.subr.mxu0 0.0
    %2889 = vmatpush1.msra.mxu0 0.0
    %2890 = vmatprep.subr.mxu0 0.0
    %2891 = vmatpush1.msra.mxu0 0.0
    %2892 = vmatprep.subr.mxu0 0.0
    %2893 = vmatpush1.msra.mxu0 0.0
    %2894 = vmatprep.subr.mxu0 0.0
    %2895 = vmatpush1.msra.mxu0 0.0
    %2896 = vmatprep.subr.mxu0 0.0
    %2897 = vmatpush1.msra.mxu0 0.0
    %2898 = vmatprep.subr.mxu0 0.0
    %2899 = vmatpush1.msra.mxu0 0.0
    %2900 = vmatprep.subr.mxu0 0.0
    %2901 = vmatpush1.msra.mxu0 0.0
    %2902 = vmatprep.subr.mxu0 0.0
    %2903 = vmatpush1.msra.mxu0 0.0
    %2904 = vmatprep.subr.mxu0 0.0
    %2905 = vmatpush1.msra.mxu0 0.0
    %2906 = vmatprep.subr.mxu0 0.0
    %2907 = vmatpush1.msra.mxu0 0.0
    %2908 = vmatprep.subr.mxu0 0.0
    %2909 = vmatpush1.msra.mxu0 0.0
    %2910 = vmatprep.subr.mxu0 0.0
    %2911 = vmatpush1.msra.mxu0 0.0
    %2912 = vmatprep.subr.mxu0 0.0
    %2913 = vmatpush1.msra.mxu0 0.0
    %2914 = vmatprep.subr.mxu0 0.0
    %2915 = vmatpush1.msra.mxu0 0.0
    %2916 = vmatprep.subr.mxu0 0.0
    %2917 = vmatpush1.msra.mxu0 0.0
    %2918 = vmatprep.mubr.f32.mxu0 0.0
    %2919 = vmatmul.mubr.f32.gmra.mrb[0].mxu0 %v2843
    %v2920 = vpop.f32.mrb[0].mxu0
    %v2921 = vadd.f32 %v2840, %v2920
    %v2922 = vpop.f32.mrb[0].mxu0
    %2923 = vmatprep.mubr.f32.mxu0 0.0
    %2924 = vmatmul.mubr.f32.gmra.mrb[0].mxu0 %v2846
    %v2925 = vpop.f32.mrb[0].mxu0
    %v2926 = vadd.f32 %v2840, %v2925
    %v2927 = vpop.f32.mrb[0].mxu0
    %2928 = vmatprep.mubr.f32.mxu0 0.0
    %2929 = vmatmul.mubr.f32.gmra.mrb[0].mxu0 %v2849
    %v2930 = vpop.f32.mrb[0].mxu0
    %v2931 = vadd.f32 %v2840, %v2930
    %v2932 = vpop.f32.mrb[0].mxu0
    %2933 = vmatprep.mubr.f32.mxu0 0.0
    %2934 = vmatmul.mubr.f32.gmra.mrb[0].mxu0 %v2852
    %v2935 = vpop.f32.mrb[0].mxu0
    %v2936 = vadd.f32 %v2840, %v2935
    %v2937 = vpop.f32.mrb[0].mxu0
    %2938 = vdwg.mxu0
    %s2939 = scalar_lea.vmem [#allocation7], 64
    %v2940 = vld [vmem:[%s2939] sm:$0xff]
    %v2941 = vld [vmem:[%s2939 + $0x8] sm:$0xff]
    %v2942 = vld [vmem:[%s2939 + $0x10] sm:$0xff]
    %v2943 = vld [vmem:[%s2939 + $0x18] sm:$0xff]
    %v2945 = vsel %vm207, %v2940, 0
    %v2948 = vsel %vm207, %v2941, 0
    %v2951 = vsel %vm207, %v2942, 0
    %v2954 = vsel %vm207, %v2943, 0
    %2956 = vmatprep.subr.mxu0 0.0
    %2957 = vmatpush1.msra.mxu0 %v2921
    %2958 = vmatprep.subr.mxu0 0.0
    %2959 = vmatpush1.msra.mxu0 %v2926
    %2960 = vmatprep.subr.mxu0 0.0
    %2961 = vmatpush1.msra.mxu0 %v2931
    %2962 = vmatprep.subr.mxu0 0.0
    %2963 = vmatpush1.msra.mxu0 %v2936
    %2964 = vmatprep.subr.mxu0 0.0
    %2965 = vmatpush1.msra.mxu0 0.0
    %2966 = vmatprep.subr.mxu0 0.0
    %2967 = vmatpush1.msra.mxu0 0.0
    %2968 = vmatprep.subr.mxu0 0.0
    %2969 = vmatpush1.msra.mxu0 0.0
    %2970 = vmatprep.subr.mxu0 0.0
    %2971 = vmatpush1.msra.mxu0 0.0
    %2972 = vmatprep.subr.mxu0 0.0
    %2973 = vmatpush1.msra.mxu0 0.0
    %2974 = vmatprep.subr.mxu0 0.0
    %2975 = vmatpush1.msra.mxu0 0.0
    %2976 = vmatprep.subr.mxu0 0.0
    %2977 = vmatpush1.msra.mxu0 0.0
    %2978 = vmatprep.subr.mxu0 0.0
    %2979 = vmatpush1.msra.mxu0 0.0
    %2980 = vmatprep.subr.mxu0 0.0
    %2981 = vmatpush1.msra.mxu0 0.0
    %2982 = vmatprep.subr.mxu0 0.0
    %2983 = vmatpush1.msra.mxu0 0.0
    %2984 = vmatprep.subr.mxu0 0.0
    %2985 = vmatpush1.msra.mxu0 0.0
    %2986 = vmatprep.subr.mxu0 0.0
    %2987 = vmatpush1.msra.mxu0 0.0
    %2988 = vmatprep.subr.mxu0 0.0
    %2989 = vmatpush1.msra.mxu0 0.0
    %2990 = vmatprep.subr.mxu0 0.0
    %2991 = vmatpush1.msra.mxu0 0.0
    %2992 = vmatprep.subr.mxu0 0.0
    %2993 = vmatpush1.msra.mxu0 0.0
    %2994 = vmatprep.subr.mxu0 0.0
    %2995 = vmatpush1.msra.mxu0 0.0
    %2996 = vmatprep.subr.mxu0 0.0
    %2997 = vmatpush1.msra.mxu0 0.0
    %2998 = vmatprep.subr.mxu0 0.0
    %2999 = vmatpush1.msra.mxu0 0.0
    %3000 = vmatprep.subr.mxu0 0.0
    %3001 = vmatpush1.msra.mxu0 0.0
    %3002 = vmatprep.subr.mxu0 0.0
    %3003 = vmatpush1.msra.mxu0 0.0
    %3004 = vmatprep.subr.mxu0 0.0
    %3005 = vmatpush1.msra.mxu0 0.0
    %3006 = vmatprep.subr.mxu0 0.0
    %3007 = vmatpush1.msra.mxu0 0.0
    %3008 = vmatprep.subr.mxu0 0.0
    %3009 = vmatpush1.msra.mxu0 0.0
    %3010 = vmatprep.subr.mxu0 0.0
    %3011 = vmatpush1.msra.mxu0 0.0
    %3012 = vmatprep.subr.mxu0 0.0
    %3013 = vmatpush1.msra.mxu0 0.0
    %3014 = vmatprep.subr.mxu0 0.0
    %3015 = vmatpush1.msra.mxu0 0.0
    %3016 = vmatprep.subr.mxu0 0.0
    %3017 = vmatpush1.msra.mxu0 0.0
    %3018 = vmatprep.subr.mxu0 0.0
    %3019 = vmatpush1.msra.mxu0 0.0
    %3020 = vmatprep.mubr.f32.mxu0 0.0
    %3021 = vmatmul.mubr.f32.gmra.mrb[0].mxu0 %v2945
    %v3022 = vpop.f32.mrb[0].mxu0
    %v3023 = vadd.f32 0.0, %v3022
    %v3024 = vpop.f32.mrb[0].mxu0
    %3025 = vmatprep.mubr.f32.mxu0 0.0
    %3026 = vmatmul.mubr.f32.gmra.mrb[0].mxu0 %v2948
    %v3027 = vpop.f32.mrb[0].mxu0
    %v3028 = vadd.f32 0.0, %v3027
    %v3029 = vpop.f32.mrb[0].mxu0
    %3030 = vmatprep.mubr.f32.mxu0 0.0
    %3031 = vmatmul.mubr.f32.gmra.mrb[0].mxu0 %v2951
    %v3032 = vpop.f32.mrb[0].mxu0
    %v3033 = vadd.f32 0.0, %v3032
    %v3034 = vpop.f32.mrb[0].mxu0
    %3035 = vmatprep.mubr.f32.mxu0 0.0
    %3036 = vmatmul.mubr.f32.gmra.mrb[0].mxu0 %v2954
    %v3037 = vpop.f32.mrb[0].mxu0
    %v3038 = vadd.f32 0.0, %v3037
    %v3039 = vpop.f32.mrb[0].mxu0
    %3040 = vdwg.mxu0
    %v3041 = vmul.f32 %v3023, %v3023
    %v3042 = vmul.f32 %v3028, %v3028
    %v3043 = vmul.f32 %v3033, %v3033
    %v3044 = vmul.f32 %v3038, %v3038
    %v3045 = vsel %vm410, %v3041, 0.0
    %3046 = vadd.xlane.f32.xlu0 %v3045
    %v3047 = vpop.xlane.xlu0 %3046
    %v3048 = vsel %vm410, %v3042, 0.0
    %3049 = vadd.xlane.f32.xlu0 %v3048
    %v3050 = vpop.xlane.xlu0 %3049
    %v3051 = vsel %vm410, %v3043, 0.0
    %3052 = vadd.xlane.f32.xlu0 %v3051
    %v3053 = vpop.xlane.xlu0 %3052
    %v3054 = vsel %vm410, %v3044, 0.0
    %3055 = vadd.xlane.f32.xlu0 %v3054
    %v3056 = vpop.xlane.xlu0 %3055
    %v3057 = vrsqrt.pop %v3047
    %v3058 = vmul.f32 %v3047, %v3057
    %vm3059 = vcmp.eq.f32.partialorder %v3047, inf
    %v3060 = vsel %vm3059, %v3047, %v3058
    %vm3061 = vcmp.eq.f32.partialorder %v3047, 0.0
    %v3062 = vand.u32 %v3047, 2147483648
    %v3063 = vsel %vm3061, %v3062, %v3060
    %v3064 = vrsqrt.pop %v3050
    %v3065 = vmul.f32 %v3050, %v3064
    %vm3066 = vcmp.eq.f32.partialorder %v3050, inf
    %v3067 = vsel %vm3066, %v3050, %v3065
    %vm3068 = vcmp.eq.f32.partialorder %v3050, 0.0
    %v3069 = vand.u32 %v3050, 2147483648
    %v3070 = vsel %vm3068, %v3069, %v3067
    %v3071 = vrsqrt.pop %v3053
    %v3072 = vmul.f32 %v3053, %v3071
    %vm3073 = vcmp.eq.f32.partialorder %v3053, inf
    %v3074 = vsel %vm3073, %v3053, %v3072
    %vm3075 = vcmp.eq.f32.partialorder %v3053, 0.0
    %v3076 = vand.u32 %v3053, 2147483648
    %v3077 = vsel %vm3075, %v3076, %v3074
    %v3078 = vrsqrt.pop %v3056
    %v3079 = vmul.f32 %v3056, %v3078
    %vm3080 = vcmp.eq.f32.partialorder %v3056, inf
    %v3081 = vsel %vm3080, %v3056, %v3079
    %vm3082 = vcmp.eq.f32.partialorder %v3056, 0.0
    %v3083 = vand.u32 %v3056, 2147483648
    %v3084 = vsel %vm3082, %v3083, %v3081
    %v3085 = vmax.f32 %v3063, 1e-12
    %v3086 = vmax.f32 %v3070, 1e-12
    %v3087 = vmax.f32 %v3077, 1e-12
    %v3088 = vmax.f32 %v3084, 1e-12
    %v3089 = vrcp.pop %v3085
    %v3090 = vmul.f32 %v3023, %v3089
    %v3091 = vrcp.pop %v3086
    %v3092 = vmul.f32 %v3028, %v3091
    %v3093 = vrcp.pop %v3087
    %v3094 = vmul.f32 %v3033, %v3093
    %v3095 = vrcp.pop %v3088
    %v3096 = vmul.f32 %v3038, %v3095
    %s3097 = scalar_lea.vmem [#allocation8], 16
    %v3098 = vld [vmem:[%s3097] sm:$0xff]
    %v3100 = vsel %vm410, %v3090, 0
    %v3103 = vsel %vm410, %v3092, 0
    %v3106 = vsel %vm410, %v3094, 0
    %v3109 = vsel %vm410, %v3096, 0
    %3111 = vmatprep.subr.mxu0 0.0
    %3112 = vmatpush1.msra.mxu0 %v3098
    %3113 = vmatprep.subr.mxu0 0.0
    %3114 = vmatpush1.msra.mxu0 0.0
    %3115 = vmatprep.subr.mxu0 0.0
    %3116 = vmatpush1.msra.mxu0 0.0
    %3117 = vmatprep.subr.mxu0 0.0
    %3118 = vmatpush1.msra.mxu0 0.0
    %3119 = vmatprep.subr.mxu0 0.0
    %3120 = vmatpush1.msra.mxu0 0.0
    %3121 = vmatprep.subr.mxu0 0.0
    %3122 = vmatpush1.msra.mxu0 0.0
    %3123 = vmatprep.subr.mxu0 0.0
    %3124 = vmatpush1.msra.mxu0 0.0
    %3125 = vmatprep.subr.mxu0 0.0
    %3126 = vmatpush1.msra.mxu0 0.0
    %3127 = vmatprep.subr.mxu0 0.0
    %3128 = vmatpush1.msra.mxu0 0.0
    %3129 = vmatprep.subr.mxu0 0.0
    %3130 = vmatpush1.msra.mxu0 0.0
    %3131 = vmatprep.subr.mxu0 0.0
    %3132 = vmatpush1.msra.mxu0 0.0
    %3133 = vmatprep.subr.mxu0 0.0
    %3134 = vmatpush1.msra.mxu0 0.0
    %3135 = vmatprep.subr.mxu0 0.0
    %3136 = vmatpush1.msra.mxu0 0.0
    %3137 = vmatprep.subr.mxu0 0.0
    %3138 = vmatpush1.msra.mxu0 0.0
    %3139 = vmatprep.subr.mxu0 0.0
    %3140 = vmatpush1.msra.mxu0 0.0
    %3141 = vmatprep.subr.mxu0 0.0
    %3142 = vmatpush1.msra.mxu0 0.0
    %3143 = vmatprep.subr.mxu0 0.0
    %3144 = vmatpush1.msra.mxu0 0.0
    %3145 = vmatprep.subr.mxu0 0.0
    %3146 = vmatpush1.msra.mxu0 0.0
    %3147 = vmatprep.subr.mxu0 0.0
    %3148 = vmatpush1.msra.mxu0 0.0
    %3149 = vmatprep.subr.mxu0 0.0
    %3150 = vmatpush1.msra.mxu0 0.0
    %3151 = vmatprep.subr.mxu0 0.0
    %3152 = vmatpush1.msra.mxu0 0.0
    %3153 = vmatprep.subr.mxu0 0.0
    %3154 = vmatpush1.msra.mxu0 0.0
    %3155 = vmatprep.subr.mxu0 0.0
    %3156 = vmatpush1.msra.mxu0 0.0
    %3157 = vmatprep.subr.mxu0 0.0
    %3158 = vmatpush1.msra.mxu0 0.0
    %3159 = vmatprep.subr.mxu0 0.0
    %3160 = vmatpush1.msra.mxu0 0.0
    %3161 = vmatprep.subr.mxu0 0.0
    %3162 = vmatpush1.msra.mxu0 0.0
    %3163 = vmatprep.subr.mxu0 0.0
    %3164 = vmatpush1.msra.mxu0 0.0
    %3165 = vmatprep.subr.mxu0 0.0
    %3166 = vmatpush1.msra.mxu0 0.0
    %3167 = vmatprep.subr.mxu0 0.0
    %3168 = vmatpush1.msra.mxu0 0.0
    %3169 = vmatprep.subr.mxu0 0.0
    %3170 = vmatpush1.msra.mxu0 0.0
    %3171 = vmatprep.subr.mxu0 0.0
    %3172 = vmatpush1.msra.mxu0 0.0
    %3173 = vmatprep.subr.mxu0 0.0
    %3174 = vmatpush1.msra.mxu0 0.0
    %3175 = vmatprep.mubr.f32.mxu0 0.0
    %3176 = vmatmul.mubr.f32.gmra.mrb[0].mxu0 %v3100
    %v3177 = vpop.f32.mrb[0].mxu0
    %v3178 = vadd.f32 %v195, %v3177
    %v3179 = vpop.f32.mrb[0].mxu0
    %3180 = vmatprep.mubr.f32.mxu0 0.0
    %3181 = vmatmul.mubr.f32.gmra.mrb[0].mxu0 %v3103
    %v3182 = vpop.f32.mrb[0].mxu0
    %v3183 = vadd.f32 %v195, %v3182
    %v3184 = vpop.f32.mrb[0].mxu0
    %3185 = vmatprep.mubr.f32.mxu0 0.0
    %3186 = vmatmul.mubr.f32.gmra.mrb[0].mxu0 %v3106
    %v3187 = vpop.f32.mrb[0].mxu0
    %v3188 = vadd.f32 %v195, %v3187
    %v3189 = vpop.f32.mrb[0].mxu0
    %3190 = vmatprep.mubr.f32.mxu0 0.0
    %3191 = vmatmul.mubr.f32.gmra.mrb[0].mxu0 %v3109
    %v3192 = vpop.f32.mrb[0].mxu0
    %v3193 = vadd.f32 %v195, %v3192
    %v3194 = vpop.f32.mrb[0].mxu0
    %3195 = vdwg.mxu0
    %3196 = vmax.xlane.f32.xlu0 %v3178
    %v3197 = vpop.xlane.xlu0 %3196
    %3198 = vmax.xlane.f32.xlu0 %v3183
    %v3199 = vpop.xlane.xlu0 %3198
    %3200 = vmax.xlane.f32.xlu0 %v3188
    %v3201 = vpop.xlane.xlu0 %3200
    %3202 = vmax.xlane.f32.xlu0 %v3193
    %v3203 = vpop.xlane.xlu0 %3202
    %vm3204 = vcmp.ge.f32.partialorder %v3178, %v3197
    %vm3205 = vcmp.ge.f32.partialorder %v3183, %v3199
    %vm3206 = vcmp.ge.f32.partialorder %v3188, %v3201
    %vm3207 = vcmp.ge.f32.partialorder %v3193, %v3203
    %v3208 = vsel %vm3204, %v193, 128
    %v3209 = vsel %vm3205, %v193, 128
    %v3210 = vsel %vm3206, %v193, 128
    %v3211 = vsel %vm3207, %v193, 128
    %v3212 = vand.u32 %v3208, 65535
    %v3213 = vshra.s32 %v3208, 16
    %v3214 = vcvt.s32.f32 %v3212
    %v3215 = vcvt.s32.f32 %v3213
    %3216 = vmin.xlane.f32.xlu0 %v3215
    %v3217 = vpop.xlane.xlu0 %3216
    %vm3218 = vcmp.eq.f32.partialorder %v3215, %v3217
    %v3219 = vsel %vm3218, %v3214, inf
    %3220 = vmin.xlane.f32.xlu0 %v3219
    %v3221 = vpop.xlane.xlu0 %3220
    %v3222 = vcvt.f32.s32 %v3221
    %v3223 = vcvt.f32.s32 %v3217
    %v3224 = vshll.u32 %v3223, 16
    %v3225 = vadd.s32 %v3224, %v3222
    %v3226 = vand.u32 %v3209, 65535
    %v3227 = vshra.s32 %v3209, 16
    %v3228 = vcvt.s32.f32 %v3226
    %v3229 = vcvt.s32.f32 %v3227
    %3230 = vmin.xlane.f32.xlu0 %v3229
    %v3231 = vpop.xlane.xlu0 %3230
    %vm3232 = vcmp.eq.f32.partialorder %v3229, %v3231
    %v3233 = vsel %vm3232, %v3228, inf
    %3234 = vmin.xlane.f32.xlu0 %v3233
    %v3235 = vpop.xlane.xlu0 %3234
    %v3236 = vcvt.f32.s32 %v3235
    %v3237 = vcvt.f32.s32 %v3231
    %v3238 = vshll.u32 %v3237, 16
    %v3239 = vadd.s32 %v3238, %v3236
    %v3240 = vand.u32 %v3210, 65535
    %v3241 = vshra.s32 %v3210, 16
    %v3242 = vcvt.s32.f32 %v3240
    %v3243 = vcvt.s32.f32 %v3241
    %3244 = vmin.xlane.f32.xlu0 %v3243
    %v3245 = vpop.xlane.xlu0 %3244
    %vm3246 = vcmp.eq.f32.partialorder %v3243, %v3245
    %v3247 = vsel %vm3246, %v3242, inf
    %3248 = vmin.xlane.f32.xlu0 %v3247
    %v3249 = vpop.xlane.xlu0 %3248
    %v3250 = vcvt.f32.s32 %v3249
    %v3251 = vcvt.f32.s32 %v3245
    %v3252 = vshll.u32 %v3251, 16
    %v3253 = vadd.s32 %v3252, %v3250
    %v3254 = vand.u32 %v3211, 65535
    %v3255 = vshra.s32 %v3211, 16
    %v3256 = vcvt.s32.f32 %v3254
    %v3257 = vcvt.s32.f32 %v3255
    %3258 = vmin.xlane.f32.xlu0 %v3257
    %v3259 = vpop.xlane.xlu0 %3258
    %vm3260 = vcmp.eq.f32.partialorder %v3257, %v3259
    %v3261 = vsel %vm3260, %v3256, inf
    %3262 = vmin.xlane.f32.xlu0 %v3261
    %v3263 = vpop.xlane.xlu0 %3262
    %v3264 = vcvt.f32.s32 %v3263
    %v3265 = vcvt.f32.s32 %v3259
    %v3266 = vshll.u32 %v3265, 16
    %v3267 = vadd.s32 %v3266, %v3264
    %vm3268 = vcmp.eq.s32.totalorder %v3225, %v193
    %vm3269 = vcmp.eq.s32.totalorder %v3239, %v193
    %vm3270 = vcmp.eq.s32.totalorder %v3253, %v193
    %vm3271 = vcmp.eq.s32.totalorder %v3267, %v193
    %v3272 = vsel %vm3268, 1, 0
    %v3273 = vsel %vm3269, 1, 0
    %v3274 = vsel %vm3270, 1, 0
    %v3275 = vsel %vm3271, 1, 0
    %v3276 = vcvt.s32.f32 %v3272
    %v3277 = vcvt.s32.f32 %v3273
    %v3278 = vcvt.s32.f32 %v3274
    %v3279 = vcvt.s32.f32 %v3275
    %s3280 = scalar_lea.vmem [#allocation10], 256
    %v3281 = vld [vmem:[%s3280] sm:$0xff]
    %v3282 = vld [vmem:[%s3280 + $0x8] sm:$0xff]
    %v3283 = vld [vmem:[%s3280 + $0x10] sm:$0xff]
    %v3284 = vld [vmem:[%s3280 + $0x18] sm:$0xff]
    %v3285 = vld [vmem:[%s3280 + $0x20] sm:$0xff]
    %v3286 = vld [vmem:[%s3280 + $0x28] sm:$0xff]
    %v3287 = vld [vmem:[%s3280 + $0x30] sm:$0xff]
    %v3288 = vld [vmem:[%s3280 + $0x38] sm:$0xff]
    %v3289 = vld [vmem:[%s3280 + $0x40] sm:$0xff]
    %v3290 = vld [vmem:[%s3280 + $0x48] sm:$0xff]
    %v3291 = vld [vmem:[%s3280 + $0x50] sm:$0xff]
    %v3292 = vld [vmem:[%s3280 + $0x58] sm:$0xff]
    %v3293 = vld [vmem:[%s3280 + $0x60] sm:$0xff]
    %v3294 = vld [vmem:[%s3280 + $0x68] sm:$0xff]
    %v3295 = vld [vmem:[%s3280 + $0x70] sm:$0xff]
    %v3296 = vld [vmem:[%s3280 + $0x78] sm:$0xff]
    %3297 = vmatprep.subr.mxu0 0.0
    %3298 = vmatpush1.msra.mxu0 %v3281
    %3299 = vmatprep.subr.mxu0 0.0
    %3300 = vmatpush1.msra.mxu0 %v3282
    %3301 = vmatprep.subr.mxu0 0.0
    %3302 = vmatpush1.msra.mxu0 %v3283
    %3303 = vmatprep.subr.mxu0 0.0
    %3304 = vmatpush1.msra.mxu0 %v3284
    %3305 = vmatprep.subr.mxu0 0.0
    %3306 = vmatpush1.msra.mxu0 %v3285
    %3307 = vmatprep.subr.mxu0 0.0
    %3308 = vmatpush1.msra.mxu0 %v3286
    %3309 = vmatprep.subr.mxu0 0.0
    %3310 = vmatpush1.msra.mxu0 %v3287
    %3311 = vmatprep.subr.mxu0 0.0
    %3312 = vmatpush1.msra.mxu0 %v3288
    %3313 = vmatprep.subr.mxu0 0.0
    %3314 = vmatpush1.msra.mxu0 %v3289
    %3315 = vmatprep.subr.mxu0 0.0
    %3316 = vmatpush1.msra.mxu0 %v3290
    %3317 = vmatprep.subr.mxu0 0.0
    %3318 = vmatpush1.msra.mxu0 %v3291
    %3319 = vmatprep.subr.mxu0 0.0
    %3320 = vmatpush1.msra.mxu0 %v3292
    %3321 = vmatprep.subr.mxu0 0.0
    %3322 = vmatpush1.msra.mxu0 %v3293
    %3323 = vmatprep.subr.mxu0 0.0
    %3324 = vmatpush1.msra.mxu0 %v3294
    %3325 = vmatprep.subr.mxu0 0.0
    %3326 = vmatpush1.msra.mxu0 %v3295
    %3327 = vmatprep.subr.mxu0 0.0
    %3328 = vmatpush1.msra.mxu0 %v3296
    %3329 = vmatprep.subr.mxu0 0.0
    %3330 = vmatpush1.msra.mxu0 0.0
    %3331 = vmatprep.subr.mxu0 0.0
    %3332 = vmatpush1.msra.mxu0 0.0
    %3333 = vmatprep.subr.mxu0 0.0
    %3334 = vmatpush1.msra.mxu0 0.0
    %3335 = vmatprep.subr.mxu0 0.0
    %3336 = vmatpush1.msra.mxu0 0.0
    %3337 = vmatprep.subr.mxu0 0.0
    %3338 = vmatpush1.msra.mxu0 0.0
    %3339 = vmatprep.subr.mxu0 0.0
    %3340 = vmatpush1.msra.mxu0 0.0
    %3341 = vmatprep.subr.mxu0 0.0
    %3342 = vmatpush1.msra.mxu0 0.0
    %3343 = vmatprep.subr.mxu0 0.0
    %3344 = vmatpush1.msra.mxu0 0.0
    %3345 = vmatprep.subr.mxu0 0.0
    %3346 = vmatpush1.msra.mxu0 0.0
    %3347 = vmatprep.subr.mxu0 0.0
    %3348 = vmatpush1.msra.mxu0 0.0
    %3349 = vmatprep.subr.mxu0 0.0
    %3350 = vmatpush1.msra.mxu0 0.0
    %3351 = vmatprep.subr.mxu0 0.0
    %3352 = vmatpush1.msra.mxu0 0.0
    %3353 = vmatprep.subr.mxu0 0.0
    %3354 = vmatpush1.msra.mxu0 0.0
    %3355 = vmatprep.subr.mxu0 0.0
    %3356 = vmatpush1.msra.mxu0 0.0
    %3357 = vmatprep.subr.mxu0 0.0
    %3358 = vmatpush1.msra.mxu0 0.0
    %3359 = vmatprep.subr.mxu0 0.0
    %3360 = vmatpush1.msra.mxu0 0.0
    %3361 = vmatprep.mubr.f32.mxu0 0.0
    %3362 = vmatmul.mubr.f32.gmra.mrb[0].mxu0 %v3276
    %v3363 = vpop.f32.mrb[0].mxu0
    %v3364 = vadd.f32 0.0, %v3363
    %v3365 = vpop.f32.mrb[0].mxu0
    %3366 = vmatprep.mubr.f32.mxu0 0.0
    %3367 = vmatmul.mubr.f32.gmra.mrb[0].mxu0 %v3277
    %v3368 = vpop.f32.mrb[0].mxu0
    %v3369 = vadd.f32 0.0, %v3368
    %v3370 = vpop.f32.mrb[0].mxu0
    %3371 = vmatprep.mubr.f32.mxu0 0.0
    %3372 = vmatmul.mubr.f32.gmra.mrb[0].mxu0 %v3278
    %v3373 = vpop.f32.mrb[0].mxu0
    %v3374 = vadd.f32 0.0, %v3373
    %v3375 = vpop.f32.mrb[0].mxu0
    %3376 = vmatprep.mubr.f32.mxu0 0.0
    %3377 = vmatmul.mubr.f32.gmra.mrb[0].mxu0 %v3279
    %v3378 = vpop.f32.mrb[0].mxu0
    %v3379 = vadd.f32 0.0, %v3378
    %v3380 = vpop.f32.mrb[0].mxu0
    %3381 = vdwg.mxu0
    %s3382 = scalar_lea.vmem [#allocation11], 64
    %v3383 = vld [vmem:[%s3382] sm:$0xff]
    %v3384 = vld [vmem:[%s3382 + $0x8] sm:$0xff]
    %v3385 = vld [vmem:[%s3382 + $0x10] sm:$0xff]
    %v3386 = vld [vmem:[%s3382 + $0x18] sm:$0xff]
    %v3388 = vsel %vm207, %v3383, 0
    %v3391 = vsel %vm207, %v3384, 0
    %v3394 = vsel %vm207, %v3385, 0
    %v3397 = vsel %vm207, %v3386, 0
    %3399 = vmatprep.subr.mxu0 0.0
    %3400 = vmatpush1.msra.mxu0 %v3364
    %3401 = vmatprep.subr.mxu0 0.0
    %3402 = vmatpush1.msra.mxu0 %v3369
    %3403 = vmatprep.subr.mxu0 0.0
    %3404 = vmatpush1.msra.mxu0 %v3374
    %3405 = vmatprep.subr.mxu0 0.0
    %3406 = vmatpush1.msra.mxu0 %v3379
    %3407 = vmatprep.subr.mxu0 0.0
    %3408 = vmatpush1.msra.mxu0 0.0
    %3409 = vmatprep.subr.mxu0 0.0
    %3410 = vmatpush1.msra.mxu0 0.0
    %3411 = vmatprep.subr.mxu0 0.0
    %3412 = vmatpush1.msra.mxu0 0.0
    %3413 = vmatprep.subr.mxu0 0.0
    %3414 = vmatpush1.msra.mxu0 0.0
    %3415 = vmatprep.subr.mxu0 0.0
    %3416 = vmatpush1.msra.mxu0 0.0
    %3417 = vmatprep.subr.mxu0 0.0
    %3418 = vmatpush1.msra.mxu0 0.0
    %3419 = vmatprep.subr.mxu0 0.0
    %3420 = vmatpush1.msra.mxu0 0.0
    %3421 = vmatprep.subr.mxu0 0.0
    %3422 = vmatpush1.msra.mxu0 0.0
    %3423 = vmatprep.subr.mxu0 0.0
    %3424 = vmatpush1.msra.mxu0 0.0
    %3425 = vmatprep.subr.mxu0 0.0
    %3426 = vmatpush1.msra.mxu0 0.0
    %3427 = vmatprep.subr.mxu0 0.0
    %3428 = vmatpush1.msra.mxu0 0.0
    %3429 = vmatprep.subr.mxu0 0.0
    %3430 = vmatpush1.msra.mxu0 0.0
    %3431 = vmatprep.subr.mxu0 0.0
    %3432 = vmatpush1.msra.mxu0 0.0
    %3433 = vmatprep.subr.mxu0 0.0
    %3434 = vmatpush1.msra.mxu0 0.0
    %3435 = vmatprep.subr.mxu0 0.0
    %3436 = vmatpush1.msra.mxu0 0.0
    %3437 = vmatprep.subr.mxu0 0.0
    %3438 = vmatpush1.msra.mxu0 0.0
    %3439 = vmatprep.subr.mxu0 0.0
    %3440 = vmatpush1.msra.mxu0 0.0
    %3441 = vmatprep.subr.mxu0 0.0
    %3442 = vmatpush1.msra.mxu0 0.0
    %3443 = vmatprep.subr.mxu0 0.0
    %3444 = vmatpush1.msra.mxu0 0.0
    %3445 = vmatprep.subr.mxu0 0.0
    %3446 = vmatpush1.msra.mxu0 0.0
    %3447 = vmatprep.subr.mxu0 0.0
    %3448 = vmatpush1.msra.mxu0 0.0
    %3449 = vmatprep.subr.mxu0 0.0
    %3450 = vmatpush1.msra.mxu0 0.0
    %3451 = vmatprep.subr.mxu0 0.0
    %3452 = vmatpush1.msra.mxu0 0.0
    %3453 = vmatprep.subr.mxu0 0.0
    %3454 = vmatpush1.msra.mxu0 0.0
    %3455 = vmatprep.subr.mxu0 0.0
    %3456 = vmatpush1.msra.mxu0 0.0
    %3457 = vmatprep.subr.mxu0 0.0
    %3458 = vmatpush1.msra.mxu0 0.0
    %3459 = vmatprep.subr.mxu0 0.0
    %3460 = vmatpush1.msra.mxu0 0.0
    %3461 = vmatprep.subr.mxu0 0.0
    %3462 = vmatpush1.msra.mxu0 0.0
    %3463 = vmatprep.mubr.f32.mxu0 0.0
    %3464 = vmatmul.mubr.f32.gmra.mrb[0].mxu0 %v3388
    %v3465 = vpop.f32.mrb[0].mxu0
    %v3466 = vadd.f32 0.0, %v3465
    %v3467 = vpop.f32.mrb[0].mxu0
    %3468 = vmatprep.mubr.f32.mxu0 0.0
    %3469 = vmatmul.mubr.f32.gmra.mrb[0].mxu0 %v3391
    %v3470 = vpop.f32.mrb[0].mxu0
    %v3471 = vadd.f32 0.0, %v3470
    %v3472 = vpop.f32.mrb[0].mxu0
    %3473 = vmatprep.mubr.f32.mxu0 0.0
    %3474 = vmatmul.mubr.f32.gmra.mrb[0].mxu0 %v3394
    %v3475 = vpop.f32.mrb[0].mxu0
    %v3476 = vadd.f32 0.0, %v3475
    %v3477 = vpop.f32.mrb[0].mxu0
    %3478 = vmatprep.mubr.f32.mxu0 0.0
    %3479 = vmatmul.mubr.f32.gmra.mrb[0].mxu0 %v3397
    %v3480 = vpop.f32.mrb[0].mxu0
    %v3481 = vadd.f32 0.0, %v3480
    %v3482 = vpop.f32.mrb[0].mxu0
    %3483 = vdwg.mxu0
    %v3488 = vrot.slane %v3466, 1
    %v3489 = vsel %vm852, %v853, %v3488
    %v3490 = vrot.slane %v3471, 1
    %v3491 = vsel %vm852, %v3488, %v3490
    %v3492 = vrot.slane %v3476, 1
    %v3493 = vsel %vm852, %v3490, %v3492
    %v3494 = vrot.slane %v3481, 1
    %v3495 = vsel %vm852, %v3492, %v3494
    %3496 = vrot.lane.b32.xlu0 %v3489, 8
    %v3497 = vpop.permute.xlu0 %3496
    %3498 = vrot.lane.b32.xlu0 %v3491, 8
    %v3499 = vpop.permute.xlu0 %3498
    %3500 = vrot.lane.b32.xlu0 %v3493, 8
    %v3501 = vpop.permute.xlu0 %3500
    %3502 = vrot.lane.b32.xlu0 %v3495, 8
    %v3503 = vpop.permute.xlu0 %3502
    %3504 = vrot.lane.b32.xlu0 %v3494, 8
    %v3505 = vpop.permute.xlu0 %3504
    %v3511 = vrot.slane %v3466, 2
    %v3512 = vsel %vm877, %v878, %v3511
    %v3513 = vrot.slane %v3471, 2
    %v3514 = vsel %vm877, %v3511, %v3513
    %v3515 = vrot.slane %v3476, 2
    %v3516 = vsel %vm877, %v3513, %v3515
    %v3517 = vrot.slane %v3481, 2
    %v3518 = vsel %vm877, %v3515, %v3517
    %3519 = vrot.lane.b32.xlu0 %v3512, 16
    %v3520 = vpop.permute.xlu0 %3519
    %3521 = vrot.lane.b32.xlu0 %v3514, 16
    %v3522 = vpop.permute.xlu0 %3521
    %3523 = vrot.lane.b32.xlu0 %v3516, 16
    %v3524 = vpop.permute.xlu0 %3523
    %3525 = vrot.lane.b32.xlu0 %v3518, 16
    %v3526 = vpop.permute.xlu0 %3525
    %3527 = vrot.lane.b32.xlu0 %v3517, 16
    %v3528 = vpop.permute.xlu0 %3527
    %v3534 = vrot.slane %v3466, 3
    %v3535 = vsel %vm902, %v903, %v3534
    %v3536 = vrot.slane %v3471, 3
    %v3537 = vsel %vm902, %v3534, %v3536
    %v3538 = vrot.slane %v3476, 3
    %v3539 = vsel %vm902, %v3536, %v3538
    %v3540 = vrot.slane %v3481, 3
    %v3541 = vsel %vm902, %v3538, %v3540
    %3542 = vrot.lane.b32.xlu0 %v3535, 24
    %v3543 = vpop.permute.xlu0 %3542
    %3544 = vrot.lane.b32.xlu0 %v3537, 24
    %v3545 = vpop.permute.xlu0 %3544
    %3546 = vrot.lane.b32.xlu0 %v3539, 24
    %v3547 = vpop.permute.xlu0 %3546
    %3548 = vrot.lane.b32.xlu0 %v3541, 24
    %v3549 = vpop.permute.xlu0 %3548
    %3550 = vrot.lane.b32.xlu0 %v3540, 24
    %v3551 = vpop.permute.xlu0 %3550
    %v3557 = vrot.slane %v3466, 4
    %v3558 = vrot.slane %v3471, 4
    %v3559 = vsel %vm927, %v3557, %v3558
    %v3560 = vrot.slane %v3476, 4
    %v3561 = vsel %vm927, %v3558, %v3560
    %v3562 = vrot.slane %v3481, 4
    %v3563 = vsel %vm927, %v3560, %v3562
    %3564 = vrot.lane.b32.xlu0 %v3557, 32
    %v3565 = vpop.permute.xlu0 %3564
    %3566 = vrot.lane.b32.xlu0 %v3559, 32
    %v3567 = vpop.permute.xlu0 %3566
    %3568 = vrot.lane.b32.xlu0 %v3561, 32
    %v3569 = vpop.permute.xlu0 %3568
    %3570 = vrot.lane.b32.xlu0 %v3563, 32
    %v3571 = vpop.permute.xlu0 %3570
    %3572 = vrot.lane.b32.xlu0 %v3562, 32
    %v3573 = vpop.permute.xlu0 %3572
    %v3579 = vrot.slane %v3466, 5
    %v3580 = vrot.slane %v3471, 5
    %v3581 = vsel %vm950, %v3579, %v3580
    %v3582 = vrot.slane %v3476, 5
    %v3583 = vsel %vm950, %v3580, %v3582
    %v3584 = vrot.slane %v3481, 5
    %v3585 = vsel %vm950, %v3582, %v3584
    %v3586 = vsel %vm950, %v3584, %v958
    %3587 = vrot.lane.b32.xlu0 %v3579, 40
    %v3588 = vpop.permute.xlu0 %3587
    %3589 = vrot.lane.b32.xlu0 %v3581, 40
    %v3590 = vpop.permute.xlu0 %3589
    %3591 = vrot.lane.b32.xlu0 %v3583, 40
    %v3592 = vpop.permute.xlu0 %3591
    %3593 = vrot.lane.b32.xlu0 %v3585, 40
    %v3594 = vpop.permute.xlu0 %3593
    %3595 = vrot.lane.b32.xlu0 %v3586, 40
    %v3596 = vpop.permute.xlu0 %3595
    %v3602 = vrot.slane %v3466, 6
    %v3603 = vrot.slane %v3471, 6
    %v3604 = vsel %vm975, %v3602, %v3603
    %v3605 = vrot.slane %v3476, 6
    %v3606 = vsel %vm975, %v3603, %v3605
    %v3607 = vrot.slane %v3481, 6
    %v3608 = vsel %vm975, %v3605, %v3607
    %v3609 = vsel %vm975, %v3607, %v983
    %3610 = vrot.lane.b32.xlu0 %v3602, 48
    %v3611 = vpop.permute.xlu0 %3610
    %3612 = vrot.lane.b32.xlu0 %v3604, 48
    %v3613 = vpop.permute.xlu0 %3612
    %3614 = vrot.lane.b32.xlu0 %v3606, 48
    %v3615 = vpop.permute.xlu0 %3614
    %3616 = vrot.lane.b32.xlu0 %v3608, 48
    %v3617 = vpop.permute.xlu0 %3616
    %3618 = vrot.lane.b32.xlu0 %v3609, 48
    %v3619 = vpop.permute.xlu0 %3618
    %v3625 = vrot.slane %v3466, 7
    %v3626 = vrot.slane %v3471, 7
    %v3627 = vsel %vm1000, %v3625, %v3626
    %v3628 = vrot.slane %v3476, 7
    %v3629 = vsel %vm1000, %v3626, %v3628
    %v3630 = vrot.slane %v3481, 7
    %v3631 = vsel %vm1000, %v3628, %v3630
    %v3632 = vsel %vm1000, %v3630, %v1008
    %3633 = vrot.lane.b32.xlu0 %v3625, 56
    %v3634 = vpop.permute.xlu0 %3633
    %3635 = vrot.lane.b32.xlu0 %v3627, 56
    %v3636 = vpop.permute.xlu0 %3635
    %3637 = vrot.lane.b32.xlu0 %v3629, 56
    %v3638 = vpop.permute.xlu0 %3637
    %3639 = vrot.lane.b32.xlu0 %v3631, 56
    %v3640 = vpop.permute.xlu0 %3639
    %3641 = vrot.lane.b32.xlu0 %v3632, 56
    %v3642 = vpop.permute.xlu0 %3641
    %3648 = vrot.lane.b32.xlu0 %v3466, 64
    %v3649 = vpop.permute.xlu0 %3648
    %3650 = vrot.lane.b32.xlu0 %v3471, 64
    %v3651 = vpop.permute.xlu0 %3650
    %3652 = vrot.lane.b32.xlu0 %v3476, 64
    %v3653 = vpop.permute.xlu0 %3652
    %3654 = vrot.lane.b32.xlu0 %v3481, 64
    %v3655 = vpop.permute.xlu0 %3654
    %v3660 = vsel %vm410, 0.0, %v3497
    %v3661 = vsel %vm410, %v3466, %v3499
    %v3662 = vsel %vm410, %v3471, %v3501
    %v3663 = vsel %vm410, %v3476, %v3503
    %v3664 = vsel %vm410, %v3481, %v3505
    %v3665 = vsel %vm1045, %v3660, %v3520
    %v3666 = vsel %vm1045, %v3661, %v3522
    %v3667 = vsel %vm1045, %v3662, %v3524
    %v3668 = vsel %vm1045, %v3663, %v3526
    %v3669 = vsel %vm1045, %v3664, %v3528
    %v3670 = vsel %vm1051, %v3665, %v3543
    %v3671 = vsel %vm1051, %v3666, %v3545
    %v3672 = vsel %vm1051, %v3667, %v3547
    %v3673 = vsel %vm1051, %v3668, %v3549
    %v3674 = vsel %vm1051, %v3669, %v3551
    %v3675 = vsel %vm207, %v3670, %v3565
    %v3676 = vsel %vm207, %v3671, %v3567
    %v3677 = vsel %vm207, %v3672, %v3569
    %v3678 = vsel %vm207, %v3673, %v3571
    %v3679 = vsel %vm207, %v3674, %v3573
    %v3680 = vsel %vm1062, %v3675, %v3588
    %v3681 = vsel %vm1062, %v3676, %v3590
    %v3682 = vsel %vm1062, %v3677, %v3592
    %v3683 = vsel %vm1062, %v3678, %v3594
    %v3684 = vsel %vm1062, %v3679, %v3596
    %v3685 = vsel %vm1068, %v3680, %v3611
    %v3686 = vsel %vm1068, %v3681, %v3613
    %v3687 = vsel %vm1068, %v3682, %v3615
    %v3688 = vsel %vm1068, %v3683, %v3617
    %v3689 = vsel %vm1068, %v3684, %v3619
    %v3690 = vsel %vm1074, %v3685, %v3634
    %v3691 = vsel %vm1074, %v3686, %v3636
    %v3692 = vsel %vm1074, %v3687, %v3638
    %v3693 = vsel %vm1074, %v3688, %v3640
    %v3694 = vsel %vm1074, %v3689, %v3642
    %v3695 = vsel %vm1080, %v3690, %v3649
    %v3696 = vsel %vm1080, %v3691, %v3651
    %v3697 = vsel %vm1080, %v3692, %v3653
    %v3698 = vsel %vm1080, %v3693, %v3655
    %v3699 = vsel %vm1080, %v3694, %v1034
    %v3700 = vmul.f32 %v3695, %v1090
    %v3701 = vmul.f32 %v3696, %v1092
    %v3702 = vmul.f32 %v3697, %v1094
    %v3703 = vmul.f32 %v3698, %v1096
    %v3704 = vmul.f32 %v3699, %v1095
    %s3705 = scalar_lea.vmem [#allocation13], 144
    %v3706 = vld [vmem:[%s3705] sm:$0xff]
    %v3707 = vld [vmem:[%s3705 + $0x8] sm:$0xff]
    %v3708 = vld [vmem:[%s3705 + $0x10] sm:$0xff]
    %v3709 = vld [vmem:[%s3705 + $0x18] sm:$0xff]
    %v3710 = vld [vmem:[%s3705 + $0x20] sm:$0xff]
    %v3711 = vld [vmem:[%s3705 + $0x28] sm:$0xff]
    %v3712 = vld [vmem:[%s3705 + $0x30] sm:$0xff]
    %v3713 = vld [vmem:[%s3705 + $0x38] sm:$0xff]
    %v3714 = vld [vmem:[%s3705 + $0x40] sm:$0xff]
    %s3715 = scalar_lea.vmem %s9, 2
    %v3716 = vld [vmem:[%s3715] sm:$0x1]
    %v3718 = vlaneseq
    %v3719 = vshrl.u32 %v3718, 7
    %v3720 = vsub.s32 0, %v3719
    %v3721 = vrot.slane %v3716, %v3720
    %v3728 = vrot.slane %v3700, 4
    %v3729 = vrot.slane %v3701, 4
    %v3730 = vsel %vm927, %v3728, %v3729
    %v3731 = vrot.slane %v3702, 4
    %v3732 = vsel %vm927, %v3729, %v3731
    %v3733 = vrot.slane %v3703, 4
    %v3734 = vsel %vm927, %v3731, %v3733
    %v3735 = vrot.slane %v3704, 4
    %v3736 = vsel %vm927, %v3733, %v3735
    %v3737 = vsel %vm1137, %v3730, 0
    %v3739 = vsel %vm1137, %v3732, 0
    %v3741 = vsel %vm1137, %v3734, 0
    %v3743 = vsel %vm1137, %v3736, 0
    %3745 = vmatprep.subr.mxu0 0.0
    %3746 = vmatpush1.msra.mxu0 %v3706
    %3747 = vmatprep.subr.mxu0 0.0
    %3748 = vmatpush1.msra.mxu0 %v3707
    %3749 = vmatprep.subr.mxu0 0.0
    %3750 = vmatpush1.msra.mxu0 %v3708
    %3751 = vmatprep.subr.mxu0 0.0
    %3752 = vmatpush1.msra.mxu0 %v3709
    %3753 = vmatprep.subr.mxu0 0.0
    %3754 = vmatpush1.msra.mxu0 %v3710
    %3755 = vmatprep.subr.mxu0 0.0
    %3756 = vmatpush1.msra.mxu0 %v3711
    %3757 = vmatprep.subr.mxu0 0.0
    %3758 = vmatpush1.msra.mxu0 %v3712
    %3759 = vmatprep.subr.mxu0 0.0
    %3760 = vmatpush1.msra.mxu0 %v3713
    %3761 = vmatprep.subr.mxu0 0.0
    %3762 = vmatpush1.msra.mxu0 %v3714
    %3763 = vmatprep.subr.mxu0 0.0
    %3764 = vmatpush1.msra.mxu0 0.0
    %3765 = vmatprep.subr.mxu0 0.0
    %3766 = vmatpush1.msra.mxu0 0.0
    %3767 = vmatprep.subr.mxu0 0.0
    %3768 = vmatpush1.msra.mxu0 0.0
    %3769 = vmatprep.subr.mxu0 0.0
    %3770 = vmatpush1.msra.mxu0 0.0
    %3771 = vmatprep.subr.mxu0 0.0
    %3772 = vmatpush1.msra.mxu0 0.0
    %3773 = vmatprep.subr.mxu0 0.0
    %3774 = vmatpush1.msra.mxu0 0.0
    %3775 = vmatprep.subr.mxu0 0.0
    %3776 = vmatpush1.msra.mxu0 0.0
    %3777 = vmatprep.subr.mxu0 0.0
    %3778 = vmatpush1.msra.mxu0 0.0
    %3779 = vmatprep.subr.mxu0 0.0
    %3780 = vmatpush1.msra.mxu0 0.0
    %3781 = vmatprep.subr.mxu0 0.0
    %3782 = vmatpush1.msra.mxu0 0.0
    %3783 = vmatprep.subr.mxu0 0.0
    %3784 = vmatpush1.msra.mxu0 0.0
    %3785 = vmatprep.subr.mxu0 0.0
    %3786 = vmatpush1.msra.mxu0 0.0
    %3787 = vmatprep.subr.mxu0 0.0
    %3788 = vmatpush1.msra.mxu0 0.0
    %3789 = vmatprep.subr.mxu0 0.0
    %3790 = vmatpush1.msra.mxu0 0.0
    %3791 = vmatprep.subr.mxu0 0.0
    %3792 = vmatpush1.msra.mxu0 0.0
    %3793 = vmatprep.subr.mxu0 0.0
    %3794 = vmatpush1.msra.mxu0 0.0
    %3795 = vmatprep.subr.mxu0 0.0
    %3796 = vmatpush1.msra.mxu0 0.0
    %3797 = vmatprep.subr.mxu0 0.0
    %3798 = vmatpush1.msra.mxu0 0.0
    %3799 = vmatprep.subr.mxu0 0.0
    %3800 = vmatpush1.msra.mxu0 0.0
    %3801 = vmatprep.subr.mxu0 0.0
    %3802 = vmatpush1.msra.mxu0 0.0
    %3803 = vmatprep.subr.mxu0 0.0
    %3804 = vmatpush1.msra.mxu0 0.0
    %3805 = vmatprep.subr.mxu0 0.0
    %3806 = vmatpush1.msra.mxu0 0.0
    %3807 = vmatprep.subr.mxu0 0.0
    %3808 = vmatpush1.msra.mxu0 0.0
    %3809 = vmatprep.mubr.f32.mxu0 0.0
    %3810 = vmatmul.mubr.f32.gmra.mrb[0].mxu0 %v3737
    %v3811 = vpop.f32.mrb[0].mxu0
    %v3812 = vadd.f32 %v3721, %v3811
    %v3813 = vpop.f32.mrb[0].mxu0
    %3814 = vmatprep.mubr.f32.mxu0 0.0
    %3815 = vmatmul.mubr.f32.gmra.mrb[0].mxu0 %v3739
    %v3816 = vpop.f32.mrb[0].mxu0
    %v3817 = vadd.f32 %v3721, %v3816
    %v3818 = vpop.f32.mrb[0].mxu0
    %3819 = vmatprep.mubr.f32.mxu0 0.0
    %3820 = vmatmul.mubr.f32.gmra.mrb[0].mxu0 %v3741
    %v3821 = vpop.f32.mrb[0].mxu0
    %v3822 = vadd.f32 %v3721, %v3821
    %v3823 = vpop.f32.mrb[0].mxu0
    %3824 = vmatprep.mubr.f32.mxu0 0.0
    %3825 = vmatmul.mubr.f32.gmra.mrb[0].mxu0 %v3743
    %v3826 = vpop.f32.mrb[0].mxu0
    %v3827 = vadd.f32 %v3721, %v3826
    %v3828 = vpop.f32.mrb[0].mxu0
    %3829 = vdwg.mxu0
    %v3830 = vmul.f32 %v3466, 0.5
    %v3831 = vmul.f32 %v3471, 0.5
    %v3832 = vmul.f32 %v3476, 0.5
    %v3833 = vmul.f32 %v3481, 0.5
    %v3834 = vmul.f32 %v3812, 0.5
    %v3835 = vmul.f32 %v3817, 0.5
    %v3836 = vmul.f32 %v3822, 0.5
    %v3837 = vmul.f32 %v3827, 0.5
    %v3838 = vadd.f32 %v3830, %v3834
    %v3839 = vadd.f32 %v3831, %v3835
    %v3840 = vadd.f32 %v3832, %v3836
    %v3841 = vadd.f32 %v3833, %v3837
    %v3842 = vsub.f32 %v2921, %v3838
    %v3843 = vsub.f32 %v2926, %v3839
    %v3844 = vsub.f32 %v2931, %v3840
    %v3845 = vsub.f32 %v2936, %v3841
    %v3846 = vmul.f32 %v3842, %v3842
    %v3847 = vmul.f32 %v3843, %v3843
    %v3848 = vmul.f32 %v3844, %v3844
    %v3849 = vmul.f32 %v3845, %v3845
    %3850 = vmatprep.subr.mxu0 0.0
    %3851 = vmatpush1.msra.mxu0 %v3846
    %3852 = vmatprep.subr.mxu0 0.0
    %3853 = vmatpush1.msra.mxu0 %v3847
    %3854 = vmatprep.subr.mxu0 0.0
    %3855 = vmatpush1.msra.mxu0 %v3848
    %3856 = vmatprep.subr.mxu0 0.0
    %3857 = vmatpush1.msra.mxu0 %v3849
    %3858 = vmatprep.subr.mxu0 0.0
    %3859 = vmatpush1.msra.mxu0 0.0
    %3860 = vmatprep.subr.mxu0 0.0
    %3861 = vmatpush1.msra.mxu0 0.0
    %3862 = vmatprep.subr.mxu0 0.0
    %3863 = vmatpush1.msra.mxu0 0.0
    %3864 = vmatprep.subr.mxu0 0.0
    %3865 = vmatpush1.msra.mxu0 0.0
    %3866 = vmatprep.subr.mxu0 0.0
    %3867 = vmatpush1.msra.mxu0 0.0
    %3868 = vmatprep.subr.mxu0 0.0
    %3869 = vmatpush1.msra.mxu0 0.0
    %3870 = vmatprep.subr.mxu0 0.0
    %3871 = vmatpush1.msra.mxu0 0.0
    %3872 = vmatprep.subr.mxu0 0.0
    %3873 = vmatpush1.msra.mxu0 0.0
    %3874 = vmatprep.subr.mxu0 0.0
    %3875 = vmatpush1.msra.mxu0 0.0
    %3876 = vmatprep.subr.mxu0 0.0
    %3877 = vmatpush1.msra.mxu0 0.0
    %3878 = vmatprep.subr.mxu0 0.0
    %3879 = vmatpush1.msra.mxu0 0.0
    %3880 = vmatprep.subr.mxu0 0.0
    %3881 = vmatpush1.msra.mxu0 0.0
    %3882 = vmatprep.subr.mxu0 0.0
    %3883 = vmatpush1.msra.mxu0 0.0
    %3884 = vmatprep.subr.mxu0 0.0
    %3885 = vmatpush1.msra.mxu0 0.0
    %3886 = vmatprep.subr.mxu0 0.0
    %3887 = vmatpush1.msra.mxu0 0.0
    %3888 = vmatprep.subr.mxu0 0.0
    %3889 = vmatpush1.msra.mxu0 0.0
    %3890 = vmatprep.subr.mxu0 0.0
    %3891 = vmatpush1.msra.mxu0 0.0
    %3892 = vmatprep.subr.mxu0 0.0
    %3893 = vmatpush1.msra.mxu0 0.0
    %3894 = vmatprep.subr.mxu0 0.0
    %3895 = vmatpush1.msra.mxu0 0.0
    %3896 = vmatprep.subr.mxu0 0.0
    %3897 = vmatpush1.msra.mxu0 0.0
    %3898 = vmatprep.subr.mxu0 0.0
    %3899 = vmatpush1.msra.mxu0 0.0
    %3900 = vmatprep.subr.mxu0 0.0
    %3901 = vmatpush1.msra.mxu0 0.0
    %3902 = vmatprep.subr.mxu0 0.0
    %3903 = vmatpush1.msra.mxu0 0.0
    %3904 = vmatprep.subr.mxu0 0.0
    %3905 = vmatpush1.msra.mxu0 0.0
    %3906 = vmatprep.subr.mxu0 0.0
    %3907 = vmatpush1.msra.mxu0 0.0
    %3908 = vmatprep.subr.mxu0 0.0
    %3909 = vmatpush1.msra.mxu0 0.0
    %3910 = vmatprep.subr.mxu0 0.0
    %3911 = vmatpush1.msra.mxu0 0.0
    %3912 = vmatprep.subr.mxu0 0.0
    %3913 = vmatpush1.msra.mxu0 0.0
    %3914 = vmatprep.mubr.f32.mxu0 0.0
    %3915 = vmatmul.mubr.f32.gmra.mrb[0].mxu0 %v1252
    %v3916 = vpop.f32.mrb[0].mxu0
    %v3917 = vadd.f32 0.0, %v3916
    %v3918 = vpop.f32.mrb[0].mxu0
    %3919 = vdwg.mxu0
    %v3920 = vsel %vm1324, %v3917, 0.0
    %3921 = vadd.xlane.f32.xlu0 %v3920
    %v3922 = vpop.xlane.xlu0 %3921
    %s3923 = scalar_lea.vmem [#allocation16], 16
    %v3924 = vld [vmem:[%s3923] sm:$0xff]
    %s3925 = scalar_lea.vmem [#allocation17], 2
    %v3926 = vld [vmem:[%s3925] sm:$0x1]
    %v3928 = vlaneseq
    %v3929 = vshrl.u32 %v3928, 7
    %v3930 = vsub.s32 0, %v3929
    %v3931 = vrot.slane %v3926, %v3930
    %v3934 = vsel %vm410, %v3838, 0
    %v3937 = vsel %vm410, %v3839, 0
    %v3940 = vsel %vm410, %v3840, 0
    %v3943 = vsel %vm410, %v3841, 0
    %3945 = vmatprep.subr.mxu0 0.0
    %3946 = vmatpush1.msra.mxu0 %v3924
    %3947 = vmatprep.subr.mxu0 0.0
    %3948 = vmatpush1.msra.mxu0 0.0
    %3949 = vmatprep.subr.mxu0 0.0
    %3950 = vmatpush1.msra.mxu0 0.0
    %3951 = vmatprep.subr.mxu0 0.0
    %3952 = vmatpush1.msra.mxu0 0.0
    %3953 = vmatprep.subr.mxu0 0.0
    %3954 = vmatpush1.msra.mxu0 0.0
    %3955 = vmatprep.subr.mxu0 0.0
    %3956 = vmatpush1.msra.mxu0 0.0
    %3957 = vmatprep.subr.mxu0 0.0
    %3958 = vmatpush1.msra.mxu0 0.0
    %3959 = vmatprep.subr.mxu0 0.0
    %3960 = vmatpush1.msra.mxu0 0.0
    %3961 = vmatprep.subr.mxu0 0.0
    %3962 = vmatpush1.msra.mxu0 0.0
    %3963 = vmatprep.subr.mxu0 0.0
    %3964 = vmatpush1.msra.mxu0 0.0
    %3965 = vmatprep.subr.mxu0 0.0
    %3966 = vmatpush1.msra.mxu0 0.0
    %3967 = vmatprep.subr.mxu0 0.0
    %3968 = vmatpush1.msra.mxu0 0.0
    %3969 = vmatprep.subr.mxu0 0.0
    %3970 = vmatpush1.msra.mxu0 0.0
    %3971 = vmatprep.subr.mxu0 0.0
    %3972 = vmatpush1.msra.mxu0 0.0
    %3973 = vmatprep.subr.mxu0 0.0
    %3974 = vmatpush1.msra.mxu0 0.0
    %3975 = vmatprep.subr.mxu0 0.0
    %3976 = vmatpush1.msra.mxu0 0.0
    %3977 = vmatprep.subr.mxu0 0.0
    %3978 = vmatpush1.msra.mxu0 0.0
    %3979 = vmatprep.subr.mxu0 0.0
    %3980 = vmatpush1.msra.mxu0 0.0
    %3981 = vmatprep.subr.mxu0 0.0
    %3982 = vmatpush1.msra.mxu0 0.0
    %3983 = vmatprep.subr.mxu0 0.0
    %3984 = vmatpush1.msra.mxu0 0.0
    %3985 = vmatprep.subr.mxu0 0.0
    %3986 = vmatpush1.msra.mxu0 0.0
    %3987 = vmatprep.subr.mxu0 0.0
    %3988 = vmatpush1.msra.mxu0 0.0
    %3989 = vmatprep.subr.mxu0 0.0
    %3990 = vmatpush1.msra.mxu0 0.0
    %3991 = vmatprep.subr.mxu0 0.0
    %3992 = vmatpush1.msra.mxu0 0.0
    %3993 = vmatprep.subr.mxu0 0.0
    %3994 = vmatpush1.msra.mxu0 0.0
    %3995 = vmatprep.subr.mxu0 0.0
    %3996 = vmatpush1.msra.mxu0 0.0
    %3997 = vmatprep.subr.mxu0 0.0
    %3998 = vmatpush1.msra.mxu0 0.0
    %3999 = vmatprep.subr.mxu0 0.0
    %4000 = vmatpush1.msra.mxu0 0.0
    %4001 = vmatprep.subr.mxu0 0.0
    %4002 = vmatpush1.msra.mxu0 0.0
    %4003 = vmatprep.subr.mxu0 0.0
    %4004 = vmatpush1.msra.mxu0 0.0
    %4005 = vmatprep.subr.mxu0 0.0
    %4006 = vmatpush1.msra.mxu0 0.0
    %4007 = vmatprep.subr.mxu0 0.0
    %4008 = vmatpush1.msra.mxu0 0.0
    %4009 = vmatprep.mubr.f32.mxu0 0.0
    %4010 = vmatmul.mubr.f32.gmra.mrb[0].mxu0 %v3934
    %v4011 = vpop.f32.mrb[0].mxu0
    %v4012 = vadd.f32 %v3931, %v4011
    %v4013 = vpop.f32.mrb[0].mxu0
    %4014 = vmatprep.mubr.f32.mxu0 0.0
    %4015 = vmatmul.mubr.f32.gmra.mrb[0].mxu0 %v3937
    %v4016 = vpop.f32.mrb[0].mxu0
    %v4017 = vadd.f32 %v3931, %v4016
    %v4018 = vpop.f32.mrb[0].mxu0
    %4019 = vmatprep.mubr.f32.mxu0 0.0
    %4020 = vmatmul.mubr.f32.gmra.mrb[0].mxu0 %v3940
    %v4021 = vpop.f32.mrb[0].mxu0
    %v4022 = vadd.f32 %v3931, %v4021
    %v4023 = vpop.f32.mrb[0].mxu0
    %4024 = vmatprep.mubr.f32.mxu0 0.0
    %4025 = vmatmul.mubr.f32.gmra.mrb[0].mxu0 %v3943
    %v4026 = vpop.f32.mrb[0].mxu0
    %v4027 = vadd.f32 %v3931, %v4026
    %v4028 = vpop.f32.mrb[0].mxu0
    %4029 = vdwg.mxu0
    %v4030 = vadd.f32 %v2736, %v4012
    %v4031 = vadd.f32 %v2737, %v4017
    %v4032 = vadd.f32 %v2738, %v4022
    %v4033 = vadd.f32 %v2739, %v4027
    %v4034 = vsub.f32 %v2740, %v4012
    %v4035 = vsub.f32 %v2741, %v4017
    %v4036 = vsub.f32 %v2742, %v4022
    %v4037 = vsub.f32 %v2743, %v4027
    %vm4038 = vcmp.eq.s32.totalorder %v1442, 2
    %v4039 = vsel %vm4038, 1, 0
    %vm4040 = vcmp.eq.s32.totalorder %v4039, 1
    %v4041 = vlaneseq
    %v4042 = vshrl.u32 %v4041, 7
    %v4043 = vsub.s32 %v193, %v4042
    %v4044 = vrot.slane %v3225, %v4043
    %v4045 = vlaneseq
    %v4046 = vshrl.u32 %v4045, 7
    %v4047 = vsub.s32 %v1450, %v4046
    %v4048 = vrot.slane %v3239, %v4047
    %v4049 = vsel %vm1455, %v4048, %v4044
    %v4050 = vlaneseq
    %v4051 = vshrl.u32 %v4050, 7
    %v4052 = vsub.s32 %v1457, %v4051
    %v4053 = vrot.slane %v3253, %v4052
    %v4054 = vsel %vm1462, %v4053, %v4049
    %v4055 = vlaneseq
    %v4056 = vshrl.u32 %v4055, 7
    %v4057 = vsub.s32 %v1464, %v4056
    %v4058 = vrot.slane %v3267, %v4057
    %v4059 = vsel %vm1469, %v4058, %v4054
    %v4060 = vsel %vm1471, %v4059, %v4059
    %v4061 = vsel %vm1473, %v4059, %v4060
    %v4062 = vsel %vm4040, %v4061, 0
    %v4063 = vadd.s32 %v2769, %v4062
    %v4064 = vcvt.s32.f32 %v4039
    %v4066 = vlaneseq
    %v4067 = vshrl.u32 %v4066, 7
    %v4068 = vsub.s32 0, %v4067
    %v4069 = vrot.slane %v4064, %v4068
    %v4070 = vlaneseq
    %v4071 = vshrl.u32 %v4070, 7
    %v4072 = vsub.s32 1, %v4071
    %v4073 = vrot.slane %v4064, %v4072
    %v4074 = vlaneseq
    %v4075 = vshrl.u32 %v4074, 7
    %v4076 = vsub.s32 2, %v4075
    %v4077 = vrot.slane %v4064, %v4076
    %v4078 = vlaneseq
    %v4079 = vshrl.u32 %v4078, 7
    %v4080 = vsub.s32 3, %v4079
    %v4081 = vrot.slane %v4064, %v4080
    %v4086 = vmul.f32 %v2921, %v4069
    %v4087 = vmul.f32 %v2926, %v4069
    %v4088 = vmul.f32 %v2931, %v4069
    %v4089 = vmul.f32 %v2936, %v4069
    %v4090 = vmul.f32 %v2921, %v4073
    %v4091 = vmul.f32 %v2926, %v4073
    %v4092 = vmul.f32 %v2931, %v4073
    %v4093 = vmul.f32 %v2936, %v4073
    %v4094 = vmul.f32 %v2921, %v4077
    %v4095 = vmul.f32 %v2926, %v4077
    %v4096 = vmul.f32 %v2931, %v4077
    %v4097 = vmul.f32 %v2936, %v4077
    %v4098 = vmul.f32 %v2921, %v4081
    %v4099 = vmul.f32 %v2926, %v4081
    %v4100 = vmul.f32 %v2931, %v4081
    %v4101 = vmul.f32 %v2936, %v4081
    %v4102 = vadd.f32 %v2808, %v4086
    %v4103 = vadd.f32 %v2809, %v4087
    %v4104 = vadd.f32 %v2810, %v4088
    %v4105 = vadd.f32 %v2811, %v4089
    %v4106 = vadd.f32 %v2812, %v4090
    %v4107 = vadd.f32 %v2813, %v4091
    %v4108 = vadd.f32 %v2814, %v4092
    %v4109 = vadd.f32 %v2815, %v4093
    %v4110 = vadd.f32 %v2816, %v4094
    %v4111 = vadd.f32 %v2817, %v4095
    %v4112 = vadd.f32 %v2818, %v4096
    %v4113 = vadd.f32 %v2819, %v4097
    %v4114 = vadd.f32 %v2820, %v4098
    %v4115 = vadd.f32 %v2821, %v4099
    %v4116 = vadd.f32 %v2822, %v4100
    %v4117 = vadd.f32 %v2823, %v4101
    %vm4118 = vcmp.eq.s32.totalorder %v193, 2
    %v4119 = vsel %vm4118, 1, 0
    %v4120 = vcvt.s32.f32 %v4119
    %v4121 = vmul.f32 %v3922, %v4120
    %v4122 = vadd.f32 %v2828, %v4121
    %s4123 = scalar_lea.vmem [#allocation5], 96
    %v4124 = vld [vmem:[%s4123] sm:$0xff]
    %v4125 = vld [vmem:[%s4123 + $0x8] sm:$0xff]
    %v4126 = vld [vmem:[%s4123 + $0x10] sm:$0xff]
    %v4127 = vld [vmem:[%s4123 + $0x18] sm:$0xff]
    %s4128 = scalar_lea.vmem %s2, 3
    %v4129 = vld [vmem:[%s4128] sm:$0x1]
    %v4131 = vlaneseq
    %v4132 = vshrl.u32 %v4131, 7
    %v4133 = vsub.s32 0, %v4132
    %v4134 = vrot.slane %v4129, %v4133
    %v4137 = vsel %vm207, %v4034, 0
    %v4140 = vsel %vm207, %v4035, 0
    %v4143 = vsel %vm207, %v4036, 0
    %v4146 = vsel %vm207, %v4037, 0
    %4148 = vmatprep.subr.mxu0 0.0
    %4149 = vmatpush1.msra.mxu0 %v4124
    %4150 = vmatprep.subr.mxu0 0.0
    %4151 = vmatpush1.msra.mxu0 %v4125
    %4152 = vmatprep.subr.mxu0 0.0
    %4153 = vmatpush1.msra.mxu0 %v4126
    %4154 = vmatprep.subr.mxu0 0.0
    %4155 = vmatpush1.msra.mxu0 %v4127
    %4156 = vmatprep.subr.mxu0 0.0
    %4157 = vmatpush1.msra.mxu0 0.0
    %4158 = vmatprep.subr.mxu0 0.0
    %4159 = vmatpush1.msra.mxu0 0.0
    %4160 = vmatprep.subr.mxu0 0.0
    %4161 = vmatpush1.msra.mxu0 0.0
    %4162 = vmatprep.subr.mxu0 0.0
    %4163 = vmatpush1.msra.mxu0 0.0
    %4164 = vmatprep.subr.mxu0 0.0
    %4165 = vmatpush1.msra.mxu0 0.0
    %4166 = vmatprep.subr.mxu0 0.0
    %4167 = vmatpush1.msra.mxu0 0.0
    %4168 = vmatprep.subr.mxu0 0.0
    %4169 = vmatpush1.msra.mxu0 0.0
    %4170 = vmatprep.subr.mxu0 0.0
    %4171 = vmatpush1.msra.mxu0 0.0
    %4172 = vmatprep.subr.mxu0 0.0
    %4173 = vmatpush1.msra.mxu0 0.0
    %4174 = vmatprep.subr.mxu0 0.0
    %4175 = vmatpush1.msra.mxu0 0.0
    %4176 = vmatprep.subr.mxu0 0.0
    %4177 = vmatpush1.msra.mxu0 0.0
    %4178 = vmatprep.subr.mxu0 0.0
    %4179 = vmatpush1.msra.mxu0 0.0
    %4180 = vmatprep.subr.mxu0 0.0
    %4181 = vmatpush1.msra.mxu0 0.0
    %4182 = vmatprep.subr.mxu0 0.0
    %4183 = vmatpush1.msra.mxu0 0.0
    %4184 = vmatprep.subr.mxu0 0.0
    %4185 = vmatpush1.msra.mxu0 0.0
    %4186 = vmatprep.subr.mxu0 0.0
    %4187 = vmatpush1.msra.mxu0 0.0
    %4188 = vmatprep.subr.mxu0 0.0
    %4189 = vmatpush1.msra.mxu0 0.0
    %4190 = vmatprep.subr.mxu0 0.0
    %4191 = vmatpush1.msra.mxu0 0.0
    %4192 = vmatprep.subr.mxu0 0.0
    %4193 = vmatpush1.msra.mxu0 0.0
    %4194 = vmatprep.subr.mxu0 0.0
    %4195 = vmatpush1.msra.mxu0 0.0
    %4196 = vmatprep.subr.mxu0 0.0
    %4197 = vmatpush1.msra.mxu0 0.0
    %4198 = vmatprep.subr.mxu0 0.0
    %4199 = vmatpush1.msra.mxu0 0.0
    %4200 = vmatprep.subr.mxu0 0.0
    %4201 = vmatpush1.msra.mxu0 0.0
    %4202 = vmatprep.subr.mxu0 0.0
    %4203 = vmatpush1.msra.mxu0 0.0
    %4204 = vmatprep.subr.mxu0 0.0
    %4205 = vmatpush1.msra.mxu0 0.0
    %4206 = vmatprep.subr.mxu0 0.0
    %4207 = vmatpush1.msra.mxu0 0.0
    %4208 = vmatprep.subr.mxu0 0.0
    %4209 = vmatpush1.msra.mxu0 0.0
    %4210 = vmatprep.subr.mxu0 0.0
    %4211 = vmatpush1.msra.mxu0 0.0
    %4212 = vmatprep.mubr.f32.mxu0 0.0
    %4213 = vmatmul.mubr.f32.gmra.mrb[0].mxu0 %v4137
    %v4214 = vpop.f32.mrb[0].mxu0
    %v4215 = vadd.f32 %v4134, %v4214
    %v4216 = vpop.f32.mrb[0].mxu0
    %4217 = vmatprep.mubr.f32.mxu0 0.0
    %4218 = vmatmul.mubr.f32.gmra.mrb[0].mxu0 %v4140
    %v4219 = vpop.f32.mrb[0].mxu0
    %v4220 = vadd.f32 %v4134, %v4219
    %v4221 = vpop.f32.mrb[0].mxu0
    %4222 = vmatprep.mubr.f32.mxu0 0.0
    %4223 = vmatmul.mubr.f32.gmra.mrb[0].mxu0 %v4143
    %v4224 = vpop.f32.mrb[0].mxu0
    %v4225 = vadd.f32 %v4134, %v4224
    %v4226 = vpop.f32.mrb[0].mxu0
    %4227 = vmatprep.mubr.f32.mxu0 0.0
    %4228 = vmatmul.mubr.f32.gmra.mrb[0].mxu0 %v4146
    %v4229 = vpop.f32.mrb[0].mxu0
    %v4230 = vadd.f32 %v4134, %v4229
    %v4231 = vpop.f32.mrb[0].mxu0
    %4232 = vdwg.mxu0
    %s4233 = scalar_lea.vmem [#allocation7], 96
    %v4234 = vld [vmem:[%s4233] sm:$0xff]
    %v4235 = vld [vmem:[%s4233 + $0x8] sm:$0xff]
    %v4236 = vld [vmem:[%s4233 + $0x10] sm:$0xff]
    %v4237 = vld [vmem:[%s4233 + $0x18] sm:$0xff]
    %v4239 = vsel %vm207, %v4234, 0
    %v4242 = vsel %vm207, %v4235, 0
    %v4245 = vsel %vm207, %v4236, 0
    %v4248 = vsel %vm207, %v4237, 0
    %4250 = vmatprep.subr.mxu0 0.0
    %4251 = vmatpush1.msra.mxu0 %v4215
    %4252 = vmatprep.subr.mxu0 0.0
    %4253 = vmatpush1.msra.mxu0 %v4220
    %4254 = vmatprep.subr.mxu0 0.0
    %4255 = vmatpush1.msra.mxu0 %v4225
    %4256 = vmatprep.subr.mxu0 0.0
    %4257 = vmatpush1.msra.mxu0 %v4230
    %4258 = vmatprep.subr.mxu0 0.0
    %4259 = vmatpush1.msra.mxu0 0.0
    %4260 = vmatprep.subr.mxu0 0.0
    %4261 = vmatpush1.msra.mxu0 0.0
    %4262 = vmatprep.subr.mxu0 0.0
    %4263 = vmatpush1.msra.mxu0 0.0
    %4264 = vmatprep.subr.mxu0 0.0
    %4265 = vmatpush1.msra.mxu0 0.0
    %4266 = vmatprep.subr.mxu0 0.0
    %4267 = vmatpush1.msra.mxu0 0.0
    %4268 = vmatprep.subr.mxu0 0.0
    %4269 = vmatpush1.msra.mxu0 0.0
    %4270 = vmatprep.subr.mxu0 0.0
    %4271 = vmatpush1.msra.mxu0 0.0
    %4272 = vmatprep.subr.mxu0 0.0
    %4273 = vmatpush1.msra.mxu0 0.0
    %4274 = vmatprep.subr.mxu0 0.0
    %4275 = vmatpush1.msra.mxu0 0.0
    %4276 = vmatprep.subr.mxu0 0.0
    %4277 = vmatpush1.msra.mxu0 0.0
    %4278 = vmatprep.subr.mxu0 0.0
    %4279 = vmatpush1.msra.mxu0 0.0
    %4280 = vmatprep.subr.mxu0 0.0
    %4281 = vmatpush1.msra.mxu0 0.0
    %4282 = vmatprep.subr.mxu0 0.0
    %4283 = vmatpush1.msra.mxu0 0.0
    %4284 = vmatprep.subr.mxu0 0.0
    %4285 = vmatpush1.msra.mxu0 0.0
    %4286 = vmatprep.subr.mxu0 0.0
    %4287 = vmatpush1.msra.mxu0 0.0
    %4288 = vmatprep.subr.mxu0 0.0
    %4289 = vmatpush1.msra.mxu0 0.0
    %4290 = vmatprep.subr.mxu0 0.0
    %4291 = vmatpush1.msra.mxu0 0.0
    %4292 = vmatprep.subr.mxu0 0.0
    %4293 = vmatpush1.msra.mxu0 0.0
    %4294 = vmatprep.subr.mxu0 0.0
    %4295 = vmatpush1.msra.mxu0 0.0
    %4296 = vmatprep.subr.mxu0 0.0
    %4297 = vmatpush1.msra.mxu0 0.0
    %4298 = vmatprep.subr.mxu0 0.0
    %4299 = vmatpush1.msra.mxu0 0.0
    %4300 = vmatprep.subr.mxu0 0.0
    %4301 = vmatpush1.msra.mxu0 0.0
    %4302 = vmatprep.subr.mxu0 0.0
    %4303 = vmatpush1.msra.mxu0 0.0
    %4304 = vmatprep.subr.mxu0 0.0
    %4305 = vmatpush1.msra.mxu0 0.0
    %4306 = vmatprep.subr.mxu0 0.0
    %4307 = vmatpush1.msra.mxu0 0.0
    %4308 = vmatprep.subr.mxu0 0.0
    %4309 = vmatpush1.msra.mxu0 0.0
    %4310 = vmatprep.subr.mxu0 0.0
    %4311 = vmatpush1.msra.mxu0 0.0
    %4312 = vmatprep.subr.mxu0 0.0
    %4313 = vmatpush1.msra.mxu0 0.0
    %4314 = vmatprep.mubr.f32.mxu0 0.0
    %4315 = vmatmul.mubr.f32.gmra.mrb[0].mxu0 %v4239
    %v4316 = vpop.f32.mrb[0].mxu0
    %v4317 = vadd.f32 0.0, %v4316
    %v4318 = vpop.f32.mrb[0].mxu0
    %4319 = vmatprep.mubr.f32.mxu0 0.0
    %4320 = vmatmul.mubr.f32.gmra.mrb[0].mxu0 %v4242
    %v4321 = vpop.f32.mrb[0].mxu0
    %v4322 = vadd.f32 0.0, %v4321
    %v4323 = vpop.f32.mrb[0].mxu0
    %4324 = vmatprep.mubr.f32.mxu0 0.0
    %4325 = vmatmul.mubr.f32.gmra.mrb[0].mxu0 %v4245
    %v4326 = vpop.f32.mrb[0].mxu0
    %v4327 = vadd.f32 0.0, %v4326
    %v4328 = vpop.f32.mrb[0].mxu0
    %4329 = vmatprep.mubr.f32.mxu0 0.0
    %4330 = vmatmul.mubr.f32.gmra.mrb[0].mxu0 %v4248
    %v4331 = vpop.f32.mrb[0].mxu0
    %v4332 = vadd.f32 0.0, %v4331
    %v4333 = vpop.f32.mrb[0].mxu0
    %4334 = vdwg.mxu0
    %v4335 = vmul.f32 %v4317, %v4317
    %v4336 = vmul.f32 %v4322, %v4322
    %v4337 = vmul.f32 %v4327, %v4327
    %v4338 = vmul.f32 %v4332, %v4332
    %v4339 = vsel %vm410, %v4335, 0.0
    %4340 = vadd.xlane.f32.xlu0 %v4339
    %v4341 = vpop.xlane.xlu0 %4340
    %v4342 = vsel %vm410, %v4336, 0.0
    %4343 = vadd.xlane.f32.xlu0 %v4342
    %v4344 = vpop.xlane.xlu0 %4343
    %v4345 = vsel %vm410, %v4337, 0.0
    %4346 = vadd.xlane.f32.xlu0 %v4345
    %v4347 = vpop.xlane.xlu0 %4346
    %v4348 = vsel %vm410, %v4338, 0.0
    %4349 = vadd.xlane.f32.xlu0 %v4348
    %v4350 = vpop.xlane.xlu0 %4349
    %v4351 = vrsqrt.pop %v4341
    %v4352 = vmul.f32 %v4341, %v4351
    %vm4353 = vcmp.eq.f32.partialorder %v4341, inf
    %v4354 = vsel %vm4353, %v4341, %v4352
    %vm4355 = vcmp.eq.f32.partialorder %v4341, 0.0
    %v4356 = vand.u32 %v4341, 2147483648
    %v4357 = vsel %vm4355, %v4356, %v4354
    %v4358 = vrsqrt.pop %v4344
    %v4359 = vmul.f32 %v4344, %v4358
    %vm4360 = vcmp.eq.f32.partialorder %v4344, inf
    %v4361 = vsel %vm4360, %v4344, %v4359
    %vm4362 = vcmp.eq.f32.partialorder %v4344, 0.0
    %v4363 = vand.u32 %v4344, 2147483648
    %v4364 = vsel %vm4362, %v4363, %v4361
    %v4365 = vrsqrt.pop %v4347
    %v4366 = vmul.f32 %v4347, %v4365
    %vm4367 = vcmp.eq.f32.partialorder %v4347, inf
    %v4368 = vsel %vm4367, %v4347, %v4366
    %vm4369 = vcmp.eq.f32.partialorder %v4347, 0.0
    %v4370 = vand.u32 %v4347, 2147483648
    %v4371 = vsel %vm4369, %v4370, %v4368
    %v4372 = vrsqrt.pop %v4350
    %v4373 = vmul.f32 %v4350, %v4372
    %vm4374 = vcmp.eq.f32.partialorder %v4350, inf
    %v4375 = vsel %vm4374, %v4350, %v4373
    %vm4376 = vcmp.eq.f32.partialorder %v4350, 0.0
    %v4377 = vand.u32 %v4350, 2147483648
    %v4378 = vsel %vm4376, %v4377, %v4375
    %v4379 = vmax.f32 %v4357, 1e-12
    %v4380 = vmax.f32 %v4364, 1e-12
    %v4381 = vmax.f32 %v4371, 1e-12
    %v4382 = vmax.f32 %v4378, 1e-12
    %v4383 = vrcp.pop %v4379
    %v4384 = vmul.f32 %v4317, %v4383
    %v4385 = vrcp.pop %v4380
    %v4386 = vmul.f32 %v4322, %v4385
    %v4387 = vrcp.pop %v4381
    %v4388 = vmul.f32 %v4327, %v4387
    %v4389 = vrcp.pop %v4382
    %v4390 = vmul.f32 %v4332, %v4389
    %s4391 = scalar_lea.vmem [#allocation8], 24
    %v4392 = vld [vmem:[%s4391] sm:$0xff]
    %v4394 = vsel %vm410, %v4384, 0
    %v4397 = vsel %vm410, %v4386, 0
    %v4400 = vsel %vm410, %v4388, 0
    %v4403 = vsel %vm410, %v4390, 0
    %4405 = vmatprep.subr.mxu0 0.0
    %4406 = vmatpush1.msra.mxu0 %v4392
    %4407 = vmatprep.subr.mxu0 0.0
    %4408 = vmatpush1.msra.mxu0 0.0
    %4409 = vmatprep.subr.mxu0 0.0
    %4410 = vmatpush1.msra.mxu0 0.0
    %4411 = vmatprep.subr.mxu0 0.0
    %4412 = vmatpush1.msra.mxu0 0.0
    %4413 = vmatprep.subr.mxu0 0.0
    %4414 = vmatpush1.msra.mxu0 0.0
    %4415 = vmatprep.subr.mxu0 0.0
    %4416 = vmatpush1.msra.mxu0 0.0
    %4417 = vmatprep.subr.mxu0 0.0
    %4418 = vmatpush1.msra.mxu0 0.0
    %4419 = vmatprep.subr.mxu0 0.0
    %4420 = vmatpush1.msra.mxu0 0.0
    %4421 = vmatprep.subr.mxu0 0.0
    %4422 = vmatpush1.msra.mxu0 0.0
    %4423 = vmatprep.subr.mxu0 0.0
    %4424 = vmatpush1.msra.mxu0 0.0
    %4425 = vmatprep.subr.mxu0 0.0
    %4426 = vmatpush1.msra.mxu0 0.0
    %4427 = vmatprep.subr.mxu0 0.0
    %4428 = vmatpush1.msra.mxu0 0.0
    %4429 = vmatprep.subr.mxu0 0.0
    %4430 = vmatpush1.msra.mxu0 0.0
    %4431 = vmatprep.subr.mxu0 0.0
    %4432 = vmatpush1.msra.mxu0 0.0
    %4433 = vmatprep.subr.mxu0 0.0
    %4434 = vmatpush1.msra.mxu0 0.0
    %4435 = vmatprep.subr.mxu0 0.0
    %4436 = vmatpush1.msra.mxu0 0.0
    %4437 = vmatprep.subr.mxu0 0.0
    %4438 = vmatpush1.msra.mxu0 0.0
    %4439 = vmatprep.subr.mxu0 0.0
    %4440 = vmatpush1.msra.mxu0 0.0
    %4441 = vmatprep.subr.mxu0 0.0
    %4442 = vmatpush1.msra.mxu0 0.0
    %4443 = vmatprep.subr.mxu0 0.0
    %4444 = vmatpush1.msra.mxu0 0.0
    %4445 = vmatprep.subr.mxu0 0.0
    %4446 = vmatpush1.msra.mxu0 0.0
    %4447 = vmatprep.subr.mxu0 0.0
    %4448 = vmatpush1.msra.mxu0 0.0
    %4449 = vmatprep.subr.mxu0 0.0
    %4450 = vmatpush1.msra.mxu0 0.0
    %4451 = vmatprep.subr.mxu0 0.0
    %4452 = vmatpush1.msra.mxu0 0.0
    %4453 = vmatprep.subr.mxu0 0.0
    %4454 = vmatpush1.msra.mxu0 0.0
    %4455 = vmatprep.subr.mxu0 0.0
    %4456 = vmatpush1.msra.mxu0 0.0
    %4457 = vmatprep.subr.mxu0 0.0
    %4458 = vmatpush1.msra.mxu0 0.0
    %4459 = vmatprep.subr.mxu0 0.0
    %4460 = vmatpush1.msra.mxu0 0.0
    %4461 = vmatprep.subr.mxu0 0.0
    %4462 = vmatpush1.msra.mxu0 0.0
    %4463 = vmatprep.subr.mxu0 0.0
    %4464 = vmatpush1.msra.mxu0 0.0
    %4465 = vmatprep.subr.mxu0 0.0
    %4466 = vmatpush1.msra.mxu0 0.0
    %4467 = vmatprep.subr.mxu0 0.0
    %4468 = vmatpush1.msra.mxu0 0.0
    %4469 = vmatprep.mubr.f32.mxu0 0.0
    %4470 = vmatmul.mubr.f32.gmra.mrb[0].mxu0 %v4394
    %v4471 = vpop.f32.mrb[0].mxu0
    %v4472 = vadd.f32 %v195, %v4471
    %v4473 = vpop.f32.mrb[0].mxu0
    %4474 = vmatprep.mubr.f32.mxu0 0.0
    %4475 = vmatmul.mubr.f32.gmra.mrb[0].mxu0 %v4397
    %v4476 = vpop.f32.mrb[0].mxu0
    %v4477 = vadd.f32 %v195, %v4476
    %v4478 = vpop.f32.mrb[0].mxu0
    %4479 = vmatprep.mubr.f32.mxu0 0.0
    %4480 = vmatmul.mubr.f32.gmra.mrb[0].mxu0 %v4400
    %v4481 = vpop.f32.mrb[0].mxu0
    %v4482 = vadd.f32 %v195, %v4481
    %v4483 = vpop.f32.mrb[0].mxu0
    %4484 = vmatprep.mubr.f32.mxu0 0.0
    %4485 = vmatmul.mubr.f32.gmra.mrb[0].mxu0 %v4403
    %v4486 = vpop.f32.mrb[0].mxu0
    %v4487 = vadd.f32 %v195, %v4486
    %v4488 = vpop.f32.mrb[0].mxu0
    %4489 = vdwg.mxu0
    %4490 = vmax.xlane.f32.xlu0 %v4472
    %v4491 = vpop.xlane.xlu0 %4490
    %4492 = vmax.xlane.f32.xlu0 %v4477
    %v4493 = vpop.xlane.xlu0 %4492
    %4494 = vmax.xlane.f32.xlu0 %v4482
    %v4495 = vpop.xlane.xlu0 %4494
    %4496 = vmax.xlane.f32.xlu0 %v4487
    %v4497 = vpop.xlane.xlu0 %4496
    %vm4498 = vcmp.ge.f32.partialorder %v4472, %v4491
    %vm4499 = vcmp.ge.f32.partialorder %v4477, %v4493
    %vm4500 = vcmp.ge.f32.partialorder %v4482, %v4495
    %vm4501 = vcmp.ge.f32.partialorder %v4487, %v4497
    %v4502 = vsel %vm4498, %v193, 128
    %v4503 = vsel %vm4499, %v193, 128
    %v4504 = vsel %vm4500, %v193, 128
    %v4505 = vsel %vm4501, %v193, 128
    %v4506 = vand.u32 %v4502, 65535
    %v4507 = vshra.s32 %v4502, 16
    %v4508 = vcvt.s32.f32 %v4506
    %v4509 = vcvt.s32.f32 %v4507
    %4510 = vmin.xlane.f32.xlu0 %v4509
    %v4511 = vpop.xlane.xlu0 %4510
    %vm4512 = vcmp.eq.f32.partialorder %v4509, %v4511
    %v4513 = vsel %vm4512, %v4508, inf
    %4514 = vmin.xlane.f32.xlu0 %v4513
    %v4515 = vpop.xlane.xlu0 %4514
    %v4516 = vcvt.f32.s32 %v4515
    %v4517 = vcvt.f32.s32 %v4511
    %v4518 = vshll.u32 %v4517, 16
    %v4519 = vadd.s32 %v4518, %v4516
    %v4520 = vand.u32 %v4503, 65535
    %v4521 = vshra.s32 %v4503, 16
    %v4522 = vcvt.s32.f32 %v4520
    %v4523 = vcvt.s32.f32 %v4521
    %4524 = vmin.xlane.f32.xlu0 %v4523
    %v4525 = vpop.xlane.xlu0 %4524
    %vm4526 = vcmp.eq.f32.partialorder %v4523, %v4525
    %v4527 = vsel %vm4526, %v4522, inf
    %4528 = vmin.xlane.f32.xlu0 %v4527
    %v4529 = vpop.xlane.xlu0 %4528
    %v4530 = vcvt.f32.s32 %v4529
    %v4531 = vcvt.f32.s32 %v4525
    %v4532 = vshll.u32 %v4531, 16
    %v4533 = vadd.s32 %v4532, %v4530
    %v4534 = vand.u32 %v4504, 65535
    %v4535 = vshra.s32 %v4504, 16
    %v4536 = vcvt.s32.f32 %v4534
    %v4537 = vcvt.s32.f32 %v4535
    %4538 = vmin.xlane.f32.xlu0 %v4537
    %v4539 = vpop.xlane.xlu0 %4538
    %vm4540 = vcmp.eq.f32.partialorder %v4537, %v4539
    %v4541 = vsel %vm4540, %v4536, inf
    %4542 = vmin.xlane.f32.xlu0 %v4541
    %v4543 = vpop.xlane.xlu0 %4542
    %v4544 = vcvt.f32.s32 %v4543
    %v4545 = vcvt.f32.s32 %v4539
    %v4546 = vshll.u32 %v4545, 16
    %v4547 = vadd.s32 %v4546, %v4544
    %v4548 = vand.u32 %v4505, 65535
    %v4549 = vshra.s32 %v4505, 16
    %v4550 = vcvt.s32.f32 %v4548
    %v4551 = vcvt.s32.f32 %v4549
    %4552 = vmin.xlane.f32.xlu0 %v4551
    %v4553 = vpop.xlane.xlu0 %4552
    %vm4554 = vcmp.eq.f32.partialorder %v4551, %v4553
    %v4555 = vsel %vm4554, %v4550, inf
    %4556 = vmin.xlane.f32.xlu0 %v4555
    %v4557 = vpop.xlane.xlu0 %4556
    %v4558 = vcvt.f32.s32 %v4557
    %v4559 = vcvt.f32.s32 %v4553
    %v4560 = vshll.u32 %v4559, 16
    %v4561 = vadd.s32 %v4560, %v4558
    %vm4562 = vcmp.eq.s32.totalorder %v4519, %v193
    %vm4563 = vcmp.eq.s32.totalorder %v4533, %v193
    %vm4564 = vcmp.eq.s32.totalorder %v4547, %v193
    %vm4565 = vcmp.eq.s32.totalorder %v4561, %v193
    %v4566 = vsel %vm4562, 1, 0
    %v4567 = vsel %vm4563, 1, 0
    %v4568 = vsel %vm4564, 1, 0
    %v4569 = vsel %vm4565, 1, 0
    %v4570 = vcvt.s32.f32 %v4566
    %v4571 = vcvt.s32.f32 %v4567
    %v4572 = vcvt.s32.f32 %v4568
    %v4573 = vcvt.s32.f32 %v4569
    %s4574 = scalar_lea.vmem [#allocation10], 384
    %v4575 = vld [vmem:[%s4574] sm:$0xff]
    %v4576 = vld [vmem:[%s4574 + $0x8] sm:$0xff]
    %v4577 = vld [vmem:[%s4574 + $0x10] sm:$0xff]
    %v4578 = vld [vmem:[%s4574 + $0x18] sm:$0xff]
    %v4579 = vld [vmem:[%s4574 + $0x20] sm:$0xff]
    %v4580 = vld [vmem:[%s4574 + $0x28] sm:$0xff]
    %v4581 = vld [vmem:[%s4574 + $0x30] sm:$0xff]
    %v4582 = vld [vmem:[%s4574 + $0x38] sm:$0xff]
    %v4583 = vld [vmem:[%s4574 + $0x40] sm:$0xff]
    %v4584 = vld [vmem:[%s4574 + $0x48] sm:$0xff]
    %v4585 = vld [vmem:[%s4574 + $0x50] sm:$0xff]
    %v4586 = vld [vmem:[%s4574 + $0x58] sm:$0xff]
    %v4587 = vld [vmem:[%s4574 + $0x60] sm:$0xff]
    %v4588 = vld [vmem:[%s4574 + $0x68] sm:$0xff]
    %v4589 = vld [vmem:[%s4574 + $0x70] sm:$0xff]
    %v4590 = vld [vmem:[%s4574 + $0x78] sm:$0xff]
    %4591 = vmatprep.subr.mxu0 0.0
    %4592 = vmatpush1.msra.mxu0 %v4575
    %4593 = vmatprep.subr.mxu0 0.0
    %4594 = vmatpush1.msra.mxu0 %v4576
    %4595 = vmatprep.subr.mxu0 0.0
    %4596 = vmatpush1.msra.mxu0 %v4577
    %4597 = vmatprep.subr.mxu0 0.0
    %4598 = vmatpush1.msra.mxu0 %v4578
    %4599 = vmatprep.subr.mxu0 0.0
    %4600 = vmatpush1.msra.mxu0 %v4579
    %4601 = vmatprep.subr.mxu0 0.0
    %4602 = vmatpush1.msra.mxu0 %v4580
    %4603 = vmatprep.subr.mxu0 0.0
    %4604 = vmatpush1.msra.mxu0 %v4581
    %4605 = vmatprep.subr.mxu0 0.0
    %4606 = vmatpush1.msra.mxu0 %v4582
    %4607 = vmatprep.subr.mxu0 0.0
    %4608 = vmatpush1.msra.mxu0 %v4583
    %4609 = vmatprep.subr.mxu0 0.0
    %4610 = vmatpush1.msra.mxu0 %v4584
    %4611 = vmatprep.subr.mxu0 0.0
    %4612 = vmatpush1.msra.mxu0 %v4585
    %4613 = vmatprep.subr.mxu0 0.0
    %4614 = vmatpush1.msra.mxu0 %v4586
    %4615 = vmatprep.subr.mxu0 0.0
    %4616 = vmatpush1.msra.mxu0 %v4587
    %4617 = vmatprep.subr.mxu0 0.0
    %4618 = vmatpush1.msra.mxu0 %v4588
    %4619 = vmatprep.subr.mxu0 0.0
    %4620 = vmatpush1.msra.mxu0 %v4589
    %4621 = vmatprep.subr.mxu0 0.0
    %4622 = vmatpush1.msra.mxu0 %v4590
    %4623 = vmatprep.subr.mxu0 0.0
    %4624 = vmatpush1.msra.mxu0 0.0
    %4625 = vmatprep.subr.mxu0 0.0
    %4626 = vmatpush1.msra.mxu0 0.0
    %4627 = vmatprep.subr.mxu0 0.0
    %4628 = vmatpush1.msra.mxu0 0.0
    %4629 = vmatprep.subr.mxu0 0.0
    %4630 = vmatpush1.msra.mxu0 0.0
    %4631 = vmatprep.subr.mxu0 0.0
    %4632 = vmatpush1.msra.mxu0 0.0
    %4633 = vmatprep.subr.mxu0 0.0
    %4634 = vmatpush1.msra.mxu0 0.0
    %4635 = vmatprep.subr.mxu0 0.0
    %4636 = vmatpush1.msra.mxu0 0.0
    %4637 = vmatprep.subr.mxu0 0.0
    %4638 = vmatpush1.msra.mxu0 0.0
    %4639 = vmatprep.subr.mxu0 0.0
    %4640 = vmatpush1.msra.mxu0 0.0
    %4641 = vmatprep.subr.mxu0 0.0
    %4642 = vmatpush1.msra.mxu0 0.0
    %4643 = vmatprep.subr.mxu0 0.0
    %4644 = vmatpush1.msra.mxu0 0.0
    %4645 = vmatprep.subr.mxu0 0.0
    %4646 = vmatpush1.msra.mxu0 0.0
    %4647 = vmatprep.subr.mxu0 0.0
    %4648 = vmatpush1.msra.mxu0 0.0
    %4649 = vmatprep.subr.mxu0 0.0
    %4650 = vmatpush1.msra.mxu0 0.0
    %4651 = vmatprep.subr.mxu0 0.0
    %4652 = vmatpush1.msra.mxu0 0.0
    %4653 = vmatprep.subr.mxu0 0.0
    %4654 = vmatpush1.msra.mxu0 0.0
    %4655 = vmatprep.mubr.f32.mxu0 0.0
    %4656 = vmatmul.mubr.f32.gmra.mrb[0].mxu0 %v4570
    %v4657 = vpop.f32.mrb[0].mxu0
    %v4658 = vadd.f32 0.0, %v4657
    %v4659 = vpop.f32.mrb[0].mxu0
    %4660 = vmatprep.mubr.f32.mxu0 0.0
    %4661 = vmatmul.mubr.f32.gmra.mrb[0].mxu0 %v4571
    %v4662 = vpop.f32.mrb[0].mxu0
    %v4663 = vadd.f32 0.0, %v4662
    %v4664 = vpop.f32.mrb[0].mxu0
    %4665 = vmatprep.mubr.f32.mxu0 0.0
    %4666 = vmatmul.mubr.f32.gmra.mrb[0].mxu0 %v4572
    %v4667 = vpop.f32.mrb[0].mxu0
    %v4668 = vadd.f32 0.0, %v4667
    %v4669 = vpop.f32.mrb[0].mxu0
    %4670 = vmatprep.mubr.f32.mxu0 0.0
    %4671 = vmatmul.mubr.f32.gmra.mrb[0].mxu0 %v4573
    %v4672 = vpop.f32.mrb[0].mxu0
    %v4673 = vadd.f32 0.0, %v4672
    %v4674 = vpop.f32.mrb[0].mxu0
    %4675 = vdwg.mxu0
    %s4676 = scalar_lea.vmem [#allocation11], 96
    %v4677 = vld [vmem:[%s4676] sm:$0xff]
    %v4678 = vld [vmem:[%s4676 + $0x8] sm:$0xff]
    %v4679 = vld [vmem:[%s4676 + $0x10] sm:$0xff]
    %v4680 = vld [vmem:[%s4676 + $0x18] sm:$0xff]
    %v4682 = vsel %vm207, %v4677, 0
    %v4685 = vsel %vm207, %v4678, 0
    %v4688 = vsel %vm207, %v4679, 0
    %v4691 = vsel %vm207, %v4680, 0
    %4693 = vmatprep.subr.mxu0 0.0
    %4694 = vmatpush1.msra.mxu0 %v4658
    %4695 = vmatprep.subr.mxu0 0.0
    %4696 = vmatpush1.msra.mxu0 %v4663
    %4697 = vmatprep.subr.mxu0 0.0
    %4698 = vmatpush1.msra.mxu0 %v4668
    %4699 = vmatprep.subr.mxu0 0.0
    %4700 = vmatpush1.msra.mxu0 %v4673
    %4701 = vmatprep.subr.mxu0 0.0
    %4702 = vmatpush1.msra.mxu0 0.0
    %4703 = vmatprep.subr.mxu0 0.0
    %4704 = vmatpush1.msra.mxu0 0.0
    %4705 = vmatprep.subr.mxu0 0.0
    %4706 = vmatpush1.msra.mxu0 0.0
    %4707 = vmatprep.subr.mxu0 0.0
    %4708 = vmatpush1.msra.mxu0 0.0
    %4709 = vmatprep.subr.mxu0 0.0
    %4710 = vmatpush1.msra.mxu0 0.0
    %4711 = vmatprep.subr.mxu0 0.0
    %4712 = vmatpush1.msra.mxu0 0.0
    %4713 = vmatprep.subr.mxu0 0.0
    %4714 = vmatpush1.msra.mxu0 0.0
    %4715 = vmatprep.subr.mxu0 0.0
    %4716 = vmatpush1.msra.mxu0 0.0
    %4717 = vmatprep.subr.mxu0 0.0
    %4718 = vmatpush1.msra.mxu0 0.0
    %4719 = vmatprep.subr.mxu0 0.0
    %4720 = vmatpush1.msra.mxu0 0.0
    %4721 = vmatprep.subr.mxu0 0.0
    %4722 = vmatpush1.msra.mxu0 0.0
    %4723 = vmatprep.subr.mxu0 0.0
    %4724 = vmatpush1.msra.mxu0 0.0
    %4725 = vmatprep.subr.mxu0 0.0
    %4726 = vmatpush1.msra.mxu0 0.0
    %4727 = vmatprep.subr.mxu0 0.0
    %4728 = vmatpush1.msra.mxu0 0.0
    %4729 = vmatprep.subr.mxu0 0.0
    %4730 = vmatpush1.msra.mxu0 0.0
    %4731 = vmatprep.subr.mxu0 0.0
    %4732 = vmatpush1.msra.mxu0 0.0
    %4733 = vmatprep.subr.mxu0 0.0
    %4734 = vmatpush1.msra.mxu0 0.0
    %4735 = vmatprep.subr.mxu0 0.0
    %4736 = vmatpush1.msra.mxu0 0.0
    %4737 = vmatprep.subr.mxu0 0.0
    %4738 = vmatpush1.msra.mxu0 0.0
    %4739 = vmatprep.subr.mxu0 0.0
    %4740 = vmatpush1.msra.mxu0 0.0
    %4741 = vmatprep.subr.mxu0 0.0
    %4742 = vmatpush1.msra.mxu0 0.0
    %4743 = vmatprep.subr.mxu0 0.0
    %4744 = vmatpush1.msra.mxu0 0.0
    %4745 = vmatprep.subr.mxu0 0.0
    %4746 = vmatpush1.msra.mxu0 0.0
    %4747 = vmatprep.subr.mxu0 0.0
    %4748 = vmatpush1.msra.mxu0 0.0
    %4749 = vmatprep.subr.mxu0 0.0
    %4750 = vmatpush1.msra.mxu0 0.0
    %4751 = vmatprep.subr.mxu0 0.0
    %4752 = vmatpush1.msra.mxu0 0.0
    %4753 = vmatprep.subr.mxu0 0.0
    %4754 = vmatpush1.msra.mxu0 0.0
    %4755 = vmatprep.subr.mxu0 0.0
    %4756 = vmatpush1.msra.mxu0 0.0
    %4757 = vmatprep.mubr.f32.mxu0 0.0
    %4758 = vmatmul.mubr.f32.gmra.mrb[0].mxu0 %v4682
    %v4759 = vpop.f32.mrb[0].mxu0
    %v4760 = vadd.f32 0.0, %v4759
    %v4761 = vpop.f32.mrb[0].mxu0
    %4762 = vmatprep.mubr.f32.mxu0 0.0
    %4763 = vmatmul.mubr.f32.gmra.mrb[0].mxu0 %v4685
    %v4764 = vpop.f32.mrb[0].mxu0
    %v4765 = vadd.f32 0.0, %v4764
    %v4766 = vpop.f32.mrb[0].mxu0
    %4767 = vmatprep.mubr.f32.mxu0 0.0
    %4768 = vmatmul.mubr.f32.gmra.mrb[0].mxu0 %v4688
    %v4769 = vpop.f32.mrb[0].mxu0
    %v4770 = vadd.f32 0.0, %v4769
    %v4771 = vpop.f32.mrb[0].mxu0
    %4772 = vmatprep.mubr.f32.mxu0 0.0
    %4773 = vmatmul.mubr.f32.gmra.mrb[0].mxu0 %v4691
    %v4774 = vpop.f32.mrb[0].mxu0
    %v4775 = vadd.f32 0.0, %v4774
    %v4776 = vpop.f32.mrb[0].mxu0
    %4777 = vdwg.mxu0
    %v4782 = vrot.slane %v4760, 1
    %v4783 = vsel %vm852, %v853, %v4782
    %v4784 = vrot.slane %v4765, 1
    %v4785 = vsel %vm852, %v4782, %v4784
    %v4786 = vrot.slane %v4770, 1
    %v4787 = vsel %vm852, %v4784, %v4786
    %v4788 = vrot.slane %v4775, 1
    %v4789 = vsel %vm852, %v4786, %v4788
    %4790 = vrot.lane.b32.xlu0 %v4783, 8
    %v4791 = vpop.permute.xlu0 %4790
    %4792 = vrot.lane.b32.xlu0 %v4785, 8
    %v4793 = vpop.permute.xlu0 %4792
    %4794 = vrot.lane.b32.xlu0 %v4787, 8
    %v4795 = vpop.permute.xlu0 %4794
    %4796 = vrot.lane.b32.xlu0 %v4789, 8
    %v4797 = vpop.permute.xlu0 %4796
    %4798 = vrot.lane.b32.xlu0 %v4788, 8
    %v4799 = vpop.permute.xlu0 %4798
    %v4805 = vrot.slane %v4760, 2
    %v4806 = vsel %vm877, %v878, %v4805
    %v4807 = vrot.slane %v4765, 2
    %v4808 = vsel %vm877, %v4805, %v4807
    %v4809 = vrot.slane %v4770, 2
    %v4810 = vsel %vm877, %v4807, %v4809
    %v4811 = vrot.slane %v4775, 2
    %v4812 = vsel %vm877, %v4809, %v4811
    %4813 = vrot.lane.b32.xlu0 %v4806, 16
    %v4814 = vpop.permute.xlu0 %4813
    %4815 = vrot.lane.b32.xlu0 %v4808, 16
    %v4816 = vpop.permute.xlu0 %4815
    %4817 = vrot.lane.b32.xlu0 %v4810, 16
    %v4818 = vpop.permute.xlu0 %4817
    %4819 = vrot.lane.b32.xlu0 %v4812, 16
    %v4820 = vpop.permute.xlu0 %4819
    %4821 = vrot.lane.b32.xlu0 %v4811, 16
    %v4822 = vpop.permute.xlu0 %4821
    %v4828 = vrot.slane %v4760, 3
    %v4829 = vsel %vm902, %v903, %v4828
    %v4830 = vrot.slane %v4765, 3
    %v4831 = vsel %vm902, %v4828, %v4830
    %v4832 = vrot.slane %v4770, 3
    %v4833 = vsel %vm902, %v4830, %v4832
    %v4834 = vrot.slane %v4775, 3
    %v4835 = vsel %vm902, %v4832, %v4834
    %4836 = vrot.lane.b32.xlu0 %v4829, 24
    %v4837 = vpop.permute.xlu0 %4836
    %4838 = vrot.lane.b32.xlu0 %v4831, 24
    %v4839 = vpop.permute.xlu0 %4838
    %4840 = vrot.lane.b32.xlu0 %v4833, 24
    %v4841 = vpop.permute.xlu0 %4840
    %4842 = vrot.lane.b32.xlu0 %v4835, 24
    %v4843 = vpop.permute.xlu0 %4842
    %4844 = vrot.lane.b32.xlu0 %v4834, 24
    %v4845 = vpop.permute.xlu0 %4844
    %v4851 = vrot.slane %v4760, 4
    %v4852 = vrot.slane %v4765, 4
    %v4853 = vsel %vm927, %v4851, %v4852
    %v4854 = vrot.slane %v4770, 4
    %v4855 = vsel %vm927, %v4852, %v4854
    %v4856 = vrot.slane %v4775, 4
    %v4857 = vsel %vm927, %v4854, %v4856
    %4858 = vrot.lane.b32.xlu0 %v4851, 32
    %v4859 = vpop.permute.xlu0 %4858
    %4860 = vrot.lane.b32.xlu0 %v4853, 32
    %v4861 = vpop.permute.xlu0 %4860
    %4862 = vrot.lane.b32.xlu0 %v4855, 32
    %v4863 = vpop.permute.xlu0 %4862
    %4864 = vrot.lane.b32.xlu0 %v4857, 32
    %v4865 = vpop.permute.xlu0 %4864
    %4866 = vrot.lane.b32.xlu0 %v4856, 32
    %v4867 = vpop.permute.xlu0 %4866
    %v4873 = vrot.slane %v4760, 5
    %v4874 = vrot.slane %v4765, 5
    %v4875 = vsel %vm950, %v4873, %v4874
    %v4876 = vrot.slane %v4770, 5
    %v4877 = vsel %vm950, %v4874, %v4876
    %v4878 = vrot.slane %v4775, 5
    %v4879 = vsel %vm950, %v4876, %v4878
    %v4880 = vsel %vm950, %v4878, %v958
    %4881 = vrot.lane.b32.xlu0 %v4873, 40
    %v4882 = vpop.permute.xlu0 %4881
    %4883 = vrot.lane.b32.xlu0 %v4875, 40
    %v4884 = vpop.permute.xlu0 %4883
    %4885 = vrot.lane.b32.xlu0 %v4877, 40
    %v4886 = vpop.permute.xlu0 %4885
    %4887 = vrot.lane.b32.xlu0 %v4879, 40
    %v4888 = vpop.permute.xlu0 %4887
    %4889 = vrot.lane.b32.xlu0 %v4880, 40
    %v4890 = vpop.permute.xlu0 %4889
    %v4896 = vrot.slane %v4760, 6
    %v4897 = vrot.slane %v4765, 6
    %v4898 = vsel %vm975, %v4896, %v4897
    %v4899 = vrot.slane %v4770, 6
    %v4900 = vsel %vm975, %v4897, %v4899
    %v4901 = vrot.slane %v4775, 6
    %v4902 = vsel %vm975, %v4899, %v4901
    %v4903 = vsel %vm975, %v4901, %v983
    %4904 = vrot.lane.b32.xlu0 %v4896, 48
    %v4905 = vpop.permute.xlu0 %4904
    %4906 = vrot.lane.b32.xlu0 %v4898, 48
    %v4907 = vpop.permute.xlu0 %4906
    %4908 = vrot.lane.b32.xlu0 %v4900, 48
    %v4909 = vpop.permute.xlu0 %4908
    %4910 = vrot.lane.b32.xlu0 %v4902, 48
    %v4911 = vpop.permute.xlu0 %4910
    %4912 = vrot.lane.b32.xlu0 %v4903, 48
    %v4913 = vpop.permute.xlu0 %4912
    %v4919 = vrot.slane %v4760, 7
    %v4920 = vrot.slane %v4765, 7
    %v4921 = vsel %vm1000, %v4919, %v4920
    %v4922 = vrot.slane %v4770, 7
    %v4923 = vsel %vm1000, %v4920, %v4922
    %v4924 = vrot.slane %v4775, 7
    %v4925 = vsel %vm1000, %v4922, %v4924
    %v4926 = vsel %vm1000, %v4924, %v1008
    %4927 = vrot.lane.b32.xlu0 %v4919, 56
    %v4928 = vpop.permute.xlu0 %4927
    %4929 = vrot.lane.b32.xlu0 %v4921, 56
    %v4930 = vpop.permute.xlu0 %4929
    %4931 = vrot.lane.b32.xlu0 %v4923, 56
    %v4932 = vpop.permute.xlu0 %4931
    %4933 = vrot.lane.b32.xlu0 %v4925, 56
    %v4934 = vpop.permute.xlu0 %4933
    %4935 = vrot.lane.b32.xlu0 %v4926, 56
    %v4936 = vpop.permute.xlu0 %4935
    %4942 = vrot.lane.b32.xlu0 %v4760, 64
    %v4943 = vpop.permute.xlu0 %4942
    %4944 = vrot.lane.b32.xlu0 %v4765, 64
    %v4945 = vpop.permute.xlu0 %4944
    %4946 = vrot.lane.b32.xlu0 %v4770, 64
    %v4947 = vpop.permute.xlu0 %4946
    %4948 = vrot.lane.b32.xlu0 %v4775, 64
    %v4949 = vpop.permute.xlu0 %4948
    %v4954 = vsel %vm410, 0.0, %v4791
    %v4955 = vsel %vm410, %v4760, %v4793
    %v4956 = vsel %vm410, %v4765, %v4795
    %v4957 = vsel %vm410, %v4770, %v4797
    %v4958 = vsel %vm410, %v4775, %v4799
    %v4959 = vsel %vm1045, %v4954, %v4814
    %v4960 = vsel %vm1045, %v4955, %v4816
    %v4961 = vsel %vm1045, %v4956, %v4818
    %v4962 = vsel %vm1045, %v4957, %v4820
    %v4963 = vsel %vm1045, %v4958, %v4822
    %v4964 = vsel %vm1051, %v4959, %v4837
    %v4965 = vsel %vm1051, %v4960, %v4839
    %v4966 = vsel %vm1051, %v4961, %v4841
    %v4967 = vsel %vm1051, %v4962, %v4843
    %v4968 = vsel %vm1051, %v4963, %v4845
    %v4969 = vsel %vm207, %v4964, %v4859
    %v4970 = vsel %vm207, %v4965, %v4861
    %v4971 = vsel %vm207, %v4966, %v4863
    %v4972 = vsel %vm207, %v4967, %v4865
    %v4973 = vsel %vm207, %v4968, %v4867
    %v4974 = vsel %vm1062, %v4969, %v4882
    %v4975 = vsel %vm1062, %v4970, %v4884
    %v4976 = vsel %vm1062, %v4971, %v4886
    %v4977 = vsel %vm1062, %v4972, %v4888
    %v4978 = vsel %vm1062, %v4973, %v4890
    %v4979 = vsel %vm1068, %v4974, %v4905
    %v4980 = vsel %vm1068, %v4975, %v4907
    %v4981 = vsel %vm1068, %v4976, %v4909
    %v4982 = vsel %vm1068, %v4977, %v4911
    %v4983 = vsel %vm1068, %v4978, %v4913
    %v4984 = vsel %vm1074, %v4979, %v4928
    %v4985 = vsel %vm1074, %v4980, %v4930
    %v4986 = vsel %vm1074, %v4981, %v4932
    %v4987 = vsel %vm1074, %v4982, %v4934
    %v4988 = vsel %vm1074, %v4983, %v4936
    %v4989 = vsel %vm1080, %v4984, %v4943
    %v4990 = vsel %vm1080, %v4985, %v4945
    %v4991 = vsel %vm1080, %v4986, %v4947
    %v4992 = vsel %vm1080, %v4987, %v4949
    %v4993 = vsel %vm1080, %v4988, %v1034
    %v4994 = vmul.f32 %v4989, %v1090
    %v4995 = vmul.f32 %v4990, %v1092
    %v4996 = vmul.f32 %v4991, %v1094
    %v4997 = vmul.f32 %v4992, %v1096
    %v4998 = vmul.f32 %v4993, %v1095
    %s4999 = scalar_lea.vmem [#allocation13], 216
    %v5000 = vld [vmem:[%s4999] sm:$0xff]
    %v5001 = vld [vmem:[%s4999 + $0x8] sm:$0xff]
    %v5002 = vld [vmem:[%s4999 + $0x10] sm:$0xff]
    %v5003 = vld [vmem:[%s4999 + $0x18] sm:$0xff]
    %v5004 = vld [vmem:[%s4999 + $0x20] sm:$0xff]
    %v5005 = vld [vmem:[%s4999 + $0x28] sm:$0xff]
    %v5006 = vld [vmem:[%s4999 + $0x30] sm:$0xff]
    %v5007 = vld [vmem:[%s4999 + $0x38] sm:$0xff]
    %v5008 = vld [vmem:[%s4999 + $0x40] sm:$0xff]
    %s5009 = scalar_lea.vmem %s9, 3
    %v5010 = vld [vmem:[%s5009] sm:$0x1]
    %v5012 = vlaneseq
    %v5013 = vshrl.u32 %v5012, 7
    %v5014 = vsub.s32 0, %v5013
    %v5015 = vrot.slane %v5010, %v5014
    %v5022 = vrot.slane %v4994, 4
    %v5023 = vrot.slane %v4995, 4
    %v5024 = vsel %vm927, %v5022, %v5023
    %v5025 = vrot.slane %v4996, 4
    %v5026 = vsel %vm927, %v5023, %v5025
    %v5027 = vrot.slane %v4997, 4
    %v5028 = vsel %vm927, %v5025, %v5027
    %v5029 = vrot.slane %v4998, 4
    %v5030 = vsel %vm927, %v5027, %v5029
    %v5031 = vsel %vm1137, %v5024, 0
    %v5033 = vsel %vm1137, %v5026, 0
    %v5035 = vsel %vm1137, %v5028, 0
    %v5037 = vsel %vm1137, %v5030, 0
    %5039 = vmatprep.subr.mxu0 0.0
    %5040 = vmatpush1.msra.mxu0 %v5000
    %5041 = vmatprep.subr.mxu0 0.0
    %5042 = vmatpush1.msra.mxu0 %v5001
    %5043 = vmatprep.subr.mxu0 0.0
    %5044 = vmatpush1.msra.mxu0 %v5002
    %5045 = vmatprep.subr.mxu0 0.0
    %5046 = vmatpush1.msra.mxu0 %v5003
    %5047 = vmatprep.subr.mxu0 0.0
    %5048 = vmatpush1.msra.mxu0 %v5004
    %5049 = vmatprep.subr.mxu0 0.0
    %5050 = vmatpush1.msra.mxu0 %v5005
    %5051 = vmatprep.subr.mxu0 0.0
    %5052 = vmatpush1.msra.mxu0 %v5006
    %5053 = vmatprep.subr.mxu0 0.0
    %5054 = vmatpush1.msra.mxu0 %v5007
    %5055 = vmatprep.subr.mxu0 0.0
    %5056 = vmatpush1.msra.mxu0 %v5008
    %5057 = vmatprep.subr.mxu0 0.0
    %5058 = vmatpush1.msra.mxu0 0.0
    %5059 = vmatprep.subr.mxu0 0.0
    %5060 = vmatpush1.msra.mxu0 0.0
    %5061 = vmatprep.subr.mxu0 0.0
    %5062 = vmatpush1.msra.mxu0 0.0
    %5063 = vmatprep.subr.mxu0 0.0
    %5064 = vmatpush1.msra.mxu0 0.0
    %5065 = vmatprep.subr.mxu0 0.0
    %5066 = vmatpush1.msra.mxu0 0.0
    %5067 = vmatprep.subr.mxu0 0.0
    %5068 = vmatpush1.msra.mxu0 0.0
    %5069 = vmatprep.subr.mxu0 0.0
    %5070 = vmatpush1.msra.mxu0 0.0
    %5071 = vmatprep.subr.mxu0 0.0
    %5072 = vmatpush1.msra.mxu0 0.0
    %5073 = vmatprep.subr.mxu0 0.0
    %5074 = vmatpush1.msra.mxu0 0.0
    %5075 = vmatprep.subr.mxu0 0.0
    %5076 = vmatpush1.msra.mxu0 0.0
    %5077 = vmatprep.subr.mxu0 0.0
    %5078 = vmatpush1.msra.mxu0 0.0
    %5079 = vmatprep.subr.mxu0 0.0
    %5080 = vmatpush1.msra.mxu0 0.0
    %5081 = vmatprep.subr.mxu0 0.0
    %5082 = vmatpush1.msra.mxu0 0.0
    %5083 = vmatprep.subr.mxu0 0.0
    %5084 = vmatpush1.msra.mxu0 0.0
    %5085 = vmatprep.subr.mxu0 0.0
    %5086 = vmatpush1.msra.mxu0 0.0
    %5087 = vmatprep.subr.mxu0 0.0
    %5088 = vmatpush1.msra.mxu0 0.0
    %5089 = vmatprep.subr.mxu0 0.0
    %5090 = vmatpush1.msra.mxu0 0.0
    %5091 = vmatprep.subr.mxu0 0.0
    %5092 = vmatpush1.msra.mxu0 0.0
    %5093 = vmatprep.subr.mxu0 0.0
    %5094 = vmatpush1.msra.mxu0 0.0
    %5095 = vmatprep.subr.mxu0 0.0
    %5096 = vmatpush1.msra.mxu0 0.0
    %5097 = vmatprep.subr.mxu0 0.0
    %5098 = vmatpush1.msra.mxu0 0.0
    %5099 = vmatprep.subr.mxu0 0.0
    %5100 = vmatpush1.msra.mxu0 0.0
    %5101 = vmatprep.subr.mxu0 0.0
    %5102 = vmatpush1.msra.mxu0 0.0
    %5103 = vmatprep.mubr.f32.mxu0 0.0
    %5104 = vmatmul.mubr.f32.gmra.mrb[0].mxu0 %v5031
    %v5105 = vpop.f32.mrb[0].mxu0
    %v5106 = vadd.f32 %v5015, %v5105
    %v5107 = vpop.f32.mrb[0].mxu0
    %5108 = vmatprep.mubr.f32.mxu0 0.0
    %5109 = vmatmul.mubr.f32.gmra.mrb[0].mxu0 %v5033
    %v5110 = vpop.f32.mrb[0].mxu0
    %v5111 = vadd.f32 %v5015, %v5110
    %v5112 = vpop.f32.mrb[0].mxu0
    %5113 = vmatprep.mubr.f32.mxu0 0.0
    %5114 = vmatmul.mubr.f32.gmra.mrb[0].mxu0 %v5035
    %v5115 = vpop.f32.mrb[0].mxu0
    %v5116 = vadd.f32 %v5015, %v5115
    %v5117 = vpop.f32.mrb[0].mxu0
    %5118 = vmatprep.mubr.f32.mxu0 0.0
    %5119 = vmatmul.mubr.f32.gmra.mrb[0].mxu0 %v5037
    %v5120 = vpop.f32.mrb[0].mxu0
    %v5121 = vadd.f32 %v5015, %v5120
    %v5122 = vpop.f32.mrb[0].mxu0
    %5123 = vdwg.mxu0
    %v5124 = vmul.f32 %v4760, 0.5
    %v5125 = vmul.f32 %v4765, 0.5
    %v5126 = vmul.f32 %v4770, 0.5
    %v5127 = vmul.f32 %v4775, 0.5
    %v5128 = vmul.f32 %v5106, 0.5
    %v5129 = vmul.f32 %v5111, 0.5
    %v5130 = vmul.f32 %v5116, 0.5
    %v5131 = vmul.f32 %v5121, 0.5
    %v5132 = vadd.f32 %v5124, %v5128
    %v5133 = vadd.f32 %v5125, %v5129
    %v5134 = vadd.f32 %v5126, %v5130
    %v5135 = vadd.f32 %v5127, %v5131
    %v5136 = vsub.f32 %v4215, %v5132
    %v5137 = vsub.f32 %v4220, %v5133
    %v5138 = vsub.f32 %v4225, %v5134
    %v5139 = vsub.f32 %v4230, %v5135
    %v5140 = vmul.f32 %v5136, %v5136
    %v5141 = vmul.f32 %v5137, %v5137
    %v5142 = vmul.f32 %v5138, %v5138
    %v5143 = vmul.f32 %v5139, %v5139
    %5144 = vmatprep.subr.mxu0 0.0
    %5145 = vmatpush1.msra.mxu0 %v5140
    %5146 = vmatprep.subr.mxu0 0.0
    %5147 = vmatpush1.msra.mxu0 %v5141
    %5148 = vmatprep.subr.mxu0 0.0
    %5149 = vmatpush1.msra.mxu0 %v5142
    %5150 = vmatprep.subr.mxu0 0.0
    %5151 = vmatpush1.msra.mxu0 %v5143
    %5152 = vmatprep.subr.mxu0 0.0
    %5153 = vmatpush1.msra.mxu0 0.0
    %5154 = vmatprep.subr.mxu0 0.0
    %5155 = vmatpush1.msra.mxu0 0.0
    %5156 = vmatprep.subr.mxu0 0.0
    %5157 = vmatpush1.msra.mxu0 0.0
    %5158 = vmatprep.subr.mxu0 0.0
    %5159 = vmatpush1.msra.mxu0 0.0
    %5160 = vmatprep.subr.mxu0 0.0
    %5161 = vmatpush1.msra.mxu0 0.0
    %5162 = vmatprep.subr.mxu0 0.0
    %5163 = vmatpush1.msra.mxu0 0.0
    %5164 = vmatprep.subr.mxu0 0.0
    %5165 = vmatpush1.msra.mxu0 0.0
    %5166 = vmatprep.subr.mxu0 0.0
    %5167 = vmatpush1.msra.mxu0 0.0
    %5168 = vmatprep.subr.mxu0 0.0
    %5169 = vmatpush1.msra.mxu0 0.0
    %5170 = vmatprep.subr.mxu0 0.0
    %5171 = vmatpush1.msra.mxu0 0.0
    %5172 = vmatprep.subr.mxu0 0.0
    %5173 = vmatpush1.msra.mxu0 0.0
    %5174 = vmatprep.subr.mxu0 0.0
    %5175 = vmatpush1.msra.mxu0 0.0
    %5176 = vmatprep.subr.mxu0 0.0
    %5177 = vmatpush1.msra.mxu0 0.0
    %5178 = vmatprep.subr.mxu0 0.0
    %5179 = vmatpush1.msra.mxu0 0.0
    %5180 = vmatprep.subr.mxu0 0.0
    %5181 = vmatpush1.msra.mxu0 0.0
    %5182 = vmatprep.subr.mxu0 0.0
    %5183 = vmatpush1.msra.mxu0 0.0
    %5184 = vmatprep.subr.mxu0 0.0
    %5185 = vmatpush1.msra.mxu0 0.0
    %5186 = vmatprep.subr.mxu0 0.0
    %5187 = vmatpush1.msra.mxu0 0.0
    %5188 = vmatprep.subr.mxu0 0.0
    %5189 = vmatpush1.msra.mxu0 0.0
    %5190 = vmatprep.subr.mxu0 0.0
    %5191 = vmatpush1.msra.mxu0 0.0
    %5192 = vmatprep.subr.mxu0 0.0
    %5193 = vmatpush1.msra.mxu0 0.0
    %5194 = vmatprep.subr.mxu0 0.0
    %5195 = vmatpush1.msra.mxu0 0.0
    %5196 = vmatprep.subr.mxu0 0.0
    %5197 = vmatpush1.msra.mxu0 0.0
    %5198 = vmatprep.subr.mxu0 0.0
    %5199 = vmatpush1.msra.mxu0 0.0
    %5200 = vmatprep.subr.mxu0 0.0
    %5201 = vmatpush1.msra.mxu0 0.0
    %5202 = vmatprep.subr.mxu0 0.0
    %5203 = vmatpush1.msra.mxu0 0.0
    %5204 = vmatprep.subr.mxu0 0.0
    %5205 = vmatpush1.msra.mxu0 0.0
    %5206 = vmatprep.subr.mxu0 0.0
    %5207 = vmatpush1.msra.mxu0 0.0
    %5208 = vmatprep.mubr.f32.mxu0 0.0
    %5209 = vmatmul.mubr.f32.gmra.mrb[0].mxu0 %v1252
    %v5210 = vpop.f32.mrb[0].mxu0
    %v5211 = vadd.f32 0.0, %v5210
    %v5212 = vpop.f32.mrb[0].mxu0
    %5213 = vdwg.mxu0
    %v5214 = vsel %vm1324, %v5211, 0.0
    %5215 = vadd.xlane.f32.xlu0 %v5214
    %v5216 = vpop.xlane.xlu0 %5215
    %s5217 = scalar_lea.vmem [#allocation16], 24
    %v5218 = vld [vmem:[%s5217] sm:$0xff]
    %s5219 = scalar_lea.vmem [#allocation17], 3
    %v5220 = vld [vmem:[%s5219] sm:$0x1]
    %v5222 = vlaneseq
    %v5223 = vshrl.u32 %v5222, 7
    %v5224 = vsub.s32 0, %v5223
    %v5225 = vrot.slane %v5220, %v5224
    %v5228 = vsel %vm410, %v5132, 0
    %v5231 = vsel %vm410, %v5133, 0
    %v5234 = vsel %vm410, %v5134, 0
    %v5237 = vsel %vm410, %v5135, 0
    %5239 = vmatprep.subr.mxu0 0.0
    %5240 = vmatpush1.msra.mxu0 %v5218
    %5241 = vmatprep.subr.mxu0 0.0
    %5242 = vmatpush1.msra.mxu0 0.0
    %5243 = vmatprep.subr.mxu0 0.0
    %5244 = vmatpush1.msra.mxu0 0.0
    %5245 = vmatprep.subr.mxu0 0.0
    %5246 = vmatpush1.msra.mxu0 0.0
    %5247 = vmatprep.subr.mxu0 0.0
    %5248 = vmatpush1.msra.mxu0 0.0
    %5249 = vmatprep.subr.mxu0 0.0
    %5250 = vmatpush1.msra.mxu0 0.0
    %5251 = vmatprep.subr.mxu0 0.0
    %5252 = vmatpush1.msra.mxu0 0.0
    %5253 = vmatprep.subr.mxu0 0.0
    %5254 = vmatpush1.msra.mxu0 0.0
    %5255 = vmatprep.subr.mxu0 0.0
    %5256 = vmatpush1.msra.mxu0 0.0
    %5257 = vmatprep.subr.mxu0 0.0
    %5258 = vmatpush1.msra.mxu0 0.0
    %5259 = vmatprep.subr.mxu0 0.0
    %5260 = vmatpush1.msra.mxu0 0.0
    %5261 = vmatprep.subr.mxu0 0.0
    %5262 = vmatpush1.msra.mxu0 0.0
    %5263 = vmatprep.subr.mxu0 0.0
    %5264 = vmatpush1.msra.mxu0 0.0
    %5265 = vmatprep.subr.mxu0 0.0
    %5266 = vmatpush1.msra.mxu0 0.0
    %5267 = vmatprep.subr.mxu0 0.0
    %5268 = vmatpush1.msra.mxu0 0.0
    %5269 = vmatprep.subr.mxu0 0.0
    %5270 = vmatpush1.msra.mxu0 0.0
    %5271 = vmatprep.subr.mxu0 0.0
    %5272 = vmatpush1.msra.mxu0 0.0
    %5273 = vmatprep.subr.mxu0 0.0
    %5274 = vmatpush1.msra.mxu0 0.0
    %5275 = vmatprep.subr.mxu0 0.0
    %5276 = vmatpush1.msra.mxu0 0.0
    %5277 = vmatprep.subr.mxu0 0.0
    %5278 = vmatpush1.msra.mxu0 0.0
    %5279 = vmatprep.subr.mxu0 0.0
    %5280 = vmatpush1.msra.mxu0 0.0
    %5281 = vmatprep.subr.mxu0 0.0
    %5282 = vmatpush1.msra.mxu0 0.0
    %5283 = vmatprep.subr.mxu0 0.0
    %5284 = vmatpush1.msra.mxu0 0.0
    %5285 = vmatprep.subr.mxu0 0.0
    %5286 = vmatpush1.msra.mxu0 0.0
    %5287 = vmatprep.subr.mxu0 0.0
    %5288 = vmatpush1.msra.mxu0 0.0
    %5289 = vmatprep.subr.mxu0 0.0
    %5290 = vmatpush1.msra.mxu0 0.0
    %5291 = vmatprep.subr.mxu0 0.0
    %5292 = vmatpush1.msra.mxu0 0.0
    %5293 = vmatprep.subr.mxu0 0.0
    %5294 = vmatpush1.msra.mxu0 0.0
    %5295 = vmatprep.subr.mxu0 0.0
    %5296 = vmatpush1.msra.mxu0 0.0
    %5297 = vmatprep.subr.mxu0 0.0
    %5298 = vmatpush1.msra.mxu0 0.0
    %5299 = vmatprep.subr.mxu0 0.0
    %5300 = vmatpush1.msra.mxu0 0.0
    %5301 = vmatprep.subr.mxu0 0.0
    %5302 = vmatpush1.msra.mxu0 0.0
    %5303 = vmatprep.mubr.f32.mxu0 0.0
    %5304 = vmatmul.mubr.f32.gmra.mrb[0].mxu0 %v5228
    %v5305 = vpop.f32.mrb[0].mxu0
    %v5306 = vadd.f32 %v5225, %v5305
    %v5307 = vpop.f32.mrb[0].mxu0
    %5308 = vmatprep.mubr.f32.mxu0 0.0
    %5309 = vmatmul.mubr.f32.gmra.mrb[0].mxu0 %v5231
    %v5310 = vpop.f32.mrb[0].mxu0
    %v5311 = vadd.f32 %v5225, %v5310
    %v5312 = vpop.f32.mrb[0].mxu0
    %5313 = vmatprep.mubr.f32.mxu0 0.0
    %5314 = vmatmul.mubr.f32.gmra.mrb[0].mxu0 %v5234
    %v5315 = vpop.f32.mrb[0].mxu0
    %v5316 = vadd.f32 %v5225, %v5315
    %v5317 = vpop.f32.mrb[0].mxu0
    %5318 = vmatprep.mubr.f32.mxu0 0.0
    %5319 = vmatmul.mubr.f32.gmra.mrb[0].mxu0 %v5237
    %v5320 = vpop.f32.mrb[0].mxu0
    %v5321 = vadd.f32 %v5225, %v5320
    %v5322 = vpop.f32.mrb[0].mxu0
    %5323 = vdwg.mxu0
    %v5324 = vadd.f32 %v4030, %v5306
    %v5325 = vadd.f32 %v4031, %v5311
    %v5326 = vadd.f32 %v4032, %v5316
    %v5327 = vadd.f32 %v4033, %v5321
    %vm5328 = vcmp.eq.s32.totalorder %v1442, 3
    %v5329 = vsel %vm5328, 1, 0
    %vm5330 = vcmp.eq.s32.totalorder %v5329, 1
    %v5331 = vlaneseq
    %v5332 = vshrl.u32 %v5331, 7
    %v5333 = vsub.s32 %v193, %v5332
    %v5334 = vrot.slane %v4519, %v5333
    %v5335 = vlaneseq
    %v5336 = vshrl.u32 %v5335, 7
    %v5337 = vsub.s32 %v1450, %v5336
    %v5338 = vrot.slane %v4533, %v5337
    %v5339 = vsel %vm1455, %v5338, %v5334
    %v5340 = vlaneseq
    %v5341 = vshrl.u32 %v5340, 7
    %v5342 = vsub.s32 %v1457, %v5341
    %v5343 = vrot.slane %v4547, %v5342
    %v5344 = vsel %vm1462, %v5343, %v5339
    %v5345 = vlaneseq
    %v5346 = vshrl.u32 %v5345, 7
    %v5347 = vsub.s32 %v1464, %v5346
    %v5348 = vrot.slane %v4561, %v5347
    %v5349 = vsel %vm1469, %v5348, %v5344
    %v5350 = vsel %vm1471, %v5349, %v5349
    %v5351 = vsel %vm1473, %v5349, %v5350
    %v5352 = vsel %vm5330, %v5351, 0
    %v5353 = vadd.s32 %v4063, %v5352
    %v5354 = vcvt.s32.f32 %v5329
    %v5356 = vlaneseq
    %v5357 = vshrl.u32 %v5356, 7
    %v5358 = vsub.s32 0, %v5357
    %v5359 = vrot.slane %v5354, %v5358
    %v5360 = vlaneseq
    %v5361 = vshrl.u32 %v5360, 7
    %v5362 = vsub.s32 1, %v5361
    %v5363 = vrot.slane %v5354, %v5362
    %v5364 = vlaneseq
    %v5365 = vshrl.u32 %v5364, 7
    %v5366 = vsub.s32 2, %v5365
    %v5367 = vrot.slane %v5354, %v5366
    %v5368 = vlaneseq
    %v5369 = vshrl.u32 %v5368, 7
    %v5370 = vsub.s32 3, %v5369
    %v5371 = vrot.slane %v5354, %v5370
    %v5376 = vmul.f32 %v4215, %v5359
    %v5377 = vmul.f32 %v4220, %v5359
    %v5378 = vmul.f32 %v4225, %v5359
    %v5379 = vmul.f32 %v4230, %v5359
    %v5380 = vmul.f32 %v4215, %v5363
    %v5381 = vmul.f32 %v4220, %v5363
    %v5382 = vmul.f32 %v4225, %v5363
    %v5383 = vmul.f32 %v4230, %v5363
    %v5384 = vmul.f32 %v4215, %v5367
    %v5385 = vmul.f32 %v4220, %v5367
    %v5386 = vmul.f32 %v4225, %v5367
    %v5387 = vmul.f32 %v4230, %v5367
    %v5388 = vmul.f32 %v4215, %v5371
    %v5389 = vmul.f32 %v4220, %v5371
    %v5390 = vmul.f32 %v4225, %v5371
    %v5391 = vmul.f32 %v4230, %v5371
    %v5392 = vadd.f32 %v4102, %v5376
    %v5393 = vadd.f32 %v4103, %v5377
    %v5394 = vadd.f32 %v4104, %v5378
    %v5395 = vadd.f32 %v4105, %v5379
    %v5396 = vadd.f32 %v4106, %v5380
    %v5397 = vadd.f32 %v4107, %v5381
    %v5398 = vadd.f32 %v4108, %v5382
    %v5399 = vadd.f32 %v4109, %v5383
    %v5400 = vadd.f32 %v4110, %v5384
    %v5401 = vadd.f32 %v4111, %v5385
    %v5402 = vadd.f32 %v4112, %v5386
    %v5403 = vadd.f32 %v4113, %v5387
    %v5404 = vadd.f32 %v4114, %v5388
    %v5405 = vadd.f32 %v4115, %v5389
    %v5406 = vadd.f32 %v4116, %v5390
    %v5407 = vadd.f32 %v4117, %v5391
    %vm5408 = vcmp.eq.s32.totalorder %v193, 3
    %v5409 = vsel %vm5408, 1, 0
    %v5410 = vcvt.s32.f32 %v5409
    %v5411 = vmul.f32 %v5216, %v5410
    %v5412 = vadd.f32 %v4122, %v5411
    %5413 = vst.msk [vmem:[#allocation19] sm:$0xff] %vm207, %v5324
    %5414 = vst.msk [vmem:[#allocation19 + $0x8] sm:$0xff] %vm207, %v5325
    %5415 = vst.msk [vmem:[#allocation19 + $0x10] sm:$0xff] %vm207, %v5326
    %5416 = vst.msk [vmem:[#allocation19 + $0x18] sm:$0xff] %vm207, %v5327
    %vm5417 = vcmask 257024
    %5418 = vst.msk [vmem:[%s14] sm:$0xf] %vm5417, %v5353
    %5419 = vst.msk [vmem:[%s15] sm:$0xff] %vm410, %v5392
    %5420 = vst.msk [vmem:[%s15 + $0x8] sm:$0xff] %vm410, %v5393
    %5421 = vst.msk [vmem:[%s15 + $0x10] sm:$0xff] %vm410, %v5394
    %5422 = vst.msk [vmem:[%s15 + $0x18] sm:$0xff] %vm410, %v5395
    %5423 = vst.msk [vmem:[%s15 + $0x20] sm:$0xff] %vm410, %v5396
    %5424 = vst.msk [vmem:[%s15 + $0x28] sm:$0xff] %vm410, %v5397
    %5425 = vst.msk [vmem:[%s15 + $0x30] sm:$0xff] %vm410, %v5398
    %5426 = vst.msk [vmem:[%s15 + $0x38] sm:$0xff] %vm410, %v5399
    %5427 = vst.msk [vmem:[%s15 + $0x40] sm:$0xff] %vm410, %v5400
    %5428 = vst.msk [vmem:[%s15 + $0x48] sm:$0xff] %vm410, %v5401
    %5429 = vst.msk [vmem:[%s15 + $0x50] sm:$0xff] %vm410, %v5402
    %5430 = vst.msk [vmem:[%s15 + $0x58] sm:$0xff] %vm410, %v5403
    %5431 = vst.msk [vmem:[%s15 + $0x60] sm:$0xff] %vm410, %v5404
    %5432 = vst.msk [vmem:[%s15 + $0x68] sm:$0xff] %vm410, %v5405
    %5433 = vst.msk [vmem:[%s15 + $0x70] sm:$0xff] %vm410, %v5406
    %5434 = vst.msk [vmem:[%s15 + $0x78] sm:$0xff] %vm410, %v5407
    %vm5435 = vcmask 25600
    %5436 = vst.msk [vmem:[%s16] sm:$0x3] %vm5435, %v5412
    // Predicated region
    $region94: #{_lambda_.1} parent=1 // pred_check
      _
    $region95: #{_lambda_.1} parent=1 // pred_check_branch
      %5438 = sbr.rel (0) target = $region97
    $region96: #{_lambda_.1} parent=1 // pred_region
      %s5440 = ssub.s32 512, 512
      %5441 = vsyncadd [#allocation4], %s5440
      %s5442 = sshll.u32 [#allocation19], 4
      %s5443 = int_to_ptr.vmem [resolvable:$true] %s5442
      %5448 = dma.vmem_to_hbm [thread:$0]  %s5443, 512, %s13, [#allocation4], 128, 128, 8
    $region97: #{_lambda_.1} parent=1 // pred_fallthru
      _
    // Predicated region
    $region98: #{_lambda_.1} parent=1 // pred_check
      _
    $region99: #{_lambda_.1} parent=1 // pred_check_branch
      %5450 = sbr.rel (0) target = $region101
    $region100: #{_lambda_.1} parent=1 // pred_region
      _
    $region101: #{_lambda_.1} parent=1 // pred_fallthru
      _
    // Predicated region
    $region102: #{_lambda_.1} parent=1 // pred_check
      _
    $region103: #{_lambda_.1} parent=1 // pred_check_branch
      %5452 = sbr.rel (0) target = $region105
    $region104: #{_lambda_.1} parent=1 // pred_region
      _
    $region105: #{_lambda_.1} parent=1 // pred_fallthru
      _
    // Predicated region
    $region106: #{_lambda_.1} parent=1 // pred_check
      _
    $region107: #{_lambda_.1} parent=1 // pred_check_branch
      %5454 = sbr.rel (0) target = $region109
    $region108: #{_lambda_.1} parent=1 // pred_region
      _
    $region109: #{_lambda_.1} parent=1 // pred_fallthru
      _
    // Predicated region
    $region110: #{_lambda_.1} parent=1 // pred_check
      _
    $region111: #{_lambda_.1} parent=1 // pred_check_branch
      %5456 = sbr.rel (0) target = $region113
    $region112: #{_lambda_.1} parent=1 // pred_region
      %5457 = dma.done [#allocation4], 512
    $region113: #{_lambda_.1} parent=1 // pred_fallthru
      _
    // Predicated region
    $region114: #{_lambda_.1} parent=1 // pred_check
      _
    $region115: #{_lambda_.1} parent=1 // pred_check_branch
      %5459 = sbr.rel (0) target = $region117
    $region116: #{_lambda_.1} parent=1 // pred_region
      _
    $region117: #{_lambda_.1} parent=1 // pred_fallthru
      _
    // Predicated region
    $region118: #{_lambda_.1} parent=1 // pred_check
      _
    $region119: #{_lambda_.1} parent=1 // pred_check_branch
      %5461 = sbr.rel (0) target = $region121
    $region120: #{_lambda_.1} parent=1 // pred_region
      _
    $region121: #{_lambda_.1} parent=1 // pred_fallthru
      _
    // Predicated region
    $region122: #{_lambda_.1} parent=1 // pred_check
      _
    $region123: #{_lambda_.1} parent=1 // pred_check_branch
      %5463 = sbr.rel (0) target = $region125
    $region124: #{_lambda_.1} parent=1 // pred_region
      _
    $region125: #{_lambda_.1} parent=1 // pred_fallthru
      _
    %5464 = vsyncpa [#allocation3], 1
    %5465 = vsyncpa [#allocation6], 1
    %5466 = vsyncpa [#allocation9], 1
    %5467 = vsyncpa [#allocation12], 1
    %5468 = vsyncpa [#allocation15], 1
    %5469 = vsyncpa [#allocation18], 1
    %5470 = vsyncpa [#allocation4], 1

</llo_original>
